<compile_context>
chip_gen: v5e
topology: v5e:2x2
jax: 0.10.0
libtpu: 0.0.40
codegen_flags: <defaults>
</compile_context>

<pallas_src>
import math
import jax
import jax.numpy as jnp
from jax.experimental import pallas as pl
from jax.experimental.pallas import tpu as pltpu

# ----------------------- model configuration (small) -----------------------
EMBED_DIM = 32
NUM_HEADS = 4
HEAD_DIM = EMBED_DIM // NUM_HEADS
FFN_DIM = EMBED_DIM            # AxialTL(embed_dim, embed_dim, ...) -> ffn hidden == embed_dim
NUM_LAYERS = 2
ALPHABET_SIZE = 26 + 1 + 1     # alphabet_size + 1 + 1, as in MSATransf.__init__
PADDING_IDX = 1
MASK_IDX = 2
MAX_POSITIONS = 64
LN_EPS = 1e-5
LM_PAD = 128                   # lane-dense padded width for the logits store

LAYER_PARAM_NAMES = (
    "ln1_g", "ln1_b",
    "row_wqkv", "row_bqkv", "row_wo", "row_bo",
    "ln2_g", "ln2_b",
    "col_wqkv", "col_bqkv", "col_wo", "col_bo",
    "ln3_g", "ln3_b",
    "fc1_w", "fc1_b", "fc2_w", "fc2_b",
)
TOP_PARAM_NAMES = (
    "ln_b_g", "ln_b_b", "ln_a_g", "ln_a_b",
    "lm_dense_w", "lm_dense_b", "lm_ln_g", "lm_ln_b",
    "lm_w", "lm_bias",
)


# --------------------------- in-kernel math helpers ---------------------------
def _layernorm(x, g, b):
    mu = jnp.mean(x, axis=-1, keepdims=True)
    xc = x - mu
    var = jnp.mean(xc * xc, axis=-1, keepdims=True)
    return xc * jax.lax.rsqrt(var + LN_EPS) * g + b


def _linear(x, w, b):
    return jnp.dot(x, w, preferred_element_type=jnp.float32) + b


def _erf(x):
    # Abramowitz & Stegun 7.1.26 rational approximation, |abs err| < 1.5e-7
    # (~f32 rounding).  Uses only exp/mul/add/where so exact-GELU stays fused.
    p = 0.3275911
    a1, a2, a3, a4, a5 = (0.254829592, -0.284496736, 1.421413741,
                          -1.453152027, 1.061405429)
    ax = jnp.abs(x)
    t = 1.0 / (1.0 + p * ax)
    poly = ((((a5 * t + a4) * t + a3) * t + a2) * t + a1) * t
    y = 1.0 - poly * jnp.exp(-(ax * ax))
    return jnp.where(x >= 0.0, y, -y)


def _gelu(x):
    return 0.5 * x * (1.0 + _erf(x * 0.7071067811865476))


def _softmax_last(s):
    s = s - jnp.max(s, axis=-1, keepdims=True)
    p = jnp.exp(s)
    return p / jnp.sum(p, axis=-1, keepdims=True)


# --------------------------- fused forward kernel ---------------------------
def _make_fused_kernel(R, C):
    """Whole MSATransf forward for ONE batch element (grid axis = batch)."""
    E, H, D = EMBED_DIM, NUM_HEADS, HEAD_DIM
    M = R * C
    n_lp = len(LAYER_PARAM_NAMES)
    n_tp = len(TOP_PARAM_NAMES)

    def kernel(x_ref, *refs):
        lp = dict(zip(LAYER_PARAM_NAMES, refs[:n_lp]))
        tp = dict(zip(TOP_PARAM_NAMES, refs[n_lp:n_lp + n_tp]))
        out_ref = refs[n_lp + n_tp]
        o_scr = refs[n_lp + n_tp + 1]       # (R, C, E)  attention output assembly
        qkv_scr = refs[n_lp + n_tp + 2]     # (R, C, 3E) fused QKV, head-sliced via ref loads

        x2 = x_ref[...].astype(jnp.float32)                       # (M, E)
        x2 = _layernorm(x2, tp["ln_b_g"][...], tp["ln_b_b"][...])

        for l in range(NUM_LAYERS):
            # ---------- tied row self-attention (attend over seqlen C) ----------
            h_ln = _layernorm(x2, lp["ln1_g"][l], lp["ln1_b"][l])
            qkv = _linear(h_ln, lp["row_wqkv"][l], lp["row_bqkv"][l])     # (M, 3E)
            qkv_scr[...] = qkv.reshape(R, C, 3 * E)
            scale = D ** -0.5 / math.sqrt(R)        # ESM-style tied-row scaling
            for h in range(H):
                q_h = qkv_scr[:, :, h * D:(h + 1) * D] * scale            # (R,C,D)
                k_h = qkv_scr[:, :, E + h * D:E + (h + 1) * D]
                v_h = qkv_scr[:, :, 2 * E + h * D:2 * E + (h + 1) * D]
                # scores summed over alignments r, keys over columns j
                s = jax.lax.dot_general(q_h[0], k_h[0], (((1,), (1,)), ((), ())),
                                        preferred_element_type=jnp.float32)
                for r in range(1, R):
                    s = s + jax.lax.dot_general(q_h[r], k_h[r],
                                                (((1,), (1,)), ((), ())),
                                                preferred_element_type=jnp.float32)
                p = _softmax_last(s)                                      # (C, C)
                for r in range(R):
                    ctx = jnp.dot(p, v_h[r], preferred_element_type=jnp.float32)
                    o_scr[r:r + 1, :, h * D:(h + 1) * D] = ctx[None]      # (1,C,D)
            o2 = o_scr[...].reshape(M, E)
            x2 = x2 + _linear(o2, lp["row_wo"][l], lp["row_bo"][l])

            # ---------- column self-attention (attend over alignments R) ----------
            h_ln = _layernorm(x2, lp["ln2_g"][l], lp["ln2_b"][l])
            qkv = _linear(h_ln, lp["col_wqkv"][l], lp["col_bqkv"][l])     # (M, 3E)
            qkv_scr[...] = qkv.reshape(R, C, 3 * E)
            for h in range(H):
                q_h = qkv_scr[:, :, h * D:(h + 1) * D] * (D ** -0.5)      # (R,C,D)
                k_h = qkv_scr[:, :, E + h * D:E + (h + 1) * D]
                v_h = qkv_scr[:, :, 2 * E + h * D:2 * E + (h + 1) * D]
                # s4[i, j, c, 0] = sum_d q[i,c,d] * k[j,c,d]   (tiny; VPU path)
                s4 = jnp.sum(q_h[:, None] * k_h[None], axis=-1, keepdims=True)
                s4 = s4 - jnp.max(s4, axis=1, keepdims=True)
                p4 = jnp.exp(s4)
                p4 = p4 / jnp.sum(p4, axis=1, keepdims=True)              # (R,R,C,1)
                ctx = jnp.sum(p4 * v_h[None], axis=1)                     # (R,C,D)
                o_scr[:, :, h * D:(h + 1) * D] = ctx
            o2 = o_scr[...].reshape(M, E)
            x2 = x2 + _linear(o2, lp["col_wo"][l], lp["col_bo"][l])

            # ---------- feed-forward with fused GELU epilogue ----------
            h_ln = _layernorm(x2, lp["ln3_g"][l], lp["ln3_b"][l])
            h1 = _gelu(_linear(h_ln, lp["fc1_w"][l], lp["fc1_b"][l]))
            x2 = x2 + _linear(h1, lp["fc2_w"][l], lp["fc2_b"][l])

        # ---------- final LN + LM head (dense -> gelu -> LN -> tied projection) ----------
        x2 = _layernorm(x2, tp["ln_a_g"][...], tp["ln_a_b"][...])
        hh = _gelu(_linear(x2, tp["lm_dense_w"][...], tp["lm_dense_b"][...]))
        hh = _layernorm(hh, tp["lm_ln_g"][...], tp["lm_ln_b"][...])
        out_ref[...] = (jnp.dot(hh, tp["lm_w"][...],
                                preferred_element_type=jnp.float32)
                        + tp["lm_bias"][...]).astype(out_ref.dtype)       # (M, 128)

    return kernel


def _const_index_map(nd):
    def im(b):
        return (0,) * nd
    return im


def fused_forward(x2d, layer_params, top_params, B, R, C):
    E = EMBED_DIM
    layer_args = [layer_params[k] for k in LAYER_PARAM_NAMES]
    top_args = [top_params[k] for k in TOP_PARAM_NAMES]
    in_specs = [pl.BlockSpec((R * C, E), lambda b: (b, 0))]
    in_specs += [pl.BlockSpec(a.shape, _const_index_map(a.ndim))
                 for a in layer_args + top_args]
    return pl.pallas_call(
        _make_fused_kernel(R, C),
        out_shape=jax.ShapeDtypeStruct((B * R * C, LM_PAD), jnp.float32),
        grid=(B,),
        in_specs=in_specs,
        out_specs=pl.BlockSpec((R * C, LM_PAD), lambda b: (b, 0)),
        scratch_shapes=[pltpu.VMEM((R, C, E), jnp.float32),
                        pltpu.VMEM((R, C, 3 * E), jnp.float32)],
        compiler_params=pltpu.CompilerParams(
            dimension_semantics=("parallel",)),
    )(x2d, *layer_args, *top_args)


# --------------------------------- forward ---------------------------------
@jax.jit
def msa_transf_forward(tokens, params):
    B, R, C = tokens.shape
    E = EMBED_DIM
    # token embedding + learned positional embedding (cumsum of non-pad positions)
    x = params["embed_tokens"][tokens]                                  # (B,R,C,E)
    tf = tokens.reshape(B * R, C)
    nz = (tf != PADDING_IDX).astype(jnp.int32)
    positions = jnp.cumsum(nz, axis=1) * nz + PADDING_IDX
    x = x + params["embed_pos"][positions].reshape(B, R, C, E)
    x2d = x.reshape(B * R * C, E)

    # lane-dense LM projection: tied embedding weights padded to 128 columns
    lm_w = jnp.zeros((E, LM_PAD), jnp.float32).at[:, :ALPHABET_SIZE].set(
        params["embed_tokens"].T)
    lm_bias = jnp.zeros((1, LM_PAD), jnp.float32).at[:, :ALPHABET_SIZE].set(
        params["lm_bias"].reshape(1, -1))

    top = {
        "ln_b_g": params["ln_b_g"], "ln_b_b": params["ln_b_b"],
        "ln_a_g": params["ln_a_g"], "ln_a_b": params["ln_a_b"],
        "lm_dense_w": params["lm_dense_w"], "lm_dense_b": params["lm_dense_b"],
        "lm_ln_g": params["lm_ln_g"], "lm_ln_b": params["lm_ln_b"],
        "lm_w": lm_w, "lm_bias": lm_bias,
    }

    # dropout layers are identity in eval/inference mode.
    # TODO(synk): padding_mask / mask attention biasing not implemented; test tokens
    # contain no pad/mask ids, matching the padding_mask=None / mask=None branch.
    logits_pad = fused_forward(x2d, params["layers"], top, B, R, C)     # (M, 128)
    return logits_pad[:, :ALPHABET_SIZE].reshape(B, R, C, ALPHABET_SIZE)


# ------------------------------ parameter init ------------------------------
def init_params(key):
    keys = iter(jax.random.split(key, 16))

    def nrm(shape, scale=0.02):
        return (scale * jax.random.normal(next(keys), shape)).astype(jnp.float32)

    L, E, F = NUM_LAYERS, EMBED_DIM, FFN_DIM
    ones = lambda s: jnp.ones(s, jnp.float32)
    zeros = lambda s: jnp.zeros(s, jnp.float32)

    embed_tokens = nrm((ALPHABET_SIZE, E)).at[PADDING_IDX].set(0.0)
    embed_pos = nrm((MAX_POSITIONS + PADDING_IDX + 1, E)).at[PADDING_IDX].set(0.0)

    layers = {
        "ln1_g": ones((L, 1, E)), "ln1_b": zeros((L, 1, E)),
        "row_wqkv": nrm((L, E, 3 * E)), "row_bqkv": zeros((L, 1, 3 * E)),
        "row_wo": nrm((L, E, E)), "row_bo": zeros((L, 1, E)),
        "ln2_g": ones((L, 1, E)), "ln2_b": zeros((L, 1, E)),
        "col_wqkv": nrm((L, E, 3 * E)), "col_bqkv": zeros((L, 1, 3 * E)),
        "col_wo": nrm((L, E, E)), "col_bo": zeros((L, 1, E)),
        "ln3_g": ones((L, 1, E)), "ln3_b": zeros((L, 1, E)),
        "fc1_w": nrm((L, E, F)), "fc1_b": zeros((L, 1, F)),
        "fc2_w": nrm((L, F, E)), "fc2_b": zeros((L, 1, E)),
    }

    return {
        "embed_tokens": embed_tokens,
        "embed_pos": embed_pos,
        "ln_b_g": ones((1, E)), "ln_b_b": zeros((1, E)),
        "ln_a_g": ones((1, E)), "ln_a_b": zeros((1, E)),
        "layers": layers,
        "lm_dense_w": nrm((E, E)), "lm_dense_b": zeros((1, E)),
        "lm_ln_g": ones((1, E)), "lm_ln_b": zeros((1, E)),
        "lm_bias": zeros((ALPHABET_SIZE,)),
    }


# ------------------------------------ main ------------------------------------
if __name__ == "__main__":
    key = jax.random.PRNGKey(0)
    pkey, tkey = jax.random.split(key)
    params = init_params(pkey)

    B, R, C = 2, 4, 8  # batch, alignments, seqlen
    # tokens avoid padding_idx (1) and mask_idx (2) -> padding_mask/mask None branch
    tokens = jax.random.randint(tkey, (B, R, C), minval=3, maxval=ALPHABET_SIZE,
                                dtype=jnp.int32)

    logits = msa_transf_forward(tokens, params)
    logits = jax.block_until_ready(logits)

    assert logits.shape == (B, R, C, ALPHABET_SIZE), logits.shape
    assert bool(jnp.all(jnp.isfinite(logits)))
    print("KERNEL_OK")
</pallas_src>

<mosaic_0001>
module attributes {stable_mosaic.version = 11 : i64} {
  func.func @kernel(%arg0: i32, %arg1: memref<32x32xf32, #tpu.memory_space<vmem>>, %arg2: memref<2x1x32xf32, #tpu.memory_space<vmem>>, %arg3: memref<2x1x32xf32, #tpu.memory_space<vmem>>, %arg4: memref<2x32x96xf32, #tpu.memory_space<vmem>>, %arg5: memref<2x1x96xf32, #tpu.memory_space<vmem>>, %arg6: memref<2x32x32xf32, #tpu.memory_space<vmem>>, %arg7: memref<2x1x32xf32, #tpu.memory_space<vmem>>, %arg8: memref<2x1x32xf32, #tpu.memory_space<vmem>>, %arg9: memref<2x1x32xf32, #tpu.memory_space<vmem>>, %arg10: memref<2x32x96xf32, #tpu.memory_space<vmem>>, %arg11: memref<2x1x96xf32, #tpu.memory_space<vmem>>, %arg12: memref<2x32x32xf32, #tpu.memory_space<vmem>>, %arg13: memref<2x1x32xf32, #tpu.memory_space<vmem>>, %arg14: memref<2x1x32xf32, #tpu.memory_space<vmem>>, %arg15: memref<2x1x32xf32, #tpu.memory_space<vmem>>, %arg16: memref<2x32x32xf32, #tpu.memory_space<vmem>>, %arg17: memref<2x1x32xf32, #tpu.memory_space<vmem>>, %arg18: memref<2x32x32xf32, #tpu.memory_space<vmem>>, %arg19: memref<2x1x32xf32, #tpu.memory_space<vmem>>, %arg20: memref<1x32xf32, #tpu.memory_space<vmem>>, %arg21: memref<1x32xf32, #tpu.memory_space<vmem>>, %arg22: memref<1x32xf32, #tpu.memory_space<vmem>>, %arg23: memref<1x32xf32, #tpu.memory_space<vmem>>, %arg24: memref<32x32xf32, #tpu.memory_space<vmem>>, %arg25: memref<1x32xf32, #tpu.memory_space<vmem>>, %arg26: memref<1x32xf32, #tpu.memory_space<vmem>>, %arg27: memref<1x32xf32, #tpu.memory_space<vmem>>, %arg28: memref<32x128xf32, #tpu.memory_space<vmem>>, %arg29: memref<1x128xf32, #tpu.memory_space<vmem>>, %arg30: memref<32x128xf32, #tpu.memory_space<vmem>>, %arg31: memref<4x8x32xf32, #tpu.memory_space<vmem>>, %arg32: memref<4x8x96xf32, #tpu.memory_space<vmem>>) attributes {dimension_semantics = [#tpu.dimension_semantics<parallel>], iteration_bounds = array<i64: 2>, scalar_prefetch = 0 : i64, scratch_operands = 2 : i64, tpu.core_type = #tpu.core_type<tc>, window_params = [{transform_indices = @transform_0, window_bounds = array<i64: 32, 32>}, {pipeline_mode = #tpu.pipeline_mode<synchronous>, transform_indices = @transform_1, window_bounds = array<i64: 2, 1, 32>}, {pipeline_mode = #tpu.pipeline_mode<synchronous>, transform_indices = @transform_2, window_bounds = array<i64: 2, 1, 32>}, {pipeline_mode = #tpu.pipeline_mode<synchronous>, transform_indices = @transform_3, window_bounds = array<i64: 2, 32, 96>}, {pipeline_mode = #tpu.pipeline_mode<synchronous>, transform_indices = @transform_4, window_bounds = array<i64: 2, 1, 96>}, {pipeline_mode = #tpu.pipeline_mode<synchronous>, transform_indices = @transform_5, window_bounds = array<i64: 2, 32, 32>}, {pipeline_mode = #tpu.pipeline_mode<synchronous>, transform_indices = @transform_6, window_bounds = array<i64: 2, 1, 32>}, {pipeline_mode = #tpu.pipeline_mode<synchronous>, transform_indices = @transform_7, window_bounds = array<i64: 2, 1, 32>}, {pipeline_mode = #tpu.pipeline_mode<synchronous>, transform_indices = @transform_8, window_bounds = array<i64: 2, 1, 32>}, {pipeline_mode = #tpu.pipeline_mode<synchronous>, transform_indices = @transform_9, window_bounds = array<i64: 2, 32, 96>}, {pipeline_mode = #tpu.pipeline_mode<synchronous>, transform_indices = @transform_10, window_bounds = array<i64: 2, 1, 96>}, {pipeline_mode = #tpu.pipeline_mode<synchronous>, transform_indices = @transform_11, window_bounds = array<i64: 2, 32, 32>}, {pipeline_mode = #tpu.pipeline_mode<synchronous>, transform_indices = @transform_12, window_bounds = array<i64: 2, 1, 32>}, {pipeline_mode = #tpu.pipeline_mode<synchronous>, transform_indices = @transform_13, window_bounds = array<i64: 2, 1, 32>}, {pipeline_mode = #tpu.pipeline_mode<synchronous>, transform_indices = @transform_14, window_bounds = array<i64: 2, 1, 32>}, {pipeline_mode = #tpu.pipeline_mode<synchronous>, transform_indices = @transform_15, window_bounds = array<i64: 2, 32, 32>}, {pipeline_mode = #tpu.pipeline_mode<synchronous>, transform_indices = @transform_16, window_bounds = array<i64: 2, 1, 32>}, {pipeline_mode = #tpu.pipeline_mode<synchronous>, transform_indices = @transform_17, window_bounds = array<i64: 2, 32, 32>}, {pipeline_mode = #tpu.pipeline_mode<synchronous>, transform_indices = @transform_18, window_bounds = array<i64: 2, 1, 32>}, {pipeline_mode = #tpu.pipeline_mode<synchronous>, transform_indices = @transform_19, window_bounds = array<i64: 1, 32>}, {pipeline_mode = #tpu.pipeline_mode<synchronous>, transform_indices = @transform_20, window_bounds = array<i64: 1, 32>}, {pipeline_mode = #tpu.pipeline_mode<synchronous>, transform_indices = @transform_21, window_bounds = array<i64: 1, 32>}, {pipeline_mode = #tpu.pipeline_mode<synchronous>, transform_indices = @transform_22, window_bounds = array<i64: 1, 32>}, {pipeline_mode = #tpu.pipeline_mode<synchronous>, transform_indices = @transform_23, window_bounds = array<i64: 32, 32>}, {pipeline_mode = #tpu.pipeline_mode<synchronous>, transform_indices = @transform_24, window_bounds = array<i64: 1, 32>}, {pipeline_mode = #tpu.pipeline_mode<synchronous>, transform_indices = @transform_25, window_bounds = array<i64: 1, 32>}, {pipeline_mode = #tpu.pipeline_mode<synchronous>, transform_indices = @transform_26, window_bounds = array<i64: 1, 32>}, {pipeline_mode = #tpu.pipeline_mode<synchronous>, transform_indices = @transform_27, window_bounds = array<i64: 32, 128>}, {pipeline_mode = #tpu.pipeline_mode<synchronous>, transform_indices = @transform_28, window_bounds = array<i64: 1, 128>}, {transform_indices = @transform_29, window_bounds = array<i64: 32, 128>}]} {
    %c0 = arith.constant 0 : index
    %c0_0 = arith.constant 0 : index
    %0 = vector.load %arg1[%c0, %c0_0] : memref<32x32xf32, #tpu.memory_space<vmem>>, vector<32x32xf32>
    %c0_1 = arith.constant 0 : index
    %c0_2 = arith.constant 0 : index
    %1 = vector.load %arg20[%c0_1, %c0_2] : memref<1x32xf32, #tpu.memory_space<vmem>>, vector<1x32xf32>
    %c0_3 = arith.constant 0 : index
    %c0_4 = arith.constant 0 : index
    %2 = vector.load %arg21[%c0_3, %c0_4] : memref<1x32xf32, #tpu.memory_space<vmem>>, vector<1x32xf32>
    %cst = arith.constant dense<0.000000e+00> : vector<32xf32>
    %3 = vector.multi_reduction <add>, %0, %cst [1] : vector<32x32xf32> to vector<32xf32>
    %4 = vector.shape_cast %3 : vector<32xf32> to vector<32x1xf32>
    %cst_5 = arith.constant 3.200000e+01 : f32
    %5 = vector.broadcast %cst_5 : f32 to vector<32x1xf32>
    %6 = arith.divf %4, %5 : vector<32x1xf32>
    %7 = vector.broadcast %6 : vector<32x1xf32> to vector<32x32xf32>
    %8 = arith.subf %0, %7 : vector<32x32xf32>
    %9 = arith.mulf %8, %8 : vector<32x32xf32>
    %cst_6 = arith.constant dense<0.000000e+00> : vector<32xf32>
    %10 = vector.multi_reduction <add>, %9, %cst_6 [1] : vector<32x32xf32> to vector<32xf32>
    %11 = vector.shape_cast %10 : vector<32xf32> to vector<32x1xf32>
    %cst_7 = arith.constant 3.200000e+01 : f32
    %12 = vector.broadcast %cst_7 : f32 to vector<32x1xf32>
    %13 = arith.divf %11, %12 : vector<32x1xf32>
    %cst_8 = arith.constant 9.99999974E-6 : f32
    %14 = vector.broadcast %cst_8 : f32 to vector<32x1xf32>
    %15 = arith.addf %13, %14 : vector<32x1xf32>
    %16 = math.rsqrt %15 : vector<32x1xf32>
    %17 = vector.broadcast %16 : vector<32x1xf32> to vector<32x32xf32>
    %18 = arith.mulf %8, %17 : vector<32x32xf32>
    %19 = vector.broadcast %1 : vector<1x32xf32> to vector<32x32xf32>
    %20 = arith.mulf %18, %19 : vector<32x32xf32>
    %21 = vector.broadcast %2 : vector<1x32xf32> to vector<32x32xf32>
    %22 = arith.addf %20, %21 : vector<32x32xf32>
    %c0_9 = arith.constant 0 : index
    %c0_10 = arith.constant 0 : index
    %c0_11 = arith.constant 0 : index
    %23 = vector.load %arg2[%c0_9, %c0_10, %c0_11] : memref<2x1x32xf32, #tpu.memory_space<vmem>>, vector<1x1x32xf32>
    %24 = vector.shape_cast %23 : vector<1x1x32xf32> to vector<1x32xf32>
    %c0_12 = arith.constant 0 : index
    %c0_13 = arith.constant 0 : index
    %c0_14 = arith.constant 0 : index
    %25 = vector.load %arg3[%c0_12, %c0_13, %c0_14] : memref<2x1x32xf32, #tpu.memory_space<vmem>>, vector<1x1x32xf32>
    %26 = vector.shape_cast %25 : vector<1x1x32xf32> to vector<1x32xf32>
    %cst_15 = arith.constant dense<0.000000e+00> : vector<32xf32>
    %27 = vector.multi_reduction <add>, %22, %cst_15 [1] : vector<32x32xf32> to vector<32xf32>
    %28 = vector.shape_cast %27 : vector<32xf32> to vector<32x1xf32>
    %cst_16 = arith.constant 3.200000e+01 : f32
    %29 = vector.broadcast %cst_16 : f32 to vector<32x1xf32>
    %30 = arith.divf %28, %29 : vector<32x1xf32>
    %31 = vector.broadcast %30 : vector<32x1xf32> to vector<32x32xf32>
    %32 = arith.subf %22, %31 : vector<32x32xf32>
    %33 = arith.mulf %32, %32 : vector<32x32xf32>
    %cst_17 = arith.constant dense<0.000000e+00> : vector<32xf32>
    %34 = vector.multi_reduction <add>, %33, %cst_17 [1] : vector<32x32xf32> to vector<32xf32>
    %35 = vector.shape_cast %34 : vector<32xf32> to vector<32x1xf32>
    %cst_18 = arith.constant 3.200000e+01 : f32
    %36 = vector.broadcast %cst_18 : f32 to vector<32x1xf32>
    %37 = arith.divf %35, %36 : vector<32x1xf32>
    %cst_19 = arith.constant 9.99999974E-6 : f32
    %38 = vector.broadcast %cst_19 : f32 to vector<32x1xf32>
    %39 = arith.addf %37, %38 : vector<32x1xf32>
    %40 = math.rsqrt %39 : vector<32x1xf32>
    %41 = vector.broadcast %40 : vector<32x1xf32> to vector<32x32xf32>
    %42 = arith.mulf %32, %41 : vector<32x32xf32>
    %43 = vector.broadcast %24 : vector<1x32xf32> to vector<32x32xf32>
    %44 = arith.mulf %42, %43 : vector<32x32xf32>
    %45 = vector.broadcast %26 : vector<1x32xf32> to vector<32x32xf32>
    %46 = arith.addf %44, %45 : vector<32x32xf32>
    %c0_20 = arith.constant 0 : index
    %c0_21 = arith.constant 0 : index
    %c0_22 = arith.constant 0 : index
    %47 = vector.load %arg4[%c0_20, %c0_21, %c0_22] : memref<2x32x96xf32, #tpu.memory_space<vmem>>, vector<1x32x96xf32>
    %48 = vector.shape_cast %47 : vector<1x32x96xf32> to vector<32x96xf32>
    %c0_23 = arith.constant 0 : index
    %c0_24 = arith.constant 0 : index
    %c0_25 = arith.constant 0 : index
    %49 = vector.load %arg5[%c0_23, %c0_24, %c0_25] : memref<2x1x96xf32, #tpu.memory_space<vmem>>, vector<1x1x96xf32>
    %50 = vector.shape_cast %49 : vector<1x1x96xf32> to vector<1x96xf32>
    %cst_26 = arith.constant dense<0.000000e+00> : vector<32x96xf32>
    %51 = tpu.matmul %46, %48, %cst_26 {dimension_numbers = #tpu.dot_dimension_numbers<[1], [0], [0], [1], [0, 0, 1, 1], [], []>} : vector<32x32xf32>, vector<32x96xf32>, vector<32x96xf32> -> vector<32x96xf32>
    %52 = vector.broadcast %50 : vector<1x96xf32> to vector<32x96xf32>
    %53 = arith.addf %51, %52 : vector<32x96xf32>
    %54 = vector.shape_cast %53 : vector<32x96xf32> to vector<4x8x96xf32>
    %c0_27 = arith.constant 0 : index
    %c0_28 = arith.constant 0 : index
    %c0_29 = arith.constant 0 : index
    %55 = vector.load %arg32[%c0_27, %c0_28, %c0_29] : memref<4x8x96xf32, #tpu.memory_space<vmem>>, vector<4x8x96xf32>
    tpu.vector_store %arg32[%c0_27, %c0_28, %c0_29], %54 {strides = array<i32>} : memref<4x8x96xf32, #tpu.memory_space<vmem>>, vector<4x8x96xf32>,
    %c0_30 = arith.constant 0 : index
    %c0_31 = arith.constant 0 : index
    %c0_32 = arith.constant 0 : index
    %56 = vector.load %arg32[%c0_30, %c0_31, %c0_32] : memref<4x8x96xf32, #tpu.memory_space<vmem>>, vector<4x8x8xf32>
    %cst_33 = arith.constant 0.176776692 : f32
    %57 = vector.broadcast %cst_33 : f32 to vector<4x8x8xf32>
    %58 = arith.mulf %56, %57 : vector<4x8x8xf32>
    %c0_34 = arith.constant 0 : index
    %c0_35 = arith.constant 0 : index
    %c32 = arith.constant 32 : index
    %59 = vector.load %arg32[%c0_34, %c0_35, %c32] : memref<4x8x96xf32, #tpu.memory_space<vmem>>, vector<4x8x8xf32>
    %c0_36 = arith.constant 0 : index
    %c0_37 = arith.constant 0 : index
    %c64 = arith.constant 64 : index
    %60 = vector.load %arg32[%c0_36, %c0_37, %c64] : memref<4x8x96xf32, #tpu.memory_space<vmem>>, vector<4x8x8xf32>
    %61 = vector.extract_strided_slice %58 {offsets = [0, 0, 0], sizes = [1, 8, 8], strides = [1, 1, 1]} : vector<4x8x8xf32> to vector<1x8x8xf32>
    %62 = vector.shape_cast %61 : vector<1x8x8xf32> to vector<8x8xf32>
    %63 = vector.extract_strided_slice %59 {offsets = [0, 0, 0], sizes = [1, 8, 8], strides = [1, 1, 1]} : vector<4x8x8xf32> to vector<1x8x8xf32>
    %64 = vector.shape_cast %63 : vector<1x8x8xf32> to vector<8x8xf32>
    %cst_38 = arith.constant dense<0.000000e+00> : vector<8x8xf32>
    %65 = tpu.matmul %62, %64, %cst_38 {dimension_numbers = #tpu.dot_dimension_numbers<[1], [1], [0], [0], [0, 0, 1, 0], [], []>} : vector<8x8xf32>, vector<8x8xf32>, vector<8x8xf32> -> vector<8x8xf32>
    %66 = vector.extract_strided_slice %58 {offsets = [1, 0, 0], sizes = [1, 8, 8], strides = [1, 1, 1]} : vector<4x8x8xf32> to vector<1x8x8xf32>
    %67 = vector.shape_cast %66 : vector<1x8x8xf32> to vector<8x8xf32>
    %68 = vector.extract_strided_slice %59 {offsets = [1, 0, 0], sizes = [1, 8, 8], strides = [1, 1, 1]} : vector<4x8x8xf32> to vector<1x8x8xf32>
    %69 = vector.shape_cast %68 : vector<1x8x8xf32> to vector<8x8xf32>
    %cst_39 = arith.constant dense<0.000000e+00> : vector<8x8xf32>
    %70 = tpu.matmul %67, %69, %cst_39 {dimension_numbers = #tpu.dot_dimension_numbers<[1], [1], [0], [0], [0, 0, 1, 0], [], []>} : vector<8x8xf32>, vector<8x8xf32>, vector<8x8xf32> -> vector<8x8xf32>
    %71 = arith.addf %65, %70 : vector<8x8xf32>
    %72 = vector.extract_strided_slice %58 {offsets = [2, 0, 0], sizes = [1, 8, 8], strides = [1, 1, 1]} : vector<4x8x8xf32> to vector<1x8x8xf32>
    %73 = vector.shape_cast %72 : vector<1x8x8xf32> to vector<8x8xf32>
    %74 = vector.extract_strided_slice %59 {offsets = [2, 0, 0], sizes = [1, 8, 8], strides = [1, 1, 1]} : vector<4x8x8xf32> to vector<1x8x8xf32>
    %75 = vector.shape_cast %74 : vector<1x8x8xf32> to vector<8x8xf32>
    %cst_40 = arith.constant dense<0.000000e+00> : vector<8x8xf32>
    %76 = tpu.matmul %73, %75, %cst_40 {dimension_numbers = #tpu.dot_dimension_numbers<[1], [1], [0], [0], [0, 0, 1, 0], [], []>} : vector<8x8xf32>, vector<8x8xf32>, vector<8x8xf32> -> vector<8x8xf32>
    %77 = arith.addf %71, %76 : vector<8x8xf32>
    %78 = vector.extract_strided_slice %58 {offsets = [3, 0, 0], sizes = [1, 8, 8], strides = [1, 1, 1]} : vector<4x8x8xf32> to vector<1x8x8xf32>
    %79 = vector.shape_cast %78 : vector<1x8x8xf32> to vector<8x8xf32>
    %80 = vector.extract_strided_slice %59 {offsets = [3, 0, 0], sizes = [1, 8, 8], strides = [1, 1, 1]} : vector<4x8x8xf32> to vector<1x8x8xf32>
    %81 = vector.shape_cast %80 : vector<1x8x8xf32> to vector<8x8xf32>
    %cst_41 = arith.constant dense<0.000000e+00> : vector<8x8xf32>
    %82 = tpu.matmul %79, %81, %cst_41 {dimension_numbers = #tpu.dot_dimension_numbers<[1], [1], [0], [0], [0, 0, 1, 0], [], []>} : vector<8x8xf32>, vector<8x8xf32>, vector<8x8xf32> -> vector<8x8xf32>
    %83 = arith.addf %77, %82 : vector<8x8xf32>
    %cst_42 = arith.constant dense<0xFF800000> : vector<8xf32>
    %84 = vector.multi_reduction <maximumf>, %83, %cst_42 [1] : vector<8x8xf32> to vector<8xf32>
    %85 = vector.shape_cast %84 : vector<8xf32> to vector<8x1xf32>
    %86 = vector.broadcast %85 : vector<8x1xf32> to vector<8x8xf32>
    %87 = arith.subf %83, %86 : vector<8x8xf32>
    %88 = math.exp %87 : vector<8x8xf32>
    %cst_43 = arith.constant dense<0.000000e+00> : vector<8xf32>
    %89 = vector.multi_reduction <add>, %88, %cst_43 [1] : vector<8x8xf32> to vector<8xf32>
    %90 = vector.shape_cast %89 : vector<8xf32> to vector<8x1xf32>
    %91 = vector.broadcast %90 : vector<8x1xf32> to vector<8x8xf32>
    %92 = arith.divf %88, %91 : vector<8x8xf32>
    %93 = vector.extract_strided_slice %60 {offsets = [0, 0, 0], sizes = [1, 8, 8], strides = [1, 1, 1]} : vector<4x8x8xf32> to vector<1x8x8xf32>
    %94 = vector.shape_cast %93 : vector<1x8x8xf32> to vector<8x8xf32>
    %cst_44 = arith.constant dense<0.000000e+00> : vector<8x8xf32>
    %95 = tpu.matmul %92, %94, %cst_44 {dimension_numbers = #tpu.dot_dimension_numbers<[1], [0], [0], [1], [0, 0, 1, 1], [], []>} : vector<8x8xf32>, vector<8x8xf32>, vector<8x8xf32> -> vector<8x8xf32>
    %96 = vector.shape_cast %95 : vector<8x8xf32> to vector<1x8x8xf32>
    %c0_45 = arith.constant 0 : index
    %c0_46 = arith.constant 0 : index
    %c0_47 = arith.constant 0 : index
    %97 = vector.load %arg31[%c0_45, %c0_46, %c0_47] : memref<4x8x32xf32, #tpu.memory_space<vmem>>, vector<1x8x8xf32>
    tpu.vector_store %arg31[%c0_45, %c0_46, %c0_47], %96 {strides = array<i32>} : memref<4x8x32xf32, #tpu.memory_space<vmem>>, vector<1x8x8xf32>,
    %98 = vector.extract_strided_slice %60 {offsets = [1, 0, 0], sizes = [1, 8, 8], strides = [1, 1, 1]} : vector<4x8x8xf32> to vector<1x8x8xf32>
    %99 = vector.shape_cast %98 : vector<1x8x8xf32> to vector<8x8xf32>
    %cst_48 = arith.constant dense<0.000000e+00> : vector<8x8xf32>
    %100 = tpu.matmul %92, %99, %cst_48 {dimension_numbers = #tpu.dot_dimension_numbers<[1], [0], [0], [1], [0, 0, 1, 1], [], []>} : vector<8x8xf32>, vector<8x8xf32>, vector<8x8xf32> -> vector<8x8xf32>
    %101 = vector.shape_cast %100 : vector<8x8xf32> to vector<1x8x8xf32>
    %c1 = arith.constant 1 : index
    %c0_49 = arith.constant 0 : index
    %c0_50 = arith.constant 0 : index
    %102 = vector.load %arg31[%c1, %c0_49, %c0_50] : memref<4x8x32xf32, #tpu.memory_space<vmem>>, vector<1x8x8xf32>
    tpu.vector_store %arg31[%c1, %c0_49, %c0_50], %101 {strides = array<i32>} : memref<4x8x32xf32, #tpu.memory_space<vmem>>, vector<1x8x8xf32>,
    %103 = vector.extract_strided_slice %60 {offsets = [2, 0, 0], sizes = [1, 8, 8], strides = [1, 1, 1]} : vector<4x8x8xf32> to vector<1x8x8xf32>
    %104 = vector.shape_cast %103 : vector<1x8x8xf32> to vector<8x8xf32>
    %cst_51 = arith.constant dense<0.000000e+00> : vector<8x8xf32>
    %105 = tpu.matmul %92, %104, %cst_51 {dimension_numbers = #tpu.dot_dimension_numbers<[1], [0], [0], [1], [0, 0, 1, 1], [], []>} : vector<8x8xf32>, vector<8x8xf32>, vector<8x8xf32> -> vector<8x8xf32>
    %106 = vector.shape_cast %105 : vector<8x8xf32> to vector<1x8x8xf32>
    %c2 = arith.constant 2 : index
    %c0_52 = arith.constant 0 : index
    %c0_53 = arith.constant 0 : index
    %107 = vector.load %arg31[%c2, %c0_52, %c0_53] : memref<4x8x32xf32, #tpu.memory_space<vmem>>, vector<1x8x8xf32>
    tpu.vector_store %arg31[%c2, %c0_52, %c0_53], %106 {strides = array<i32>} : memref<4x8x32xf32, #tpu.memory_space<vmem>>, vector<1x8x8xf32>,
    %108 = vector.extract_strided_slice %60 {offsets = [3, 0, 0], sizes = [1, 8, 8], strides = [1, 1, 1]} : vector<4x8x8xf32> to vector<1x8x8xf32>
    %109 = vector.shape_cast %108 : vector<1x8x8xf32> to vector<8x8xf32>
    %cst_54 = arith.constant dense<0.000000e+00> : vector<8x8xf32>
    %110 = tpu.matmul %92, %109, %cst_54 {dimension_numbers = #tpu.dot_dimension_numbers<[1], [0], [0], [1], [0, 0, 1, 1], [], []>} : vector<8x8xf32>, vector<8x8xf32>, vector<8x8xf32> -> vector<8x8xf32>
    %111 = vector.shape_cast %110 : vector<8x8xf32> to vector<1x8x8xf32>
    %c3 = arith.constant 3 : index
    %c0_55 = arith.constant 0 : index
    %c0_56 = arith.constant 0 : index
    %112 = vector.load %arg31[%c3, %c0_55, %c0_56] : memref<4x8x32xf32, #tpu.memory_space<vmem>>, vector<1x8x8xf32>
    tpu.vector_store %arg31[%c3, %c0_55, %c0_56], %111 {strides = array<i32>} : memref<4x8x32xf32, #tpu.memory_space<vmem>>, vector<1x8x8xf32>,
    %c0_57 = arith.constant 0 : index
    %c0_58 = arith.constant 0 : index
    %c8 = arith.constant 8 : index
    %113 = vector.load %arg32[%c0_57, %c0_58, %c8] : memref<4x8x96xf32, #tpu.memory_space<vmem>>, vector<4x8x8xf32>
    %cst_59 = arith.constant 0.176776692 : f32
    %114 = vector.broadcast %cst_59 : f32 to vector<4x8x8xf32>
    %115 = arith.mulf %113, %114 : vector<4x8x8xf32>
    %c0_60 = arith.constant 0 : index
    %c0_61 = arith.constant 0 : index
    %c40 = arith.constant 40 : index
    %116 = vector.load %arg32[%c0_60, %c0_61, %c40] : memref<4x8x96xf32, #tpu.memory_space<vmem>>, vector<4x8x8xf32>
    %c0_62 = arith.constant 0 : index
    %c0_63 = arith.constant 0 : index
    %c72 = arith.constant 72 : index
    %117 = vector.load %arg32[%c0_62, %c0_63, %c72] : memref<4x8x96xf32, #tpu.memory_space<vmem>>, vector<4x8x8xf32>
    %118 = vector.extract_strided_slice %115 {offsets = [0, 0, 0], sizes = [1, 8, 8], strides = [1, 1, 1]} : vector<4x8x8xf32> to vector<1x8x8xf32>
    %119 = vector.shape_cast %118 : vector<1x8x8xf32> to vector<8x8xf32>
    %120 = vector.extract_strided_slice %116 {offsets = [0, 0, 0], sizes = [1, 8, 8], strides = [1, 1, 1]} : vector<4x8x8xf32> to vector<1x8x8xf32>
    %121 = vector.shape_cast %120 : vector<1x8x8xf32> to vector<8x8xf32>
    %cst_64 = arith.constant dense<0.000000e+00> : vector<8x8xf32>
    %122 = tpu.matmul %119, %121, %cst_64 {dimension_numbers = #tpu.dot_dimension_numbers<[1], [1], [0], [0], [0, 0, 1, 0], [], []>} : vector<8x8xf32>, vector<8x8xf32>, vector<8x8xf32> -> vector<8x8xf32>
    %123 = vector.extract_strided_slice %115 {offsets = [1, 0, 0], sizes = [1, 8, 8], strides = [1, 1, 1]} : vector<4x8x8xf32> to vector<1x8x8xf32>
    %124 = vector.shape_cast %123 : vector<1x8x8xf32> to vector<8x8xf32>
    %125 = vector.extract_strided_slice %116 {offsets = [1, 0, 0], sizes = [1, 8, 8], strides = [1, 1, 1]} : vector<4x8x8xf32> to vector<1x8x8xf32>
    %126 = vector.shape_cast %125 : vector<1x8x8xf32> to vector<8x8xf32>
    %cst_65 = arith.constant dense<0.000000e+00> : vector<8x8xf32>
    %127 = tpu.matmul %124, %126, %cst_65 {dimension_numbers = #tpu.dot_dimension_numbers<[1], [1], [0], [0], [0, 0, 1, 0], [], []>} : vector<8x8xf32>, vector<8x8xf32>, vector<8x8xf32> -> vector<8x8xf32>
    %128 = arith.addf %122, %127 : vector<8x8xf32>
    %129 = vector.extract_strided_slice %115 {offsets = [2, 0, 0], sizes = [1, 8, 8], strides = [1, 1, 1]} : vector<4x8x8xf32> to vector<1x8x8xf32>
    %130 = vector.shape_cast %129 : vector<1x8x8xf32> to vector<8x8xf32>
    %131 = vector.extract_strided_slice %116 {offsets = [2, 0, 0], sizes = [1, 8, 8], strides = [1, 1, 1]} : vector<4x8x8xf32> to vector<1x8x8xf32>
    %132 = vector.shape_cast %131 : vector<1x8x8xf32> to vector<8x8xf32>
    %cst_66 = arith.constant dense<0.000000e+00> : vector<8x8xf32>
    %133 = tpu.matmul %130, %132, %cst_66 {dimension_numbers = #tpu.dot_dimension_numbers<[1], [1], [0], [0], [0, 0, 1, 0], [], []>} : vector<8x8xf32>, vector<8x8xf32>, vector<8x8xf32> -> vector<8x8xf32>
    %134 = arith.addf %128, %133 : vector<8x8xf32>
    %135 = vector.extract_strided_slice %115 {offsets = [3, 0, 0], sizes = [1, 8, 8], strides = [1, 1, 1]} : vector<4x8x8xf32> to vector<1x8x8xf32>
    %136 = vector.shape_cast %135 : vector<1x8x8xf32> to vector<8x8xf32>
    %137 = vector.extract_strided_slice %116 {offsets = [3, 0, 0], sizes = [1, 8, 8], strides = [1, 1, 1]} : vector<4x8x8xf32> to vector<1x8x8xf32>
    %138 = vector.shape_cast %137 : vector<1x8x8xf32> to vector<8x8xf32>
    %cst_67 = arith.constant dense<0.000000e+00> : vector<8x8xf32>
    %139 = tpu.matmul %136, %138, %cst_67 {dimension_numbers = #tpu.dot_dimension_numbers<[1], [1], [0], [0], [0, 0, 1, 0], [], []>} : vector<8x8xf32>, vector<8x8xf32>, vector<8x8xf32> -> vector<8x8xf32>
    %140 = arith.addf %134, %139 : vector<8x8xf32>
    %cst_68 = arith.constant dense<0xFF800000> : vector<8xf32>
    %141 = vector.multi_reduction <maximumf>, %140, %cst_68 [1] : vector<8x8xf32> to vector<8xf32>
    %142 = vector.shape_cast %141 : vector<8xf32> to vector<8x1xf32>
    %143 = vector.broadcast %142 : vector<8x1xf32> to vector<8x8xf32>
    %144 = arith.subf %140, %143 : vector<8x8xf32>
    %145 = math.exp %144 : vector<8x8xf32>
    %cst_69 = arith.constant dense<0.000000e+00> : vector<8xf32>
    %146 = vector.multi_reduction <add>, %145, %cst_69 [1] : vector<8x8xf32> to vector<8xf32>
    %147 = vector.shape_cast %146 : vector<8xf32> to vector<8x1xf32>
    %148 = vector.broadcast %147 : vector<8x1xf32> to vector<8x8xf32>
    %149 = arith.divf %145, %148 : vector<8x8xf32>
    %150 = vector.extract_strided_slice %117 {offsets = [0, 0, 0], sizes = [1, 8, 8], strides = [1, 1, 1]} : vector<4x8x8xf32> to vector<1x8x8xf32>
    %151 = vector.shape_cast %150 : vector<1x8x8xf32> to vector<8x8xf32>
    %cst_70 = arith.constant dense<0.000000e+00> : vector<8x8xf32>
    %152 = tpu.matmul %149, %151, %cst_70 {dimension_numbers = #tpu.dot_dimension_numbers<[1], [0], [0], [1], [0, 0, 1, 1], [], []>} : vector<8x8xf32>, vector<8x8xf32>, vector<8x8xf32> -> vector<8x8xf32>
    %153 = vector.shape_cast %152 : vector<8x8xf32> to vector<1x8x8xf32>
    %c0_71 = arith.constant 0 : index
    %c0_72 = arith.constant 0 : index
    %c8_73 = arith.constant 8 : index
    %154 = vector.load %arg31[%c0_71, %c0_72, %c8_73] : memref<4x8x32xf32, #tpu.memory_space<vmem>>, vector<1x8x8xf32>
    tpu.vector_store %arg31[%c0_71, %c0_72, %c8_73], %153 {strides = array<i32>} : memref<4x8x32xf32, #tpu.memory_space<vmem>>, vector<1x8x8xf32>,
    %155 = vector.extract_strided_slice %117 {offsets = [1, 0, 0], sizes = [1, 8, 8], strides = [1, 1, 1]} : vector<4x8x8xf32> to vector<1x8x8xf32>
    %156 = vector.shape_cast %155 : vector<1x8x8xf32> to vector<8x8xf32>
    %cst_74 = arith.constant dense<0.000000e+00> : vector<8x8xf32>
    %157 = tpu.matmul %149, %156, %cst_74 {dimension_numbers = #tpu.dot_dimension_numbers<[1], [0], [0], [1], [0, 0, 1, 1], [], []>} : vector<8x8xf32>, vector<8x8xf32>, vector<8x8xf32> -> vector<8x8xf32>
    %158 = vector.shape_cast %157 : vector<8x8xf32> to vector<1x8x8xf32>
    %c1_75 = arith.constant 1 : index
    %c0_76 = arith.constant 0 : index
    %c8_77 = arith.constant 8 : index
    %159 = vector.load %arg31[%c1_75, %c0_76, %c8_77] : memref<4x8x32xf32, #tpu.memory_space<vmem>>, vector<1x8x8xf32>
    tpu.vector_store %arg31[%c1_75, %c0_76, %c8_77], %158 {strides = array<i32>} : memref<4x8x32xf32, #tpu.memory_space<vmem>>, vector<1x8x8xf32>,
    %160 = vector.extract_strided_slice %117 {offsets = [2, 0, 0], sizes = [1, 8, 8], strides = [1, 1, 1]} : vector<4x8x8xf32> to vector<1x8x8xf32>
    %161 = vector.shape_cast %160 : vector<1x8x8xf32> to vector<8x8xf32>
    %cst_78 = arith.constant dense<0.000000e+00> : vector<8x8xf32>
    %162 = tpu.matmul %149, %161, %cst_78 {dimension_numbers = #tpu.dot_dimension_numbers<[1], [0], [0], [1], [0, 0, 1, 1], [], []>} : vector<8x8xf32>, vector<8x8xf32>, vector<8x8xf32> -> vector<8x8xf32>
    %163 = vector.shape_cast %162 : vector<8x8xf32> to vector<1x8x8xf32>
    %c2_79 = arith.constant 2 : index
    %c0_80 = arith.constant 0 : index
    %c8_81 = arith.constant 8 : index
    %164 = vector.load %arg31[%c2_79, %c0_80, %c8_81] : memref<4x8x32xf32, #tpu.memory_space<vmem>>, vector<1x8x8xf32>
    tpu.vector_store %arg31[%c2_79, %c0_80, %c8_81], %163 {strides = array<i32>} : memref<4x8x32xf32, #tpu.memory_space<vmem>>, vector<1x8x8xf32>,
    %165 = vector.extract_strided_slice %117 {offsets = [3, 0, 0], sizes = [1, 8, 8], strides = [1, 1, 1]} : vector<4x8x8xf32> to vector<1x8x8xf32>
    %166 = vector.shape_cast %165 : vector<1x8x8xf32> to vector<8x8xf32>
    %cst_82 = arith.constant dense<0.000000e+00> : vector<8x8xf32>
    %167 = tpu.matmul %149, %166, %cst_82 {dimension_numbers = #tpu.dot_dimension_numbers<[1], [0], [0], [1], [0, 0, 1, 1], [], []>} : vector<8x8xf32>, vector<8x8xf32>, vector<8x8xf32> -> vector<8x8xf32>
    %168 = vector.shape_cast %167 : vector<8x8xf32> to vector<1x8x8xf32>
    %c3_83 = arith.constant 3 : index
    %c0_84 = arith.constant 0 : index
    %c8_85 = arith.constant 8 : index
    %169 = vector.load %arg31[%c3_83, %c0_84, %c8_85] : memref<4x8x32xf32, #tpu.memory_space<vmem>>, vector<1x8x8xf32>
    tpu.vector_store %arg31[%c3_83, %c0_84, %c8_85], %168 {strides = array<i32>} : memref<4x8x32xf32, #tpu.memory_space<vmem>>, vector<1x8x8xf32>,
    %c0_86 = arith.constant 0 : index
    %c0_87 = arith.constant 0 : index
    %c16 = arith.constant 16 : index
    %170 = vector.load %arg32[%c0_86, %c0_87, %c16] : memref<4x8x96xf32, #tpu.memory_space<vmem>>, vector<4x8x8xf32>
    %cst_88 = arith.constant 0.176776692 : f32
    %171 = vector.broadcast %cst_88 : f32 to vector<4x8x8xf32>
    %172 = arith.mulf %170, %171 : vector<4x8x8xf32>
    %c0_89 = arith.constant 0 : index
    %c0_90 = arith.constant 0 : index
    %c48 = arith.constant 48 : index
    %173 = vector.load %arg32[%c0_89, %c0_90, %c48] : memref<4x8x96xf32, #tpu.memory_space<vmem>>, vector<4x8x8xf32>
    %c0_91 = arith.constant 0 : index
    %c0_92 = arith.constant 0 : index
    %c80 = arith.constant 80 : index
    %174 = vector.load %arg32[%c0_91, %c0_92, %c80] : memref<4x8x96xf32, #tpu.memory_space<vmem>>, vector<4x8x8xf32>
    %175 = vector.extract_strided_slice %172 {offsets = [0, 0, 0], sizes = [1, 8, 8], strides = [1, 1, 1]} : vector<4x8x8xf32> to vector<1x8x8xf32>
    %176 = vector.shape_cast %175 : vector<1x8x8xf32> to vector<8x8xf32>
    %177 = vector.extract_strided_slice %173 {offsets = [0, 0, 0], sizes = [1, 8, 8], strides = [1, 1, 1]} : vector<4x8x8xf32> to vector<1x8x8xf32>
    %178 = vector.shape_cast %177 : vector<1x8x8xf32> to vector<8x8xf32>
    %cst_93 = arith.constant dense<0.000000e+00> : vector<8x8xf32>
    %179 = tpu.matmul %176, %178, %cst_93 {dimension_numbers = #tpu.dot_dimension_numbers<[1], [1], [0], [0], [0, 0, 1, 0], [], []>} : vector<8x8xf32>, vector<8x8xf32>, vector<8x8xf32> -> vector<8x8xf32>
    %180 = vector.extract_strided_slice %172 {offsets = [1, 0, 0], sizes = [1, 8, 8], strides = [1, 1, 1]} : vector<4x8x8xf32> to vector<1x8x8xf32>
    %181 = vector.shape_cast %180 : vector<1x8x8xf32> to vector<8x8xf32>
    %182 = vector.extract_strided_slice %173 {offsets = [1, 0, 0], sizes = [1, 8, 8], strides = [1, 1, 1]} : vector<4x8x8xf32> to vector<1x8x8xf32>
    %183 = vector.shape_cast %182 : vector<1x8x8xf32> to vector<8x8xf32>
    %cst_94 = arith.constant dense<0.000000e+00> : vector<8x8xf32>
    %184 = tpu.matmul %181, %183, %cst_94 {dimension_numbers = #tpu.dot_dimension_numbers<[1], [1], [0], [0], [0, 0, 1, 0], [], []>} : vector<8x8xf32>, vector<8x8xf32>, vector<8x8xf32> -> vector<8x8xf32>
    %185 = arith.addf %179, %184 : vector<8x8xf32>
    %186 = vector.extract_strided_slice %172 {offsets = [2, 0, 0], sizes = [1, 8, 8], strides = [1, 1, 1]} : vector<4x8x8xf32> to vector<1x8x8xf32>
    %187 = vector.shape_cast %186 : vector<1x8x8xf32> to vector<8x8xf32>
    %188 = vector.extract_strided_slice %173 {offsets = [2, 0, 0], sizes = [1, 8, 8], strides = [1, 1, 1]} : vector<4x8x8xf32> to vector<1x8x8xf32>
    %189 = vector.shape_cast %188 : vector<1x8x8xf32> to vector<8x8xf32>
    %cst_95 = arith.constant dense<0.000000e+00> : vector<8x8xf32>
    %190 = tpu.matmul %187, %189, %cst_95 {dimension_numbers = #tpu.dot_dimension_numbers<[1], [1], [0], [0], [0, 0, 1, 0], [], []>} : vector<8x8xf32>, vector<8x8xf32>, vector<8x8xf32> -> vector<8x8xf32>
    %191 = arith.addf %185, %190 : vector<8x8xf32>
    %192 = vector.extract_strided_slice %172 {offsets = [3, 0, 0], sizes = [1, 8, 8], strides = [1, 1, 1]} : vector<4x8x8xf32> to vector<1x8x8xf32>
    %193 = vector.shape_cast %192 : vector<1x8x8xf32> to vector<8x8xf32>
    %194 = vector.extract_strided_slice %173 {offsets = [3, 0, 0], sizes = [1, 8, 8], strides = [1, 1, 1]} : vector<4x8x8xf32> to vector<1x8x8xf32>
    %195 = vector.shape_cast %194 : vector<1x8x8xf32> to vector<8x8xf32>
    %cst_96 = arith.constant dense<0.000000e+00> : vector<8x8xf32>
    %196 = tpu.matmul %193, %195, %cst_96 {dimension_numbers = #tpu.dot_dimension_numbers<[1], [1], [0], [0], [0, 0, 1, 0], [], []>} : vector<8x8xf32>, vector<8x8xf32>, vector<8x8xf32> -> vector<8x8xf32>
    %197 = arith.addf %191, %196 : vector<8x8xf32>
    %cst_97 = arith.constant dense<0xFF800000> : vector<8xf32>
    %198 = vector.multi_reduction <maximumf>, %197, %cst_97 [1] : vector<8x8xf32> to vector<8xf32>
    %199 = vector.shape_cast %198 : vector<8xf32> to vector<8x1xf32>
    %200 = vector.broadcast %199 : vector<8x1xf32> to vector<8x8xf32>
    %201 = arith.subf %197, %200 : vector<8x8xf32>
    %202 = math.exp %201 : vector<8x8xf32>
    %cst_98 = arith.constant dense<0.000000e+00> : vector<8xf32>
    %203 = vector.multi_reduction <add>, %202, %cst_98 [1] : vector<8x8xf32> to vector<8xf32>
    %204 = vector.shape_cast %203 : vector<8xf32> to vector<8x1xf32>
    %205 = vector.broadcast %204 : vector<8x1xf32> to vector<8x8xf32>
    %206 = arith.divf %202, %205 : vector<8x8xf32>
    %207 = vector.extract_strided_slice %174 {offsets = [0, 0, 0], sizes = [1, 8, 8], strides = [1, 1, 1]} : vector<4x8x8xf32> to vector<1x8x8xf32>
    %208 = vector.shape_cast %207 : vector<1x8x8xf32> to vector<8x8xf32>
    %cst_99 = arith.constant dense<0.000000e+00> : vector<8x8xf32>
    %209 = tpu.matmul %206, %208, %cst_99 {dimension_numbers = #tpu.dot_dimension_numbers<[1], [0], [0], [1], [0, 0, 1, 1], [], []>} : vector<8x8xf32>, vector<8x8xf32>, vector<8x8xf32> -> vector<8x8xf32>
    %210 = vector.shape_cast %209 : vector<8x8xf32> to vector<1x8x8xf32>
    %c0_100 = arith.constant 0 : index
    %c0_101 = arith.constant 0 : index
    %c16_102 = arith.constant 16 : index
    %211 = vector.load %arg31[%c0_100, %c0_101, %c16_102] : memref<4x8x32xf32, #tpu.memory_space<vmem>>, vector<1x8x8xf32>
    tpu.vector_store %arg31[%c0_100, %c0_101, %c16_102], %210 {strides = array<i32>} : memref<4x8x32xf32, #tpu.memory_space<vmem>>, vector<1x8x8xf32>,
    %212 = vector.extract_strided_slice %174 {offsets = [1, 0, 0], sizes = [1, 8, 8], strides = [1, 1, 1]} : vector<4x8x8xf32> to vector<1x8x8xf32>
    %213 = vector.shape_cast %212 : vector<1x8x8xf32> to vector<8x8xf32>
    %cst_103 = arith.constant dense<0.000000e+00> : vector<8x8xf32>
    %214 = tpu.matmul %206, %213, %cst_103 {dimension_numbers = #tpu.dot_dimension_numbers<[1], [0], [0], [1], [0, 0, 1, 1], [], []>} : vector<8x8xf32>, vector<8x8xf32>, vector<8x8xf32> -> vector<8x8xf32>
    %215 = vector.shape_cast %214 : vector<8x8xf32> to vector<1x8x8xf32>
    %c1_104 = arith.constant 1 : index
    %c0_105 = arith.constant 0 : index
    %c16_106 = arith.constant 16 : index
    %216 = vector.load %arg31[%c1_104, %c0_105, %c16_106] : memref<4x8x32xf32, #tpu.memory_space<vmem>>, vector<1x8x8xf32>
    tpu.vector_store %arg31[%c1_104, %c0_105, %c16_106], %215 {strides = array<i32>} : memref<4x8x32xf32, #tpu.memory_space<vmem>>, vector<1x8x8xf32>,
    %217 = vector.extract_strided_slice %174 {offsets = [2, 0, 0], sizes = [1, 8, 8], strides = [1, 1, 1]} : vector<4x8x8xf32> to vector<1x8x8xf32>
    %218 = vector.shape_cast %217 : vector<1x8x8xf32> to vector<8x8xf32>
    %cst_107 = arith.constant dense<0.000000e+00> : vector<8x8xf32>
    %219 = tpu.matmul %206, %218, %cst_107 {dimension_numbers = #tpu.dot_dimension_numbers<[1], [0], [0], [1], [0, 0, 1, 1], [], []>} : vector<8x8xf32>, vector<8x8xf32>, vector<8x8xf32> -> vector<8x8xf32>
    %220 = vector.shape_cast %219 : vector<8x8xf32> to vector<1x8x8xf32>
    %c2_108 = arith.constant 2 : index
    %c0_109 = arith.constant 0 : index
    %c16_110 = arith.constant 16 : index
    %221 = vector.load %arg31[%c2_108, %c0_109, %c16_110] : memref<4x8x32xf32, #tpu.memory_space<vmem>>, vector<1x8x8xf32>
    tpu.vector_store %arg31[%c2_108, %c0_109, %c16_110], %220 {strides = array<i32>} : memref<4x8x32xf32, #tpu.memory_space<vmem>>, vector<1x8x8xf32>,
    %222 = vector.extract_strided_slice %174 {offsets = [3, 0, 0], sizes = [1, 8, 8], strides = [1, 1, 1]} : vector<4x8x8xf32> to vector<1x8x8xf32>
    %223 = vector.shape_cast %222 : vector<1x8x8xf32> to vector<8x8xf32>
    %cst_111 = arith.constant dense<0.000000e+00> : vector<8x8xf32>
    %224 = tpu.matmul %206, %223, %cst_111 {dimension_numbers = #tpu.dot_dimension_numbers<[1], [0], [0], [1], [0, 0, 1, 1], [], []>} : vector<8x8xf32>, vector<8x8xf32>, vector<8x8xf32> -> vector<8x8xf32>
    %225 = vector.shape_cast %224 : vector<8x8xf32> to vector<1x8x8xf32>
    %c3_112 = arith.constant 3 : index
    %c0_113 = arith.constant 0 : index
    %c16_114 = arith.constant 16 : index
    %226 = vector.load %arg31[%c3_112, %c0_113, %c16_114] : memref<4x8x32xf32, #tpu.memory_space<vmem>>, vector<1x8x8xf32>
    tpu.vector_store %arg31[%c3_112, %c0_113, %c16_114], %225 {strides = array<i32>} : memref<4x8x32xf32, #tpu.memory_space<vmem>>, vector<1x8x8xf32>,
    %c0_115 = arith.constant 0 : index
    %c0_116 = arith.constant 0 : index
    %c24 = arith.constant 24 : index
    %227 = vector.load %arg32[%c0_115, %c0_116, %c24] : memref<4x8x96xf32, #tpu.memory_space<vmem>>, vector<4x8x8xf32>
    %cst_117 = arith.constant 0.176776692 : f32
    %228 = vector.broadcast %cst_117 : f32 to vector<4x8x8xf32>
    %229 = arith.mulf %227, %228 : vector<4x8x8xf32>
    %c0_118 = arith.constant 0 : index
    %c0_119 = arith.constant 0 : index
    %c56 = arith.constant 56 : index
    %230 = vector.load %arg32[%c0_118, %c0_119, %c56] : memref<4x8x96xf32, #tpu.memory_space<vmem>>, vector<4x8x8xf32>
    %c0_120 = arith.constant 0 : index
    %c0_121 = arith.constant 0 : index
    %c88 = arith.constant 88 : index
    %231 = vector.load %arg32[%c0_120, %c0_121, %c88] : memref<4x8x96xf32, #tpu.memory_space<vmem>>, vector<4x8x8xf32>
    %232 = vector.extract_strided_slice %229 {offsets = [0, 0, 0], sizes = [1, 8, 8], strides = [1, 1, 1]} : vector<4x8x8xf32> to vector<1x8x8xf32>
    %233 = vector.shape_cast %232 : vector<1x8x8xf32> to vector<8x8xf32>
    %234 = vector.extract_strided_slice %230 {offsets = [0, 0, 0], sizes = [1, 8, 8], strides = [1, 1, 1]} : vector<4x8x8xf32> to vector<1x8x8xf32>
    %235 = vector.shape_cast %234 : vector<1x8x8xf32> to vector<8x8xf32>
    %cst_122 = arith.constant dense<0.000000e+00> : vector<8x8xf32>
    %236 = tpu.matmul %233, %235, %cst_122 {dimension_numbers = #tpu.dot_dimension_numbers<[1], [1], [0], [0], [0, 0, 1, 0], [], []>} : vector<8x8xf32>, vector<8x8xf32>, vector<8x8xf32> -> vector<8x8xf32>
    %237 = vector.extract_strided_slice %229 {offsets = [1, 0, 0], sizes = [1, 8, 8], strides = [1, 1, 1]} : vector<4x8x8xf32> to vector<1x8x8xf32>
    %238 = vector.shape_cast %237 : vector<1x8x8xf32> to vector<8x8xf32>
    %239 = vector.extract_strided_slice %230 {offsets = [1, 0, 0], sizes = [1, 8, 8], strides = [1, 1, 1]} : vector<4x8x8xf32> to vector<1x8x8xf32>
    %240 = vector.shape_cast %239 : vector<1x8x8xf32> to vector<8x8xf32>
    %cst_123 = arith.constant dense<0.000000e+00> : vector<8x8xf32>
    %241 = tpu.matmul %238, %240, %cst_123 {dimension_numbers = #tpu.dot_dimension_numbers<[1], [1], [0], [0], [0, 0, 1, 0], [], []>} : vector<8x8xf32>, vector<8x8xf32>, vector<8x8xf32> -> vector<8x8xf32>
    %242 = arith.addf %236, %241 : vector<8x8xf32>
    %243 = vector.extract_strided_slice %229 {offsets = [2, 0, 0], sizes = [1, 8, 8], strides = [1, 1, 1]} : vector<4x8x8xf32> to vector<1x8x8xf32>
    %244 = vector.shape_cast %243 : vector<1x8x8xf32> to vector<8x8xf32>
    %245 = vector.extract_strided_slice %230 {offsets = [2, 0, 0], sizes = [1, 8, 8], strides = [1, 1, 1]} : vector<4x8x8xf32> to vector<1x8x8xf32>
    %246 = vector.shape_cast %245 : vector<1x8x8xf32> to vector<8x8xf32>
    %cst_124 = arith.constant dense<0.000000e+00> : vector<8x8xf32>
    %247 = tpu.matmul %244, %246, %cst_124 {dimension_numbers = #tpu.dot_dimension_numbers<[1], [1], [0], [0], [0, 0, 1, 0], [], []>} : vector<8x8xf32>, vector<8x8xf32>, vector<8x8xf32> -> vector<8x8xf32>
    %248 = arith.addf %242, %247 : vector<8x8xf32>
    %249 = vector.extract_strided_slice %229 {offsets = [3, 0, 0], sizes = [1, 8, 8], strides = [1, 1, 1]} : vector<4x8x8xf32> to vector<1x8x8xf32>
    %250 = vector.shape_cast %249 : vector<1x8x8xf32> to vector<8x8xf32>
    %251 = vector.extract_strided_slice %230 {offsets = [3, 0, 0], sizes = [1, 8, 8], strides = [1, 1, 1]} : vector<4x8x8xf32> to vector<1x8x8xf32>
    %252 = vector.shape_cast %251 : vector<1x8x8xf32> to vector<8x8xf32>
    %cst_125 = arith.constant dense<0.000000e+00> : vector<8x8xf32>
    %253 = tpu.matmul %250, %252, %cst_125 {dimension_numbers = #tpu.dot_dimension_numbers<[1], [1], [0], [0], [0, 0, 1, 0], [], []>} : vector<8x8xf32>, vector<8x8xf32>, vector<8x8xf32> -> vector<8x8xf32>
    %254 = arith.addf %248, %253 : vector<8x8xf32>
    %cst_126 = arith.constant dense<0xFF800000> : vector<8xf32>
    %255 = vector.multi_reduction <maximumf>, %254, %cst_126 [1] : vector<8x8xf32> to vector<8xf32>
    %256 = vector.shape_cast %255 : vector<8xf32> to vector<8x1xf32>
    %257 = vector.broadcast %256 : vector<8x1xf32> to vector<8x8xf32>
    %258 = arith.subf %254, %257 : vector<8x8xf32>
    %259 = math.exp %258 : vector<8x8xf32>
    %cst_127 = arith.constant dense<0.000000e+00> : vector<8xf32>
    %260 = vector.multi_reduction <add>, %259, %cst_127 [1] : vector<8x8xf32> to vector<8xf32>
    %261 = vector.shape_cast %260 : vector<8xf32> to vector<8x1xf32>
    %262 = vector.broadcast %261 : vector<8x1xf32> to vector<8x8xf32>
    %263 = arith.divf %259, %262 : vector<8x8xf32>
    %264 = vector.extract_strided_slice %231 {offsets = [0, 0, 0], sizes = [1, 8, 8], strides = [1, 1, 1]} : vector<4x8x8xf32> to vector<1x8x8xf32>
    %265 = vector.shape_cast %264 : vector<1x8x8xf32> to vector<8x8xf32>
    %cst_128 = arith.constant dense<0.000000e+00> : vector<8x8xf32>
    %266 = tpu.matmul %263, %265, %cst_128 {dimension_numbers = #tpu.dot_dimension_numbers<[1], [0], [0], [1], [0, 0, 1, 1], [], []>} : vector<8x8xf32>, vector<8x8xf32>, vector<8x8xf32> -> vector<8x8xf32>
    %267 = vector.shape_cast %266 : vector<8x8xf32> to vector<1x8x8xf32>
    %c0_129 = arith.constant 0 : index
    %c0_130 = arith.constant 0 : index
    %c24_131 = arith.constant 24 : index
    %268 = vector.load %arg31[%c0_129, %c0_130, %c24_131] : memref<4x8x32xf32, #tpu.memory_space<vmem>>, vector<1x8x8xf32>
    tpu.vector_store %arg31[%c0_129, %c0_130, %c24_131], %267 {strides = array<i32>} : memref<4x8x32xf32, #tpu.memory_space<vmem>>, vector<1x8x8xf32>,
    %269 = vector.extract_strided_slice %231 {offsets = [1, 0, 0], sizes = [1, 8, 8], strides = [1, 1, 1]} : vector<4x8x8xf32> to vector<1x8x8xf32>
    %270 = vector.shape_cast %269 : vector<1x8x8xf32> to vector<8x8xf32>
    %cst_132 = arith.constant dense<0.000000e+00> : vector<8x8xf32>
    %271 = tpu.matmul %263, %270, %cst_132 {dimension_numbers = #tpu.dot_dimension_numbers<[1], [0], [0], [1], [0, 0, 1, 1], [], []>} : vector<8x8xf32>, vector<8x8xf32>, vector<8x8xf32> -> vector<8x8xf32>
    %272 = vector.shape_cast %271 : vector<8x8xf32> to vector<1x8x8xf32>
    %c1_133 = arith.constant 1 : index
    %c0_134 = arith.constant 0 : index
    %c24_135 = arith.constant 24 : index
    %273 = vector.load %arg31[%c1_133, %c0_134, %c24_135] : memref<4x8x32xf32, #tpu.memory_space<vmem>>, vector<1x8x8xf32>
    tpu.vector_store %arg31[%c1_133, %c0_134, %c24_135], %272 {strides = array<i32>} : memref<4x8x32xf32, #tpu.memory_space<vmem>>, vector<1x8x8xf32>,
    %274 = vector.extract_strided_slice %231 {offsets = [2, 0, 0], sizes = [1, 8, 8], strides = [1, 1, 1]} : vector<4x8x8xf32> to vector<1x8x8xf32>
    %275 = vector.shape_cast %274 : vector<1x8x8xf32> to vector<8x8xf32>
    %cst_136 = arith.constant dense<0.000000e+00> : vector<8x8xf32>
    %276 = tpu.matmul %263, %275, %cst_136 {dimension_numbers = #tpu.dot_dimension_numbers<[1], [0], [0], [1], [0, 0, 1, 1], [], []>} : vector<8x8xf32>, vector<8x8xf32>, vector<8x8xf32> -> vector<8x8xf32>
    %277 = vector.shape_cast %276 : vector<8x8xf32> to vector<1x8x8xf32>
    %c2_137 = arith.constant 2 : index
    %c0_138 = arith.constant 0 : index
    %c24_139 = arith.constant 24 : index
    %278 = vector.load %arg31[%c2_137, %c0_138, %c24_139] : memref<4x8x32xf32, #tpu.memory_space<vmem>>, vector<1x8x8xf32>
    tpu.vector_store %arg31[%c2_137, %c0_138, %c24_139], %277 {strides = array<i32>} : memref<4x8x32xf32, #tpu.memory_space<vmem>>, vector<1x8x8xf32>,
    %279 = vector.extract_strided_slice %231 {offsets = [3, 0, 0], sizes = [1, 8, 8], strides = [1, 1, 1]} : vector<4x8x8xf32> to vector<1x8x8xf32>
    %280 = vector.shape_cast %279 : vector<1x8x8xf32> to vector<8x8xf32>
    %cst_140 = arith.constant dense<0.000000e+00> : vector<8x8xf32>
    %281 = tpu.matmul %263, %280, %cst_140 {dimension_numbers = #tpu.dot_dimension_numbers<[1], [0], [0], [1], [0, 0, 1, 1], [], []>} : vector<8x8xf32>, vector<8x8xf32>, vector<8x8xf32> -> vector<8x8xf32>
    %282 = vector.shape_cast %281 : vector<8x8xf32> to vector<1x8x8xf32>
    %c3_141 = arith.constant 3 : index
    %c0_142 = arith.constant 0 : index
    %c24_143 = arith.constant 24 : index
    %283 = vector.load %arg31[%c3_141, %c0_142, %c24_143] : memref<4x8x32xf32, #tpu.memory_space<vmem>>, vector<1x8x8xf32>
    tpu.vector_store %arg31[%c3_141, %c0_142, %c24_143], %282 {strides = array<i32>} : memref<4x8x32xf32, #tpu.memory_space<vmem>>, vector<1x8x8xf32>,
    %c0_144 = arith.constant 0 : index
    %c0_145 = arith.constant 0 : index
    %c0_146 = arith.constant 0 : index
    %284 = vector.load %arg31[%c0_144, %c0_145, %c0_146] : memref<4x8x32xf32, #tpu.memory_space<vmem>>, vector<4x8x32xf32>
    %285 = vector.shape_cast %284 : vector<4x8x32xf32> to vector<32x32xf32>
    %c0_147 = arith.constant 0 : index
    %c0_148 = arith.constant 0 : index
    %c0_149 = arith.constant 0 : index
    %286 = vector.load %arg6[%c0_147, %c0_148, %c0_149] : memref<2x32x32xf32, #tpu.memory_space<vmem>>, vector<1x32x32xf32>
    %287 = vector.shape_cast %286 : vector<1x32x32xf32> to vector<32x32xf32>
    %c0_150 = arith.constant 0 : index
    %c0_151 = arith.constant 0 : index
    %c0_152 = arith.constant 0 : index
    %288 = vector.load %arg7[%c0_150, %c0_151, %c0_152] : memref<2x1x32xf32, #tpu.memory_space<vmem>>, vector<1x1x32xf32>
    %289 = vector.shape_cast %288 : vector<1x1x32xf32> to vector<1x32xf32>
    %cst_153 = arith.constant dense<0.000000e+00> : vector<32x32xf32>
    %290 = tpu.matmul %285, %287, %cst_153 {dimension_numbers = #tpu.dot_dimension_numbers<[1], [0], [0], [1], [0, 0, 1, 1], [], []>} : vector<32x32xf32>, vector<32x32xf32>, vector<32x32xf32> -> vector<32x32xf32>
    %291 = vector.broadcast %289 : vector<1x32xf32> to vector<32x32xf32>
    %292 = arith.addf %290, %291 : vector<32x32xf32>
    %293 = arith.addf %22, %292 : vector<32x32xf32>
    %c0_154 = arith.constant 0 : index
    %c0_155 = arith.constant 0 : index
    %c0_156 = arith.constant 0 : index
    %294 = vector.load %arg8[%c0_154, %c0_155, %c0_156] : memref<2x1x32xf32, #tpu.memory_space<vmem>>, vector<1x1x32xf32>
    %295 = vector.shape_cast %294 : vector<1x1x32xf32> to vector<1x32xf32>
    %c0_157 = arith.constant 0 : index
    %c0_158 = arith.constant 0 : index
    %c0_159 = arith.constant 0 : index
    %296 = vector.load %arg9[%c0_157, %c0_158, %c0_159] : memref<2x1x32xf32, #tpu.memory_space<vmem>>, vector<1x1x32xf32>
    %297 = vector.shape_cast %296 : vector<1x1x32xf32> to vector<1x32xf32>
    %cst_160 = arith.constant dense<0.000000e+00> : vector<32xf32>
    %298 = vector.multi_reduction <add>, %293, %cst_160 [1] : vector<32x32xf32> to vector<32xf32>
    %299 = vector.shape_cast %298 : vector<32xf32> to vector<32x1xf32>
    %cst_161 = arith.constant 3.200000e+01 : f32
    %300 = vector.broadcast %cst_161 : f32 to vector<32x1xf32>
    %301 = arith.divf %299, %300 : vector<32x1xf32>
    %302 = vector.broadcast %301 : vector<32x1xf32> to vector<32x32xf32>
    %303 = arith.subf %293, %302 : vector<32x32xf32>
    %304 = arith.mulf %303, %303 : vector<32x32xf32>
    %cst_162 = arith.constant dense<0.000000e+00> : vector<32xf32>
    %305 = vector.multi_reduction <add>, %304, %cst_162 [1] : vector<32x32xf32> to vector<32xf32>
    %306 = vector.shape_cast %305 : vector<32xf32> to vector<32x1xf32>
    %cst_163 = arith.constant 3.200000e+01 : f32
    %307 = vector.broadcast %cst_163 : f32 to vector<32x1xf32>
    %308 = arith.divf %306, %307 : vector<32x1xf32>
    %cst_164 = arith.constant 9.99999974E-6 : f32
    %309 = vector.broadcast %cst_164 : f32 to vector<32x1xf32>
    %310 = arith.addf %308, %309 : vector<32x1xf32>
    %311 = math.rsqrt %310 : vector<32x1xf32>
    %312 = vector.broadcast %311 : vector<32x1xf32> to vector<32x32xf32>
    %313 = arith.mulf %303, %312 : vector<32x32xf32>
    %314 = vector.broadcast %295 : vector<1x32xf32> to vector<32x32xf32>
    %315 = arith.mulf %313, %314 : vector<32x32xf32>
    %316 = vector.broadcast %297 : vector<1x32xf32> to vector<32x32xf32>
    %317 = arith.addf %315, %316 : vector<32x32xf32>
    %c0_165 = arith.constant 0 : index
    %c0_166 = arith.constant 0 : index
    %c0_167 = arith.constant 0 : index
    %318 = vector.load %arg10[%c0_165, %c0_166, %c0_167] : memref<2x32x96xf32, #tpu.memory_space<vmem>>, vector<1x32x96xf32>
    %319 = vector.shape_cast %318 : vector<1x32x96xf32> to vector<32x96xf32>
    %c0_168 = arith.constant 0 : index
    %c0_169 = arith.constant 0 : index
    %c0_170 = arith.constant 0 : index
    %320 = vector.load %arg11[%c0_168, %c0_169, %c0_170] : memref<2x1x96xf32, #tpu.memory_space<vmem>>, vector<1x1x96xf32>
    %321 = vector.shape_cast %320 : vector<1x1x96xf32> to vector<1x96xf32>
    %cst_171 = arith.constant dense<0.000000e+00> : vector<32x96xf32>
    %322 = tpu.matmul %317, %319, %cst_171 {dimension_numbers = #tpu.dot_dimension_numbers<[1], [0], [0], [1], [0, 0, 1, 1], [], []>} : vector<32x32xf32>, vector<32x96xf32>, vector<32x96xf32> -> vector<32x96xf32>
    %323 = vector.broadcast %321 : vector<1x96xf32> to vector<32x96xf32>
    %324 = arith.addf %322, %323 : vector<32x96xf32>
    %325 = vector.shape_cast %324 : vector<32x96xf32> to vector<4x8x96xf32>
    %c0_172 = arith.constant 0 : index
    %c0_173 = arith.constant 0 : index
    %c0_174 = arith.constant 0 : index
    %326 = vector.load %arg32[%c0_172, %c0_173, %c0_174] : memref<4x8x96xf32, #tpu.memory_space<vmem>>, vector<4x8x96xf32>
    tpu.vector_store %arg32[%c0_172, %c0_173, %c0_174], %325 {strides = array<i32>} : memref<4x8x96xf32, #tpu.memory_space<vmem>>, vector<4x8x96xf32>,
    %c0_175 = arith.constant 0 : index
    %c0_176 = arith.constant 0 : index
    %c0_177 = arith.constant 0 : index
    %327 = vector.load %arg32[%c0_175, %c0_176, %c0_177] : memref<4x8x96xf32, #tpu.memory_space<vmem>>, vector<4x8x8xf32>
    %cst_178 = arith.constant 0.353553385 : f32
    %328 = vector.broadcast %cst_178 : f32 to vector<4x8x8xf32>
    %329 = arith.mulf %327, %328 : vector<4x8x8xf32>
    %c0_179 = arith.constant 0 : index
    %c0_180 = arith.constant 0 : index
    %c32_181 = arith.constant 32 : index
    %330 = vector.load %arg32[%c0_179, %c0_180, %c32_181] : memref<4x8x96xf32, #tpu.memory_space<vmem>>, vector<4x8x8xf32>
    %c0_182 = arith.constant 0 : index
    %c0_183 = arith.constant 0 : index
    %c64_184 = arith.constant 64 : index
    %331 = vector.load %arg32[%c0_182, %c0_183, %c64_184] : memref<4x8x96xf32, #tpu.memory_space<vmem>>, vector<4x8x8xf32>
    %332 = vector.shape_cast %329 : vector<4x8x8xf32> to vector<4x1x8x8xf32>
    %333 = vector.shape_cast %330 : vector<4x8x8xf32> to vector<1x4x8x8xf32>
    %334 = vector.broadcast %332 : vector<4x1x8x8xf32> to vector<4x4x8x8xf32>
    %335 = vector.broadcast %333 : vector<1x4x8x8xf32> to vector<4x4x8x8xf32>
    %336 = arith.mulf %334, %335 : vector<4x4x8x8xf32>
    %cst_185 = arith.constant dense<0.000000e+00> : vector<4x4x8xf32>
    %337 = vector.multi_reduction <add>, %336, %cst_185 [3] : vector<4x4x8x8xf32> to vector<4x4x8xf32>
    %338 = vector.shape_cast %337 : vector<4x4x8xf32> to vector<4x4x8x1xf32>
    %cst_186 = arith.constant dense<0xFF800000> : vector<4x8x1xf32>
    %339 = vector.multi_reduction <maximumf>, %338, %cst_186 [1] : vector<4x4x8x1xf32> to vector<4x8x1xf32>
    %340 = vector.shape_cast %339 : vector<4x8x1xf32> to vector<4x1x8x1xf32>
    %341 = vector.broadcast %340 : vector<4x1x8x1xf32> to vector<4x4x8x1xf32>
    %342 = arith.subf %338, %341 : vector<4x4x8x1xf32>
    %343 = math.exp %342 : vector<4x4x8x1xf32>
    %cst_187 = arith.constant dense<0.000000e+00> : vector<4x8x1xf32>
    %344 = vector.multi_reduction <add>, %343, %cst_187 [1] : vector<4x4x8x1xf32> to vector<4x8x1xf32>
    %345 = vector.shape_cast %344 : vector<4x8x1xf32> to vector<4x1x8x1xf32>
    %346 = vector.broadcast %345 : vector<4x1x8x1xf32> to vector<4x4x8x1xf32>
    %347 = arith.divf %343, %346 : vector<4x4x8x1xf32>
    %348 = vector.shape_cast %331 : vector<4x8x8xf32> to vector<1x4x8x8xf32>
    %349 = vector.broadcast %347 : vector<4x4x8x1xf32> to vector<4x4x8x8xf32>
    %350 = vector.broadcast %348 : vector<1x4x8x8xf32> to vector<4x4x8x8xf32>
    %351 = arith.mulf %349, %350 : vector<4x4x8x8xf32>
    %cst_188 = arith.constant dense<0.000000e+00> : vector<4x8x8xf32>
    %352 = vector.multi_reduction <add>, %351, %cst_188 [1] : vector<4x4x8x8xf32> to vector<4x8x8xf32>
    %c0_189 = arith.constant 0 : index
    %c0_190 = arith.constant 0 : index
    %c0_191 = arith.constant 0 : index
    %353 = vector.load %arg31[%c0_189, %c0_190, %c0_191] : memref<4x8x32xf32, #tpu.memory_space<vmem>>, vector<4x8x8xf32>
    tpu.vector_store %arg31[%c0_189, %c0_190, %c0_191], %352 {strides = array<i32>} : memref<4x8x32xf32, #tpu.memory_space<vmem>>, vector<4x8x8xf32>,
    %c0_192 = arith.constant 0 : index
    %c0_193 = arith.constant 0 : index
    %c8_194 = arith.constant 8 : index
    %354 = vector.load %arg32[%c0_192, %c0_193, %c8_194] : memref<4x8x96xf32, #tpu.memory_space<vmem>>, vector<4x8x8xf32>
    %cst_195 = arith.constant 0.353553385 : f32
    %355 = vector.broadcast %cst_195 : f32 to vector<4x8x8xf32>
    %356 = arith.mulf %354, %355 : vector<4x8x8xf32>
    %c0_196 = arith.constant 0 : index
    %c0_197 = arith.constant 0 : index
    %c40_198 = arith.constant 40 : index
    %357 = vector.load %arg32[%c0_196, %c0_197, %c40_198] : memref<4x8x96xf32, #tpu.memory_space<vmem>>, vector<4x8x8xf32>
    %c0_199 = arith.constant 0 : index
    %c0_200 = arith.constant 0 : index
    %c72_201 = arith.constant 72 : index
    %358 = vector.load %arg32[%c0_199, %c0_200, %c72_201] : memref<4x8x96xf32, #tpu.memory_space<vmem>>, vector<4x8x8xf32>
    %359 = vector.shape_cast %356 : vector<4x8x8xf32> to vector<4x1x8x8xf32>
    %360 = vector.shape_cast %357 : vector<4x8x8xf32> to vector<1x4x8x8xf32>
    %361 = vector.broadcast %359 : vector<4x1x8x8xf32> to vector<4x4x8x8xf32>
    %362 = vector.broadcast %360 : vector<1x4x8x8xf32> to vector<4x4x8x8xf32>
    %363 = arith.mulf %361, %362 : vector<4x4x8x8xf32>
    %cst_202 = arith.constant dense<0.000000e+00> : vector<4x4x8xf32>
    %364 = vector.multi_reduction <add>, %363, %cst_202 [3] : vector<4x4x8x8xf32> to vector<4x4x8xf32>
    %365 = vector.shape_cast %364 : vector<4x4x8xf32> to vector<4x4x8x1xf32>
    %cst_203 = arith.constant dense<0xFF800000> : vector<4x8x1xf32>
    %366 = vector.multi_reduction <maximumf>, %365, %cst_203 [1] : vector<4x4x8x1xf32> to vector<4x8x1xf32>
    %367 = vector.shape_cast %366 : vector<4x8x1xf32> to vector<4x1x8x1xf32>
    %368 = vector.broadcast %367 : vector<4x1x8x1xf32> to vector<4x4x8x1xf32>
    %369 = arith.subf %365, %368 : vector<4x4x8x1xf32>
    %370 = math.exp %369 : vector<4x4x8x1xf32>
    %cst_204 = arith.constant dense<0.000000e+00> : vector<4x8x1xf32>
    %371 = vector.multi_reduction <add>, %370, %cst_204 [1] : vector<4x4x8x1xf32> to vector<4x8x1xf32>
    %372 = vector.shape_cast %371 : vector<4x8x1xf32> to vector<4x1x8x1xf32>
    %373 = vector.broadcast %372 : vector<4x1x8x1xf32> to vector<4x4x8x1xf32>
    %374 = arith.divf %370, %373 : vector<4x4x8x1xf32>
    %375 = vector.shape_cast %358 : vector<4x8x8xf32> to vector<1x4x8x8xf32>
    %376 = vector.broadcast %374 : vector<4x4x8x1xf32> to vector<4x4x8x8xf32>
    %377 = vector.broadcast %375 : vector<1x4x8x8xf32> to vector<4x4x8x8xf32>
    %378 = arith.mulf %376, %377 : vector<4x4x8x8xf32>
    %cst_205 = arith.constant dense<0.000000e+00> : vector<4x8x8xf32>
    %379 = vector.multi_reduction <add>, %378, %cst_205 [1] : vector<4x4x8x8xf32> to vector<4x8x8xf32>
    %c0_206 = arith.constant 0 : index
    %c0_207 = arith.constant 0 : index
    %c8_208 = arith.constant 8 : index
    %380 = vector.load %arg31[%c0_206, %c0_207, %c8_208] : memref<4x8x32xf32, #tpu.memory_space<vmem>>, vector<4x8x8xf32>
    tpu.vector_store %arg31[%c0_206, %c0_207, %c8_208], %379 {strides = array<i32>} : memref<4x8x32xf32, #tpu.memory_space<vmem>>, vector<4x8x8xf32>,
    %c0_209 = arith.constant 0 : index
    %c0_210 = arith.constant 0 : index
    %c16_211 = arith.constant 16 : index
    %381 = vector.load %arg32[%c0_209, %c0_210, %c16_211] : memref<4x8x96xf32, #tpu.memory_space<vmem>>, vector<4x8x8xf32>
    %cst_212 = arith.constant 0.353553385 : f32
    %382 = vector.broadcast %cst_212 : f32 to vector<4x8x8xf32>
    %383 = arith.mulf %381, %382 : vector<4x8x8xf32>
    %c0_213 = arith.constant 0 : index
    %c0_214 = arith.constant 0 : index
    %c48_215 = arith.constant 48 : index
    %384 = vector.load %arg32[%c0_213, %c0_214, %c48_215] : memref<4x8x96xf32, #tpu.memory_space<vmem>>, vector<4x8x8xf32>
    %c0_216 = arith.constant 0 : index
    %c0_217 = arith.constant 0 : index
    %c80_218 = arith.constant 80 : index
    %385 = vector.load %arg32[%c0_216, %c0_217, %c80_218] : memref<4x8x96xf32, #tpu.memory_space<vmem>>, vector<4x8x8xf32>
    %386 = vector.shape_cast %383 : vector<4x8x8xf32> to vector<4x1x8x8xf32>
    %387 = vector.shape_cast %384 : vector<4x8x8xf32> to vector<1x4x8x8xf32>
    %388 = vector.broadcast %386 : vector<4x1x8x8xf32> to vector<4x4x8x8xf32>
    %389 = vector.broadcast %387 : vector<1x4x8x8xf32> to vector<4x4x8x8xf32>
    %390 = arith.mulf %388, %389 : vector<4x4x8x8xf32>
    %cst_219 = arith.constant dense<0.000000e+00> : vector<4x4x8xf32>
    %391 = vector.multi_reduction <add>, %390, %cst_219 [3] : vector<4x4x8x8xf32> to vector<4x4x8xf32>
    %392 = vector.shape_cast %391 : vector<4x4x8xf32> to vector<4x4x8x1xf32>
    %cst_220 = arith.constant dense<0xFF800000> : vector<4x8x1xf32>
    %393 = vector.multi_reduction <maximumf>, %392, %cst_220 [1] : vector<4x4x8x1xf32> to vector<4x8x1xf32>
    %394 = vector.shape_cast %393 : vector<4x8x1xf32> to vector<4x1x8x1xf32>
    %395 = vector.broadcast %394 : vector<4x1x8x1xf32> to vector<4x4x8x1xf32>
    %396 = arith.subf %392, %395 : vector<4x4x8x1xf32>
    %397 = math.exp %396 : vector<4x4x8x1xf32>
    %cst_221 = arith.constant dense<0.000000e+00> : vector<4x8x1xf32>
    %398 = vector.multi_reduction <add>, %397, %cst_221 [1] : vector<4x4x8x1xf32> to vector<4x8x1xf32>
    %399 = vector.shape_cast %398 : vector<4x8x1xf32> to vector<4x1x8x1xf32>
    %400 = vector.broadcast %399 : vector<4x1x8x1xf32> to vector<4x4x8x1xf32>
    %401 = arith.divf %397, %400 : vector<4x4x8x1xf32>
    %402 = vector.shape_cast %385 : vector<4x8x8xf32> to vector<1x4x8x8xf32>
    %403 = vector.broadcast %401 : vector<4x4x8x1xf32> to vector<4x4x8x8xf32>
    %404 = vector.broadcast %402 : vector<1x4x8x8xf32> to vector<4x4x8x8xf32>
    %405 = arith.mulf %403, %404 : vector<4x4x8x8xf32>
    %cst_222 = arith.constant dense<0.000000e+00> : vector<4x8x8xf32>
    %406 = vector.multi_reduction <add>, %405, %cst_222 [1] : vector<4x4x8x8xf32> to vector<4x8x8xf32>
    %c0_223 = arith.constant 0 : index
    %c0_224 = arith.constant 0 : index
    %c16_225 = arith.constant 16 : index
    %407 = vector.load %arg31[%c0_223, %c0_224, %c16_225] : memref<4x8x32xf32, #tpu.memory_space<vmem>>, vector<4x8x8xf32>
    tpu.vector_store %arg31[%c0_223, %c0_224, %c16_225], %406 {strides = array<i32>} : memref<4x8x32xf32, #tpu.memory_space<vmem>>, vector<4x8x8xf32>,
    %c0_226 = arith.constant 0 : index
    %c0_227 = arith.constant 0 : index
    %c24_228 = arith.constant 24 : index
    %408 = vector.load %arg32[%c0_226, %c0_227, %c24_228] : memref<4x8x96xf32, #tpu.memory_space<vmem>>, vector<4x8x8xf32>
    %cst_229 = arith.constant 0.353553385 : f32
    %409 = vector.broadcast %cst_229 : f32 to vector<4x8x8xf32>
    %410 = arith.mulf %408, %409 : vector<4x8x8xf32>
    %c0_230 = arith.constant 0 : index
    %c0_231 = arith.constant 0 : index
    %c56_232 = arith.constant 56 : index
    %411 = vector.load %arg32[%c0_230, %c0_231, %c56_232] : memref<4x8x96xf32, #tpu.memory_space<vmem>>, vector<4x8x8xf32>
    %c0_233 = arith.constant 0 : index
    %c0_234 = arith.constant 0 : index
    %c88_235 = arith.constant 88 : index
    %412 = vector.load %arg32[%c0_233, %c0_234, %c88_235] : memref<4x8x96xf32, #tpu.memory_space<vmem>>, vector<4x8x8xf32>
    %413 = vector.shape_cast %410 : vector<4x8x8xf32> to vector<4x1x8x8xf32>
    %414 = vector.shape_cast %411 : vector<4x8x8xf32> to vector<1x4x8x8xf32>
    %415 = vector.broadcast %413 : vector<4x1x8x8xf32> to vector<4x4x8x8xf32>
    %416 = vector.broadcast %414 : vector<1x4x8x8xf32> to vector<4x4x8x8xf32>
    %417 = arith.mulf %415, %416 : vector<4x4x8x8xf32>
    %cst_236 = arith.constant dense<0.000000e+00> : vector<4x4x8xf32>
    %418 = vector.multi_reduction <add>, %417, %cst_236 [3] : vector<4x4x8x8xf32> to vector<4x4x8xf32>
    %419 = vector.shape_cast %418 : vector<4x4x8xf32> to vector<4x4x8x1xf32>
    %cst_237 = arith.constant dense<0xFF800000> : vector<4x8x1xf32>
    %420 = vector.multi_reduction <maximumf>, %419, %cst_237 [1] : vector<4x4x8x1xf32> to vector<4x8x1xf32>
    %421 = vector.shape_cast %420 : vector<4x8x1xf32> to vector<4x1x8x1xf32>
    %422 = vector.broadcast %421 : vector<4x1x8x1xf32> to vector<4x4x8x1xf32>
    %423 = arith.subf %419, %422 : vector<4x4x8x1xf32>
    %424 = math.exp %423 : vector<4x4x8x1xf32>
    %cst_238 = arith.constant dense<0.000000e+00> : vector<4x8x1xf32>
    %425 = vector.multi_reduction <add>, %424, %cst_238 [1] : vector<4x4x8x1xf32> to vector<4x8x1xf32>
    %426 = vector.shape_cast %425 : vector<4x8x1xf32> to vector<4x1x8x1xf32>
    %427 = vector.broadcast %426 : vector<4x1x8x1xf32> to vector<4x4x8x1xf32>
    %428 = arith.divf %424, %427 : vector<4x4x8x1xf32>
    %429 = vector.shape_cast %412 : vector<4x8x8xf32> to vector<1x4x8x8xf32>
    %430 = vector.broadcast %428 : vector<4x4x8x1xf32> to vector<4x4x8x8xf32>
    %431 = vector.broadcast %429 : vector<1x4x8x8xf32> to vector<4x4x8x8xf32>
    %432 = arith.mulf %430, %431 : vector<4x4x8x8xf32>
    %cst_239 = arith.constant dense<0.000000e+00> : vector<4x8x8xf32>
    %433 = vector.multi_reduction <add>, %432, %cst_239 [1] : vector<4x4x8x8xf32> to vector<4x8x8xf32>
    %c0_240 = arith.constant 0 : index
    %c0_241 = arith.constant 0 : index
    %c24_242 = arith.constant 24 : index
    %434 = vector.load %arg31[%c0_240, %c0_241, %c24_242] : memref<4x8x32xf32, #tpu.memory_space<vmem>>, vector<4x8x8xf32>
    tpu.vector_store %arg31[%c0_240, %c0_241, %c24_242], %433 {strides = array<i32>} : memref<4x8x32xf32, #tpu.memory_space<vmem>>, vector<4x8x8xf32>,
    %c0_243 = arith.constant 0 : index
    %c0_244 = arith.constant 0 : index
    %c0_245 = arith.constant 0 : index
    %435 = vector.load %arg31[%c0_243, %c0_244, %c0_245] : memref<4x8x32xf32, #tpu.memory_space<vmem>>, vector<4x8x32xf32>
    %436 = vector.shape_cast %435 : vector<4x8x32xf32> to vector<32x32xf32>
    %c0_246 = arith.constant 0 : index
    %c0_247 = arith.constant 0 : index
    %c0_248 = arith.constant 0 : index
    %437 = vector.load %arg12[%c0_246, %c0_247, %c0_248] : memref<2x32x32xf32, #tpu.memory_space<vmem>>, vector<1x32x32xf32>
    %438 = vector.shape_cast %437 : vector<1x32x32xf32> to vector<32x32xf32>
    %c0_249 = arith.constant 0 : index
    %c0_250 = arith.constant 0 : index
    %c0_251 = arith.constant 0 : index
    %439 = vector.load %arg13[%c0_249, %c0_250, %c0_251] : memref<2x1x32xf32, #tpu.memory_space<vmem>>, vector<1x1x32xf32>
    %440 = vector.shape_cast %439 : vector<1x1x32xf32> to vector<1x32xf32>
    %cst_252 = arith.constant dense<0.000000e+00> : vector<32x32xf32>
    %441 = tpu.matmul %436, %438, %cst_252 {dimension_numbers = #tpu.dot_dimension_numbers<[1], [0], [0], [1], [0, 0, 1, 1], [], []>} : vector<32x32xf32>, vector<32x32xf32>, vector<32x32xf32> -> vector<32x32xf32>
    %442 = vector.broadcast %440 : vector<1x32xf32> to vector<32x32xf32>
    %443 = arith.addf %441, %442 : vector<32x32xf32>
    %444 = arith.addf %293, %443 : vector<32x32xf32>
    %c0_253 = arith.constant 0 : index
    %c0_254 = arith.constant 0 : index
    %c0_255 = arith.constant 0 : index
    %445 = vector.load %arg14[%c0_253, %c0_254, %c0_255] : memref<2x1x32xf32, #tpu.memory_space<vmem>>, vector<1x1x32xf32>
    %446 = vector.shape_cast %445 : vector<1x1x32xf32> to vector<1x32xf32>
    %c0_256 = arith.constant 0 : index
    %c0_257 = arith.constant 0 : index
    %c0_258 = arith.constant 0 : index
    %447 = vector.load %arg15[%c0_256, %c0_257, %c0_258] : memref<2x1x32xf32, #tpu.memory_space<vmem>>, vector<1x1x32xf32>
    %448 = vector.shape_cast %447 : vector<1x1x32xf32> to vector<1x32xf32>
    %cst_259 = arith.constant dense<0.000000e+00> : vector<32xf32>
    %449 = vector.multi_reduction <add>, %444, %cst_259 [1] : vector<32x32xf32> to vector<32xf32>
    %450 = vector.shape_cast %449 : vector<32xf32> to vector<32x1xf32>
    %cst_260 = arith.constant 3.200000e+01 : f32
    %451 = vector.broadcast %cst_260 : f32 to vector<32x1xf32>
    %452 = arith.divf %450, %451 : vector<32x1xf32>
    %453 = vector.broadcast %452 : vector<32x1xf32> to vector<32x32xf32>
    %454 = arith.subf %444, %453 : vector<32x32xf32>
    %455 = arith.mulf %454, %454 : vector<32x32xf32>
    %cst_261 = arith.constant dense<0.000000e+00> : vector<32xf32>
    %456 = vector.multi_reduction <add>, %455, %cst_261 [1] : vector<32x32xf32> to vector<32xf32>
    %457 = vector.shape_cast %456 : vector<32xf32> to vector<32x1xf32>
    %cst_262 = arith.constant 3.200000e+01 : f32
    %458 = vector.broadcast %cst_262 : f32 to vector<32x1xf32>
    %459 = arith.divf %457, %458 : vector<32x1xf32>
    %cst_263 = arith.constant 9.99999974E-6 : f32
    %460 = vector.broadcast %cst_263 : f32 to vector<32x1xf32>
    %461 = arith.addf %459, %460 : vector<32x1xf32>
    %462 = math.rsqrt %461 : vector<32x1xf32>
    %463 = vector.broadcast %462 : vector<32x1xf32> to vector<32x32xf32>
    %464 = arith.mulf %454, %463 : vector<32x32xf32>
    %465 = vector.broadcast %446 : vector<1x32xf32> to vector<32x32xf32>
    %466 = arith.mulf %464, %465 : vector<32x32xf32>
    %467 = vector.broadcast %448 : vector<1x32xf32> to vector<32x32xf32>
    %468 = arith.addf %466, %467 : vector<32x32xf32>
    %c0_264 = arith.constant 0 : index
    %c0_265 = arith.constant 0 : index
    %c0_266 = arith.constant 0 : index
    %469 = vector.load %arg16[%c0_264, %c0_265, %c0_266] : memref<2x32x32xf32, #tpu.memory_space<vmem>>, vector<1x32x32xf32>
    %470 = vector.shape_cast %469 : vector<1x32x32xf32> to vector<32x32xf32>
    %c0_267 = arith.constant 0 : index
    %c0_268 = arith.constant 0 : index
    %c0_269 = arith.constant 0 : index
    %471 = vector.load %arg17[%c0_267, %c0_268, %c0_269] : memref<2x1x32xf32, #tpu.memory_space<vmem>>, vector<1x1x32xf32>
    %472 = vector.shape_cast %471 : vector<1x1x32xf32> to vector<1x32xf32>
    %cst_270 = arith.constant dense<0.000000e+00> : vector<32x32xf32>
    %473 = tpu.matmul %468, %470, %cst_270 {dimension_numbers = #tpu.dot_dimension_numbers<[1], [0], [0], [1], [0, 0, 1, 1], [], []>} : vector<32x32xf32>, vector<32x32xf32>, vector<32x32xf32> -> vector<32x32xf32>
    %474 = vector.broadcast %472 : vector<1x32xf32> to vector<32x32xf32>
    %475 = arith.addf %473, %474 : vector<32x32xf32>
    %cst_271 = arith.constant 5.000000e-01 : f32
    %476 = vector.broadcast %cst_271 : f32 to vector<32x32xf32>
    %477 = arith.mulf %476, %475 : vector<32x32xf32>
    %cst_272 = arith.constant 0.707106769 : f32
    %478 = vector.broadcast %cst_272 : f32 to vector<32x32xf32>
    %479 = arith.mulf %475, %478 : vector<32x32xf32>
    %480 = math.absf %479 : vector<32x32xf32>
    %cst_273 = arith.constant 0.327591091 : f32
    %481 = vector.broadcast %cst_273 : f32 to vector<32x32xf32>
    %482 = arith.mulf %481, %480 : vector<32x32xf32>
    %cst_274 = arith.constant 1.000000e+00 : f32
    %483 = vector.broadcast %cst_274 : f32 to vector<32x32xf32>
    %484 = arith.addf %483, %482 : vector<32x32xf32>
    %cst_275 = arith.constant 1.000000e+00 : f32
    %485 = vector.broadcast %cst_275 : f32 to vector<32x32xf32>
    %486 = arith.divf %485, %484 : vector<32x32xf32>
    %cst_276 = arith.constant 1.06140542 : f32
    %487 = vector.broadcast %cst_276 : f32 to vector<32x32xf32>
    %488 = arith.mulf %487, %486 : vector<32x32xf32>
    %cst_277 = arith.constant -1.45315206 : f32
    %489 = vector.broadcast %cst_277 : f32 to vector<32x32xf32>
    %490 = arith.addf %488, %489 : vector<32x32xf32>
    %491 = arith.mulf %490, %486 : vector<32x32xf32>
    %cst_278 = arith.constant 1.42141378 : f32
    %492 = vector.broadcast %cst_278 : f32 to vector<32x32xf32>
    %493 = arith.addf %491, %492 : vector<32x32xf32>
    %494 = arith.mulf %493, %486 : vector<32x32xf32>
    %cst_279 = arith.constant -0.284496725 : f32
    %495 = vector.broadcast %cst_279 : f32 to vector<32x32xf32>
    %496 = arith.addf %494, %495 : vector<32x32xf32>
    %497 = arith.mulf %496, %486 : vector<32x32xf32>
    %cst_280 = arith.constant 0.254829586 : f32
    %498 = vector.broadcast %cst_280 : f32 to vector<32x32xf32>
    %499 = arith.addf %497, %498 : vector<32x32xf32>
    %500 = arith.mulf %499, %486 : vector<32x32xf32>
    %501 = arith.mulf %480, %480 : vector<32x32xf32>
    %cst_281 = arith.constant 0.000000e+00 : f32
    %502 = vector.broadcast %cst_281 : f32 to vector<32x32xf32>
    %503 = arith.subf %502, %501 : vector<32x32xf32>
    %504 = math.exp %503 : vector<32x32xf32>
    %505 = arith.mulf %500, %504 : vector<32x32xf32>
    %cst_282 = arith.constant 1.000000e+00 : f32
    %506 = vector.broadcast %cst_282 : f32 to vector<32x32xf32>
    %507 = arith.subf %506, %505 : vector<32x32xf32>
    %cst_283 = arith.constant 0.000000e+00 : f32
    %508 = vector.broadcast %cst_283 : f32 to vector<32x32xf32>
    %509 = arith.cmpf oge, %479, %508 : vector<32x32xf32>
    %cst_284 = arith.constant 0.000000e+00 : f32
    %510 = vector.broadcast %cst_284 : f32 to vector<32x32xf32>
    %511 = arith.subf %510, %507 : vector<32x32xf32>
    %512 = arith.select %509, %507, %511 : vector<32x32xi1>, vector<32x32xf32>
    %cst_285 = arith.constant 1.000000e+00 : f32
    %513 = vector.broadcast %cst_285 : f32 to vector<32x32xf32>
    %514 = arith.addf %513, %512 : vector<32x32xf32>
    %515 = arith.mulf %477, %514 : vector<32x32xf32>
    %c0_286 = arith.constant 0 : index
    %c0_287 = arith.constant 0 : index
    %c0_288 = arith.constant 0 : index
    %516 = vector.load %arg18[%c0_286, %c0_287, %c0_288] : memref<2x32x32xf32, #tpu.memory_space<vmem>>, vector<1x32x32xf32>
    %517 = vector.shape_cast %516 : vector<1x32x32xf32> to vector<32x32xf32>
    %c0_289 = arith.constant 0 : index
    %c0_290 = arith.constant 0 : index
    %c0_291 = arith.constant 0 : index
    %518 = vector.load %arg19[%c0_289, %c0_290, %c0_291] : memref<2x1x32xf32, #tpu.memory_space<vmem>>, vector<1x1x32xf32>
    %519 = vector.shape_cast %518 : vector<1x1x32xf32> to vector<1x32xf32>
    %cst_292 = arith.constant dense<0.000000e+00> : vector<32x32xf32>
    %520 = tpu.matmul %515, %517, %cst_292 {dimension_numbers = #tpu.dot_dimension_numbers<[1], [0], [0], [1], [0, 0, 1, 1], [], []>} : vector<32x32xf32>, vector<32x32xf32>, vector<32x32xf32> -> vector<32x32xf32>
    %521 = vector.broadcast %519 : vector<1x32xf32> to vector<32x32xf32>
    %522 = arith.addf %520, %521 : vector<32x32xf32>
    %523 = arith.addf %444, %522 : vector<32x32xf32>
    %c1_293 = arith.constant 1 : index
    %c0_294 = arith.constant 0 : index
    %c0_295 = arith.constant 0 : index
    %524 = vector.load %arg2[%c1_293, %c0_294, %c0_295] : memref<2x1x32xf32, #tpu.memory_space<vmem>>, vector<1x1x32xf32>
    %525 = vector.shape_cast %524 : vector<1x1x32xf32> to vector<1x32xf32>
    %c1_296 = arith.constant 1 : index
    %c0_297 = arith.constant 0 : index
    %c0_298 = arith.constant 0 : index
    %526 = vector.load %arg3[%c1_296, %c0_297, %c0_298] : memref<2x1x32xf32, #tpu.memory_space<vmem>>, vector<1x1x32xf32>
    %527 = vector.shape_cast %526 : vector<1x1x32xf32> to vector<1x32xf32>
    %cst_299 = arith.constant dense<0.000000e+00> : vector<32xf32>
    %528 = vector.multi_reduction <add>, %523, %cst_299 [1] : vector<32x32xf32> to vector<32xf32>
    %529 = vector.shape_cast %528 : vector<32xf32> to vector<32x1xf32>
    %cst_300 = arith.constant 3.200000e+01 : f32
    %530 = vector.broadcast %cst_300 : f32 to vector<32x1xf32>
    %531 = arith.divf %529, %530 : vector<32x1xf32>
    %532 = vector.broadcast %531 : vector<32x1xf32> to vector<32x32xf32>
    %533 = arith.subf %523, %532 : vector<32x32xf32>
    %534 = arith.mulf %533, %533 : vector<32x32xf32>
    %cst_301 = arith.constant dense<0.000000e+00> : vector<32xf32>
    %535 = vector.multi_reduction <add>, %534, %cst_301 [1] : vector<32x32xf32> to vector<32xf32>
    %536 = vector.shape_cast %535 : vector<32xf32> to vector<32x1xf32>
    %cst_302 = arith.constant 3.200000e+01 : f32
    %537 = vector.broadcast %cst_302 : f32 to vector<32x1xf32>
    %538 = arith.divf %536, %537 : vector<32x1xf32>
    %cst_303 = arith.constant 9.99999974E-6 : f32
    %539 = vector.broadcast %cst_303 : f32 to vector<32x1xf32>
    %540 = arith.addf %538, %539 : vector<32x1xf32>
    %541 = math.rsqrt %540 : vector<32x1xf32>
    %542 = vector.broadcast %541 : vector<32x1xf32> to vector<32x32xf32>
    %543 = arith.mulf %533, %542 : vector<32x32xf32>
    %544 = vector.broadcast %525 : vector<1x32xf32> to vector<32x32xf32>
    %545 = arith.mulf %543, %544 : vector<32x32xf32>
    %546 = vector.broadcast %527 : vector<1x32xf32> to vector<32x32xf32>
    %547 = arith.addf %545, %546 : vector<32x32xf32>
    %c1_304 = arith.constant 1 : index
    %c0_305 = arith.constant 0 : index
    %c0_306 = arith.constant 0 : index
    %548 = vector.load %arg4[%c1_304, %c0_305, %c0_306] : memref<2x32x96xf32, #tpu.memory_space<vmem>>, vector<1x32x96xf32>
    %549 = vector.shape_cast %548 : vector<1x32x96xf32> to vector<32x96xf32>
    %c1_307 = arith.constant 1 : index
    %c0_308 = arith.constant 0 : index
    %c0_309 = arith.constant 0 : index
    %550 = vector.load %arg5[%c1_307, %c0_308, %c0_309] : memref<2x1x96xf32, #tpu.memory_space<vmem>>, vector<1x1x96xf32>
    %551 = vector.shape_cast %550 : vector<1x1x96xf32> to vector<1x96xf32>
    %cst_310 = arith.constant dense<0.000000e+00> : vector<32x96xf32>
    %552 = tpu.matmul %547, %549, %cst_310 {dimension_numbers = #tpu.dot_dimension_numbers<[1], [0], [0], [1], [0, 0, 1, 1], [], []>} : vector<32x32xf32>, vector<32x96xf32>, vector<32x96xf32> -> vector<32x96xf32>
    %553 = vector.broadcast %551 : vector<1x96xf32> to vector<32x96xf32>
    %554 = arith.addf %552, %553 : vector<32x96xf32>
    %555 = vector.shape_cast %554 : vector<32x96xf32> to vector<4x8x96xf32>
    %c0_311 = arith.constant 0 : index
    %c0_312 = arith.constant 0 : index
    %c0_313 = arith.constant 0 : index
    %556 = vector.load %arg32[%c0_311, %c0_312, %c0_313] : memref<4x8x96xf32, #tpu.memory_space<vmem>>, vector<4x8x96xf32>
    tpu.vector_store %arg32[%c0_311, %c0_312, %c0_313], %555 {strides = array<i32>} : memref<4x8x96xf32, #tpu.memory_space<vmem>>, vector<4x8x96xf32>,
    %c0_314 = arith.constant 0 : index
    %c0_315 = arith.constant 0 : index
    %c0_316 = arith.constant 0 : index
    %557 = vector.load %arg32[%c0_314, %c0_315, %c0_316] : memref<4x8x96xf32, #tpu.memory_space<vmem>>, vector<4x8x8xf32>
    %cst_317 = arith.constant 0.176776692 : f32
    %558 = vector.broadcast %cst_317 : f32 to vector<4x8x8xf32>
    %559 = arith.mulf %557, %558 : vector<4x8x8xf32>
    %c0_318 = arith.constant 0 : index
    %c0_319 = arith.constant 0 : index
    %c32_320 = arith.constant 32 : index
    %560 = vector.load %arg32[%c0_318, %c0_319, %c32_320] : memref<4x8x96xf32, #tpu.memory_space<vmem>>, vector<4x8x8xf32>
    %c0_321 = arith.constant 0 : index
    %c0_322 = arith.constant 0 : index
    %c64_323 = arith.constant 64 : index
    %561 = vector.load %arg32[%c0_321, %c0_322, %c64_323] : memref<4x8x96xf32, #tpu.memory_space<vmem>>, vector<4x8x8xf32>
    %562 = vector.extract_strided_slice %559 {offsets = [0, 0, 0], sizes = [1, 8, 8], strides = [1, 1, 1]} : vector<4x8x8xf32> to vector<1x8x8xf32>
    %563 = vector.shape_cast %562 : vector<1x8x8xf32> to vector<8x8xf32>
    %564 = vector.extract_strided_slice %560 {offsets = [0, 0, 0], sizes = [1, 8, 8], strides = [1, 1, 1]} : vector<4x8x8xf32> to vector<1x8x8xf32>
    %565 = vector.shape_cast %564 : vector<1x8x8xf32> to vector<8x8xf32>
    %cst_324 = arith.constant dense<0.000000e+00> : vector<8x8xf32>
    %566 = tpu.matmul %563, %565, %cst_324 {dimension_numbers = #tpu.dot_dimension_numbers<[1], [1], [0], [0], [0, 0, 1, 0], [], []>} : vector<8x8xf32>, vector<8x8xf32>, vector<8x8xf32> -> vector<8x8xf32>
    %567 = vector.extract_strided_slice %559 {offsets = [1, 0, 0], sizes = [1, 8, 8], strides = [1, 1, 1]} : vector<4x8x8xf32> to vector<1x8x8xf32>
    %568 = vector.shape_cast %567 : vector<1x8x8xf32> to vector<8x8xf32>
    %569 = vector.extract_strided_slice %560 {offsets = [1, 0, 0], sizes = [1, 8, 8], strides = [1, 1, 1]} : vector<4x8x8xf32> to vector<1x8x8xf32>
    %570 = vector.shape_cast %569 : vector<1x8x8xf32> to vector<8x8xf32>
    %cst_325 = arith.constant dense<0.000000e+00> : vector<8x8xf32>
    %571 = tpu.matmul %568, %570, %cst_325 {dimension_numbers = #tpu.dot_dimension_numbers<[1], [1], [0], [0], [0, 0, 1, 0], [], []>} : vector<8x8xf32>, vector<8x8xf32>, vector<8x8xf32> -> vector<8x8xf32>
    %572 = arith.addf %566, %571 : vector<8x8xf32>
    %573 = vector.extract_strided_slice %559 {offsets = [2, 0, 0], sizes = [1, 8, 8], strides = [1, 1, 1]} : vector<4x8x8xf32> to vector<1x8x8xf32>
    %574 = vector.shape_cast %573 : vector<1x8x8xf32> to vector<8x8xf32>
    %575 = vector.extract_strided_slice %560 {offsets = [2, 0, 0], sizes = [1, 8, 8], strides = [1, 1, 1]} : vector<4x8x8xf32> to vector<1x8x8xf32>
    %576 = vector.shape_cast %575 : vector<1x8x8xf32> to vector<8x8xf32>
    %cst_326 = arith.constant dense<0.000000e+00> : vector<8x8xf32>
    %577 = tpu.matmul %574, %576, %cst_326 {dimension_numbers = #tpu.dot_dimension_numbers<[1], [1], [0], [0], [0, 0, 1, 0], [], []>} : vector<8x8xf32>, vector<8x8xf32>, vector<8x8xf32> -> vector<8x8xf32>
    %578 = arith.addf %572, %577 : vector<8x8xf32>
    %579 = vector.extract_strided_slice %559 {offsets = [3, 0, 0], sizes = [1, 8, 8], strides = [1, 1, 1]} : vector<4x8x8xf32> to vector<1x8x8xf32>
    %580 = vector.shape_cast %579 : vector<1x8x8xf32> to vector<8x8xf32>
    %581 = vector.extract_strided_slice %560 {offsets = [3, 0, 0], sizes = [1, 8, 8], strides = [1, 1, 1]} : vector<4x8x8xf32> to vector<1x8x8xf32>
    %582 = vector.shape_cast %581 : vector<1x8x8xf32> to vector<8x8xf32>
    %cst_327 = arith.constant dense<0.000000e+00> : vector<8x8xf32>
    %583 = tpu.matmul %580, %582, %cst_327 {dimension_numbers = #tpu.dot_dimension_numbers<[1], [1], [0], [0], [0, 0, 1, 0], [], []>} : vector<8x8xf32>, vector<8x8xf32>, vector<8x8xf32> -> vector<8x8xf32>
    %584 = arith.addf %578, %583 : vector<8x8xf32>
    %cst_328 = arith.constant dense<0xFF800000> : vector<8xf32>
    %585 = vector.multi_reduction <maximumf>, %584, %cst_328 [1] : vector<8x8xf32> to vector<8xf32>
    %586 = vector.shape_cast %585 : vector<8xf32> to vector<8x1xf32>
    %587 = vector.broadcast %586 : vector<8x1xf32> to vector<8x8xf32>
    %588 = arith.subf %584, %587 : vector<8x8xf32>
    %589 = math.exp %588 : vector<8x8xf32>
    %cst_329 = arith.constant dense<0.000000e+00> : vector<8xf32>
    %590 = vector.multi_reduction <add>, %589, %cst_329 [1] : vector<8x8xf32> to vector<8xf32>
    %591 = vector.shape_cast %590 : vector<8xf32> to vector<8x1xf32>
    %592 = vector.broadcast %591 : vector<8x1xf32> to vector<8x8xf32>
    %593 = arith.divf %589, %592 : vector<8x8xf32>
    %594 = vector.extract_strided_slice %561 {offsets = [0, 0, 0], sizes = [1, 8, 8], strides = [1, 1, 1]} : vector<4x8x8xf32> to vector<1x8x8xf32>
    %595 = vector.shape_cast %594 : vector<1x8x8xf32> to vector<8x8xf32>
    %cst_330 = arith.constant dense<0.000000e+00> : vector<8x8xf32>
    %596 = tpu.matmul %593, %595, %cst_330 {dimension_numbers = #tpu.dot_dimension_numbers<[1], [0], [0], [1], [0, 0, 1, 1], [], []>} : vector<8x8xf32>, vector<8x8xf32>, vector<8x8xf32> -> vector<8x8xf32>
    %597 = vector.shape_cast %596 : vector<8x8xf32> to vector<1x8x8xf32>
    %c0_331 = arith.constant 0 : index
    %c0_332 = arith.constant 0 : index
    %c0_333 = arith.constant 0 : index
    %598 = vector.load %arg31[%c0_331, %c0_332, %c0_333] : memref<4x8x32xf32, #tpu.memory_space<vmem>>, vector<1x8x8xf32>
    tpu.vector_store %arg31[%c0_331, %c0_332, %c0_333], %597 {strides = array<i32>} : memref<4x8x32xf32, #tpu.memory_space<vmem>>, vector<1x8x8xf32>,
    %599 = vector.extract_strided_slice %561 {offsets = [1, 0, 0], sizes = [1, 8, 8], strides = [1, 1, 1]} : vector<4x8x8xf32> to vector<1x8x8xf32>
    %600 = vector.shape_cast %599 : vector<1x8x8xf32> to vector<8x8xf32>
    %cst_334 = arith.constant dense<0.000000e+00> : vector<8x8xf32>
    %601 = tpu.matmul %593, %600, %cst_334 {dimension_numbers = #tpu.dot_dimension_numbers<[1], [0], [0], [1], [0, 0, 1, 1], [], []>} : vector<8x8xf32>, vector<8x8xf32>, vector<8x8xf32> -> vector<8x8xf32>
    %602 = vector.shape_cast %601 : vector<8x8xf32> to vector<1x8x8xf32>
    %c1_335 = arith.constant 1 : index
    %c0_336 = arith.constant 0 : index
    %c0_337 = arith.constant 0 : index
    %603 = vector.load %arg31[%c1_335, %c0_336, %c0_337] : memref<4x8x32xf32, #tpu.memory_space<vmem>>, vector<1x8x8xf32>
    tpu.vector_store %arg31[%c1_335, %c0_336, %c0_337], %602 {strides = array<i32>} : memref<4x8x32xf32, #tpu.memory_space<vmem>>, vector<1x8x8xf32>,
    %604 = vector.extract_strided_slice %561 {offsets = [2, 0, 0], sizes = [1, 8, 8], strides = [1, 1, 1]} : vector<4x8x8xf32> to vector<1x8x8xf32>
    %605 = vector.shape_cast %604 : vector<1x8x8xf32> to vector<8x8xf32>
    %cst_338 = arith.constant dense<0.000000e+00> : vector<8x8xf32>
    %606 = tpu.matmul %593, %605, %cst_338 {dimension_numbers = #tpu.dot_dimension_numbers<[1], [0], [0], [1], [0, 0, 1, 1], [], []>} : vector<8x8xf32>, vector<8x8xf32>, vector<8x8xf32> -> vector<8x8xf32>
    %607 = vector.shape_cast %606 : vector<8x8xf32> to vector<1x8x8xf32>
    %c2_339 = arith.constant 2 : index
    %c0_340 = arith.constant 0 : index
    %c0_341 = arith.constant 0 : index
    %608 = vector.load %arg31[%c2_339, %c0_340, %c0_341] : memref<4x8x32xf32, #tpu.memory_space<vmem>>, vector<1x8x8xf32>
    tpu.vector_store %arg31[%c2_339, %c0_340, %c0_341], %607 {strides = array<i32>} : memref<4x8x32xf32, #tpu.memory_space<vmem>>, vector<1x8x8xf32>,
    %609 = vector.extract_strided_slice %561 {offsets = [3, 0, 0], sizes = [1, 8, 8], strides = [1, 1, 1]} : vector<4x8x8xf32> to vector<1x8x8xf32>
    %610 = vector.shape_cast %609 : vector<1x8x8xf32> to vector<8x8xf32>
    %cst_342 = arith.constant dense<0.000000e+00> : vector<8x8xf32>
    %611 = tpu.matmul %593, %610, %cst_342 {dimension_numbers = #tpu.dot_dimension_numbers<[1], [0], [0], [1], [0, 0, 1, 1], [], []>} : vector<8x8xf32>, vector<8x8xf32>, vector<8x8xf32> -> vector<8x8xf32>
    %612 = vector.shape_cast %611 : vector<8x8xf32> to vector<1x8x8xf32>
    %c3_343 = arith.constant 3 : index
    %c0_344 = arith.constant 0 : index
    %c0_345 = arith.constant 0 : index
    %613 = vector.load %arg31[%c3_343, %c0_344, %c0_345] : memref<4x8x32xf32, #tpu.memory_space<vmem>>, vector<1x8x8xf32>
    tpu.vector_store %arg31[%c3_343, %c0_344, %c0_345], %612 {strides = array<i32>} : memref<4x8x32xf32, #tpu.memory_space<vmem>>, vector<1x8x8xf32>,
    %c0_346 = arith.constant 0 : index
    %c0_347 = arith.constant 0 : index
    %c8_348 = arith.constant 8 : index
    %614 = vector.load %arg32[%c0_346, %c0_347, %c8_348] : memref<4x8x96xf32, #tpu.memory_space<vmem>>, vector<4x8x8xf32>
    %cst_349 = arith.constant 0.176776692 : f32
    %615 = vector.broadcast %cst_349 : f32 to vector<4x8x8xf32>
    %616 = arith.mulf %614, %615 : vector<4x8x8xf32>
    %c0_350 = arith.constant 0 : index
    %c0_351 = arith.constant 0 : index
    %c40_352 = arith.constant 40 : index
    %617 = vector.load %arg32[%c0_350, %c0_351, %c40_352] : memref<4x8x96xf32, #tpu.memory_space<vmem>>, vector<4x8x8xf32>
    %c0_353 = arith.constant 0 : index
    %c0_354 = arith.constant 0 : index
    %c72_355 = arith.constant 72 : index
    %618 = vector.load %arg32[%c0_353, %c0_354, %c72_355] : memref<4x8x96xf32, #tpu.memory_space<vmem>>, vector<4x8x8xf32>
    %619 = vector.extract_strided_slice %616 {offsets = [0, 0, 0], sizes = [1, 8, 8], strides = [1, 1, 1]} : vector<4x8x8xf32> to vector<1x8x8xf32>
    %620 = vector.shape_cast %619 : vector<1x8x8xf32> to vector<8x8xf32>
    %621 = vector.extract_strided_slice %617 {offsets = [0, 0, 0], sizes = [1, 8, 8], strides = [1, 1, 1]} : vector<4x8x8xf32> to vector<1x8x8xf32>
    %622 = vector.shape_cast %621 : vector<1x8x8xf32> to vector<8x8xf32>
    %cst_356 = arith.constant dense<0.000000e+00> : vector<8x8xf32>
    %623 = tpu.matmul %620, %622, %cst_356 {dimension_numbers = #tpu.dot_dimension_numbers<[1], [1], [0], [0], [0, 0, 1, 0], [], []>} : vector<8x8xf32>, vector<8x8xf32>, vector<8x8xf32> -> vector<8x8xf32>
    %624 = vector.extract_strided_slice %616 {offsets = [1, 0, 0], sizes = [1, 8, 8], strides = [1, 1, 1]} : vector<4x8x8xf32> to vector<1x8x8xf32>
    %625 = vector.shape_cast %624 : vector<1x8x8xf32> to vector<8x8xf32>
    %626 = vector.extract_strided_slice %617 {offsets = [1, 0, 0], sizes = [1, 8, 8], strides = [1, 1, 1]} : vector<4x8x8xf32> to vector<1x8x8xf32>
    %627 = vector.shape_cast %626 : vector<1x8x8xf32> to vector<8x8xf32>
    %cst_357 = arith.constant dense<0.000000e+00> : vector<8x8xf32>
    %628 = tpu.matmul %625, %627, %cst_357 {dimension_numbers = #tpu.dot_dimension_numbers<[1], [1], [0], [0], [0, 0, 1, 0], [], []>} : vector<8x8xf32>, vector<8x8xf32>, vector<8x8xf32> -> vector<8x8xf32>
    %629 = arith.addf %623, %628 : vector<8x8xf32>
    %630 = vector.extract_strided_slice %616 {offsets = [2, 0, 0], sizes = [1, 8, 8], strides = [1, 1, 1]} : vector<4x8x8xf32> to vector<1x8x8xf32>
    %631 = vector.shape_cast %630 : vector<1x8x8xf32> to vector<8x8xf32>
    %632 = vector.extract_strided_slice %617 {offsets = [2, 0, 0], sizes = [1, 8, 8], strides = [1, 1, 1]} : vector<4x8x8xf32> to vector<1x8x8xf32>
    %633 = vector.shape_cast %632 : vector<1x8x8xf32> to vector<8x8xf32>
    %cst_358 = arith.constant dense<0.000000e+00> : vector<8x8xf32>
    %634 = tpu.matmul %631, %633, %cst_358 {dimension_numbers = #tpu.dot_dimension_numbers<[1], [1], [0], [0], [0, 0, 1, 0], [], []>} : vector<8x8xf32>, vector<8x8xf32>, vector<8x8xf32> -> vector<8x8xf32>
    %635 = arith.addf %629, %634 : vector<8x8xf32>
    %636 = vector.extract_strided_slice %616 {offsets = [3, 0, 0], sizes = [1, 8, 8], strides = [1, 1, 1]} : vector<4x8x8xf32> to vector<1x8x8xf32>
    %637 = vector.shape_cast %636 : vector<1x8x8xf32> to vector<8x8xf32>
    %638 = vector.extract_strided_slice %617 {offsets = [3, 0, 0], sizes = [1, 8, 8], strides = [1, 1, 1]} : vector<4x8x8xf32> to vector<1x8x8xf32>
    %639 = vector.shape_cast %638 : vector<1x8x8xf32> to vector<8x8xf32>
    %cst_359 = arith.constant dense<0.000000e+00> : vector<8x8xf32>
    %640 = tpu.matmul %637, %639, %cst_359 {dimension_numbers = #tpu.dot_dimension_numbers<[1], [1], [0], [0], [0, 0, 1, 0], [], []>} : vector<8x8xf32>, vector<8x8xf32>, vector<8x8xf32> -> vector<8x8xf32>
    %641 = arith.addf %635, %640 : vector<8x8xf32>
    %cst_360 = arith.constant dense<0xFF800000> : vector<8xf32>
    %642 = vector.multi_reduction <maximumf>, %641, %cst_360 [1] : vector<8x8xf32> to vector<8xf32>
    %643 = vector.shape_cast %642 : vector<8xf32> to vector<8x1xf32>
    %644 = vector.broadcast %643 : vector<8x1xf32> to vector<8x8xf32>
    %645 = arith.subf %641, %644 : vector<8x8xf32>
    %646 = math.exp %645 : vector<8x8xf32>
    %cst_361 = arith.constant dense<0.000000e+00> : vector<8xf32>
    %647 = vector.multi_reduction <add>, %646, %cst_361 [1] : vector<8x8xf32> to vector<8xf32>
    %648 = vector.shape_cast %647 : vector<8xf32> to vector<8x1xf32>
    %649 = vector.broadcast %648 : vector<8x1xf32> to vector<8x8xf32>
    %650 = arith.divf %646, %649 : vector<8x8xf32>
    %651 = vector.extract_strided_slice %618 {offsets = [0, 0, 0], sizes = [1, 8, 8], strides = [1, 1, 1]} : vector<4x8x8xf32> to vector<1x8x8xf32>
    %652 = vector.shape_cast %651 : vector<1x8x8xf32> to vector<8x8xf32>
    %cst_362 = arith.constant dense<0.000000e+00> : vector<8x8xf32>
    %653 = tpu.matmul %650, %652, %cst_362 {dimension_numbers = #tpu.dot_dimension_numbers<[1], [0], [0], [1], [0, 0, 1, 1], [], []>} : vector<8x8xf32>, vector<8x8xf32>, vector<8x8xf32> -> vector<8x8xf32>
    %654 = vector.shape_cast %653 : vector<8x8xf32> to vector<1x8x8xf32>
    %c0_363 = arith.constant 0 : index
    %c0_364 = arith.constant 0 : index
    %c8_365 = arith.constant 8 : index
    %655 = vector.load %arg31[%c0_363, %c0_364, %c8_365] : memref<4x8x32xf32, #tpu.memory_space<vmem>>, vector<1x8x8xf32>
    tpu.vector_store %arg31[%c0_363, %c0_364, %c8_365], %654 {strides = array<i32>} : memref<4x8x32xf32, #tpu.memory_space<vmem>>, vector<1x8x8xf32>,
    %656 = vector.extract_strided_slice %618 {offsets = [1, 0, 0], sizes = [1, 8, 8], strides = [1, 1, 1]} : vector<4x8x8xf32> to vector<1x8x8xf32>
    %657 = vector.shape_cast %656 : vector<1x8x8xf32> to vector<8x8xf32>
    %cst_366 = arith.constant dense<0.000000e+00> : vector<8x8xf32>
    %658 = tpu.matmul %650, %657, %cst_366 {dimension_numbers = #tpu.dot_dimension_numbers<[1], [0], [0], [1], [0, 0, 1, 1], [], []>} : vector<8x8xf32>, vector<8x8xf32>, vector<8x8xf32> -> vector<8x8xf32>
    %659 = vector.shape_cast %658 : vector<8x8xf32> to vector<1x8x8xf32>
    %c1_367 = arith.constant 1 : index
    %c0_368 = arith.constant 0 : index
    %c8_369 = arith.constant 8 : index
    %660 = vector.load %arg31[%c1_367, %c0_368, %c8_369] : memref<4x8x32xf32, #tpu.memory_space<vmem>>, vector<1x8x8xf32>
    tpu.vector_store %arg31[%c1_367, %c0_368, %c8_369], %659 {strides = array<i32>} : memref<4x8x32xf32, #tpu.memory_space<vmem>>, vector<1x8x8xf32>,
    %661 = vector.extract_strided_slice %618 {offsets = [2, 0, 0], sizes = [1, 8, 8], strides = [1, 1, 1]} : vector<4x8x8xf32> to vector<1x8x8xf32>
    %662 = vector.shape_cast %661 : vector<1x8x8xf32> to vector<8x8xf32>
    %cst_370 = arith.constant dense<0.000000e+00> : vector<8x8xf32>
    %663 = tpu.matmul %650, %662, %cst_370 {dimension_numbers = #tpu.dot_dimension_numbers<[1], [0], [0], [1], [0, 0, 1, 1], [], []>} : vector<8x8xf32>, vector<8x8xf32>, vector<8x8xf32> -> vector<8x8xf32>
    %664 = vector.shape_cast %663 : vector<8x8xf32> to vector<1x8x8xf32>
    %c2_371 = arith.constant 2 : index
    %c0_372 = arith.constant 0 : index
    %c8_373 = arith.constant 8 : index
    %665 = vector.load %arg31[%c2_371, %c0_372, %c8_373] : memref<4x8x32xf32, #tpu.memory_space<vmem>>, vector<1x8x8xf32>
    tpu.vector_store %arg31[%c2_371, %c0_372, %c8_373], %664 {strides = array<i32>} : memref<4x8x32xf32, #tpu.memory_space<vmem>>, vector<1x8x8xf32>,
    %666 = vector.extract_strided_slice %618 {offsets = [3, 0, 0], sizes = [1, 8, 8], strides = [1, 1, 1]} : vector<4x8x8xf32> to vector<1x8x8xf32>
    %667 = vector.shape_cast %666 : vector<1x8x8xf32> to vector<8x8xf32>
    %cst_374 = arith.constant dense<0.000000e+00> : vector<8x8xf32>
    %668 = tpu.matmul %650, %667, %cst_374 {dimension_numbers = #tpu.dot_dimension_numbers<[1], [0], [0], [1], [0, 0, 1, 1], [], []>} : vector<8x8xf32>, vector<8x8xf32>, vector<8x8xf32> -> vector<8x8xf32>
    %669 = vector.shape_cast %668 : vector<8x8xf32> to vector<1x8x8xf32>
    %c3_375 = arith.constant 3 : index
    %c0_376 = arith.constant 0 : index
    %c8_377 = arith.constant 8 : index
    %670 = vector.load %arg31[%c3_375, %c0_376, %c8_377] : memref<4x8x32xf32, #tpu.memory_space<vmem>>, vector<1x8x8xf32>
    tpu.vector_store %arg31[%c3_375, %c0_376, %c8_377], %669 {strides = array<i32>} : memref<4x8x32xf32, #tpu.memory_space<vmem>>, vector<1x8x8xf32>,
    %c0_378 = arith.constant 0 : index
    %c0_379 = arith.constant 0 : index
    %c16_380 = arith.constant 16 : index
    %671 = vector.load %arg32[%c0_378, %c0_379, %c16_380] : memref<4x8x96xf32, #tpu.memory_space<vmem>>, vector<4x8x8xf32>
    %cst_381 = arith.constant 0.176776692 : f32
    %672 = vector.broadcast %cst_381 : f32 to vector<4x8x8xf32>
    %673 = arith.mulf %671, %672 : vector<4x8x8xf32>
    %c0_382 = arith.constant 0 : index
    %c0_383 = arith.constant 0 : index
    %c48_384 = arith.constant 48 : index
    %674 = vector.load %arg32[%c0_382, %c0_383, %c48_384] : memref<4x8x96xf32, #tpu.memory_space<vmem>>, vector<4x8x8xf32>
    %c0_385 = arith.constant 0 : index
    %c0_386 = arith.constant 0 : index
    %c80_387 = arith.constant 80 : index
    %675 = vector.load %arg32[%c0_385, %c0_386, %c80_387] : memref<4x8x96xf32, #tpu.memory_space<vmem>>, vector<4x8x8xf32>
    %676 = vector.extract_strided_slice %673 {offsets = [0, 0, 0], sizes = [1, 8, 8], strides = [1, 1, 1]} : vector<4x8x8xf32> to vector<1x8x8xf32>
    %677 = vector.shape_cast %676 : vector<1x8x8xf32> to vector<8x8xf32>
    %678 = vector.extract_strided_slice %674 {offsets = [0, 0, 0], sizes = [1, 8, 8], strides = [1, 1, 1]} : vector<4x8x8xf32> to vector<1x8x8xf32>
    %679 = vector.shape_cast %678 : vector<1x8x8xf32> to vector<8x8xf32>
    %cst_388 = arith.constant dense<0.000000e+00> : vector<8x8xf32>
    %680 = tpu.matmul %677, %679, %cst_388 {dimension_numbers = #tpu.dot_dimension_numbers<[1], [1], [0], [0], [0, 0, 1, 0], [], []>} : vector<8x8xf32>, vector<8x8xf32>, vector<8x8xf32> -> vector<8x8xf32>
    %681 = vector.extract_strided_slice %673 {offsets = [1, 0, 0], sizes = [1, 8, 8], strides = [1, 1, 1]} : vector<4x8x8xf32> to vector<1x8x8xf32>
    %682 = vector.shape_cast %681 : vector<1x8x8xf32> to vector<8x8xf32>
    %683 = vector.extract_strided_slice %674 {offsets = [1, 0, 0], sizes = [1, 8, 8], strides = [1, 1, 1]} : vector<4x8x8xf32> to vector<1x8x8xf32>
    %684 = vector.shape_cast %683 : vector<1x8x8xf32> to vector<8x8xf32>
    %cst_389 = arith.constant dense<0.000000e+00> : vector<8x8xf32>
    %685 = tpu.matmul %682, %684, %cst_389 {dimension_numbers = #tpu.dot_dimension_numbers<[1], [1], [0], [0], [0, 0, 1, 0], [], []>} : vector<8x8xf32>, vector<8x8xf32>, vector<8x8xf32> -> vector<8x8xf32>
    %686 = arith.addf %680, %685 : vector<8x8xf32>
    %687 = vector.extract_strided_slice %673 {offsets = [2, 0, 0], sizes = [1, 8, 8], strides = [1, 1, 1]} : vector<4x8x8xf32> to vector<1x8x8xf32>
    %688 = vector.shape_cast %687 : vector<1x8x8xf32> to vector<8x8xf32>
    %689 = vector.extract_strided_slice %674 {offsets = [2, 0, 0], sizes = [1, 8, 8], strides = [1, 1, 1]} : vector<4x8x8xf32> to vector<1x8x8xf32>
    %690 = vector.shape_cast %689 : vector<1x8x8xf32> to vector<8x8xf32>
    %cst_390 = arith.constant dense<0.000000e+00> : vector<8x8xf32>
    %691 = tpu.matmul %688, %690, %cst_390 {dimension_numbers = #tpu.dot_dimension_numbers<[1], [1], [0], [0], [0, 0, 1, 0], [], []>} : vector<8x8xf32>, vector<8x8xf32>, vector<8x8xf32> -> vector<8x8xf32>
    %692 = arith.addf %686, %691 : vector<8x8xf32>
    %693 = vector.extract_strided_slice %673 {offsets = [3, 0, 0], sizes = [1, 8, 8], strides = [1, 1, 1]} : vector<4x8x8xf32> to vector<1x8x8xf32>
    %694 = vector.shape_cast %693 : vector<1x8x8xf32> to vector<8x8xf32>
    %695 = vector.extract_strided_slice %674 {offsets = [3, 0, 0], sizes = [1, 8, 8], strides = [1, 1, 1]} : vector<4x8x8xf32> to vector<1x8x8xf32>
    %696 = vector.shape_cast %695 : vector<1x8x8xf32> to vector<8x8xf32>
    %cst_391 = arith.constant dense<0.000000e+00> : vector<8x8xf32>
    %697 = tpu.matmul %694, %696, %cst_391 {dimension_numbers = #tpu.dot_dimension_numbers<[1], [1], [0], [0], [0, 0, 1, 0], [], []>} : vector<8x8xf32>, vector<8x8xf32>, vector<8x8xf32> -> vector<8x8xf32>
    %698 = arith.addf %692, %697 : vector<8x8xf32>
    %cst_392 = arith.constant dense<0xFF800000> : vector<8xf32>
    %699 = vector.multi_reduction <maximumf>, %698, %cst_392 [1] : vector<8x8xf32> to vector<8xf32>
    %700 = vector.shape_cast %699 : vector<8xf32> to vector<8x1xf32>
    %701 = vector.broadcast %700 : vector<8x1xf32> to vector<8x8xf32>
    %702 = arith.subf %698, %701 : vector<8x8xf32>
    %703 = math.exp %702 : vector<8x8xf32>
    %cst_393 = arith.constant dense<0.000000e+00> : vector<8xf32>
    %704 = vector.multi_reduction <add>, %703, %cst_393 [1] : vector<8x8xf32> to vector<8xf32>
    %705 = vector.shape_cast %704 : vector<8xf32> to vector<8x1xf32>
    %706 = vector.broadcast %705 : vector<8x1xf32> to vector<8x8xf32>
    %707 = arith.divf %703, %706 : vector<8x8xf32>
    %708 = vector.extract_strided_slice %675 {offsets = [0, 0, 0], sizes = [1, 8, 8], strides = [1, 1, 1]} : vector<4x8x8xf32> to vector<1x8x8xf32>
    %709 = vector.shape_cast %708 : vector<1x8x8xf32> to vector<8x8xf32>
    %cst_394 = arith.constant dense<0.000000e+00> : vector<8x8xf32>
    %710 = tpu.matmul %707, %709, %cst_394 {dimension_numbers = #tpu.dot_dimension_numbers<[1], [0], [0], [1], [0, 0, 1, 1], [], []>} : vector<8x8xf32>, vector<8x8xf32>, vector<8x8xf32> -> vector<8x8xf32>
    %711 = vector.shape_cast %710 : vector<8x8xf32> to vector<1x8x8xf32>
    %c0_395 = arith.constant 0 : index
    %c0_396 = arith.constant 0 : index
    %c16_397 = arith.constant 16 : index
    %712 = vector.load %arg31[%c0_395, %c0_396, %c16_397] : memref<4x8x32xf32, #tpu.memory_space<vmem>>, vector<1x8x8xf32>
    tpu.vector_store %arg31[%c0_395, %c0_396, %c16_397], %711 {strides = array<i32>} : memref<4x8x32xf32, #tpu.memory_space<vmem>>, vector<1x8x8xf32>,
    %713 = vector.extract_strided_slice %675 {offsets = [1, 0, 0], sizes = [1, 8, 8], strides = [1, 1, 1]} : vector<4x8x8xf32> to vector<1x8x8xf32>
    %714 = vector.shape_cast %713 : vector<1x8x8xf32> to vector<8x8xf32>
    %cst_398 = arith.constant dense<0.000000e+00> : vector<8x8xf32>
    %715 = tpu.matmul %707, %714, %cst_398 {dimension_numbers = #tpu.dot_dimension_numbers<[1], [0], [0], [1], [0, 0, 1, 1], [], []>} : vector<8x8xf32>, vector<8x8xf32>, vector<8x8xf32> -> vector<8x8xf32>
    %716 = vector.shape_cast %715 : vector<8x8xf32> to vector<1x8x8xf32>
    %c1_399 = arith.constant 1 : index
    %c0_400 = arith.constant 0 : index
    %c16_401 = arith.constant 16 : index
    %717 = vector.load %arg31[%c1_399, %c0_400, %c16_401] : memref<4x8x32xf32, #tpu.memory_space<vmem>>, vector<1x8x8xf32>
    tpu.vector_store %arg31[%c1_399, %c0_400, %c16_401], %716 {strides = array<i32>} : memref<4x8x32xf32, #tpu.memory_space<vmem>>, vector<1x8x8xf32>,
    %718 = vector.extract_strided_slice %675 {offsets = [2, 0, 0], sizes = [1, 8, 8], strides = [1, 1, 1]} : vector<4x8x8xf32> to vector<1x8x8xf32>
    %719 = vector.shape_cast %718 : vector<1x8x8xf32> to vector<8x8xf32>
    %cst_402 = arith.constant dense<0.000000e+00> : vector<8x8xf32>
    %720 = tpu.matmul %707, %719, %cst_402 {dimension_numbers = #tpu.dot_dimension_numbers<[1], [0], [0], [1], [0, 0, 1, 1], [], []>} : vector<8x8xf32>, vector<8x8xf32>, vector<8x8xf32> -> vector<8x8xf32>
    %721 = vector.shape_cast %720 : vector<8x8xf32> to vector<1x8x8xf32>
    %c2_403 = arith.constant 2 : index
    %c0_404 = arith.constant 0 : index
    %c16_405 = arith.constant 16 : index
    %722 = vector.load %arg31[%c2_403, %c0_404, %c16_405] : memref<4x8x32xf32, #tpu.memory_space<vmem>>, vector<1x8x8xf32>
    tpu.vector_store %arg31[%c2_403, %c0_404, %c16_405], %721 {strides = array<i32>} : memref<4x8x32xf32, #tpu.memory_space<vmem>>, vector<1x8x8xf32>,
    %723 = vector.extract_strided_slice %675 {offsets = [3, 0, 0], sizes = [1, 8, 8], strides = [1, 1, 1]} : vector<4x8x8xf32> to vector<1x8x8xf32>
    %724 = vector.shape_cast %723 : vector<1x8x8xf32> to vector<8x8xf32>
    %cst_406 = arith.constant dense<0.000000e+00> : vector<8x8xf32>
    %725 = tpu.matmul %707, %724, %cst_406 {dimension_numbers = #tpu.dot_dimension_numbers<[1], [0], [0], [1], [0, 0, 1, 1], [], []>} : vector<8x8xf32>, vector<8x8xf32>, vector<8x8xf32> -> vector<8x8xf32>
    %726 = vector.shape_cast %725 : vector<8x8xf32> to vector<1x8x8xf32>
    %c3_407 = arith.constant 3 : index
    %c0_408 = arith.constant 0 : index
    %c16_409 = arith.constant 16 : index
    %727 = vector.load %arg31[%c3_407, %c0_408, %c16_409] : memref<4x8x32xf32, #tpu.memory_space<vmem>>, vector<1x8x8xf32>
    tpu.vector_store %arg31[%c3_407, %c0_408, %c16_409], %726 {strides = array<i32>} : memref<4x8x32xf32, #tpu.memory_space<vmem>>, vector<1x8x8xf32>,
    %c0_410 = arith.constant 0 : index
    %c0_411 = arith.constant 0 : index
    %c24_412 = arith.constant 24 : index
    %728 = vector.load %arg32[%c0_410, %c0_411, %c24_412] : memref<4x8x96xf32, #tpu.memory_space<vmem>>, vector<4x8x8xf32>
    %cst_413 = arith.constant 0.176776692 : f32
    %729 = vector.broadcast %cst_413 : f32 to vector<4x8x8xf32>
    %730 = arith.mulf %728, %729 : vector<4x8x8xf32>
    %c0_414 = arith.constant 0 : index
    %c0_415 = arith.constant 0 : index
    %c56_416 = arith.constant 56 : index
    %731 = vector.load %arg32[%c0_414, %c0_415, %c56_416] : memref<4x8x96xf32, #tpu.memory_space<vmem>>, vector<4x8x8xf32>
    %c0_417 = arith.constant 0 : index
    %c0_418 = arith.constant 0 : index
    %c88_419 = arith.constant 88 : index
    %732 = vector.load %arg32[%c0_417, %c0_418, %c88_419] : memref<4x8x96xf32, #tpu.memory_space<vmem>>, vector<4x8x8xf32>
    %733 = vector.extract_strided_slice %730 {offsets = [0, 0, 0], sizes = [1, 8, 8], strides = [1, 1, 1]} : vector<4x8x8xf32> to vector<1x8x8xf32>
    %734 = vector.shape_cast %733 : vector<1x8x8xf32> to vector<8x8xf32>
    %735 = vector.extract_strided_slice %731 {offsets = [0, 0, 0], sizes = [1, 8, 8], strides = [1, 1, 1]} : vector<4x8x8xf32> to vector<1x8x8xf32>
    %736 = vector.shape_cast %735 : vector<1x8x8xf32> to vector<8x8xf32>
    %cst_420 = arith.constant dense<0.000000e+00> : vector<8x8xf32>
    %737 = tpu.matmul %734, %736, %cst_420 {dimension_numbers = #tpu.dot_dimension_numbers<[1], [1], [0], [0], [0, 0, 1, 0], [], []>} : vector<8x8xf32>, vector<8x8xf32>, vector<8x8xf32> -> vector<8x8xf32>
    %738 = vector.extract_strided_slice %730 {offsets = [1, 0, 0], sizes = [1, 8, 8], strides = [1, 1, 1]} : vector<4x8x8xf32> to vector<1x8x8xf32>
    %739 = vector.shape_cast %738 : vector<1x8x8xf32> to vector<8x8xf32>
    %740 = vector.extract_strided_slice %731 {offsets = [1, 0, 0], sizes = [1, 8, 8], strides = [1, 1, 1]} : vector<4x8x8xf32> to vector<1x8x8xf32>
    %741 = vector.shape_cast %740 : vector<1x8x8xf32> to vector<8x8xf32>
    %cst_421 = arith.constant dense<0.000000e+00> : vector<8x8xf32>
    %742 = tpu.matmul %739, %741, %cst_421 {dimension_numbers = #tpu.dot_dimension_numbers<[1], [1], [0], [0], [0, 0, 1, 0], [], []>} : vector<8x8xf32>, vector<8x8xf32>, vector<8x8xf32> -> vector<8x8xf32>
    %743 = arith.addf %737, %742 : vector<8x8xf32>
    %744 = vector.extract_strided_slice %730 {offsets = [2, 0, 0], sizes = [1, 8, 8], strides = [1, 1, 1]} : vector<4x8x8xf32> to vector<1x8x8xf32>
    %745 = vector.shape_cast %744 : vector<1x8x8xf32> to vector<8x8xf32>
    %746 = vector.extract_strided_slice %731 {offsets = [2, 0, 0], sizes = [1, 8, 8], strides = [1, 1, 1]} : vector<4x8x8xf32> to vector<1x8x8xf32>
    %747 = vector.shape_cast %746 : vector<1x8x8xf32> to vector<8x8xf32>
    %cst_422 = arith.constant dense<0.000000e+00> : vector<8x8xf32>
    %748 = tpu.matmul %745, %747, %cst_422 {dimension_numbers = #tpu.dot_dimension_numbers<[1], [1], [0], [0], [0, 0, 1, 0], [], []>} : vector<8x8xf32>, vector<8x8xf32>, vector<8x8xf32> -> vector<8x8xf32>
    %749 = arith.addf %743, %748 : vector<8x8xf32>
    %750 = vector.extract_strided_slice %730 {offsets = [3, 0, 0], sizes = [1, 8, 8], strides = [1, 1, 1]} : vector<4x8x8xf32> to vector<1x8x8xf32>
    %751 = vector.shape_cast %750 : vector<1x8x8xf32> to vector<8x8xf32>
    %752 = vector.extract_strided_slice %731 {offsets = [3, 0, 0], sizes = [1, 8, 8], strides = [1, 1, 1]} : vector<4x8x8xf32> to vector<1x8x8xf32>
    %753 = vector.shape_cast %752 : vector<1x8x8xf32> to vector<8x8xf32>
    %cst_423 = arith.constant dense<0.000000e+00> : vector<8x8xf32>
    %754 = tpu.matmul %751, %753, %cst_423 {dimension_numbers = #tpu.dot_dimension_numbers<[1], [1], [0], [0], [0, 0, 1, 0], [], []>} : vector<8x8xf32>, vector<8x8xf32>, vector<8x8xf32> -> vector<8x8xf32>
    %755 = arith.addf %749, %754 : vector<8x8xf32>
    %cst_424 = arith.constant dense<0xFF800000> : vector<8xf32>
    %756 = vector.multi_reduction <maximumf>, %755, %cst_424 [1] : vector<8x8xf32> to vector<8xf32>
    %757 = vector.shape_cast %756 : vector<8xf32> to vector<8x1xf32>
    %758 = vector.broadcast %757 : vector<8x1xf32> to vector<8x8xf32>
    %759 = arith.subf %755, %758 : vector<8x8xf32>
    %760 = math.exp %759 : vector<8x8xf32>
    %cst_425 = arith.constant dense<0.000000e+00> : vector<8xf32>
    %761 = vector.multi_reduction <add>, %760, %cst_425 [1] : vector<8x8xf32> to vector<8xf32>
    %762 = vector.shape_cast %761 : vector<8xf32> to vector<8x1xf32>
    %763 = vector.broadcast %762 : vector<8x1xf32> to vector<8x8xf32>
    %764 = arith.divf %760, %763 : vector<8x8xf32>
    %765 = vector.extract_strided_slice %732 {offsets = [0, 0, 0], sizes = [1, 8, 8], strides = [1, 1, 1]} : vector<4x8x8xf32> to vector<1x8x8xf32>
    %766 = vector.shape_cast %765 : vector<1x8x8xf32> to vector<8x8xf32>
    %cst_426 = arith.constant dense<0.000000e+00> : vector<8x8xf32>
    %767 = tpu.matmul %764, %766, %cst_426 {dimension_numbers = #tpu.dot_dimension_numbers<[1], [0], [0], [1], [0, 0, 1, 1], [], []>} : vector<8x8xf32>, vector<8x8xf32>, vector<8x8xf32> -> vector<8x8xf32>
    %768 = vector.shape_cast %767 : vector<8x8xf32> to vector<1x8x8xf32>
    %c0_427 = arith.constant 0 : index
    %c0_428 = arith.constant 0 : index
    %c24_429 = arith.constant 24 : index
    %769 = vector.load %arg31[%c0_427, %c0_428, %c24_429] : memref<4x8x32xf32, #tpu.memory_space<vmem>>, vector<1x8x8xf32>
    tpu.vector_store %arg31[%c0_427, %c0_428, %c24_429], %768 {strides = array<i32>} : memref<4x8x32xf32, #tpu.memory_space<vmem>>, vector<1x8x8xf32>,
    %770 = vector.extract_strided_slice %732 {offsets = [1, 0, 0], sizes = [1, 8, 8], strides = [1, 1, 1]} : vector<4x8x8xf32> to vector<1x8x8xf32>
    %771 = vector.shape_cast %770 : vector<1x8x8xf32> to vector<8x8xf32>
    %cst_430 = arith.constant dense<0.000000e+00> : vector<8x8xf32>
    %772 = tpu.matmul %764, %771, %cst_430 {dimension_numbers = #tpu.dot_dimension_numbers<[1], [0], [0], [1], [0, 0, 1, 1], [], []>} : vector<8x8xf32>, vector<8x8xf32>, vector<8x8xf32> -> vector<8x8xf32>
    %773 = vector.shape_cast %772 : vector<8x8xf32> to vector<1x8x8xf32>
    %c1_431 = arith.constant 1 : index
    %c0_432 = arith.constant 0 : index
    %c24_433 = arith.constant 24 : index
    %774 = vector.load %arg31[%c1_431, %c0_432, %c24_433] : memref<4x8x32xf32, #tpu.memory_space<vmem>>, vector<1x8x8xf32>
    tpu.vector_store %arg31[%c1_431, %c0_432, %c24_433], %773 {strides = array<i32>} : memref<4x8x32xf32, #tpu.memory_space<vmem>>, vector<1x8x8xf32>,
    %775 = vector.extract_strided_slice %732 {offsets = [2, 0, 0], sizes = [1, 8, 8], strides = [1, 1, 1]} : vector<4x8x8xf32> to vector<1x8x8xf32>
    %776 = vector.shape_cast %775 : vector<1x8x8xf32> to vector<8x8xf32>
    %cst_434 = arith.constant dense<0.000000e+00> : vector<8x8xf32>
    %777 = tpu.matmul %764, %776, %cst_434 {dimension_numbers = #tpu.dot_dimension_numbers<[1], [0], [0], [1], [0, 0, 1, 1], [], []>} : vector<8x8xf32>, vector<8x8xf32>, vector<8x8xf32> -> vector<8x8xf32>
    %778 = vector.shape_cast %777 : vector<8x8xf32> to vector<1x8x8xf32>
    %c2_435 = arith.constant 2 : index
    %c0_436 = arith.constant 0 : index
    %c24_437 = arith.constant 24 : index
    %779 = vector.load %arg31[%c2_435, %c0_436, %c24_437] : memref<4x8x32xf32, #tpu.memory_space<vmem>>, vector<1x8x8xf32>
    tpu.vector_store %arg31[%c2_435, %c0_436, %c24_437], %778 {strides = array<i32>} : memref<4x8x32xf32, #tpu.memory_space<vmem>>, vector<1x8x8xf32>,
    %780 = vector.extract_strided_slice %732 {offsets = [3, 0, 0], sizes = [1, 8, 8], strides = [1, 1, 1]} : vector<4x8x8xf32> to vector<1x8x8xf32>
    %781 = vector.shape_cast %780 : vector<1x8x8xf32> to vector<8x8xf32>
    %cst_438 = arith.constant dense<0.000000e+00> : vector<8x8xf32>
    %782 = tpu.matmul %764, %781, %cst_438 {dimension_numbers = #tpu.dot_dimension_numbers<[1], [0], [0], [1], [0, 0, 1, 1], [], []>} : vector<8x8xf32>, vector<8x8xf32>, vector<8x8xf32> -> vector<8x8xf32>
    %783 = vector.shape_cast %782 : vector<8x8xf32> to vector<1x8x8xf32>
    %c3_439 = arith.constant 3 : index
    %c0_440 = arith.constant 0 : index
    %c24_441 = arith.constant 24 : index
    %784 = vector.load %arg31[%c3_439, %c0_440, %c24_441] : memref<4x8x32xf32, #tpu.memory_space<vmem>>, vector<1x8x8xf32>
    tpu.vector_store %arg31[%c3_439, %c0_440, %c24_441], %783 {strides = array<i32>} : memref<4x8x32xf32, #tpu.memory_space<vmem>>, vector<1x8x8xf32>,
    %c0_442 = arith.constant 0 : index
    %c0_443 = arith.constant 0 : index
    %c0_444 = arith.constant 0 : index
    %785 = vector.load %arg31[%c0_442, %c0_443, %c0_444] : memref<4x8x32xf32, #tpu.memory_space<vmem>>, vector<4x8x32xf32>
    %786 = vector.shape_cast %785 : vector<4x8x32xf32> to vector<32x32xf32>
    %c1_445 = arith.constant 1 : index
    %c0_446 = arith.constant 0 : index
    %c0_447 = arith.constant 0 : index
    %787 = vector.load %arg6[%c1_445, %c0_446, %c0_447] : memref<2x32x32xf32, #tpu.memory_space<vmem>>, vector<1x32x32xf32>
    %788 = vector.shape_cast %787 : vector<1x32x32xf32> to vector<32x32xf32>
    %c1_448 = arith.constant 1 : index
    %c0_449 = arith.constant 0 : index
    %c0_450 = arith.constant 0 : index
    %789 = vector.load %arg7[%c1_448, %c0_449, %c0_450] : memref<2x1x32xf32, #tpu.memory_space<vmem>>, vector<1x1x32xf32>
    %790 = vector.shape_cast %789 : vector<1x1x32xf32> to vector<1x32xf32>
    %cst_451 = arith.constant dense<0.000000e+00> : vector<32x32xf32>
    %791 = tpu.matmul %786, %788, %cst_451 {dimension_numbers = #tpu.dot_dimension_numbers<[1], [0], [0], [1], [0, 0, 1, 1], [], []>} : vector<32x32xf32>, vector<32x32xf32>, vector<32x32xf32> -> vector<32x32xf32>
    %792 = vector.broadcast %790 : vector<1x32xf32> to vector<32x32xf32>
    %793 = arith.addf %791, %792 : vector<32x32xf32>
    %794 = arith.addf %523, %793 : vector<32x32xf32>
    %c1_452 = arith.constant 1 : index
    %c0_453 = arith.constant 0 : index
    %c0_454 = arith.constant 0 : index
    %795 = vector.load %arg8[%c1_452, %c0_453, %c0_454] : memref<2x1x32xf32, #tpu.memory_space<vmem>>, vector<1x1x32xf32>
    %796 = vector.shape_cast %795 : vector<1x1x32xf32> to vector<1x32xf32>
    %c1_455 = arith.constant 1 : index
    %c0_456 = arith.constant 0 : index
    %c0_457 = arith.constant 0 : index
    %797 = vector.load %arg9[%c1_455, %c0_456, %c0_457] : memref<2x1x32xf32, #tpu.memory_space<vmem>>, vector<1x1x32xf32>
    %798 = vector.shape_cast %797 : vector<1x1x32xf32> to vector<1x32xf32>
    %cst_458 = arith.constant dense<0.000000e+00> : vector<32xf32>
    %799 = vector.multi_reduction <add>, %794, %cst_458 [1] : vector<32x32xf32> to vector<32xf32>
    %800 = vector.shape_cast %799 : vector<32xf32> to vector<32x1xf32>
    %cst_459 = arith.constant 3.200000e+01 : f32
    %801 = vector.broadcast %cst_459 : f32 to vector<32x1xf32>
    %802 = arith.divf %800, %801 : vector<32x1xf32>
    %803 = vector.broadcast %802 : vector<32x1xf32> to vector<32x32xf32>
    %804 = arith.subf %794, %803 : vector<32x32xf32>
    %805 = arith.mulf %804, %804 : vector<32x32xf32>
    %cst_460 = arith.constant dense<0.000000e+00> : vector<32xf32>
    %806 = vector.multi_reduction <add>, %805, %cst_460 [1] : vector<32x32xf32> to vector<32xf32>
    %807 = vector.shape_cast %806 : vector<32xf32> to vector<32x1xf32>
    %cst_461 = arith.constant 3.200000e+01 : f32
    %808 = vector.broadcast %cst_461 : f32 to vector<32x1xf32>
    %809 = arith.divf %807, %808 : vector<32x1xf32>
    %cst_462 = arith.constant 9.99999974E-6 : f32
    %810 = vector.broadcast %cst_462 : f32 to vector<32x1xf32>
    %811 = arith.addf %809, %810 : vector<32x1xf32>
    %812 = math.rsqrt %811 : vector<32x1xf32>
    %813 = vector.broadcast %812 : vector<32x1xf32> to vector<32x32xf32>
    %814 = arith.mulf %804, %813 : vector<32x32xf32>
    %815 = vector.broadcast %796 : vector<1x32xf32> to vector<32x32xf32>
    %816 = arith.mulf %814, %815 : vector<32x32xf32>
    %817 = vector.broadcast %798 : vector<1x32xf32> to vector<32x32xf32>
    %818 = arith.addf %816, %817 : vector<32x32xf32>
    %c1_463 = arith.constant 1 : index
    %c0_464 = arith.constant 0 : index
    %c0_465 = arith.constant 0 : index
    %819 = vector.load %arg10[%c1_463, %c0_464, %c0_465] : memref<2x32x96xf32, #tpu.memory_space<vmem>>, vector<1x32x96xf32>
    %820 = vector.shape_cast %819 : vector<1x32x96xf32> to vector<32x96xf32>
    %c1_466 = arith.constant 1 : index
    %c0_467 = arith.constant 0 : index
    %c0_468 = arith.constant 0 : index
    %821 = vector.load %arg11[%c1_466, %c0_467, %c0_468] : memref<2x1x96xf32, #tpu.memory_space<vmem>>, vector<1x1x96xf32>
    %822 = vector.shape_cast %821 : vector<1x1x96xf32> to vector<1x96xf32>
    %cst_469 = arith.constant dense<0.000000e+00> : vector<32x96xf32>
    %823 = tpu.matmul %818, %820, %cst_469 {dimension_numbers = #tpu.dot_dimension_numbers<[1], [0], [0], [1], [0, 0, 1, 1], [], []>} : vector<32x32xf32>, vector<32x96xf32>, vector<32x96xf32> -> vector<32x96xf32>
    %824 = vector.broadcast %822 : vector<1x96xf32> to vector<32x96xf32>
    %825 = arith.addf %823, %824 : vector<32x96xf32>
    %826 = vector.shape_cast %825 : vector<32x96xf32> to vector<4x8x96xf32>
    %c0_470 = arith.constant 0 : index
    %c0_471 = arith.constant 0 : index
    %c0_472 = arith.constant 0 : index
    %827 = vector.load %arg32[%c0_470, %c0_471, %c0_472] : memref<4x8x96xf32, #tpu.memory_space<vmem>>, vector<4x8x96xf32>
    tpu.vector_store %arg32[%c0_470, %c0_471, %c0_472], %826 {strides = array<i32>} : memref<4x8x96xf32, #tpu.memory_space<vmem>>, vector<4x8x96xf32>,
    %c0_473 = arith.constant 0 : index
    %c0_474 = arith.constant 0 : index
    %c0_475 = arith.constant 0 : index
    %828 = vector.load %arg32[%c0_473, %c0_474, %c0_475] : memref<4x8x96xf32, #tpu.memory_space<vmem>>, vector<4x8x8xf32>
    %cst_476 = arith.constant 0.353553385 : f32
    %829 = vector.broadcast %cst_476 : f32 to vector<4x8x8xf32>
    %830 = arith.mulf %828, %829 : vector<4x8x8xf32>
    %c0_477 = arith.constant 0 : index
    %c0_478 = arith.constant 0 : index
    %c32_479 = arith.constant 32 : index
    %831 = vector.load %arg32[%c0_477, %c0_478, %c32_479] : memref<4x8x96xf32, #tpu.memory_space<vmem>>, vector<4x8x8xf32>
    %c0_480 = arith.constant 0 : index
    %c0_481 = arith.constant 0 : index
    %c64_482 = arith.constant 64 : index
    %832 = vector.load %arg32[%c0_480, %c0_481, %c64_482] : memref<4x8x96xf32, #tpu.memory_space<vmem>>, vector<4x8x8xf32>
    %833 = vector.shape_cast %830 : vector<4x8x8xf32> to vector<4x1x8x8xf32>
    %834 = vector.shape_cast %831 : vector<4x8x8xf32> to vector<1x4x8x8xf32>
    %835 = vector.broadcast %833 : vector<4x1x8x8xf32> to vector<4x4x8x8xf32>
    %836 = vector.broadcast %834 : vector<1x4x8x8xf32> to vector<4x4x8x8xf32>
    %837 = arith.mulf %835, %836 : vector<4x4x8x8xf32>
    %cst_483 = arith.constant dense<0.000000e+00> : vector<4x4x8xf32>
    %838 = vector.multi_reduction <add>, %837, %cst_483 [3] : vector<4x4x8x8xf32> to vector<4x4x8xf32>
    %839 = vector.shape_cast %838 : vector<4x4x8xf32> to vector<4x4x8x1xf32>
    %cst_484 = arith.constant dense<0xFF800000> : vector<4x8x1xf32>
    %840 = vector.multi_reduction <maximumf>, %839, %cst_484 [1] : vector<4x4x8x1xf32> to vector<4x8x1xf32>
    %841 = vector.shape_cast %840 : vector<4x8x1xf32> to vector<4x1x8x1xf32>
    %842 = vector.broadcast %841 : vector<4x1x8x1xf32> to vector<4x4x8x1xf32>
    %843 = arith.subf %839, %842 : vector<4x4x8x1xf32>
    %844 = math.exp %843 : vector<4x4x8x1xf32>
    %cst_485 = arith.constant dense<0.000000e+00> : vector<4x8x1xf32>
    %845 = vector.multi_reduction <add>, %844, %cst_485 [1] : vector<4x4x8x1xf32> to vector<4x8x1xf32>
    %846 = vector.shape_cast %845 : vector<4x8x1xf32> to vector<4x1x8x1xf32>
    %847 = vector.broadcast %846 : vector<4x1x8x1xf32> to vector<4x4x8x1xf32>
    %848 = arith.divf %844, %847 : vector<4x4x8x1xf32>
    %849 = vector.shape_cast %832 : vector<4x8x8xf32> to vector<1x4x8x8xf32>
    %850 = vector.broadcast %848 : vector<4x4x8x1xf32> to vector<4x4x8x8xf32>
    %851 = vector.broadcast %849 : vector<1x4x8x8xf32> to vector<4x4x8x8xf32>
    %852 = arith.mulf %850, %851 : vector<4x4x8x8xf32>
    %cst_486 = arith.constant dense<0.000000e+00> : vector<4x8x8xf32>
    %853 = vector.multi_reduction <add>, %852, %cst_486 [1] : vector<4x4x8x8xf32> to vector<4x8x8xf32>
    %c0_487 = arith.constant 0 : index
    %c0_488 = arith.constant 0 : index
    %c0_489 = arith.constant 0 : index
    %854 = vector.load %arg31[%c0_487, %c0_488, %c0_489] : memref<4x8x32xf32, #tpu.memory_space<vmem>>, vector<4x8x8xf32>
    tpu.vector_store %arg31[%c0_487, %c0_488, %c0_489], %853 {strides = array<i32>} : memref<4x8x32xf32, #tpu.memory_space<vmem>>, vector<4x8x8xf32>,
    %c0_490 = arith.constant 0 : index
    %c0_491 = arith.constant 0 : index
    %c8_492 = arith.constant 8 : index
    %855 = vector.load %arg32[%c0_490, %c0_491, %c8_492] : memref<4x8x96xf32, #tpu.memory_space<vmem>>, vector<4x8x8xf32>
    %cst_493 = arith.constant 0.353553385 : f32
    %856 = vector.broadcast %cst_493 : f32 to vector<4x8x8xf32>
    %857 = arith.mulf %855, %856 : vector<4x8x8xf32>
    %c0_494 = arith.constant 0 : index
    %c0_495 = arith.constant 0 : index
    %c40_496 = arith.constant 40 : index
    %858 = vector.load %arg32[%c0_494, %c0_495, %c40_496] : memref<4x8x96xf32, #tpu.memory_space<vmem>>, vector<4x8x8xf32>
    %c0_497 = arith.constant 0 : index
    %c0_498 = arith.constant 0 : index
    %c72_499 = arith.constant 72 : index
    %859 = vector.load %arg32[%c0_497, %c0_498, %c72_499] : memref<4x8x96xf32, #tpu.memory_space<vmem>>, vector<4x8x8xf32>
    %860 = vector.shape_cast %857 : vector<4x8x8xf32> to vector<4x1x8x8xf32>
    %861 = vector.shape_cast %858 : vector<4x8x8xf32> to vector<1x4x8x8xf32>
    %862 = vector.broadcast %860 : vector<4x1x8x8xf32> to vector<4x4x8x8xf32>
    %863 = vector.broadcast %861 : vector<1x4x8x8xf32> to vector<4x4x8x8xf32>
    %864 = arith.mulf %862, %863 : vector<4x4x8x8xf32>
    %cst_500 = arith.constant dense<0.000000e+00> : vector<4x4x8xf32>
    %865 = vector.multi_reduction <add>, %864, %cst_500 [3] : vector<4x4x8x8xf32> to vector<4x4x8xf32>
    %866 = vector.shape_cast %865 : vector<4x4x8xf32> to vector<4x4x8x1xf32>
    %cst_501 = arith.constant dense<0xFF800000> : vector<4x8x1xf32>
    %867 = vector.multi_reduction <maximumf>, %866, %cst_501 [1] : vector<4x4x8x1xf32> to vector<4x8x1xf32>
    %868 = vector.shape_cast %867 : vector<4x8x1xf32> to vector<4x1x8x1xf32>
    %869 = vector.broadcast %868 : vector<4x1x8x1xf32> to vector<4x4x8x1xf32>
    %870 = arith.subf %866, %869 : vector<4x4x8x1xf32>
    %871 = math.exp %870 : vector<4x4x8x1xf32>
    %cst_502 = arith.constant dense<0.000000e+00> : vector<4x8x1xf32>
    %872 = vector.multi_reduction <add>, %871, %cst_502 [1] : vector<4x4x8x1xf32> to vector<4x8x1xf32>
    %873 = vector.shape_cast %872 : vector<4x8x1xf32> to vector<4x1x8x1xf32>
    %874 = vector.broadcast %873 : vector<4x1x8x1xf32> to vector<4x4x8x1xf32>
    %875 = arith.divf %871, %874 : vector<4x4x8x1xf32>
    %876 = vector.shape_cast %859 : vector<4x8x8xf32> to vector<1x4x8x8xf32>
    %877 = vector.broadcast %875 : vector<4x4x8x1xf32> to vector<4x4x8x8xf32>
    %878 = vector.broadcast %876 : vector<1x4x8x8xf32> to vector<4x4x8x8xf32>
    %879 = arith.mulf %877, %878 : vector<4x4x8x8xf32>
    %cst_503 = arith.constant dense<0.000000e+00> : vector<4x8x8xf32>
    %880 = vector.multi_reduction <add>, %879, %cst_503 [1] : vector<4x4x8x8xf32> to vector<4x8x8xf32>
    %c0_504 = arith.constant 0 : index
    %c0_505 = arith.constant 0 : index
    %c8_506 = arith.constant 8 : index
    %881 = vector.load %arg31[%c0_504, %c0_505, %c8_506] : memref<4x8x32xf32, #tpu.memory_space<vmem>>, vector<4x8x8xf32>
    tpu.vector_store %arg31[%c0_504, %c0_505, %c8_506], %880 {strides = array<i32>} : memref<4x8x32xf32, #tpu.memory_space<vmem>>, vector<4x8x8xf32>,
    %c0_507 = arith.constant 0 : index
    %c0_508 = arith.constant 0 : index
    %c16_509 = arith.constant 16 : index
    %882 = vector.load %arg32[%c0_507, %c0_508, %c16_509] : memref<4x8x96xf32, #tpu.memory_space<vmem>>, vector<4x8x8xf32>
    %cst_510 = arith.constant 0.353553385 : f32
    %883 = vector.broadcast %cst_510 : f32 to vector<4x8x8xf32>
    %884 = arith.mulf %882, %883 : vector<4x8x8xf32>
    %c0_511 = arith.constant 0 : index
    %c0_512 = arith.constant 0 : index
    %c48_513 = arith.constant 48 : index
    %885 = vector.load %arg32[%c0_511, %c0_512, %c48_513] : memref<4x8x96xf32, #tpu.memory_space<vmem>>, vector<4x8x8xf32>
    %c0_514 = arith.constant 0 : index
    %c0_515 = arith.constant 0 : index
    %c80_516 = arith.constant 80 : index
    %886 = vector.load %arg32[%c0_514, %c0_515, %c80_516] : memref<4x8x96xf32, #tpu.memory_space<vmem>>, vector<4x8x8xf32>
    %887 = vector.shape_cast %884 : vector<4x8x8xf32> to vector<4x1x8x8xf32>
    %888 = vector.shape_cast %885 : vector<4x8x8xf32> to vector<1x4x8x8xf32>
    %889 = vector.broadcast %887 : vector<4x1x8x8xf32> to vector<4x4x8x8xf32>
    %890 = vector.broadcast %888 : vector<1x4x8x8xf32> to vector<4x4x8x8xf32>
    %891 = arith.mulf %889, %890 : vector<4x4x8x8xf32>
    %cst_517 = arith.constant dense<0.000000e+00> : vector<4x4x8xf32>
    %892 = vector.multi_reduction <add>, %891, %cst_517 [3] : vector<4x4x8x8xf32> to vector<4x4x8xf32>
    %893 = vector.shape_cast %892 : vector<4x4x8xf32> to vector<4x4x8x1xf32>
    %cst_518 = arith.constant dense<0xFF800000> : vector<4x8x1xf32>
    %894 = vector.multi_reduction <maximumf>, %893, %cst_518 [1] : vector<4x4x8x1xf32> to vector<4x8x1xf32>
    %895 = vector.shape_cast %894 : vector<4x8x1xf32> to vector<4x1x8x1xf32>
    %896 = vector.broadcast %895 : vector<4x1x8x1xf32> to vector<4x4x8x1xf32>
    %897 = arith.subf %893, %896 : vector<4x4x8x1xf32>
    %898 = math.exp %897 : vector<4x4x8x1xf32>
    %cst_519 = arith.constant dense<0.000000e+00> : vector<4x8x1xf32>
    %899 = vector.multi_reduction <add>, %898, %cst_519 [1] : vector<4x4x8x1xf32> to vector<4x8x1xf32>
    %900 = vector.shape_cast %899 : vector<4x8x1xf32> to vector<4x1x8x1xf32>
    %901 = vector.broadcast %900 : vector<4x1x8x1xf32> to vector<4x4x8x1xf32>
    %902 = arith.divf %898, %901 : vector<4x4x8x1xf32>
    %903 = vector.shape_cast %886 : vector<4x8x8xf32> to vector<1x4x8x8xf32>
    %904 = vector.broadcast %902 : vector<4x4x8x1xf32> to vector<4x4x8x8xf32>
    %905 = vector.broadcast %903 : vector<1x4x8x8xf32> to vector<4x4x8x8xf32>
    %906 = arith.mulf %904, %905 : vector<4x4x8x8xf32>
    %cst_520 = arith.constant dense<0.000000e+00> : vector<4x8x8xf32>
    %907 = vector.multi_reduction <add>, %906, %cst_520 [1] : vector<4x4x8x8xf32> to vector<4x8x8xf32>
    %c0_521 = arith.constant 0 : index
    %c0_522 = arith.constant 0 : index
    %c16_523 = arith.constant 16 : index
    %908 = vector.load %arg31[%c0_521, %c0_522, %c16_523] : memref<4x8x32xf32, #tpu.memory_space<vmem>>, vector<4x8x8xf32>
    tpu.vector_store %arg31[%c0_521, %c0_522, %c16_523], %907 {strides = array<i32>} : memref<4x8x32xf32, #tpu.memory_space<vmem>>, vector<4x8x8xf32>,
    %c0_524 = arith.constant 0 : index
    %c0_525 = arith.constant 0 : index
    %c24_526 = arith.constant 24 : index
    %909 = vector.load %arg32[%c0_524, %c0_525, %c24_526] : memref<4x8x96xf32, #tpu.memory_space<vmem>>, vector<4x8x8xf32>
    %cst_527 = arith.constant 0.353553385 : f32
    %910 = vector.broadcast %cst_527 : f32 to vector<4x8x8xf32>
    %911 = arith.mulf %909, %910 : vector<4x8x8xf32>
    %c0_528 = arith.constant 0 : index
    %c0_529 = arith.constant 0 : index
    %c56_530 = arith.constant 56 : index
    %912 = vector.load %arg32[%c0_528, %c0_529, %c56_530] : memref<4x8x96xf32, #tpu.memory_space<vmem>>, vector<4x8x8xf32>
    %c0_531 = arith.constant 0 : index
    %c0_532 = arith.constant 0 : index
    %c88_533 = arith.constant 88 : index
    %913 = vector.load %arg32[%c0_531, %c0_532, %c88_533] : memref<4x8x96xf32, #tpu.memory_space<vmem>>, vector<4x8x8xf32>
    %914 = vector.shape_cast %911 : vector<4x8x8xf32> to vector<4x1x8x8xf32>
    %915 = vector.shape_cast %912 : vector<4x8x8xf32> to vector<1x4x8x8xf32>
    %916 = vector.broadcast %914 : vector<4x1x8x8xf32> to vector<4x4x8x8xf32>
    %917 = vector.broadcast %915 : vector<1x4x8x8xf32> to vector<4x4x8x8xf32>
    %918 = arith.mulf %916, %917 : vector<4x4x8x8xf32>
    %cst_534 = arith.constant dense<0.000000e+00> : vector<4x4x8xf32>
    %919 = vector.multi_reduction <add>, %918, %cst_534 [3] : vector<4x4x8x8xf32> to vector<4x4x8xf32>
    %920 = vector.shape_cast %919 : vector<4x4x8xf32> to vector<4x4x8x1xf32>
    %cst_535 = arith.constant dense<0xFF800000> : vector<4x8x1xf32>
    %921 = vector.multi_reduction <maximumf>, %920, %cst_535 [1] : vector<4x4x8x1xf32> to vector<4x8x1xf32>
    %922 = vector.shape_cast %921 : vector<4x8x1xf32> to vector<4x1x8x1xf32>
    %923 = vector.broadcast %922 : vector<4x1x8x1xf32> to vector<4x4x8x1xf32>
    %924 = arith.subf %920, %923 : vector<4x4x8x1xf32>
    %925 = math.exp %924 : vector<4x4x8x1xf32>
    %cst_536 = arith.constant dense<0.000000e+00> : vector<4x8x1xf32>
    %926 = vector.multi_reduction <add>, %925, %cst_536 [1] : vector<4x4x8x1xf32> to vector<4x8x1xf32>
    %927 = vector.shape_cast %926 : vector<4x8x1xf32> to vector<4x1x8x1xf32>
    %928 = vector.broadcast %927 : vector<4x1x8x1xf32> to vector<4x4x8x1xf32>
    %929 = arith.divf %925, %928 : vector<4x4x8x1xf32>
    %930 = vector.shape_cast %913 : vector<4x8x8xf32> to vector<1x4x8x8xf32>
    %931 = vector.broadcast %929 : vector<4x4x8x1xf32> to vector<4x4x8x8xf32>
    %932 = vector.broadcast %930 : vector<1x4x8x8xf32> to vector<4x4x8x8xf32>
    %933 = arith.mulf %931, %932 : vector<4x4x8x8xf32>
    %cst_537 = arith.constant dense<0.000000e+00> : vector<4x8x8xf32>
    %934 = vector.multi_reduction <add>, %933, %cst_537 [1] : vector<4x4x8x8xf32> to vector<4x8x8xf32>
    %c0_538 = arith.constant 0 : index
    %c0_539 = arith.constant 0 : index
    %c24_540 = arith.constant 24 : index
    %935 = vector.load %arg31[%c0_538, %c0_539, %c24_540] : memref<4x8x32xf32, #tpu.memory_space<vmem>>, vector<4x8x8xf32>
    tpu.vector_store %arg31[%c0_538, %c0_539, %c24_540], %934 {strides = array<i32>} : memref<4x8x32xf32, #tpu.memory_space<vmem>>, vector<4x8x8xf32>,
    %c0_541 = arith.constant 0 : index
    %c0_542 = arith.constant 0 : index
    %c0_543 = arith.constant 0 : index
    %936 = vector.load %arg31[%c0_541, %c0_542, %c0_543] : memref<4x8x32xf32, #tpu.memory_space<vmem>>, vector<4x8x32xf32>
    %937 = vector.shape_cast %936 : vector<4x8x32xf32> to vector<32x32xf32>
    %c1_544 = arith.constant 1 : index
    %c0_545 = arith.constant 0 : index
    %c0_546 = arith.constant 0 : index
    %938 = vector.load %arg12[%c1_544, %c0_545, %c0_546] : memref<2x32x32xf32, #tpu.memory_space<vmem>>, vector<1x32x32xf32>
    %939 = vector.shape_cast %938 : vector<1x32x32xf32> to vector<32x32xf32>
    %c1_547 = arith.constant 1 : index
    %c0_548 = arith.constant 0 : index
    %c0_549 = arith.constant 0 : index
    %940 = vector.load %arg13[%c1_547, %c0_548, %c0_549] : memref<2x1x32xf32, #tpu.memory_space<vmem>>, vector<1x1x32xf32>
    %941 = vector.shape_cast %940 : vector<1x1x32xf32> to vector<1x32xf32>
    %cst_550 = arith.constant dense<0.000000e+00> : vector<32x32xf32>
    %942 = tpu.matmul %937, %939, %cst_550 {dimension_numbers = #tpu.dot_dimension_numbers<[1], [0], [0], [1], [0, 0, 1, 1], [], []>} : vector<32x32xf32>, vector<32x32xf32>, vector<32x32xf32> -> vector<32x32xf32>
    %943 = vector.broadcast %941 : vector<1x32xf32> to vector<32x32xf32>
    %944 = arith.addf %942, %943 : vector<32x32xf32>
    %945 = arith.addf %794, %944 : vector<32x32xf32>
    %c1_551 = arith.constant 1 : index
    %c0_552 = arith.constant 0 : index
    %c0_553 = arith.constant 0 : index
    %946 = vector.load %arg14[%c1_551, %c0_552, %c0_553] : memref<2x1x32xf32, #tpu.memory_space<vmem>>, vector<1x1x32xf32>
    %947 = vector.shape_cast %946 : vector<1x1x32xf32> to vector<1x32xf32>
    %c1_554 = arith.constant 1 : index
    %c0_555 = arith.constant 0 : index
    %c0_556 = arith.constant 0 : index
    %948 = vector.load %arg15[%c1_554, %c0_555, %c0_556] : memref<2x1x32xf32, #tpu.memory_space<vmem>>, vector<1x1x32xf32>
    %949 = vector.shape_cast %948 : vector<1x1x32xf32> to vector<1x32xf32>
    %cst_557 = arith.constant dense<0.000000e+00> : vector<32xf32>
    %950 = vector.multi_reduction <add>, %945, %cst_557 [1] : vector<32x32xf32> to vector<32xf32>
    %951 = vector.shape_cast %950 : vector<32xf32> to vector<32x1xf32>
    %cst_558 = arith.constant 3.200000e+01 : f32
    %952 = vector.broadcast %cst_558 : f32 to vector<32x1xf32>
    %953 = arith.divf %951, %952 : vector<32x1xf32>
    %954 = vector.broadcast %953 : vector<32x1xf32> to vector<32x32xf32>
    %955 = arith.subf %945, %954 : vector<32x32xf32>
    %956 = arith.mulf %955, %955 : vector<32x32xf32>
    %cst_559 = arith.constant dense<0.000000e+00> : vector<32xf32>
    %957 = vector.multi_reduction <add>, %956, %cst_559 [1] : vector<32x32xf32> to vector<32xf32>
    %958 = vector.shape_cast %957 : vector<32xf32> to vector<32x1xf32>
    %cst_560 = arith.constant 3.200000e+01 : f32
    %959 = vector.broadcast %cst_560 : f32 to vector<32x1xf32>
    %960 = arith.divf %958, %959 : vector<32x1xf32>
    %cst_561 = arith.constant 9.99999974E-6 : f32
    %961 = vector.broadcast %cst_561 : f32 to vector<32x1xf32>
    %962 = arith.addf %960, %961 : vector<32x1xf32>
    %963 = math.rsqrt %962 : vector<32x1xf32>
    %964 = vector.broadcast %963 : vector<32x1xf32> to vector<32x32xf32>
    %965 = arith.mulf %955, %964 : vector<32x32xf32>
    %966 = vector.broadcast %947 : vector<1x32xf32> to vector<32x32xf32>
    %967 = arith.mulf %965, %966 : vector<32x32xf32>
    %968 = vector.broadcast %949 : vector<1x32xf32> to vector<32x32xf32>
    %969 = arith.addf %967, %968 : vector<32x32xf32>
    %c1_562 = arith.constant 1 : index
    %c0_563 = arith.constant 0 : index
    %c0_564 = arith.constant 0 : index
    %970 = vector.load %arg16[%c1_562, %c0_563, %c0_564] : memref<2x32x32xf32, #tpu.memory_space<vmem>>, vector<1x32x32xf32>
    %971 = vector.shape_cast %970 : vector<1x32x32xf32> to vector<32x32xf32>
    %c1_565 = arith.constant 1 : index
    %c0_566 = arith.constant 0 : index
    %c0_567 = arith.constant 0 : index
    %972 = vector.load %arg17[%c1_565, %c0_566, %c0_567] : memref<2x1x32xf32, #tpu.memory_space<vmem>>, vector<1x1x32xf32>
    %973 = vector.shape_cast %972 : vector<1x1x32xf32> to vector<1x32xf32>
    %cst_568 = arith.constant dense<0.000000e+00> : vector<32x32xf32>
    %974 = tpu.matmul %969, %971, %cst_568 {dimension_numbers = #tpu.dot_dimension_numbers<[1], [0], [0], [1], [0, 0, 1, 1], [], []>} : vector<32x32xf32>, vector<32x32xf32>, vector<32x32xf32> -> vector<32x32xf32>
    %975 = vector.broadcast %973 : vector<1x32xf32> to vector<32x32xf32>
    %976 = arith.addf %974, %975 : vector<32x32xf32>
    %cst_569 = arith.constant 5.000000e-01 : f32
    %977 = vector.broadcast %cst_569 : f32 to vector<32x32xf32>
    %978 = arith.mulf %977, %976 : vector<32x32xf32>
    %cst_570 = arith.constant 0.707106769 : f32
    %979 = vector.broadcast %cst_570 : f32 to vector<32x32xf32>
    %980 = arith.mulf %976, %979 : vector<32x32xf32>
    %981 = math.absf %980 : vector<32x32xf32>
    %cst_571 = arith.constant 0.327591091 : f32
    %982 = vector.broadcast %cst_571 : f32 to vector<32x32xf32>
    %983 = arith.mulf %982, %981 : vector<32x32xf32>
    %cst_572 = arith.constant 1.000000e+00 : f32
    %984 = vector.broadcast %cst_572 : f32 to vector<32x32xf32>
    %985 = arith.addf %984, %983 : vector<32x32xf32>
    %cst_573 = arith.constant 1.000000e+00 : f32
    %986 = vector.broadcast %cst_573 : f32 to vector<32x32xf32>
    %987 = arith.divf %986, %985 : vector<32x32xf32>
    %cst_574 = arith.constant 1.06140542 : f32
    %988 = vector.broadcast %cst_574 : f32 to vector<32x32xf32>
    %989 = arith.mulf %988, %987 : vector<32x32xf32>
    %cst_575 = arith.constant -1.45315206 : f32
    %990 = vector.broadcast %cst_575 : f32 to vector<32x32xf32>
    %991 = arith.addf %989, %990 : vector<32x32xf32>
    %992 = arith.mulf %991, %987 : vector<32x32xf32>
    %cst_576 = arith.constant 1.42141378 : f32
    %993 = vector.broadcast %cst_576 : f32 to vector<32x32xf32>
    %994 = arith.addf %992, %993 : vector<32x32xf32>
    %995 = arith.mulf %994, %987 : vector<32x32xf32>
    %cst_577 = arith.constant -0.284496725 : f32
    %996 = vector.broadcast %cst_577 : f32 to vector<32x32xf32>
    %997 = arith.addf %995, %996 : vector<32x32xf32>
    %998 = arith.mulf %997, %987 : vector<32x32xf32>
    %cst_578 = arith.constant 0.254829586 : f32
    %999 = vector.broadcast %cst_578 : f32 to vector<32x32xf32>
    %1000 = arith.addf %998, %999 : vector<32x32xf32>
    %1001 = arith.mulf %1000, %987 : vector<32x32xf32>
    %1002 = arith.mulf %981, %981 : vector<32x32xf32>
    %cst_579 = arith.constant 0.000000e+00 : f32
    %1003 = vector.broadcast %cst_579 : f32 to vector<32x32xf32>
    %1004 = arith.subf %1003, %1002 : vector<32x32xf32>
    %1005 = math.exp %1004 : vector<32x32xf32>
    %1006 = arith.mulf %1001, %1005 : vector<32x32xf32>
    %cst_580 = arith.constant 1.000000e+00 : f32
    %1007 = vector.broadcast %cst_580 : f32 to vector<32x32xf32>
    %1008 = arith.subf %1007, %1006 : vector<32x32xf32>
    %cst_581 = arith.constant 0.000000e+00 : f32
    %1009 = vector.broadcast %cst_581 : f32 to vector<32x32xf32>
    %1010 = arith.cmpf oge, %980, %1009 : vector<32x32xf32>
    %cst_582 = arith.constant 0.000000e+00 : f32
    %1011 = vector.broadcast %cst_582 : f32 to vector<32x32xf32>
    %1012 = arith.subf %1011, %1008 : vector<32x32xf32>
    %1013 = arith.select %1010, %1008, %1012 : vector<32x32xi1>, vector<32x32xf32>
    %cst_583 = arith.constant 1.000000e+00 : f32
    %1014 = vector.broadcast %cst_583 : f32 to vector<32x32xf32>
    %1015 = arith.addf %1014, %1013 : vector<32x32xf32>
    %1016 = arith.mulf %978, %1015 : vector<32x32xf32>
    %c1_584 = arith.constant 1 : index
    %c0_585 = arith.constant 0 : index
    %c0_586 = arith.constant 0 : index
    %1017 = vector.load %arg18[%c1_584, %c0_585, %c0_586] : memref<2x32x32xf32, #tpu.memory_space<vmem>>, vector<1x32x32xf32>
    %1018 = vector.shape_cast %1017 : vector<1x32x32xf32> to vector<32x32xf32>
    %c1_587 = arith.constant 1 : index
    %c0_588 = arith.constant 0 : index
    %c0_589 = arith.constant 0 : index
    %1019 = vector.load %arg19[%c1_587, %c0_588, %c0_589] : memref<2x1x32xf32, #tpu.memory_space<vmem>>, vector<1x1x32xf32>
    %1020 = vector.shape_cast %1019 : vector<1x1x32xf32> to vector<1x32xf32>
    %cst_590 = arith.constant dense<0.000000e+00> : vector<32x32xf32>
    %1021 = tpu.matmul %1016, %1018, %cst_590 {dimension_numbers = #tpu.dot_dimension_numbers<[1], [0], [0], [1], [0, 0, 1, 1], [], []>} : vector<32x32xf32>, vector<32x32xf32>, vector<32x32xf32> -> vector<32x32xf32>
    %1022 = vector.broadcast %1020 : vector<1x32xf32> to vector<32x32xf32>
    %1023 = arith.addf %1021, %1022 : vector<32x32xf32>
    %1024 = arith.addf %945, %1023 : vector<32x32xf32>
    %c0_591 = arith.constant 0 : index
    %c0_592 = arith.constant 0 : index
    %1025 = vector.load %arg22[%c0_591, %c0_592] : memref<1x32xf32, #tpu.memory_space<vmem>>, vector<1x32xf32>
    %c0_593 = arith.constant 0 : index
    %c0_594 = arith.constant 0 : index
    %1026 = vector.load %arg23[%c0_593, %c0_594] : memref<1x32xf32, #tpu.memory_space<vmem>>, vector<1x32xf32>
    %cst_595 = arith.constant dense<0.000000e+00> : vector<32xf32>
    %1027 = vector.multi_reduction <add>, %1024, %cst_595 [1] : vector<32x32xf32> to vector<32xf32>
    %1028 = vector.shape_cast %1027 : vector<32xf32> to vector<32x1xf32>
    %cst_596 = arith.constant 3.200000e+01 : f32
    %1029 = vector.broadcast %cst_596 : f32 to vector<32x1xf32>
    %1030 = arith.divf %1028, %1029 : vector<32x1xf32>
    %1031 = vector.broadcast %1030 : vector<32x1xf32> to vector<32x32xf32>
    %1032 = arith.subf %1024, %1031 : vector<32x32xf32>
    %1033 = arith.mulf %1032, %1032 : vector<32x32xf32>
    %cst_597 = arith.constant dense<0.000000e+00> : vector<32xf32>
    %1034 = vector.multi_reduction <add>, %1033, %cst_597 [1] : vector<32x32xf32> to vector<32xf32>
    %1035 = vector.shape_cast %1034 : vector<32xf32> to vector<32x1xf32>
    %cst_598 = arith.constant 3.200000e+01 : f32
    %1036 = vector.broadcast %cst_598 : f32 to vector<32x1xf32>
    %1037 = arith.divf %1035, %1036 : vector<32x1xf32>
    %cst_599 = arith.constant 9.99999974E-6 : f32
    %1038 = vector.broadcast %cst_599 : f32 to vector<32x1xf32>
    %1039 = arith.addf %1037, %1038 : vector<32x1xf32>
    %1040 = math.rsqrt %1039 : vector<32x1xf32>
    %1041 = vector.broadcast %1040 : vector<32x1xf32> to vector<32x32xf32>
    %1042 = arith.mulf %1032, %1041 : vector<32x32xf32>
    %1043 = vector.broadcast %1025 : vector<1x32xf32> to vector<32x32xf32>
    %1044 = arith.mulf %1042, %1043 : vector<32x32xf32>
    %1045 = vector.broadcast %1026 : vector<1x32xf32> to vector<32x32xf32>
    %1046 = arith.addf %1044, %1045 : vector<32x32xf32>
    %c0_600 = arith.constant 0 : index
    %c0_601 = arith.constant 0 : index
    %1047 = vector.load %arg24[%c0_600, %c0_601] : memref<32x32xf32, #tpu.memory_space<vmem>>, vector<32x32xf32>
    %c0_602 = arith.constant 0 : index
    %c0_603 = arith.constant 0 : index
    %1048 = vector.load %arg25[%c0_602, %c0_603] : memref<1x32xf32, #tpu.memory_space<vmem>>, vector<1x32xf32>
    %cst_604 = arith.constant dense<0.000000e+00> : vector<32x32xf32>
    %1049 = tpu.matmul %1046, %1047, %cst_604 {dimension_numbers = #tpu.dot_dimension_numbers<[1], [0], [0], [1], [0, 0, 1, 1], [], []>} : vector<32x32xf32>, vector<32x32xf32>, vector<32x32xf32> -> vector<32x32xf32>
    %1050 = vector.broadcast %1048 : vector<1x32xf32> to vector<32x32xf32>
    %1051 = arith.addf %1049, %1050 : vector<32x32xf32>
    %cst_605 = arith.constant 5.000000e-01 : f32
    %1052 = vector.broadcast %cst_605 : f32 to vector<32x32xf32>
    %1053 = arith.mulf %1052, %1051 : vector<32x32xf32>
    %cst_606 = arith.constant 0.707106769 : f32
    %1054 = vector.broadcast %cst_606 : f32 to vector<32x32xf32>
    %1055 = arith.mulf %1051, %1054 : vector<32x32xf32>
    %1056 = math.absf %1055 : vector<32x32xf32>
    %cst_607 = arith.constant 0.327591091 : f32
    %1057 = vector.broadcast %cst_607 : f32 to vector<32x32xf32>
    %1058 = arith.mulf %1057, %1056 : vector<32x32xf32>
    %cst_608 = arith.constant 1.000000e+00 : f32
    %1059 = vector.broadcast %cst_608 : f32 to vector<32x32xf32>
    %1060 = arith.addf %1059, %1058 : vector<32x32xf32>
    %cst_609 = arith.constant 1.000000e+00 : f32
    %1061 = vector.broadcast %cst_609 : f32 to vector<32x32xf32>
    %1062 = arith.divf %1061, %1060 : vector<32x32xf32>
    %cst_610 = arith.constant 1.06140542 : f32
    %1063 = vector.broadcast %cst_610 : f32 to vector<32x32xf32>
    %1064 = arith.mulf %1063, %1062 : vector<32x32xf32>
    %cst_611 = arith.constant -1.45315206 : f32
    %1065 = vector.broadcast %cst_611 : f32 to vector<32x32xf32>
    %1066 = arith.addf %1064, %1065 : vector<32x32xf32>
    %1067 = arith.mulf %1066, %1062 : vector<32x32xf32>
    %cst_612 = arith.constant 1.42141378 : f32
    %1068 = vector.broadcast %cst_612 : f32 to vector<32x32xf32>
    %1069 = arith.addf %1067, %1068 : vector<32x32xf32>
    %1070 = arith.mulf %1069, %1062 : vector<32x32xf32>
    %cst_613 = arith.constant -0.284496725 : f32
    %1071 = vector.broadcast %cst_613 : f32 to vector<32x32xf32>
    %1072 = arith.addf %1070, %1071 : vector<32x32xf32>
    %1073 = arith.mulf %1072, %1062 : vector<32x32xf32>
    %cst_614 = arith.constant 0.254829586 : f32
    %1074 = vector.broadcast %cst_614 : f32 to vector<32x32xf32>
    %1075 = arith.addf %1073, %1074 : vector<32x32xf32>
    %1076 = arith.mulf %1075, %1062 : vector<32x32xf32>
    %1077 = arith.mulf %1056, %1056 : vector<32x32xf32>
    %cst_615 = arith.constant 0.000000e+00 : f32
    %1078 = vector.broadcast %cst_615 : f32 to vector<32x32xf32>
    %1079 = arith.subf %1078, %1077 : vector<32x32xf32>
    %1080 = math.exp %1079 : vector<32x32xf32>
    %1081 = arith.mulf %1076, %1080 : vector<32x32xf32>
    %cst_616 = arith.constant 1.000000e+00 : f32
    %1082 = vector.broadcast %cst_616 : f32 to vector<32x32xf32>
    %1083 = arith.subf %1082, %1081 : vector<32x32xf32>
    %cst_617 = arith.constant 0.000000e+00 : f32
    %1084 = vector.broadcast %cst_617 : f32 to vector<32x32xf32>
    %1085 = arith.cmpf oge, %1055, %1084 : vector<32x32xf32>
    %cst_618 = arith.constant 0.000000e+00 : f32
    %1086 = vector.broadcast %cst_618 : f32 to vector<32x32xf32>
    %1087 = arith.subf %1086, %1083 : vector<32x32xf32>
    %1088 = arith.select %1085, %1083, %1087 : vector<32x32xi1>, vector<32x32xf32>
    %cst_619 = arith.constant 1.000000e+00 : f32
    %1089 = vector.broadcast %cst_619 : f32 to vector<32x32xf32>
    %1090 = arith.addf %1089, %1088 : vector<32x32xf32>
    %1091 = arith.mulf %1053, %1090 : vector<32x32xf32>
    %c0_620 = arith.constant 0 : index
    %c0_621 = arith.constant 0 : index
    %1092 = vector.load %arg26[%c0_620, %c0_621] : memref<1x32xf32, #tpu.memory_space<vmem>>, vector<1x32xf32>
    %c0_622 = arith.constant 0 : index
    %c0_623 = arith.constant 0 : index
    %1093 = vector.load %arg27[%c0_622, %c0_623] : memref<1x32xf32, #tpu.memory_space<vmem>>, vector<1x32xf32>
    %cst_624 = arith.constant dense<0.000000e+00> : vector<32xf32>
    %1094 = vector.multi_reduction <add>, %1091, %cst_624 [1] : vector<32x32xf32> to vector<32xf32>
    %1095 = vector.shape_cast %1094 : vector<32xf32> to vector<32x1xf32>
    %cst_625 = arith.constant 3.200000e+01 : f32
    %1096 = vector.broadcast %cst_625 : f32 to vector<32x1xf32>
    %1097 = arith.divf %1095, %1096 : vector<32x1xf32>
    %1098 = vector.broadcast %1097 : vector<32x1xf32> to vector<32x32xf32>
    %1099 = arith.subf %1091, %1098 : vector<32x32xf32>
    %1100 = arith.mulf %1099, %1099 : vector<32x32xf32>
    %cst_626 = arith.constant dense<0.000000e+00> : vector<32xf32>
    %1101 = vector.multi_reduction <add>, %1100, %cst_626 [1] : vector<32x32xf32> to vector<32xf32>
    %1102 = vector.shape_cast %1101 : vector<32xf32> to vector<32x1xf32>
    %cst_627 = arith.constant 3.200000e+01 : f32
    %1103 = vector.broadcast %cst_627 : f32 to vector<32x1xf32>
    %1104 = arith.divf %1102, %1103 : vector<32x1xf32>
    %cst_628 = arith.constant 9.99999974E-6 : f32
    %1105 = vector.broadcast %cst_628 : f32 to vector<32x1xf32>
    %1106 = arith.addf %1104, %1105 : vector<32x1xf32>
    %1107 = math.rsqrt %1106 : vector<32x1xf32>
    %1108 = vector.broadcast %1107 : vector<32x1xf32> to vector<32x32xf32>
    %1109 = arith.mulf %1099, %1108 : vector<32x32xf32>
    %1110 = vector.broadcast %1092 : vector<1x32xf32> to vector<32x32xf32>
    %1111 = arith.mulf %1109, %1110 : vector<32x32xf32>
    %1112 = vector.broadcast %1093 : vector<1x32xf32> to vector<32x32xf32>
    %1113 = arith.addf %1111, %1112 : vector<32x32xf32>
    %c0_629 = arith.constant 0 : index
    %c0_630 = arith.constant 0 : index
    %1114 = vector.load %arg28[%c0_629, %c0_630] : memref<32x128xf32, #tpu.memory_space<vmem>>, vector<32x128xf32>
    %cst_631 = arith.constant dense<0.000000e+00> : vector<32x128xf32>
    %1115 = tpu.matmul %1113, %1114, %cst_631 {dimension_numbers = #tpu.dot_dimension_numbers<[1], [0], [0], [1], [0, 0, 1, 1], [], []>} : vector<32x32xf32>, vector<32x128xf32>, vector<32x128xf32> -> vector<32x128xf32>
    %c0_632 = arith.constant 0 : index
    %c0_633 = arith.constant 0 : index
    %1116 = vector.load %arg29[%c0_632, %c0_633] : memref<1x128xf32, #tpu.memory_space<vmem>>, vector<1x128xf32>
    %1117 = vector.broadcast %1116 : vector<1x128xf32> to vector<32x128xf32>
    %1118 = arith.addf %1115, %1117 : vector<32x128xf32>
    %c0_634 = arith.constant 0 : index
    %c0_635 = arith.constant 0 : index
    %1119 = vector.load %arg30[%c0_634, %c0_635] : memref<32x128xf32, #tpu.memory_space<vmem>>, vector<32x128xf32>
    tpu.vector_store %arg30[%c0_634, %c0_635], %1118 {strides = array<i32>} : memref<32x128xf32, #tpu.memory_space<vmem>>, vector<32x128xf32>,
    return
  }
  func.func @transform_0(%arg0: i32) -> (i32, i32) {
    %c0_i32 = arith.constant 0 : i32
    %c0_i32_0 = arith.constant 0 : i32
    return %arg0, %c0_i32 : i32, i32
  }
  func.func @transform_1(%arg0: i32) -> (i32, i32, i32) {
    %c0_i32 = arith.constant 0 : i32
    %c0_i32_0 = arith.constant 0 : i32
    %c0_i32_1 = arith.constant 0 : i32
    %c0_i32_2 = arith.constant 0 : i32
    return %c0_i32, %c0_i32_0, %c0_i32_1 : i32, i32, i32
  }
  func.func @transform_2(%arg0: i32) -> (i32, i32, i32) {
    %c0_i32 = arith.constant 0 : i32
    %c0_i32_0 = arith.constant 0 : i32
    %c0_i32_1 = arith.constant 0 : i32
    %c0_i32_2 = arith.constant 0 : i32
    return %c0_i32, %c0_i32_0, %c0_i32_1 : i32, i32, i32
  }
  func.func @transform_3(%arg0: i32) -> (i32, i32, i32) {
    %c0_i32 = arith.constant 0 : i32
    %c0_i32_0 = arith.constant 0 : i32
    %c0_i32_1 = arith.constant 0 : i32
    %c0_i32_2 = arith.constant 0 : i32
    return %c0_i32, %c0_i32_0, %c0_i32_1 : i32, i32, i32
  }
  func.func @transform_4(%arg0: i32) -> (i32, i32, i32) {
    %c0_i32 = arith.constant 0 : i32
    %c0_i32_0 = arith.constant 0 : i32
    %c0_i32_1 = arith.constant 0 : i32
    %c0_i32_2 = arith.constant 0 : i32
    return %c0_i32, %c0_i32_0, %c0_i32_1 : i32, i32, i32
  }
  func.func @transform_5(%arg0: i32) -> (i32, i32, i32) {
    %c0_i32 = arith.constant 0 : i32
    %c0_i32_0 = arith.constant 0 : i32
    %c0_i32_1 = arith.constant 0 : i32
    %c0_i32_2 = arith.constant 0 : i32
    return %c0_i32, %c0_i32_0, %c0_i32_1 : i32, i32, i32
  }
  func.func @transform_6(%arg0: i32) -> (i32, i32, i32) {
    %c0_i32 = arith.constant 0 : i32
    %c0_i32_0 = arith.constant 0 : i32
    %c0_i32_1 = arith.constant 0 : i32
    %c0_i32_2 = arith.constant 0 : i32
    return %c0_i32, %c0_i32_0, %c0_i32_1 : i32, i32, i32
  }
  func.func @transform_7(%arg0: i32) -> (i32, i32, i32) {
    %c0_i32 = arith.constant 0 : i32
    %c0_i32_0 = arith.constant 0 : i32
    %c0_i32_1 = arith.constant 0 : i32
    %c0_i32_2 = arith.constant 0 : i32
    return %c0_i32, %c0_i32_0, %c0_i32_1 : i32, i32, i32
  }
  func.func @transform_8(%arg0: i32) -> (i32, i32, i32) {
    %c0_i32 = arith.constant 0 : i32
    %c0_i32_0 = arith.constant 0 : i32
    %c0_i32_1 = arith.constant 0 : i32
    %c0_i32_2 = arith.constant 0 : i32
    return %c0_i32, %c0_i32_0, %c0_i32_1 : i32, i32, i32
  }
  func.func @transform_9(%arg0: i32) -> (i32, i32, i32) {
    %c0_i32 = arith.constant 0 : i32
    %c0_i32_0 = arith.constant 0 : i32
    %c0_i32_1 = arith.constant 0 : i32
    %c0_i32_2 = arith.constant 0 : i32
    return %c0_i32, %c0_i32_0, %c0_i32_1 : i32, i32, i32
  }
  func.func @transform_10(%arg0: i32) -> (i32, i32, i32) {
    %c0_i32 = arith.constant 0 : i32
    %c0_i32_0 = arith.constant 0 : i32
    %c0_i32_1 = arith.constant 0 : i32
    %c0_i32_2 = arith.constant 0 : i32
    return %c0_i32, %c0_i32_0, %c0_i32_1 : i32, i32, i32
  }
  func.func @transform_11(%arg0: i32) -> (i32, i32, i32) {
    %c0_i32 = arith.constant 0 : i32
    %c0_i32_0 = arith.constant 0 : i32
    %c0_i32_1 = arith.constant 0 : i32
    %c0_i32_2 = arith.constant 0 : i32
    return %c0_i32, %c0_i32_0, %c0_i32_1 : i32, i32, i32
  }
  func.func @transform_12(%arg0: i32) -> (i32, i32, i32) {
    %c0_i32 = arith.constant 0 : i32
    %c0_i32_0 = arith.constant 0 : i32
    %c0_i32_1 = arith.constant 0 : i32
    %c0_i32_2 = arith.constant 0 : i32
    return %c0_i32, %c0_i32_0, %c0_i32_1 : i32, i32, i32
  }
  func.func @transform_13(%arg0: i32) -> (i32, i32, i32) {
    %c0_i32 = arith.constant 0 : i32
    %c0_i32_0 = arith.constant 0 : i32
    %c0_i32_1 = arith.constant 0 : i32
    %c0_i32_2 = arith.constant 0 : i32
    return %c0_i32, %c0_i32_0, %c0_i32_1 : i32, i32, i32
  }
  func.func @transform_14(%arg0: i32) -> (i32, i32, i32) {
    %c0_i32 = arith.constant 0 : i32
    %c0_i32_0 = arith.constant 0 : i32
    %c0_i32_1 = arith.constant 0 : i32
    %c0_i32_2 = arith.constant 0 : i32
    return %c0_i32, %c0_i32_0, %c0_i32_1 : i32, i32, i32
  }
  func.func @transform_15(%arg0: i32) -> (i32, i32, i32) {
    %c0_i32 = arith.constant 0 : i32
    %c0_i32_0 = arith.constant 0 : i32
    %c0_i32_1 = arith.constant 0 : i32
    %c0_i32_2 = arith.constant 0 : i32
    return %c0_i32, %c0_i32_0, %c0_i32_1 : i32, i32, i32
  }
  func.func @transform_16(%arg0: i32) -> (i32, i32, i32) {
    %c0_i32 = arith.constant 0 : i32
    %c0_i32_0 = arith.constant 0 : i32
    %c0_i32_1 = arith.constant 0 : i32
    %c0_i32_2 = arith.constant 0 : i32
    return %c0_i32, %c0_i32_0, %c0_i32_1 : i32, i32, i32
  }
  func.func @transform_17(%arg0: i32) -> (i32, i32, i32) {
    %c0_i32 = arith.constant 0 : i32
    %c0_i32_0 = arith.constant 0 : i32
    %c0_i32_1 = arith.constant 0 : i32
    %c0_i32_2 = arith.constant 0 : i32
    return %c0_i32, %c0_i32_0, %c0_i32_1 : i32, i32, i32
  }
  func.func @transform_18(%arg0: i32) -> (i32, i32, i32) {
    %c0_i32 = arith.constant 0 : i32
    %c0_i32_0 = arith.constant 0 : i32
    %c0_i32_1 = arith.constant 0 : i32
    %c0_i32_2 = arith.constant 0 : i32
    return %c0_i32, %c0_i32_0, %c0_i32_1 : i32, i32, i32
  }
  func.func @transform_19(%arg0: i32) -> (i32, i32) {
    %c0_i32 = arith.constant 0 : i32
    %c0_i32_0 = arith.constant 0 : i32
    %c0_i32_1 = arith.constant 0 : i32
    return %c0_i32, %c0_i32_0 : i32, i32
  }
  func.func @transform_20(%arg0: i32) -> (i32, i32) {
    %c0_i32 = arith.constant 0 : i32
    %c0_i32_0 = arith.constant 0 : i32
    %c0_i32_1 = arith.constant 0 : i32
    return %c0_i32, %c0_i32_0 : i32, i32
  }
  func.func @transform_21(%arg0: i32) -> (i32, i32) {
    %c0_i32 = arith.constant 0 : i32
    %c0_i32_0 = arith.constant 0 : i32
    %c0_i32_1 = arith.constant 0 : i32
    return %c0_i32, %c0_i32_0 : i32, i32
  }
  func.func @transform_22(%arg0: i32) -> (i32, i32) {
    %c0_i32 = arith.constant 0 : i32
    %c0_i32_0 = arith.constant 0 : i32
    %c0_i32_1 = arith.constant 0 : i32
    return %c0_i32, %c0_i32_0 : i32, i32
  }
  func.func @transform_23(%arg0: i32) -> (i32, i32) {
    %c0_i32 = arith.constant 0 : i32
    %c0_i32_0 = arith.constant 0 : i32
    %c0_i32_1 = arith.constant 0 : i32
    return %c0_i32, %c0_i32_0 : i32, i32
  }
  func.func @transform_24(%arg0: i32) -> (i32, i32) {
    %c0_i32 = arith.constant 0 : i32
    %c0_i32_0 = arith.constant 0 : i32
    %c0_i32_1 = arith.constant 0 : i32
    return %c0_i32, %c0_i32_0 : i32, i32
  }
  func.func @transform_25(%arg0: i32) -> (i32, i32) {
    %c0_i32 = arith.constant 0 : i32
    %c0_i32_0 = arith.constant 0 : i32
    %c0_i32_1 = arith.constant 0 : i32
    return %c0_i32, %c0_i32_0 : i32, i32
  }
  func.func @transform_26(%arg0: i32) -> (i32, i32) {
    %c0_i32 = arith.constant 0 : i32
    %c0_i32_0 = arith.constant 0 : i32
    %c0_i32_1 = arith.constant 0 : i32
    return %c0_i32, %c0_i32_0 : i32, i32
  }
  func.func @transform_27(%arg0: i32) -> (i32, i32) {
    %c0_i32 = arith.constant 0 : i32
    %c0_i32_0 = arith.constant 0 : i32
    %c0_i32_1 = arith.constant 0 : i32
    return %c0_i32, %c0_i32_0 : i32, i32
  }
  func.func @transform_28(%arg0: i32) -> (i32, i32) {
    %c0_i32 = arith.constant 0 : i32
    %c0_i32_0 = arith.constant 0 : i32
    %c0_i32_1 = arith.constant 0 : i32
    return %c0_i32, %c0_i32_0 : i32, i32
  }
  func.func @transform_29(%arg0: i32) -> (i32, i32) {
    %c0_i32 = arith.constant 0 : i32
    %c0_i32_0 = arith.constant 0 : i32
    return %arg0, %c0_i32 : i32, i32
  }
}

</mosaic_0001>

<llo_original>
// kernel: msa_transf_forward.1
$region0: #{msa_transf_forward.1}
  #allocation0 [shape = 'u32[]', space=smem, size = 0x4, offset = 0x4, fixed_abs, tag = 'smem constant byte address 0x4 - core index']
  #allocation1 [shape = 'u32[72,128]{1,0:T(1,128)}', space=vmem, size = 0x9000, scoped, tag = 'internal scratch']
  #allocation2 [shape = 'f32[4,8,32]{2,1,0:T(8,128)}', space=vmem, size = 0x4000, scoped, tag = 'scratch operand']
  #allocation3 [shape = 'f32[4,8,96]{2,1,0:T(8,128)}', space=vmem, size = 0x4000, scoped, tag = 'scratch operand']
  %s0 = inlined_call_operand.smem [shape: u32[30], index: -1, kind: input, shape index: {}]
  %s1 = sld [smem:[%s0]]
  %s2 = scalar_lea.smem %s0, 1
  %s3 = sld [smem:[%s2]]
  %s4 = scalar_lea.smem %s0, 2
  %s5 = sld [smem:[%s4]]
  %s6 = scalar_lea.smem %s0, 3
  %s7 = sld [smem:[%s6]]
  %s8 = scalar_lea.smem %s0, 4
  %s9 = sld [smem:[%s8]]
  %s10 = scalar_lea.smem %s0, 5
  %s11 = sld [smem:[%s10]]
  %s12 = scalar_lea.smem %s0, 6
  %s13 = sld [smem:[%s12]]
  %s14 = scalar_lea.smem %s0, 7
  %s15 = sld [smem:[%s14]]
  %s16 = scalar_lea.smem %s0, 8
  %s17 = sld [smem:[%s16]]
  %s18 = scalar_lea.smem %s0, 9
  %s19 = sld [smem:[%s18]]
  %s20 = scalar_lea.smem %s0, 10
  %s21 = sld [smem:[%s20]]
  %s22 = scalar_lea.smem %s0, 11
  %s23 = sld [smem:[%s22]]
  %s24 = scalar_lea.smem %s0, 12
  %s25 = sld [smem:[%s24]]
  %s26 = scalar_lea.smem %s0, 13
  %s27 = sld [smem:[%s26]]
  %s28 = scalar_lea.smem %s0, 14
  %s29 = sld [smem:[%s28]]
  %s30 = scalar_lea.smem %s0, 15
  %s31 = sld [smem:[%s30]]
  %s32 = scalar_lea.smem %s0, 16
  %s33 = sld [smem:[%s32]]
  %s34 = scalar_lea.smem %s0, 17
  %s35 = sld [smem:[%s34]]
  %s36 = scalar_lea.smem %s0, 18
  %s37 = sld [smem:[%s36]]
  %s38 = scalar_lea.smem %s0, 19
  %s39 = sld [smem:[%s38]]
  %s40 = scalar_lea.smem %s0, 20
  %s41 = sld [smem:[%s40]]
  %s42 = scalar_lea.smem %s0, 21
  %s43 = sld [smem:[%s42]]
  %s44 = scalar_lea.smem %s0, 22
  %s45 = sld [smem:[%s44]]
  %s46 = scalar_lea.smem %s0, 23
  %s47 = sld [smem:[%s46]]
  %s48 = scalar_lea.smem %s0, 24
  %s49 = sld [smem:[%s48]]
  %s50 = scalar_lea.smem %s0, 25
  %s51 = sld [smem:[%s50]]
  %s52 = scalar_lea.smem %s0, 26
  %s53 = sld [smem:[%s52]]
  %s54 = scalar_lea.smem %s0, 27
  %s55 = sld [smem:[%s54]]
  %s56 = scalar_lea.smem %s0, 28
  %s57 = sld [smem:[%s56]]
  %s58 = scalar_lea.smem %s0, 29
  %s59 = sld [smem:[%s58]]
  %s60 = sld [smem:[#allocation0]]
  $region149: #{msa_transf_forward.1} parent=0
    _
  %s62 = ssub.s32 1, %s60
  %s63 = scalar_select 0, %s62, %s60
  $region1: #{msa_transf_forward.1} parent=0
    #allocation4 [shape = 'u8[32768]{0}', space=vmem, size = 0x8000, scoped, tag = 'output window, operand 0']
    #allocation5 [shape = 's32[2]{0}', space=sflag, size = 0x8, scoped, tag = 'scoped memory for msa_transf_forward.1']
    %64 = vsyncpa [#allocation5], 0
    %s65 = scalar_lea.sflag [#allocation5], 1
    %66 = vsyncpa %s65, 0
    loop: start=0, step=1, limit=4
    $region2: #{msa_transf_forward.1} parent=1 // loop_pre_header
      _
    $region3: #{msa_transf_forward.1} parent=1 // loop_header
      %s68 = sphi 0, %s72
      %p69 = scmp.ge.s32.totalorder %s68, 4
      %s78 = sphi 0, %s80
      %s81 = sphi 0, %s78
      %s82 = sphi 0, %s81
      %s98 = sphi 0, %s82
      %s102 = sphi 0, %s102
      %s104 = sphi 0, %s102
      %s105 = sphi 0, %s104
      %s119 = sphi 0, %s105
      %s123 = sphi 0, %s123
      %s125 = sphi 0, %s123
      %s126 = sphi 0, %s125
      %s140 = sphi 0, %s126
      %s144 = sphi 0, %s144
      %s146 = sphi 0, %s144
      %s147 = sphi 0, %s146
      %s161 = sphi 0, %s147
      %s165 = sphi 0, %s165
      %s167 = sphi 0, %s165
      %s168 = sphi 0, %s167
      %s182 = sphi 0, %s168
      %s186 = sphi 0, %s186
      %s188 = sphi 0, %s186
      %s189 = sphi 0, %s188
      %s203 = sphi 0, %s189
      %s207 = sphi 0, %s207
      %s209 = sphi 0, %s207
      %s210 = sphi 0, %s209
      %s224 = sphi 0, %s210
      %s228 = sphi 0, %s228
      %s230 = sphi 0, %s228
      %s231 = sphi 0, %s230
      %s245 = sphi 0, %s231
      %s249 = sphi 0, %s249
      %s251 = sphi 0, %s249
      %s252 = sphi 0, %s251
      %s266 = sphi 0, %s252
      %s270 = sphi 0, %s270
      %s272 = sphi 0, %s270
      %s273 = sphi 0, %s272
      %s287 = sphi 0, %s273
      %s291 = sphi 0, %s291
      %s293 = sphi 0, %s291
      %s294 = sphi 0, %s293
      %s308 = sphi 0, %s294
      %s312 = sphi 0, %s312
      %s314 = sphi 0, %s312
      %s315 = sphi 0, %s314
      %s329 = sphi 0, %s315
      %s333 = sphi 0, %s333
      %s335 = sphi 0, %s333
      %s336 = sphi 0, %s335
      %s350 = sphi 0, %s336
      %s354 = sphi 0, %s354
      %s356 = sphi 0, %s354
      %s357 = sphi 0, %s356
      %s371 = sphi 0, %s357
      %s375 = sphi 0, %s375
      %s377 = sphi 0, %s375
      %s378 = sphi 0, %s377
      %s392 = sphi 0, %s378
      %s396 = sphi 0, %s396
      %s398 = sphi 0, %s396
      %s399 = sphi 0, %s398
      %s413 = sphi 0, %s399
      %s417 = sphi 0, %s417
      %s419 = sphi 0, %s417
      %s420 = sphi 0, %s419
      %s434 = sphi 0, %s420
      %s438 = sphi 0, %s438
      %s440 = sphi 0, %s438
      %s441 = sphi 0, %s440
      %s455 = sphi 0, %s441
      %s459 = sphi 0, %s459
      %s461 = sphi 0, %s459
      %s462 = sphi 0, %s461
      %s476 = sphi 0, %s462
      %s480 = sphi 0, %s480
      %s482 = sphi 0, %s480
      %s483 = sphi 0, %s482
      %s497 = sphi 0, %s483
      %s501 = sphi 0, %s501
      %s503 = sphi 0, %s501
      %s504 = sphi 0, %s503
      %s518 = sphi 0, %s504
      %s522 = sphi 0, %s522
      %s524 = sphi 0, %s522
      %s525 = sphi 0, %s524
      %s539 = sphi 0, %s525
      %s543 = sphi 0, %s543
      %s545 = sphi 0, %s543
      %s546 = sphi 0, %s545
      %s560 = sphi 0, %s546
      %s564 = sphi 0, %s564
      %s566 = sphi 0, %s564
      %s567 = sphi 0, %s566
      %s581 = sphi 0, %s567
      %s585 = sphi 0, %s585
      %s587 = sphi 0, %s585
      %s588 = sphi 0, %s587
      %s602 = sphi 0, %s588
      %s606 = sphi 0, %s606
      %s608 = sphi 0, %s606
      %s609 = sphi 0, %s608
      %s623 = sphi 0, %s609
      %s627 = sphi 0, %s627
      %s629 = sphi 0, %s627
      %s630 = sphi 0, %s629
      %s644 = sphi 0, %s630
      %s648 = sphi 0, %s648
      %s650 = sphi 0, %s648
      %s651 = sphi 0, %s650
      %s665 = sphi 0, %s651
      %s669 = sphi 0, %s669
      %s671 = sphi 0, %s669
      %s672 = sphi 0, %s671
      %s686 = sphi 0, %s672
      %s692 = sphi 0, %s694
      %s695 = sphi 0, %s692
      %s696 = sphi 0, %s695
      %s712 = sphi 0, %s696
    $region4: #{msa_transf_forward.1} parent=1 // loop_header_branch
      %71 = sbr.rel (%p69) target = $region8
    $region5: #{msa_transf_forward.1} parent=1 // loop_body
      %s73 = ssub.s32 %s68, 1
      %s74 = ssub.s32 %s68, 2
      %s75 = sadd.s32 %s68, 1
      %s76 = ssub.s32 %s68, %s75
      %p77 = scmp.eq.s32.totalorder %s76, 0
      %s79 = sadd.s32 %s78, 1
      %s80 = scalar_select %p77, %s78, %s79
      %p83 = pneg %p77
      %p84 = scmp.eq.s32.totalorder %s68, 1
      %p85 = por %p83, %p84
      %p86 = scmp.ne.s32.totalorder %s78, %s81
      %p87 = scmp.eq.s32.totalorder %s68, 0
      %p88 = por %p86, %p87
      %p89 = scmp.ne.s32.totalorder %s78, %s81
      %p90 = scmp.eq.s32.totalorder %s73, 1
      %p91 = por %p89, %p90
      %p92 = scmp.ne.s32.totalorder %s81, %s82
      %p93 = scmp.eq.s32.totalorder %s73, 0
      %p94 = por %p92, %p93
      %p95 = scmp.ne.s32.totalorder %s81, %s82
      %p96 = scmp.eq.s32.totalorder %s74, 1
      %p97 = por %p95, %p96
      %p99 = scmp.ne.s32.totalorder %s82, %s98
      %p100 = scmp.eq.s32.totalorder %s74, 0
      %p101 = por %p99, %p100
      %s103 = sadd.s32 %s102, 1
      %p106 = scmp.eq.s32.totalorder %s68, 1
      %p107 = scmp.ne.s32.totalorder %s102, %s104
      %p108 = scmp.eq.s32.totalorder %s68, 0
      %p109 = por %p107, %p108
      %p110 = scmp.ne.s32.totalorder %s102, %s104
      %p111 = scmp.eq.s32.totalorder %s73, 1
      %p112 = por %p110, %p111
      %p113 = scmp.ne.s32.totalorder %s104, %s105
      %p114 = scmp.eq.s32.totalorder %s73, 0
      %p115 = por %p113, %p114
      %p116 = scmp.ne.s32.totalorder %s104, %s105
      %p117 = scmp.eq.s32.totalorder %s74, 1
      %p118 = por %p116, %p117
      %p120 = scmp.ne.s32.totalorder %s105, %s119
      %p121 = scmp.eq.s32.totalorder %s74, 0
      %p122 = por %p120, %p121
      %s124 = sadd.s32 %s123, 1
      %p127 = scmp.eq.s32.totalorder %s68, 1
      %p128 = scmp.ne.s32.totalorder %s123, %s125
      %p129 = scmp.eq.s32.totalorder %s68, 0
      %p130 = por %p128, %p129
      %p131 = scmp.ne.s32.totalorder %s123, %s125
      %p132 = scmp.eq.s32.totalorder %s73, 1
      %p133 = por %p131, %p132
      %p134 = scmp.ne.s32.totalorder %s125, %s126
      %p135 = scmp.eq.s32.totalorder %s73, 0
      %p136 = por %p134, %p135
      %p137 = scmp.ne.s32.totalorder %s125, %s126
      %p138 = scmp.eq.s32.totalorder %s74, 1
      %p139 = por %p137, %p138
      %p141 = scmp.ne.s32.totalorder %s126, %s140
      %p142 = scmp.eq.s32.totalorder %s74, 0
      %p143 = por %p141, %p142
      %s145 = sadd.s32 %s144, 1
      %p148 = scmp.eq.s32.totalorder %s68, 1
      %p149 = scmp.ne.s32.totalorder %s144, %s146
      %p150 = scmp.eq.s32.totalorder %s68, 0
      %p151 = por %p149, %p150
      %p152 = scmp.ne.s32.totalorder %s144, %s146
      %p153 = scmp.eq.s32.totalorder %s73, 1
      %p154 = por %p152, %p153
      %p155 = scmp.ne.s32.totalorder %s146, %s147
      %p156 = scmp.eq.s32.totalorder %s73, 0
      %p157 = por %p155, %p156
      %p158 = scmp.ne.s32.totalorder %s146, %s147
      %p159 = scmp.eq.s32.totalorder %s74, 1
      %p160 = por %p158, %p159
      %p162 = scmp.ne.s32.totalorder %s147, %s161
      %p163 = scmp.eq.s32.totalorder %s74, 0
      %p164 = por %p162, %p163
      %s166 = sadd.s32 %s165, 1
      %p169 = scmp.eq.s32.totalorder %s68, 1
      %p170 = scmp.ne.s32.totalorder %s165, %s167
      %p171 = scmp.eq.s32.totalorder %s68, 0
      %p172 = por %p170, %p171
      %p173 = scmp.ne.s32.totalorder %s165, %s167
      %p174 = scmp.eq.s32.totalorder %s73, 1
      %p175 = por %p173, %p174
      %p176 = scmp.ne.s32.totalorder %s167, %s168
      %p177 = scmp.eq.s32.totalorder %s73, 0
      %p178 = por %p176, %p177
      %p179 = scmp.ne.s32.totalorder %s167, %s168
      %p180 = scmp.eq.s32.totalorder %s74, 1
      %p181 = por %p179, %p180
      %p183 = scmp.ne.s32.totalorder %s168, %s182
      %p184 = scmp.eq.s32.totalorder %s74, 0
      %p185 = por %p183, %p184
      %s187 = sadd.s32 %s186, 1
      %p190 = scmp.eq.s32.totalorder %s68, 1
      %p191 = scmp.ne.s32.totalorder %s186, %s188
      %p192 = scmp.eq.s32.totalorder %s68, 0
      %p193 = por %p191, %p192
      %p194 = scmp.ne.s32.totalorder %s186, %s188
      %p195 = scmp.eq.s32.totalorder %s73, 1
      %p196 = por %p194, %p195
      %p197 = scmp.ne.s32.totalorder %s188, %s189
      %p198 = scmp.eq.s32.totalorder %s73, 0
      %p199 = por %p197, %p198
      %p200 = scmp.ne.s32.totalorder %s188, %s189
      %p201 = scmp.eq.s32.totalorder %s74, 1
      %p202 = por %p200, %p201
      %p204 = scmp.ne.s32.totalorder %s189, %s203
      %p205 = scmp.eq.s32.totalorder %s74, 0
      %p206 = por %p204, %p205
      %s208 = sadd.s32 %s207, 1
      %p211 = scmp.eq.s32.totalorder %s68, 1
      %p212 = scmp.ne.s32.totalorder %s207, %s209
      %p213 = scmp.eq.s32.totalorder %s68, 0
      %p214 = por %p212, %p213
      %p215 = scmp.ne.s32.totalorder %s207, %s209
      %p216 = scmp.eq.s32.totalorder %s73, 1
      %p217 = por %p215, %p216
      %p218 = scmp.ne.s32.totalorder %s209, %s210
      %p219 = scmp.eq.s32.totalorder %s73, 0
      %p220 = por %p218, %p219
      %p221 = scmp.ne.s32.totalorder %s209, %s210
      %p222 = scmp.eq.s32.totalorder %s74, 1
      %p223 = por %p221, %p222
      %p225 = scmp.ne.s32.totalorder %s210, %s224
      %p226 = scmp.eq.s32.totalorder %s74, 0
      %p227 = por %p225, %p226
      %s229 = sadd.s32 %s228, 1
      %p232 = scmp.eq.s32.totalorder %s68, 1
      %p233 = scmp.ne.s32.totalorder %s228, %s230
      %p234 = scmp.eq.s32.totalorder %s68, 0
      %p235 = por %p233, %p234
      %p236 = scmp.ne.s32.totalorder %s228, %s230
      %p237 = scmp.eq.s32.totalorder %s73, 1
      %p238 = por %p236, %p237
      %p239 = scmp.ne.s32.totalorder %s230, %s231
      %p240 = scmp.eq.s32.totalorder %s73, 0
      %p241 = por %p239, %p240
      %p242 = scmp.ne.s32.totalorder %s230, %s231
      %p243 = scmp.eq.s32.totalorder %s74, 1
      %p244 = por %p242, %p243
      %p246 = scmp.ne.s32.totalorder %s231, %s245
      %p247 = scmp.eq.s32.totalorder %s74, 0
      %p248 = por %p246, %p247
      %s250 = sadd.s32 %s249, 1
      %p253 = scmp.eq.s32.totalorder %s68, 1
      %p254 = scmp.ne.s32.totalorder %s249, %s251
      %p255 = scmp.eq.s32.totalorder %s68, 0
      %p256 = por %p254, %p255
      %p257 = scmp.ne.s32.totalorder %s249, %s251
      %p258 = scmp.eq.s32.totalorder %s73, 1
      %p259 = por %p257, %p258
      %p260 = scmp.ne.s32.totalorder %s251, %s252
      %p261 = scmp.eq.s32.totalorder %s73, 0
      %p262 = por %p260, %p261
      %p263 = scmp.ne.s32.totalorder %s251, %s252
      %p264 = scmp.eq.s32.totalorder %s74, 1
      %p265 = por %p263, %p264
      %p267 = scmp.ne.s32.totalorder %s252, %s266
      %p268 = scmp.eq.s32.totalorder %s74, 0
      %p269 = por %p267, %p268
      %s271 = sadd.s32 %s270, 1
      %p274 = scmp.eq.s32.totalorder %s68, 1
      %p275 = scmp.ne.s32.totalorder %s270, %s272
      %p276 = scmp.eq.s32.totalorder %s68, 0
      %p277 = por %p275, %p276
      %p278 = scmp.ne.s32.totalorder %s270, %s272
      %p279 = scmp.eq.s32.totalorder %s73, 1
      %p280 = por %p278, %p279
      %p281 = scmp.ne.s32.totalorder %s272, %s273
      %p282 = scmp.eq.s32.totalorder %s73, 0
      %p283 = por %p281, %p282
      %p284 = scmp.ne.s32.totalorder %s272, %s273
      %p285 = scmp.eq.s32.totalorder %s74, 1
      %p286 = por %p284, %p285
      %p288 = scmp.ne.s32.totalorder %s273, %s287
      %p289 = scmp.eq.s32.totalorder %s74, 0
      %p290 = por %p288, %p289
      %s292 = sadd.s32 %s291, 1
      %p295 = scmp.eq.s32.totalorder %s68, 1
      %p296 = scmp.ne.s32.totalorder %s291, %s293
      %p297 = scmp.eq.s32.totalorder %s68, 0
      %p298 = por %p296, %p297
      %p299 = scmp.ne.s32.totalorder %s291, %s293
      %p300 = scmp.eq.s32.totalorder %s73, 1
      %p301 = por %p299, %p300
      %p302 = scmp.ne.s32.totalorder %s293, %s294
      %p303 = scmp.eq.s32.totalorder %s73, 0
      %p304 = por %p302, %p303
      %p305 = scmp.ne.s32.totalorder %s293, %s294
      %p306 = scmp.eq.s32.totalorder %s74, 1
      %p307 = por %p305, %p306
      %p309 = scmp.ne.s32.totalorder %s294, %s308
      %p310 = scmp.eq.s32.totalorder %s74, 0
      %p311 = por %p309, %p310
      %s313 = sadd.s32 %s312, 1
      %p316 = scmp.eq.s32.totalorder %s68, 1
      %p317 = scmp.ne.s32.totalorder %s312, %s314
      %p318 = scmp.eq.s32.totalorder %s68, 0
      %p319 = por %p317, %p318
      %p320 = scmp.ne.s32.totalorder %s312, %s314
      %p321 = scmp.eq.s32.totalorder %s73, 1
      %p322 = por %p320, %p321
      %p323 = scmp.ne.s32.totalorder %s314, %s315
      %p324 = scmp.eq.s32.totalorder %s73, 0
      %p325 = por %p323, %p324
      %p326 = scmp.ne.s32.totalorder %s314, %s315
      %p327 = scmp.eq.s32.totalorder %s74, 1
      %p328 = por %p326, %p327
      %p330 = scmp.ne.s32.totalorder %s315, %s329
      %p331 = scmp.eq.s32.totalorder %s74, 0
      %p332 = por %p330, %p331
      %s334 = sadd.s32 %s333, 1
      %p337 = scmp.eq.s32.totalorder %s68, 1
      %p338 = scmp.ne.s32.totalorder %s333, %s335
      %p339 = scmp.eq.s32.totalorder %s68, 0
      %p340 = por %p338, %p339
      %p341 = scmp.ne.s32.totalorder %s333, %s335
      %p342 = scmp.eq.s32.totalorder %s73, 1
      %p343 = por %p341, %p342
      %p344 = scmp.ne.s32.totalorder %s335, %s336
      %p345 = scmp.eq.s32.totalorder %s73, 0
      %p346 = por %p344, %p345
      %p347 = scmp.ne.s32.totalorder %s335, %s336
      %p348 = scmp.eq.s32.totalorder %s74, 1
      %p349 = por %p347, %p348
      %p351 = scmp.ne.s32.totalorder %s336, %s350
      %p352 = scmp.eq.s32.totalorder %s74, 0
      %p353 = por %p351, %p352
      %s355 = sadd.s32 %s354, 1
      %p358 = scmp.eq.s32.totalorder %s68, 1
      %p359 = scmp.ne.s32.totalorder %s354, %s356
      %p360 = scmp.eq.s32.totalorder %s68, 0
      %p361 = por %p359, %p360
      %p362 = scmp.ne.s32.totalorder %s354, %s356
      %p363 = scmp.eq.s32.totalorder %s73, 1
      %p364 = por %p362, %p363
      %p365 = scmp.ne.s32.totalorder %s356, %s357
      %p366 = scmp.eq.s32.totalorder %s73, 0
      %p367 = por %p365, %p366
      %p368 = scmp.ne.s32.totalorder %s356, %s357
      %p369 = scmp.eq.s32.totalorder %s74, 1
      %p370 = por %p368, %p369
      %p372 = scmp.ne.s32.totalorder %s357, %s371
      %p373 = scmp.eq.s32.totalorder %s74, 0
      %p374 = por %p372, %p373
      %s376 = sadd.s32 %s375, 1
      %p379 = scmp.eq.s32.totalorder %s68, 1
      %p380 = scmp.ne.s32.totalorder %s375, %s377
      %p381 = scmp.eq.s32.totalorder %s68, 0
      %p382 = por %p380, %p381
      %p383 = scmp.ne.s32.totalorder %s375, %s377
      %p384 = scmp.eq.s32.totalorder %s73, 1
      %p385 = por %p383, %p384
      %p386 = scmp.ne.s32.totalorder %s377, %s378
      %p387 = scmp.eq.s32.totalorder %s73, 0
      %p388 = por %p386, %p387
      %p389 = scmp.ne.s32.totalorder %s377, %s378
      %p390 = scmp.eq.s32.totalorder %s74, 1
      %p391 = por %p389, %p390
      %p393 = scmp.ne.s32.totalorder %s378, %s392
      %p394 = scmp.eq.s32.totalorder %s74, 0
      %p395 = por %p393, %p394
      %s397 = sadd.s32 %s396, 1
      %p400 = scmp.eq.s32.totalorder %s68, 1
      %p401 = scmp.ne.s32.totalorder %s396, %s398
      %p402 = scmp.eq.s32.totalorder %s68, 0
      %p403 = por %p401, %p402
      %p404 = scmp.ne.s32.totalorder %s396, %s398
      %p405 = scmp.eq.s32.totalorder %s73, 1
      %p406 = por %p404, %p405
      %p407 = scmp.ne.s32.totalorder %s398, %s399
      %p408 = scmp.eq.s32.totalorder %s73, 0
      %p409 = por %p407, %p408
      %p410 = scmp.ne.s32.totalorder %s398, %s399
      %p411 = scmp.eq.s32.totalorder %s74, 1
      %p412 = por %p410, %p411
      %p414 = scmp.ne.s32.totalorder %s399, %s413
      %p415 = scmp.eq.s32.totalorder %s74, 0
      %p416 = por %p414, %p415
      %s418 = sadd.s32 %s417, 1
      %p421 = scmp.eq.s32.totalorder %s68, 1
      %p422 = scmp.ne.s32.totalorder %s417, %s419
      %p423 = scmp.eq.s32.totalorder %s68, 0
      %p424 = por %p422, %p423
      %p425 = scmp.ne.s32.totalorder %s417, %s419
      %p426 = scmp.eq.s32.totalorder %s73, 1
      %p427 = por %p425, %p426
      %p428 = scmp.ne.s32.totalorder %s419, %s420
      %p429 = scmp.eq.s32.totalorder %s73, 0
      %p430 = por %p428, %p429
      %p431 = scmp.ne.s32.totalorder %s419, %s420
      %p432 = scmp.eq.s32.totalorder %s74, 1
      %p433 = por %p431, %p432
      %p435 = scmp.ne.s32.totalorder %s420, %s434
      %p436 = scmp.eq.s32.totalorder %s74, 0
      %p437 = por %p435, %p436
      %s439 = sadd.s32 %s438, 1
      %p442 = scmp.eq.s32.totalorder %s68, 1
      %p443 = scmp.ne.s32.totalorder %s438, %s440
      %p444 = scmp.eq.s32.totalorder %s68, 0
      %p445 = por %p443, %p444
      %p446 = scmp.ne.s32.totalorder %s438, %s440
      %p447 = scmp.eq.s32.totalorder %s73, 1
      %p448 = por %p446, %p447
      %p449 = scmp.ne.s32.totalorder %s440, %s441
      %p450 = scmp.eq.s32.totalorder %s73, 0
      %p451 = por %p449, %p450
      %p452 = scmp.ne.s32.totalorder %s440, %s441
      %p453 = scmp.eq.s32.totalorder %s74, 1
      %p454 = por %p452, %p453
      %p456 = scmp.ne.s32.totalorder %s441, %s455
      %p457 = scmp.eq.s32.totalorder %s74, 0
      %p458 = por %p456, %p457
      %s460 = sadd.s32 %s459, 1
      %p463 = scmp.eq.s32.totalorder %s68, 1
      %p464 = scmp.ne.s32.totalorder %s459, %s461
      %p465 = scmp.eq.s32.totalorder %s68, 0
      %p466 = por %p464, %p465
      %p467 = scmp.ne.s32.totalorder %s459, %s461
      %p468 = scmp.eq.s32.totalorder %s73, 1
      %p469 = por %p467, %p468
      %p470 = scmp.ne.s32.totalorder %s461, %s462
      %p471 = scmp.eq.s32.totalorder %s73, 0
      %p472 = por %p470, %p471
      %p473 = scmp.ne.s32.totalorder %s461, %s462
      %p474 = scmp.eq.s32.totalorder %s74, 1
      %p475 = por %p473, %p474
      %p477 = scmp.ne.s32.totalorder %s462, %s476
      %p478 = scmp.eq.s32.totalorder %s74, 0
      %p479 = por %p477, %p478
      %s481 = sadd.s32 %s480, 1
      %p484 = scmp.eq.s32.totalorder %s68, 1
      %p485 = scmp.ne.s32.totalorder %s480, %s482
      %p486 = scmp.eq.s32.totalorder %s68, 0
      %p487 = por %p485, %p486
      %p488 = scmp.ne.s32.totalorder %s480, %s482
      %p489 = scmp.eq.s32.totalorder %s73, 1
      %p490 = por %p488, %p489
      %p491 = scmp.ne.s32.totalorder %s482, %s483
      %p492 = scmp.eq.s32.totalorder %s73, 0
      %p493 = por %p491, %p492
      %p494 = scmp.ne.s32.totalorder %s482, %s483
      %p495 = scmp.eq.s32.totalorder %s74, 1
      %p496 = por %p494, %p495
      %p498 = scmp.ne.s32.totalorder %s483, %s497
      %p499 = scmp.eq.s32.totalorder %s74, 0
      %p500 = por %p498, %p499
      %s502 = sadd.s32 %s501, 1
      %p505 = scmp.eq.s32.totalorder %s68, 1
      %p506 = scmp.ne.s32.totalorder %s501, %s503
      %p507 = scmp.eq.s32.totalorder %s68, 0
      %p508 = por %p506, %p507
      %p509 = scmp.ne.s32.totalorder %s501, %s503
      %p510 = scmp.eq.s32.totalorder %s73, 1
      %p511 = por %p509, %p510
      %p512 = scmp.ne.s32.totalorder %s503, %s504
      %p513 = scmp.eq.s32.totalorder %s73, 0
      %p514 = por %p512, %p513
      %p515 = scmp.ne.s32.totalorder %s503, %s504
      %p516 = scmp.eq.s32.totalorder %s74, 1
      %p517 = por %p515, %p516
      %p519 = scmp.ne.s32.totalorder %s504, %s518
      %p520 = scmp.eq.s32.totalorder %s74, 0
      %p521 = por %p519, %p520
      %s523 = sadd.s32 %s522, 1
      %p526 = scmp.eq.s32.totalorder %s68, 1
      %p527 = scmp.ne.s32.totalorder %s522, %s524
      %p528 = scmp.eq.s32.totalorder %s68, 0
      %p529 = por %p527, %p528
      %p530 = scmp.ne.s32.totalorder %s522, %s524
      %p531 = scmp.eq.s32.totalorder %s73, 1
      %p532 = por %p530, %p531
      %p533 = scmp.ne.s32.totalorder %s524, %s525
      %p534 = scmp.eq.s32.totalorder %s73, 0
      %p535 = por %p533, %p534
      %p536 = scmp.ne.s32.totalorder %s524, %s525
      %p537 = scmp.eq.s32.totalorder %s74, 1
      %p538 = por %p536, %p537
      %p540 = scmp.ne.s32.totalorder %s525, %s539
      %p541 = scmp.eq.s32.totalorder %s74, 0
      %p542 = por %p540, %p541
      %s544 = sadd.s32 %s543, 1
      %p547 = scmp.eq.s32.totalorder %s68, 1
      %p548 = scmp.ne.s32.totalorder %s543, %s545
      %p549 = scmp.eq.s32.totalorder %s68, 0
      %p550 = por %p548, %p549
      %p551 = scmp.ne.s32.totalorder %s543, %s545
      %p552 = scmp.eq.s32.totalorder %s73, 1
      %p553 = por %p551, %p552
      %p554 = scmp.ne.s32.totalorder %s545, %s546
      %p555 = scmp.eq.s32.totalorder %s73, 0
      %p556 = por %p554, %p555
      %p557 = scmp.ne.s32.totalorder %s545, %s546
      %p558 = scmp.eq.s32.totalorder %s74, 1
      %p559 = por %p557, %p558
      %p561 = scmp.ne.s32.totalorder %s546, %s560
      %p562 = scmp.eq.s32.totalorder %s74, 0
      %p563 = por %p561, %p562
      %s565 = sadd.s32 %s564, 1
      %p568 = scmp.eq.s32.totalorder %s68, 1
      %p569 = scmp.ne.s32.totalorder %s564, %s566
      %p570 = scmp.eq.s32.totalorder %s68, 0
      %p571 = por %p569, %p570
      %p572 = scmp.ne.s32.totalorder %s564, %s566
      %p573 = scmp.eq.s32.totalorder %s73, 1
      %p574 = por %p572, %p573
      %p575 = scmp.ne.s32.totalorder %s566, %s567
      %p576 = scmp.eq.s32.totalorder %s73, 0
      %p577 = por %p575, %p576
      %p578 = scmp.ne.s32.totalorder %s566, %s567
      %p579 = scmp.eq.s32.totalorder %s74, 1
      %p580 = por %p578, %p579
      %p582 = scmp.ne.s32.totalorder %s567, %s581
      %p583 = scmp.eq.s32.totalorder %s74, 0
      %p584 = por %p582, %p583
      %s586 = sadd.s32 %s585, 1
      %p589 = scmp.eq.s32.totalorder %s68, 1
      %p590 = scmp.ne.s32.totalorder %s585, %s587
      %p591 = scmp.eq.s32.totalorder %s68, 0
      %p592 = por %p590, %p591
      %p593 = scmp.ne.s32.totalorder %s585, %s587
      %p594 = scmp.eq.s32.totalorder %s73, 1
      %p595 = por %p593, %p594
      %p596 = scmp.ne.s32.totalorder %s587, %s588
      %p597 = scmp.eq.s32.totalorder %s73, 0
      %p598 = por %p596, %p597
      %p599 = scmp.ne.s32.totalorder %s587, %s588
      %p600 = scmp.eq.s32.totalorder %s74, 1
      %p601 = por %p599, %p600
      %p603 = scmp.ne.s32.totalorder %s588, %s602
      %p604 = scmp.eq.s32.totalorder %s74, 0
      %p605 = por %p603, %p604
      %s607 = sadd.s32 %s606, 1
      %p610 = scmp.eq.s32.totalorder %s68, 1
      %p611 = scmp.ne.s32.totalorder %s606, %s608
      %p612 = scmp.eq.s32.totalorder %s68, 0
      %p613 = por %p611, %p612
      %p614 = scmp.ne.s32.totalorder %s606, %s608
      %p615 = scmp.eq.s32.totalorder %s73, 1
      %p616 = por %p614, %p615
      %p617 = scmp.ne.s32.totalorder %s608, %s609
      %p618 = scmp.eq.s32.totalorder %s73, 0
      %p619 = por %p617, %p618
      %p620 = scmp.ne.s32.totalorder %s608, %s609
      %p621 = scmp.eq.s32.totalorder %s74, 1
      %p622 = por %p620, %p621
      %p624 = scmp.ne.s32.totalorder %s609, %s623
      %p625 = scmp.eq.s32.totalorder %s74, 0
      %p626 = por %p624, %p625
      %s628 = sadd.s32 %s627, 1
      %p631 = scmp.eq.s32.totalorder %s68, 1
      %p632 = scmp.ne.s32.totalorder %s627, %s629
      %p633 = scmp.eq.s32.totalorder %s68, 0
      %p634 = por %p632, %p633
      %p635 = scmp.ne.s32.totalorder %s627, %s629
      %p636 = scmp.eq.s32.totalorder %s73, 1
      %p637 = por %p635, %p636
      %p638 = scmp.ne.s32.totalorder %s629, %s630
      %p639 = scmp.eq.s32.totalorder %s73, 0
      %p640 = por %p638, %p639
      %p641 = scmp.ne.s32.totalorder %s629, %s630
      %p642 = scmp.eq.s32.totalorder %s74, 1
      %p643 = por %p641, %p642
      %p645 = scmp.ne.s32.totalorder %s630, %s644
      %p646 = scmp.eq.s32.totalorder %s74, 0
      %p647 = por %p645, %p646
      %s649 = sadd.s32 %s648, 1
      %p652 = scmp.eq.s32.totalorder %s68, 1
      %p653 = scmp.ne.s32.totalorder %s648, %s650
      %p654 = scmp.eq.s32.totalorder %s68, 0
      %p655 = por %p653, %p654
      %p656 = scmp.ne.s32.totalorder %s648, %s650
      %p657 = scmp.eq.s32.totalorder %s73, 1
      %p658 = por %p656, %p657
      %p659 = scmp.ne.s32.totalorder %s650, %s651
      %p660 = scmp.eq.s32.totalorder %s73, 0
      %p661 = por %p659, %p660
      %p662 = scmp.ne.s32.totalorder %s650, %s651
      %p663 = scmp.eq.s32.totalorder %s74, 1
      %p664 = por %p662, %p663
      %p666 = scmp.ne.s32.totalorder %s651, %s665
      %p667 = scmp.eq.s32.totalorder %s74, 0
      %p668 = por %p666, %p667
      %s670 = sadd.s32 %s669, 1
      %p673 = scmp.eq.s32.totalorder %s68, 1
      %p674 = scmp.ne.s32.totalorder %s669, %s671
      %p675 = scmp.eq.s32.totalorder %s68, 0
      %p676 = por %p674, %p675
      %p677 = scmp.ne.s32.totalorder %s669, %s671
      %p678 = scmp.eq.s32.totalorder %s73, 1
      %p679 = por %p677, %p678
      %p680 = scmp.ne.s32.totalorder %s671, %s672
      %p681 = scmp.eq.s32.totalorder %s73, 0
      %p682 = por %p680, %p681
      %p683 = scmp.ne.s32.totalorder %s671, %s672
      %p684 = scmp.eq.s32.totalorder %s74, 1
      %p685 = por %p683, %p684
      %p687 = scmp.ne.s32.totalorder %s672, %s686
      %p688 = scmp.eq.s32.totalorder %s74, 0
      %p689 = por %p687, %p688
      %s690 = ssub.s32 %s68, %s75
      %p691 = scmp.eq.s32.totalorder %s690, 0
      %s693 = sadd.s32 %s692, 1
      %s694 = scalar_select %p691, %s692, %s693
      %p697 = pneg %p691
      %p698 = scmp.eq.s32.totalorder %s68, 1
      %p699 = por %p697, %p698
      %p700 = scmp.ne.s32.totalorder %s692, %s695
      %p701 = scmp.eq.s32.totalorder %s68, 0
      %p702 = por %p700, %p701
      %p703 = scmp.ne.s32.totalorder %s692, %s695
      %p704 = scmp.eq.s32.totalorder %s73, 1
      %p705 = por %p703, %p704
      %p706 = scmp.ne.s32.totalorder %s695, %s696
      %p707 = scmp.eq.s32.totalorder %s73, 0
      %p708 = por %p706, %p707
      %p709 = scmp.ne.s32.totalorder %s695, %s696
      %p710 = scmp.eq.s32.totalorder %s74, 1
      %p711 = por %p709, %p710
      %p713 = scmp.ne.s32.totalorder %s696, %s712
      %p714 = scmp.eq.s32.totalorder %s74, 0
      %p715 = por %p713, %p714
      %p716 = scmp.le.s32.totalorder 1, %s68
      %p717 = scmp.lt.s32.totalorder %s68, 3
      %p718 = pnand %p716, %p717
      %p719 = pneg %p718
      // Predicated region
      $region9: #{msa_transf_forward.1} parent=5 // pred_check
        _
      $region10: #{msa_transf_forward.1} parent=5 // pred_check_branch
        %721 = sbr.rel (%p718) target = $region12
      $region11: #{msa_transf_forward.1} parent=5 // pred_region
        %s722 = ssub.s32 %s68, 1
        // Predicated region
        $region13: #{msa_transf_forward.1} parent=11 // pred_check
          %p723 = pneg %p115
        $region14: #{msa_transf_forward.1} parent=11 // pred_check_branch
          %725 = sbr.rel (%p723) target = $region16
        $region15: #{msa_transf_forward.1} parent=11 // pred_region
          _
        $region16: #{msa_transf_forward.1} parent=11 // pred_fallthru
          _
        // Predicated region
        $region17: #{msa_transf_forward.1} parent=11 // pred_check
          %p726 = pneg %p136
        $region18: #{msa_transf_forward.1} parent=11 // pred_check_branch
          %728 = sbr.rel (%p726) target = $region20
        $region19: #{msa_transf_forward.1} parent=11 // pred_region
          _
        $region20: #{msa_transf_forward.1} parent=11 // pred_fallthru
          _
        // Predicated region
        $region21: #{msa_transf_forward.1} parent=11 // pred_check
          %p729 = pneg %p157
        $region22: #{msa_transf_forward.1} parent=11 // pred_check_branch
          %731 = sbr.rel (%p729) target = $region24
        $region23: #{msa_transf_forward.1} parent=11 // pred_region
          _
        $region24: #{msa_transf_forward.1} parent=11 // pred_fallthru
          _
        // Predicated region
        $region25: #{msa_transf_forward.1} parent=11 // pred_check
          %p732 = pneg %p178
        $region26: #{msa_transf_forward.1} parent=11 // pred_check_branch
          %734 = sbr.rel (%p732) target = $region28
        $region27: #{msa_transf_forward.1} parent=11 // pred_region
          _
        $region28: #{msa_transf_forward.1} parent=11 // pred_fallthru
          _
        // Predicated region
        $region29: #{msa_transf_forward.1} parent=11 // pred_check
          %p735 = pneg %p199
        $region30: #{msa_transf_forward.1} parent=11 // pred_check_branch
          %737 = sbr.rel (%p735) target = $region32
        $region31: #{msa_transf_forward.1} parent=11 // pred_region
          _
        $region32: #{msa_transf_forward.1} parent=11 // pred_fallthru
          _
        // Predicated region
        $region33: #{msa_transf_forward.1} parent=11 // pred_check
          %p738 = pneg %p220
        $region34: #{msa_transf_forward.1} parent=11 // pred_check_branch
          %740 = sbr.rel (%p738) target = $region36
        $region35: #{msa_transf_forward.1} parent=11 // pred_region
          _
        $region36: #{msa_transf_forward.1} parent=11 // pred_fallthru
          _
        // Predicated region
        $region37: #{msa_transf_forward.1} parent=11 // pred_check
          %p741 = pneg %p241
        $region38: #{msa_transf_forward.1} parent=11 // pred_check_branch
          %743 = sbr.rel (%p741) target = $region40
        $region39: #{msa_transf_forward.1} parent=11 // pred_region
          _
        $region40: #{msa_transf_forward.1} parent=11 // pred_fallthru
          _
        // Predicated region
        $region41: #{msa_transf_forward.1} parent=11 // pred_check
          %p744 = pneg %p262
        $region42: #{msa_transf_forward.1} parent=11 // pred_check_branch
          %746 = sbr.rel (%p744) target = $region44
        $region43: #{msa_transf_forward.1} parent=11 // pred_region
          _
        $region44: #{msa_transf_forward.1} parent=11 // pred_fallthru
          _
        // Predicated region
        $region45: #{msa_transf_forward.1} parent=11 // pred_check
          %p747 = pneg %p283
        $region46: #{msa_transf_forward.1} parent=11 // pred_check_branch
          %749 = sbr.rel (%p747) target = $region48
        $region47: #{msa_transf_forward.1} parent=11 // pred_region
          _
        $region48: #{msa_transf_forward.1} parent=11 // pred_fallthru
          _
        // Predicated region
        $region49: #{msa_transf_forward.1} parent=11 // pred_check
          %p750 = pneg %p304
        $region50: #{msa_transf_forward.1} parent=11 // pred_check_branch
          %752 = sbr.rel (%p750) target = $region52
        $region51: #{msa_transf_forward.1} parent=11 // pred_region
          _
        $region52: #{msa_transf_forward.1} parent=11 // pred_fallthru
          _
        // Predicated region
        $region53: #{msa_transf_forward.1} parent=11 // pred_check
          %p753 = pneg %p325
        $region54: #{msa_transf_forward.1} parent=11 // pred_check_branch
          %755 = sbr.rel (%p753) target = $region56
        $region55: #{msa_transf_forward.1} parent=11 // pred_region
          _
        $region56: #{msa_transf_forward.1} parent=11 // pred_fallthru
          _
        // Predicated region
        $region57: #{msa_transf_forward.1} parent=11 // pred_check
          %p756 = pneg %p346
        $region58: #{msa_transf_forward.1} parent=11 // pred_check_branch
          %758 = sbr.rel (%p756) target = $region60
        $region59: #{msa_transf_forward.1} parent=11 // pred_region
          _
        $region60: #{msa_transf_forward.1} parent=11 // pred_fallthru
          _
        // Predicated region
        $region61: #{msa_transf_forward.1} parent=11 // pred_check
          %p759 = pneg %p367
        $region62: #{msa_transf_forward.1} parent=11 // pred_check_branch
          %761 = sbr.rel (%p759) target = $region64
        $region63: #{msa_transf_forward.1} parent=11 // pred_region
          _
        $region64: #{msa_transf_forward.1} parent=11 // pred_fallthru
          _
        // Predicated region
        $region65: #{msa_transf_forward.1} parent=11 // pred_check
          %p762 = pneg %p388
        $region66: #{msa_transf_forward.1} parent=11 // pred_check_branch
          %764 = sbr.rel (%p762) target = $region68
        $region67: #{msa_transf_forward.1} parent=11 // pred_region
          _
        $region68: #{msa_transf_forward.1} parent=11 // pred_fallthru
          _
        // Predicated region
        $region69: #{msa_transf_forward.1} parent=11 // pred_check
          %p765 = pneg %p409
        $region70: #{msa_transf_forward.1} parent=11 // pred_check_branch
          %767 = sbr.rel (%p765) target = $region72
        $region71: #{msa_transf_forward.1} parent=11 // pred_region
          _
        $region72: #{msa_transf_forward.1} parent=11 // pred_fallthru
          _
        // Predicated region
        $region73: #{msa_transf_forward.1} parent=11 // pred_check
          %p768 = pneg %p430
        $region74: #{msa_transf_forward.1} parent=11 // pred_check_branch
          %770 = sbr.rel (%p768) target = $region76
        $region75: #{msa_transf_forward.1} parent=11 // pred_region
          _
        $region76: #{msa_transf_forward.1} parent=11 // pred_fallthru
          _
        // Predicated region
        $region77: #{msa_transf_forward.1} parent=11 // pred_check
          %p771 = pneg %p451
        $region78: #{msa_transf_forward.1} parent=11 // pred_check_branch
          %773 = sbr.rel (%p771) target = $region80
        $region79: #{msa_transf_forward.1} parent=11 // pred_region
          _
        $region80: #{msa_transf_forward.1} parent=11 // pred_fallthru
          _
        // Predicated region
        $region81: #{msa_transf_forward.1} parent=11 // pred_check
          %p774 = pneg %p472
        $region82: #{msa_transf_forward.1} parent=11 // pred_check_branch
          %776 = sbr.rel (%p774) target = $region84
        $region83: #{msa_transf_forward.1} parent=11 // pred_region
          _
        $region84: #{msa_transf_forward.1} parent=11 // pred_fallthru
          _
        // Predicated region
        $region85: #{msa_transf_forward.1} parent=11 // pred_check
          %p777 = pneg %p493
        $region86: #{msa_transf_forward.1} parent=11 // pred_check_branch
          %779 = sbr.rel (%p777) target = $region88
        $region87: #{msa_transf_forward.1} parent=11 // pred_region
          _
        $region88: #{msa_transf_forward.1} parent=11 // pred_fallthru
          _
        // Predicated region
        $region89: #{msa_transf_forward.1} parent=11 // pred_check
          %p780 = pneg %p514
        $region90: #{msa_transf_forward.1} parent=11 // pred_check_branch
          %782 = sbr.rel (%p780) target = $region92
        $region91: #{msa_transf_forward.1} parent=11 // pred_region
          _
        $region92: #{msa_transf_forward.1} parent=11 // pred_fallthru
          _
        // Predicated region
        $region93: #{msa_transf_forward.1} parent=11 // pred_check
          %p783 = pneg %p535
        $region94: #{msa_transf_forward.1} parent=11 // pred_check_branch
          %785 = sbr.rel (%p783) target = $region96
        $region95: #{msa_transf_forward.1} parent=11 // pred_region
          _
        $region96: #{msa_transf_forward.1} parent=11 // pred_fallthru
          _
        // Predicated region
        $region97: #{msa_transf_forward.1} parent=11 // pred_check
          %p786 = pneg %p556
        $region98: #{msa_transf_forward.1} parent=11 // pred_check_branch
          %788 = sbr.rel (%p786) target = $region100
        $region99: #{msa_transf_forward.1} parent=11 // pred_region
          _
        $region100: #{msa_transf_forward.1} parent=11 // pred_fallthru
          _
        // Predicated region
        $region101: #{msa_transf_forward.1} parent=11 // pred_check
          %p789 = pneg %p577
        $region102: #{msa_transf_forward.1} parent=11 // pred_check_branch
          %791 = sbr.rel (%p789) target = $region104
        $region103: #{msa_transf_forward.1} parent=11 // pred_region
          _
        $region104: #{msa_transf_forward.1} parent=11 // pred_fallthru
          _
        // Predicated region
        $region105: #{msa_transf_forward.1} parent=11 // pred_check
          %p792 = pneg %p598
        $region106: #{msa_transf_forward.1} parent=11 // pred_check_branch
          %794 = sbr.rel (%p792) target = $region108
        $region107: #{msa_transf_forward.1} parent=11 // pred_region
          _
        $region108: #{msa_transf_forward.1} parent=11 // pred_fallthru
          _
        // Predicated region
        $region109: #{msa_transf_forward.1} parent=11 // pred_check
          %p795 = pneg %p619
        $region110: #{msa_transf_forward.1} parent=11 // pred_check_branch
          %797 = sbr.rel (%p795) target = $region112
        $region111: #{msa_transf_forward.1} parent=11 // pred_region
          _
        $region112: #{msa_transf_forward.1} parent=11 // pred_fallthru
          _
        // Predicated region
        $region113: #{msa_transf_forward.1} parent=11 // pred_check
          %p798 = pneg %p640
        $region114: #{msa_transf_forward.1} parent=11 // pred_check_branch
          %800 = sbr.rel (%p798) target = $region116
        $region115: #{msa_transf_forward.1} parent=11 // pred_region
          _
        $region116: #{msa_transf_forward.1} parent=11 // pred_fallthru
          _
        // Predicated region
        $region117: #{msa_transf_forward.1} parent=11 // pred_check
          %p801 = pneg %p661
        $region118: #{msa_transf_forward.1} parent=11 // pred_check_branch
          %803 = sbr.rel (%p801) target = $region120
        $region119: #{msa_transf_forward.1} parent=11 // pred_region
          _
        $region120: #{msa_transf_forward.1} parent=11 // pred_fallthru
          _
        // Predicated region
        $region121: #{msa_transf_forward.1} parent=11 // pred_check
          %p804 = pneg %p682
        $region122: #{msa_transf_forward.1} parent=11 // pred_check_branch
          %806 = sbr.rel (%p804) target = $region124
        $region123: #{msa_transf_forward.1} parent=11 // pred_region
          _
        $region124: #{msa_transf_forward.1} parent=11 // pred_fallthru
          _
      $region12: #{msa_transf_forward.1} parent=5 // pred_fallthru
        _
      %p807 = scmp.lt.s32.totalorder %s68, 2
      // Predicated region
      $region125: #{msa_transf_forward.1} parent=5 // pred_check
        %p808 = pneg %p807
      $region126: #{msa_transf_forward.1} parent=5 // pred_check_branch
        %810 = sbr.rel (%p808) target = $region128
      $region127: #{msa_transf_forward.1} parent=5 // pred_region
        // Predicated region
        $region129: #{msa_transf_forward.1} parent=127 // pred_check
          %p811 = pneg %p88
        $region130: #{msa_transf_forward.1} parent=127 // pred_check_branch
          %813 = sbr.rel (%p811) target = $region132
        $region131: #{msa_transf_forward.1} parent=127 // pred_region
          %s814 = smul.u32 4, %s68
          %p815 = scmp.lt.s32.totalorder %s814, 7
          %s816 = scalar_select %p815, %s814, 7
          %s817 = smul.addr %s816, 8
          %s818 = scalar_lea.vmem %s1, %s817
          %s819 = smul.u32 4, %s68
        $region132: #{msa_transf_forward.1} parent=127 // pred_fallthru
          _
      $region128: #{msa_transf_forward.1} parent=5 // pred_fallthru
        _
      %p820 = scmp.le.s32.totalorder 1, %s68
      %p821 = scmp.lt.s32.totalorder %s68, 3
      %p822 = pnand %p820, %p821
      %p823 = pneg %p822
      // Predicated region
      $region133: #{msa_transf_forward.1} parent=5 // pred_check
        _
      $region134: #{msa_transf_forward.1} parent=5 // pred_check_branch
        %825 = sbr.rel (%p822) target = $region136
      $region135: #{msa_transf_forward.1} parent=5 // pred_region
        %s826 = ssub.s32 %s68, 1
        %s827 = smul.u32 4, %s73
        %p828 = scmp.lt.s32.totalorder %s827, 7
        %s829 = scalar_select %p828, %s827, 7
        %s830 = smul.addr %s829, 8
        %s831 = scalar_lea.vmem %s1, %s830
        %p832 = pneg %p94
        %p833 = pneg %p91
        %p834 = pneg %p115
        %p835 = pneg %p112
        %p836 = pneg %p136
        %p837 = pneg %p133
        %p838 = pneg %p157
        %p839 = pneg %p154
        %p840 = pneg %p178
        %p841 = pneg %p175
        %p842 = pneg %p199
        %p843 = pneg %p196
        %p844 = pneg %p220
        %p845 = pneg %p217
        %p846 = pneg %p241
        %p847 = pneg %p238
        %p848 = pneg %p262
        %p849 = pneg %p259
        %p850 = pneg %p283
        %p851 = pneg %p280
        %p852 = pneg %p304
        %p853 = pneg %p301
        %p854 = pneg %p325
        %p855 = pneg %p322
        %p856 = pneg %p346
        %p857 = pneg %p343
        %p858 = pneg %p367
        %p859 = pneg %p364
        %p860 = pneg %p388
        %p861 = pneg %p385
        %p862 = pneg %p409
        %p863 = pneg %p406
        %p864 = pneg %p430
        %p865 = pneg %p427
        %p866 = pneg %p451
        %p867 = pneg %p448
        %p868 = pneg %p472
        %p869 = pneg %p469
        %p870 = pneg %p493
        %p871 = pneg %p490
        %p872 = pneg %p514
        %p873 = pneg %p511
        %p874 = pneg %p535
        %p875 = pneg %p532
        %p876 = pneg %p556
        %p877 = pneg %p553
        %p878 = pneg %p577
        %p879 = pneg %p574
        %p880 = pneg %p598
        %p881 = pneg %p595
        %p882 = pneg %p619
        %p883 = pneg %p616
        %p884 = pneg %p640
        %p885 = pneg %p637
        %p886 = pneg %p661
        %p887 = pneg %p658
        %p888 = pneg %p682
        %p889 = pneg %p679
        %p890 = pneg %p708
        %p891 = pneg %p705
        %s892 = sand.u32 %s695, 1
        %s893 = scalar_lea.sflag [#allocation5], %s892
        %s894 = sand.u32 %s695, 1
        %s895 = smul.addr %s894, 32
        %s896 = scalar_lea.vmem [#allocation4], %s895
        %s897 = smul.u32 4, %s73
        %p898 = scmp.lt.s32.totalorder %s897, 7
        %s899 = scalar_select %p898, %s897, 7
        %s900 = smul.addr %s899, 8
        %s901 = scalar_lea.vmem %s1, %s900
        %s902 = smul.u32 4, %s73
        %s903 = smul.u32 4, %s73
        %v904 = vld [vmem:[%s901] sm:$0xff]
        %v905 = vld [vmem:[%s901 + $0x8] sm:$0xff]
        %v906 = vld [vmem:[%s901 + $0x10] sm:$0xff]
        %v907 = vld [vmem:[%s901 + $0x18] sm:$0xff]
        %v908 = vld [vmem:[%s39] sm:$0x1]
        %v909 = vld [vmem:[%s41] sm:$0x1]
        %vm910 = vcmask 261120
        %v911 = vsel %vm910, %v904, 0.0
        %912 = vadd.xlane.f32.xlu0 %v911
        %v913 = vpop.xlane.xlu0 %912
        %v914 = vsel %vm910, %v905, 0.0
        %915 = vadd.xlane.f32.xlu0 %v914
        %v916 = vpop.xlane.xlu0 %915
        %v917 = vsel %vm910, %v906, 0.0
        %918 = vadd.xlane.f32.xlu0 %v917
        %v919 = vpop.xlane.xlu0 %918
        %v920 = vsel %vm910, %v907, 0.0
        %921 = vadd.xlane.f32.xlu0 %v920
        %v922 = vpop.xlane.xlu0 %921
        %v923 = vrcp.pop 32.0
        %v924 = vmul.f32 32.0, %v923
        %v925 = vsub.f32 1.0, %v924
        %v926 = vmul.f32 %v923, %v925
        %v927 = vadd.f32 %v923, %v926
        %vm928 = vweird.f32 %v923
        %v929 = vsel %vm928, %v923, %v927
        %v930 = vmul.f32 %v913, %v929
        %v931 = vmul.f32 %v916, %v929
        %v932 = vmul.f32 %v919, %v929
        %v933 = vmul.f32 %v922, %v929
        %v934 = vsub.f32 %v904, %v930
        %v935 = vsub.f32 %v905, %v931
        %v936 = vsub.f32 %v906, %v932
        %v937 = vsub.f32 %v907, %v933
        %v938 = vmul.f32 %v934, %v934
        %v939 = vmul.f32 %v935, %v935
        %v940 = vmul.f32 %v936, %v936
        %v941 = vmul.f32 %v937, %v937
        %v942 = vsel %vm910, %v938, 0.0
        %943 = vadd.xlane.f32.xlu0 %v942
        %v944 = vpop.xlane.xlu0 %943
        %v945 = vsel %vm910, %v939, 0.0
        %946 = vadd.xlane.f32.xlu0 %v945
        %v947 = vpop.xlane.xlu0 %946
        %v948 = vsel %vm910, %v940, 0.0
        %949 = vadd.xlane.f32.xlu0 %v948
        %v950 = vpop.xlane.xlu0 %949
        %v951 = vsel %vm910, %v941, 0.0
        %952 = vadd.xlane.f32.xlu0 %v951
        %v953 = vpop.xlane.xlu0 %952
        %v954 = vmul.f32 %v944, %v929
        %v955 = vmul.f32 %v947, %v929
        %v956 = vmul.f32 %v950, %v929
        %v957 = vmul.f32 %v953, %v929
        %v958 = vadd.f32 %v954, 1e-05
        %v959 = vadd.f32 %v955, 1e-05
        %v960 = vadd.f32 %v956, 1e-05
        %v961 = vadd.f32 %v957, 1e-05
        %v962 = vrsqrt.pop %v958
        %v963 = vmul.f32 %v962, %v958
        %v964 = vmul.f32 %v963, %v962
        %v965 = vmul.f32 0.5, %v964
        %v966 = vsub.f32 1.5, %v965
        %v967 = vmul.f32 %v962, %v966
        %vm968 = vweird.f32 %v958
        %vm969 = vweird.f32 %v962
        %vm970 = vmor %vm968, %vm969
        %v971 = vsel %vm970, %v962, %v967
        %v972 = vrsqrt.pop %v959
        %v973 = vmul.f32 %v972, %v959
        %v974 = vmul.f32 %v973, %v972
        %v975 = vmul.f32 0.5, %v974
        %v976 = vsub.f32 1.5, %v975
        %v977 = vmul.f32 %v972, %v976
        %vm978 = vweird.f32 %v959
        %vm979 = vweird.f32 %v972
        %vm980 = vmor %vm978, %vm979
        %v981 = vsel %vm980, %v972, %v977
        %v982 = vrsqrt.pop %v960
        %v983 = vmul.f32 %v982, %v960
        %v984 = vmul.f32 %v983, %v982
        %v985 = vmul.f32 0.5, %v984
        %v986 = vsub.f32 1.5, %v985
        %v987 = vmul.f32 %v982, %v986
        %vm988 = vweird.f32 %v960
        %vm989 = vweird.f32 %v982
        %vm990 = vmor %vm988, %vm989
        %v991 = vsel %vm990, %v982, %v987
        %v992 = vrsqrt.pop %v961
        %v993 = vmul.f32 %v992, %v961
        %v994 = vmul.f32 %v993, %v992
        %v995 = vmul.f32 0.5, %v994
        %v996 = vsub.f32 1.5, %v995
        %v997 = vmul.f32 %v992, %v996
        %vm998 = vweird.f32 %v961
        %vm999 = vweird.f32 %v992
        %vm1000 = vmor %vm998, %vm999
        %v1001 = vsel %vm1000, %v992, %v997
        %v1002 = vmul.f32 %v934, %v971
        %v1003 = vmul.f32 %v935, %v981
        %v1004 = vmul.f32 %v936, %v991
        %v1005 = vmul.f32 %v937, %v1001
        %v1007 = vperm.slane %v908, 0
        %v1009 = vmul.f32 %v1002, %v1007
        %v1010 = vmul.f32 %v1003, %v1007
        %v1011 = vmul.f32 %v1004, %v1007
        %v1012 = vmul.f32 %v1005, %v1007
        %v1014 = vperm.slane %v909, 0
        %v1016 = vadd.f32 %v1009, %v1014
        %v1017 = vadd.f32 %v1010, %v1014
        %v1018 = vadd.f32 %v1011, %v1014
        %v1019 = vadd.f32 %v1012, %v1014
        %v1020 = vld [vmem:[%s3] sm:$0x1]
        %v1021 = vld [vmem:[%s5] sm:$0x1]
        %v1022 = vsel %vm910, %v1016, 0.0
        %1023 = vadd.xlane.f32.xlu0 %v1022
        %v1024 = vpop.xlane.xlu0 %1023
        %v1025 = vsel %vm910, %v1017, 0.0
        %1026 = vadd.xlane.f32.xlu0 %v1025
        %v1027 = vpop.xlane.xlu0 %1026
        %v1028 = vsel %vm910, %v1018, 0.0
        %1029 = vadd.xlane.f32.xlu0 %v1028
        %v1030 = vpop.xlane.xlu0 %1029
        %v1031 = vsel %vm910, %v1019, 0.0
        %1032 = vadd.xlane.f32.xlu0 %v1031
        %v1033 = vpop.xlane.xlu0 %1032
        %v1034 = vmul.f32 %v1024, %v929
        %v1035 = vmul.f32 %v1027, %v929
        %v1036 = vmul.f32 %v1030, %v929
        %v1037 = vmul.f32 %v1033, %v929
        %v1038 = vsub.f32 %v1016, %v1034
        %v1039 = vsub.f32 %v1017, %v1035
        %v1040 = vsub.f32 %v1018, %v1036
        %v1041 = vsub.f32 %v1019, %v1037
        %v1042 = vmul.f32 %v1038, %v1038
        %v1043 = vmul.f32 %v1039, %v1039
        %v1044 = vmul.f32 %v1040, %v1040
        %v1045 = vmul.f32 %v1041, %v1041
        %v1046 = vsel %vm910, %v1042, 0.0
        %1047 = vadd.xlane.f32.xlu0 %v1046
        %v1048 = vpop.xlane.xlu0 %1047
        %v1049 = vsel %vm910, %v1043, 0.0
        %1050 = vadd.xlane.f32.xlu0 %v1049
        %v1051 = vpop.xlane.xlu0 %1050
        %v1052 = vsel %vm910, %v1044, 0.0
        %1053 = vadd.xlane.f32.xlu0 %v1052
        %v1054 = vpop.xlane.xlu0 %1053
        %v1055 = vsel %vm910, %v1045, 0.0
        %1056 = vadd.xlane.f32.xlu0 %v1055
        %v1057 = vpop.xlane.xlu0 %1056
        %v1058 = vmul.f32 %v1048, %v929
        %v1059 = vmul.f32 %v1051, %v929
        %v1060 = vmul.f32 %v1054, %v929
        %v1061 = vmul.f32 %v1057, %v929
        %v1062 = vadd.f32 %v1058, 1e-05
        %v1063 = vadd.f32 %v1059, 1e-05
        %v1064 = vadd.f32 %v1060, 1e-05
        %v1065 = vadd.f32 %v1061, 1e-05
        %v1066 = vrsqrt.pop %v1062
        %v1067 = vmul.f32 %v1066, %v1062
        %v1068 = vmul.f32 %v1067, %v1066
        %v1069 = vmul.f32 0.5, %v1068
        %v1070 = vsub.f32 1.5, %v1069
        %v1071 = vmul.f32 %v1066, %v1070
        %vm1072 = vweird.f32 %v1062
        %vm1073 = vweird.f32 %v1066
        %vm1074 = vmor %vm1072, %vm1073
        %v1075 = vsel %vm1074, %v1066, %v1071
        %v1076 = vrsqrt.pop %v1063
        %v1077 = vmul.f32 %v1076, %v1063
        %v1078 = vmul.f32 %v1077, %v1076
        %v1079 = vmul.f32 0.5, %v1078
        %v1080 = vsub.f32 1.5, %v1079
        %v1081 = vmul.f32 %v1076, %v1080
        %vm1082 = vweird.f32 %v1063
        %vm1083 = vweird.f32 %v1076
        %vm1084 = vmor %vm1082, %vm1083
        %v1085 = vsel %vm1084, %v1076, %v1081
        %v1086 = vrsqrt.pop %v1064
        %v1087 = vmul.f32 %v1086, %v1064
        %v1088 = vmul.f32 %v1087, %v1086
        %v1089 = vmul.f32 0.5, %v1088
        %v1090 = vsub.f32 1.5, %v1089
        %v1091 = vmul.f32 %v1086, %v1090
        %vm1092 = vweird.f32 %v1064
        %vm1093 = vweird.f32 %v1086
        %vm1094 = vmor %vm1092, %vm1093
        %v1095 = vsel %vm1094, %v1086, %v1091
        %v1096 = vrsqrt.pop %v1065
        %v1097 = vmul.f32 %v1096, %v1065
        %v1098 = vmul.f32 %v1097, %v1096
        %v1099 = vmul.f32 0.5, %v1098
        %v1100 = vsub.f32 1.5, %v1099
        %v1101 = vmul.f32 %v1096, %v1100
        %vm1102 = vweird.f32 %v1065
        %vm1103 = vweird.f32 %v1096
        %vm1104 = vmor %vm1102, %vm1103
        %v1105 = vsel %vm1104, %v1096, %v1101
        %v1106 = vmul.f32 %v1038, %v1075
        %v1107 = vmul.f32 %v1039, %v1085
        %v1108 = vmul.f32 %v1040, %v1095
        %v1109 = vmul.f32 %v1041, %v1105
        %v1111 = vperm.slane %v1020, 0
        %v1113 = vmul.f32 %v1106, %v1111
        %v1114 = vmul.f32 %v1107, %v1111
        %v1115 = vmul.f32 %v1108, %v1111
        %v1116 = vmul.f32 %v1109, %v1111
        %v1118 = vperm.slane %v1021, 0
        %v1120 = vadd.f32 %v1113, %v1118
        %v1121 = vadd.f32 %v1114, %v1118
        %v1122 = vadd.f32 %v1115, %v1118
        %v1123 = vadd.f32 %v1116, %v1118
        %v1124 = vld [vmem:[%s7] sm:$0xff]
        %v1125 = vld [vmem:[%s7 + $0x8] sm:$0xff]
        %v1126 = vld [vmem:[%s7 + $0x10] sm:$0xff]
        %v1127 = vld [vmem:[%s7 + $0x18] sm:$0xff]
        %v1128 = vld [vmem:[%s9] sm:$0x1]
        %v1130 = vperm.slane %v1128, 0
        %v1133 = vsel %vm910, %v1120, 0
        %v1136 = vsel %vm910, %v1121, 0
        %v1139 = vsel %vm910, %v1122, 0
        %v1142 = vsel %vm910, %v1123, 0
        %1144 = vmatpush.msra.mxu0 0.0
        %1145 = vmatpush.msra.mxu0 0.0
        %1146 = vmatpush.msra.mxu0 0.0
        %1147 = vmatpush.msra.mxu0 0.0
        %1148 = vmatpush.msra.mxu0 0.0
        %1149 = vmatpush.msra.mxu0 0.0
        %1150 = vmatpush.msra.mxu0 0.0
        %1151 = vmatpush.msra.mxu0 0.0
        %1152 = vmatpush.msra.mxu0 0.0
        %1153 = vmatpush.msra.mxu0 0.0
        %1154 = vmatpush.msra.mxu0 0.0
        %1155 = vmatpush.msra.mxu0 0.0
        %1156 = vmatpush.msra.mxu0 %v1127
        %1157 = vmatpush.msra.mxu0 %v1126
        %1158 = vmatpush.msra.mxu0 %v1125
        %1159 = vmatpush.msra.mxu0 %v1124
        %1160 = vmatmul.f32.gmra.mxu0 %v1133
        %v1161 = vpop.f32.mrf.mxu0
        %v1162 = vadd.f32 %v1130, %v1161
        %1163 = vmatmul.f32.gmra.mxu0 %v1136
        %v1164 = vpop.f32.mrf.mxu0
        %v1165 = vadd.f32 %v1130, %v1164
        %1166 = vmatmul.f32.gmra.mxu0 %v1139
        %v1167 = vpop.f32.mrf.mxu0
        %v1168 = vadd.f32 %v1130, %v1167
        %1169 = vmatmul.f32.gmra.mxu0 %v1142
        %v1170 = vpop.f32.mrf.mxu0
        %v1171 = vadd.f32 %v1130, %v1170
        %1172 = vdwg.mxu0
        %vm1173 = vcmask 785408
        %1174 = vst.msk [vmem:[#allocation3] sm:$0xff] %vm1173, %v1162
        %1175 = vst.msk [vmem:[#allocation3 + $0x8] sm:$0xff] %vm1173, %v1165
        %1176 = vst.msk [vmem:[#allocation3 + $0x10] sm:$0xff] %vm1173, %v1168
        %1177 = vst.msk [vmem:[#allocation3 + $0x18] sm:$0xff] %vm1173, %v1171
        %v1178 = vld [vmem:[#allocation3] sm:$0xff]
        %v1179 = vld [vmem:[#allocation3 + $0x8] sm:$0xff]
        %v1180 = vld [vmem:[#allocation3 + $0x10] sm:$0xff]
        %v1181 = vld [vmem:[#allocation3 + $0x18] sm:$0xff]
        %v1182 = vmul.f32 %v1178, 0.17677669
        %v1183 = vmul.f32 %v1179, 0.17677669
        %v1184 = vmul.f32 %v1180, 0.17677669
        %v1185 = vmul.f32 %v1181, 0.17677669
        %1187 = vrot.lane.b32.xlu0 %v1179, 96
        %v1188 = vpop.permute.xlu0 %1187
        %vm1189 = vcmask 64512
        %v1191 = vsel %vm1189, %v1183, 0
        %v1193 = vsel %vm1189, %v1188, 0
        %1195 = vmatpush.xpose.msra.mxu0 0.0
        %1196 = vmatpush.xpose.msra.mxu0 0.0
        %1197 = vmatpush.xpose.msra.mxu0 0.0
        %1198 = vmatpush.xpose.msra.mxu0 0.0
        %1199 = vmatpush.xpose.msra.mxu0 0.0
        %1200 = vmatpush.xpose.msra.mxu0 0.0
        %1201 = vmatpush.xpose.msra.mxu0 0.0
        %1202 = vmatpush.xpose.msra.mxu0 0.0
        %1203 = vmatpush.xpose.msra.mxu0 0.0
        %1204 = vmatpush.xpose.msra.mxu0 0.0
        %1205 = vmatpush.xpose.msra.mxu0 0.0
        %1206 = vmatpush.xpose.msra.mxu0 0.0
        %1207 = vmatpush.xpose.msra.mxu0 0.0
        %1208 = vmatpush.xpose.msra.mxu0 0.0
        %1209 = vmatpush.xpose.msra.mxu0 0.0
        %1210 = vmatpush.xpose.msra.mxu0 %v1193
        %1211 = vmatmul.f32.gmra.mxu0 %v1191
        %v1212 = vpop.f32.mrf.mxu0
        %v1213 = vadd.f32 0.0, %v1212
        %1214 = vdwg.mxu0
        %1216 = vrot.lane.b32.xlu0 %v1178, 96
        %v1217 = vpop.permute.xlu0 %1216
        %v1219 = vsel %vm1189, %v1182, 0
        %v1221 = vsel %vm1189, %v1217, 0
        %1223 = vmatpush.xpose.msra.mxu0 0.0
        %1224 = vmatpush.xpose.msra.mxu0 0.0
        %1225 = vmatpush.xpose.msra.mxu0 0.0
        %1226 = vmatpush.xpose.msra.mxu0 0.0
        %1227 = vmatpush.xpose.msra.mxu0 0.0
        %1228 = vmatpush.xpose.msra.mxu0 0.0
        %1229 = vmatpush.xpose.msra.mxu0 0.0
        %1230 = vmatpush.xpose.msra.mxu0 0.0
        %1231 = vmatpush.xpose.msra.mxu0 0.0
        %1232 = vmatpush.xpose.msra.mxu0 0.0
        %1233 = vmatpush.xpose.msra.mxu0 0.0
        %1234 = vmatpush.xpose.msra.mxu0 0.0
        %1235 = vmatpush.xpose.msra.mxu0 0.0
        %1236 = vmatpush.xpose.msra.mxu0 0.0
        %1237 = vmatpush.xpose.msra.mxu0 0.0
        %1238 = vmatpush.xpose.msra.mxu0 %v1221
        %1239 = vmatmul.f32.gmra.mxu0 %v1219
        %v1240 = vpop.f32.mrf.mxu0
        %v1241 = vadd.f32 %v1213, %v1240
        %1242 = vdwg.mxu0
        %1244 = vrot.lane.b32.xlu0 %v1180, 96
        %v1245 = vpop.permute.xlu0 %1244
        %v1247 = vsel %vm1189, %v1184, 0
        %v1249 = vsel %vm1189, %v1245, 0
        %1251 = vmatpush.xpose.msra.mxu0 0.0
        %1252 = vmatpush.xpose.msra.mxu0 0.0
        %1253 = vmatpush.xpose.msra.mxu0 0.0
        %1254 = vmatpush.xpose.msra.mxu0 0.0
        %1255 = vmatpush.xpose.msra.mxu0 0.0
        %1256 = vmatpush.xpose.msra.mxu0 0.0
        %1257 = vmatpush.xpose.msra.mxu0 0.0
        %1258 = vmatpush.xpose.msra.mxu0 0.0
        %1259 = vmatpush.xpose.msra.mxu0 0.0
        %1260 = vmatpush.xpose.msra.mxu0 0.0
        %1261 = vmatpush.xpose.msra.mxu0 0.0
        %1262 = vmatpush.xpose.msra.mxu0 0.0
        %1263 = vmatpush.xpose.msra.mxu0 0.0
        %1264 = vmatpush.xpose.msra.mxu0 0.0
        %1265 = vmatpush.xpose.msra.mxu0 0.0
        %1266 = vmatpush.xpose.msra.mxu0 %v1249
        %1267 = vmatmul.f32.gmra.mxu0 %v1247
        %v1268 = vpop.f32.mrf.mxu0
        %v1269 = vadd.f32 0.0, %v1268
        %1270 = vdwg.mxu0
        %v1271 = vadd.f32 %v1241, %v1269
        %1273 = vrot.lane.b32.xlu0 %v1181, 96
        %v1274 = vpop.permute.xlu0 %1273
        %v1276 = vsel %vm1189, %v1185, 0
        %v1278 = vsel %vm1189, %v1274, 0
        %1280 = vmatpush.xpose.msra.mxu0 0.0
        %1281 = vmatpush.xpose.msra.mxu0 0.0
        %1282 = vmatpush.xpose.msra.mxu0 0.0
        %1283 = vmatpush.xpose.msra.mxu0 0.0
        %1284 = vmatpush.xpose.msra.mxu0 0.0
        %1285 = vmatpush.xpose.msra.mxu0 0.0
        %1286 = vmatpush.xpose.msra.mxu0 0.0
        %1287 = vmatpush.xpose.msra.mxu0 0.0
        %1288 = vmatpush.xpose.msra.mxu0 0.0
        %1289 = vmatpush.xpose.msra.mxu0 0.0
        %1290 = vmatpush.xpose.msra.mxu0 0.0
        %1291 = vmatpush.xpose.msra.mxu0 0.0
        %1292 = vmatpush.xpose.msra.mxu0 0.0
        %1293 = vmatpush.xpose.msra.mxu0 0.0
        %1294 = vmatpush.xpose.msra.mxu0 0.0
        %1295 = vmatpush.xpose.msra.mxu0 %v1278
        %1296 = vmatmul.f32.gmra.mxu0 %v1276
        %v1297 = vpop.f32.mrf.mxu0
        %v1298 = vadd.f32 0.0, %v1297
        %1299 = vdwg.mxu0
        %v1300 = vadd.f32 %v1271, %v1298
        %v1301 = vsel %vm1189, %v1300, -inf
        %1302 = vmax.xlane.f32.xlu0 %v1301
        %v1303 = vpop.xlane.xlu0 %1302
        %v1304 = vsub.f32 %v1300, %v1303
        %v1305 = vmul.f32 %v1304, 1.442695
        %v1306 = vpow.pop %v1305
        %v1307 = vsel %vm1189, %v1306, 0.0
        %1308 = vadd.xlane.f32.xlu0 %v1307
        %v1309 = vpop.xlane.xlu0 %1308
        %v1310 = vrcp.pop %v1309
        %v1311 = vmul.f32 %v1309, %v1310
        %v1312 = vsub.f32 1.0, %v1311
        %v1313 = vmul.f32 %v1310, %v1312
        %v1314 = vadd.f32 %v1310, %v1313
        %vm1315 = vweird.f32 %v1309
        %vm1316 = vweird.f32 %v1310
        %vm1317 = vmor %vm1315, %vm1316
        %v1318 = vsel %vm1317, %v1310, %v1314
        %v1319 = vand.u32 2147483647, %v1309
        %vm1320 = vcmp.eq.f32.partialorder %v1319, 8.507059e+37
        %v1321 = vand.u32 %v1309, 2147483648
        %v1322 = vor.u32 1.1754944e-38, %v1321
        %v1323 = vsel %vm1320, %v1322, %v1318
        %v1324 = vmul.f32 %v1306, %v1323
        %1325 = vrot.lane.b32.xlu0 %v1178, 64
        %v1326 = vpop.permute.xlu0 %1325
        %v1329 = vsel %vm1189, %v1324, 0
        %1331 = vmatpush.msra.mxu0 0.0
        %1332 = vmatpush.msra.mxu0 0.0
        %1333 = vmatpush.msra.mxu0 0.0
        %1334 = vmatpush.msra.mxu0 0.0
        %1335 = vmatpush.msra.mxu0 0.0
        %1336 = vmatpush.msra.mxu0 0.0
        %1337 = vmatpush.msra.mxu0 0.0
        %1338 = vmatpush.msra.mxu0 0.0
        %1339 = vmatpush.msra.mxu0 0.0
        %1340 = vmatpush.msra.mxu0 0.0
        %1341 = vmatpush.msra.mxu0 0.0
        %1342 = vmatpush.msra.mxu0 0.0
        %1343 = vmatpush.msra.mxu0 0.0
        %1344 = vmatpush.msra.mxu0 0.0
        %1345 = vmatpush.msra.mxu0 0.0
        %1346 = vmatpush.msra.mxu0 %v1326
        %1347 = vmatmul.f32.gmra.mxu0 %v1329
        %v1348 = vpop.f32.mrf.mxu0
        %v1349 = vadd.f32 0.0, %v1348
        %1350 = vdwg.mxu0
        %1351 = vst.msk [vmem:[#allocation2] sm:$0xff] %vm1189, %v1349
        %1352 = vrot.lane.b32.xlu0 %v1179, 64
        %v1353 = vpop.permute.xlu0 %1352
        %1355 = vmatpush.msra.mxu0 0.0
        %1356 = vmatpush.msra.mxu0 0.0
        %1357 = vmatpush.msra.mxu0 0.0
        %1358 = vmatpush.msra.mxu0 0.0
        %1359 = vmatpush.msra.mxu0 0.0
        %1360 = vmatpush.msra.mxu0 0.0
        %1361 = vmatpush.msra.mxu0 0.0
        %1362 = vmatpush.msra.mxu0 0.0
        %1363 = vmatpush.msra.mxu0 0.0
        %1364 = vmatpush.msra.mxu0 0.0
        %1365 = vmatpush.msra.mxu0 0.0
        %1366 = vmatpush.msra.mxu0 0.0
        %1367 = vmatpush.msra.mxu0 0.0
        %1368 = vmatpush.msra.mxu0 0.0
        %1369 = vmatpush.msra.mxu0 0.0
        %1370 = vmatpush.msra.mxu0 %v1353
        %1371 = vmatmul.f32.gmra.mxu0 %v1329
        %v1372 = vpop.f32.mrf.mxu0
        %v1373 = vadd.f32 0.0, %v1372
        %1374 = vdwg.mxu0
        %s1375 = scalar_lea.vmem [#allocation2], 8
        %1376 = vst.msk [vmem:[%s1375] sm:$0xff] %vm1189, %v1373
        %1377 = vrot.lane.b32.xlu0 %v1180, 64
        %v1378 = vpop.permute.xlu0 %1377
        %1380 = vmatpush.msra.mxu0 0.0
        %1381 = vmatpush.msra.mxu0 0.0
        %1382 = vmatpush.msra.mxu0 0.0
        %1383 = vmatpush.msra.mxu0 0.0
        %1384 = vmatpush.msra.mxu0 0.0
        %1385 = vmatpush.msra.mxu0 0.0
        %1386 = vmatpush.msra.mxu0 0.0
        %1387 = vmatpush.msra.mxu0 0.0
        %1388 = vmatpush.msra.mxu0 0.0
        %1389 = vmatpush.msra.mxu0 0.0
        %1390 = vmatpush.msra.mxu0 0.0
        %1391 = vmatpush.msra.mxu0 0.0
        %1392 = vmatpush.msra.mxu0 0.0
        %1393 = vmatpush.msra.mxu0 0.0
        %1394 = vmatpush.msra.mxu0 0.0
        %1395 = vmatpush.msra.mxu0 %v1378
        %1396 = vmatmul.f32.gmra.mxu0 %v1329
        %v1397 = vpop.f32.mrf.mxu0
        %v1398 = vadd.f32 0.0, %v1397
        %1399 = vdwg.mxu0
        %s1400 = scalar_lea.vmem [#allocation2], 16
        %1401 = vst.msk [vmem:[%s1400] sm:$0xff] %vm1189, %v1398
        %1402 = vrot.lane.b32.xlu0 %v1181, 64
        %v1403 = vpop.permute.xlu0 %1402
        %1405 = vmatpush.msra.mxu0 0.0
        %1406 = vmatpush.msra.mxu0 0.0
        %1407 = vmatpush.msra.mxu0 0.0
        %1408 = vmatpush.msra.mxu0 0.0
        %1409 = vmatpush.msra.mxu0 0.0
        %1410 = vmatpush.msra.mxu0 0.0
        %1411 = vmatpush.msra.mxu0 0.0
        %1412 = vmatpush.msra.mxu0 0.0
        %1413 = vmatpush.msra.mxu0 0.0
        %1414 = vmatpush.msra.mxu0 0.0
        %1415 = vmatpush.msra.mxu0 0.0
        %1416 = vmatpush.msra.mxu0 0.0
        %1417 = vmatpush.msra.mxu0 0.0
        %1418 = vmatpush.msra.mxu0 0.0
        %1419 = vmatpush.msra.mxu0 0.0
        %1420 = vmatpush.msra.mxu0 %v1403
        %1421 = vmatmul.f32.gmra.mxu0 %v1329
        %v1422 = vpop.f32.mrf.mxu0
        %v1423 = vadd.f32 0.0, %v1422
        %1424 = vdwg.mxu0
        %s1425 = scalar_lea.vmem [#allocation2], 24
        %1426 = vst.msk [vmem:[%s1425] sm:$0xff] %vm1189, %v1423
        %v1427 = vld [vmem:[#allocation3] sm:$0xff]
        %v1428 = vld [vmem:[#allocation3 + $0x8] sm:$0xff]
        %v1429 = vld [vmem:[#allocation3 + $0x10] sm:$0xff]
        %v1430 = vld [vmem:[#allocation3 + $0x18] sm:$0xff]
        %v1431 = vmul.f32 %v1427, 0.17677669
        %v1432 = vmul.f32 %v1428, 0.17677669
        %v1433 = vmul.f32 %v1429, 0.17677669
        %v1434 = vmul.f32 %v1430, 0.17677669
        %1436 = vrot.lane.b32.xlu0 %v1432, 120
        %v1437 = vpop.permute.xlu0 %1436
        %1439 = vrot.lane.b32.xlu0 %v1428, 88
        %v1440 = vpop.permute.xlu0 %1439
        %v1441 = vsel %vm1189, %v1437, 0
        %v1443 = vsel %vm1189, %v1440, 0
        %1445 = vmatpush.xpose.msra.mxu0 0.0
        %1446 = vmatpush.xpose.msra.mxu0 0.0
        %1447 = vmatpush.xpose.msra.mxu0 0.0
        %1448 = vmatpush.xpose.msra.mxu0 0.0
        %1449 = vmatpush.xpose.msra.mxu0 0.0
        %1450 = vmatpush.xpose.msra.mxu0 0.0
        %1451 = vmatpush.xpose.msra.mxu0 0.0
        %1452 = vmatpush.xpose.msra.mxu0 0.0
        %1453 = vmatpush.xpose.msra.mxu0 0.0
        %1454 = vmatpush.xpose.msra.mxu0 0.0
        %1455 = vmatpush.xpose.msra.mxu0 0.0
        %1456 = vmatpush.xpose.msra.mxu0 0.0
        %1457 = vmatpush.xpose.msra.mxu0 0.0
        %1458 = vmatpush.xpose.msra.mxu0 0.0
        %1459 = vmatpush.xpose.msra.mxu0 0.0
        %1460 = vmatpush.xpose.msra.mxu0 %v1443
        %1461 = vmatmul.f32.gmra.mxu0 %v1441
        %v1462 = vpop.f32.mrf.mxu0
        %v1463 = vadd.f32 0.0, %v1462
        %1464 = vdwg.mxu0
        %1466 = vrot.lane.b32.xlu0 %v1431, 120
        %v1467 = vpop.permute.xlu0 %1466
        %1469 = vrot.lane.b32.xlu0 %v1427, 88
        %v1470 = vpop.permute.xlu0 %1469
        %v1471 = vsel %vm1189, %v1467, 0
        %v1473 = vsel %vm1189, %v1470, 0
        %1475 = vmatpush.xpose.msra.mxu0 0.0
        %1476 = vmatpush.xpose.msra.mxu0 0.0
        %1477 = vmatpush.xpose.msra.mxu0 0.0
        %1478 = vmatpush.xpose.msra.mxu0 0.0
        %1479 = vmatpush.xpose.msra.mxu0 0.0
        %1480 = vmatpush.xpose.msra.mxu0 0.0
        %1481 = vmatpush.xpose.msra.mxu0 0.0
        %1482 = vmatpush.xpose.msra.mxu0 0.0
        %1483 = vmatpush.xpose.msra.mxu0 0.0
        %1484 = vmatpush.xpose.msra.mxu0 0.0
        %1485 = vmatpush.xpose.msra.mxu0 0.0
        %1486 = vmatpush.xpose.msra.mxu0 0.0
        %1487 = vmatpush.xpose.msra.mxu0 0.0
        %1488 = vmatpush.xpose.msra.mxu0 0.0
        %1489 = vmatpush.xpose.msra.mxu0 0.0
        %1490 = vmatpush.xpose.msra.mxu0 %v1473
        %1491 = vmatmul.f32.gmra.mxu0 %v1471
        %v1492 = vpop.f32.mrf.mxu0
        %v1493 = vadd.f32 %v1463, %v1492
        %1494 = vdwg.mxu0
        %1496 = vrot.lane.b32.xlu0 %v1433, 120
        %v1497 = vpop.permute.xlu0 %1496
        %1499 = vrot.lane.b32.xlu0 %v1429, 88
        %v1500 = vpop.permute.xlu0 %1499
        %v1501 = vsel %vm1189, %v1497, 0
        %v1503 = vsel %vm1189, %v1500, 0
        %1505 = vmatpush.xpose.msra.mxu0 0.0
        %1506 = vmatpush.xpose.msra.mxu0 0.0
        %1507 = vmatpush.xpose.msra.mxu0 0.0
        %1508 = vmatpush.xpose.msra.mxu0 0.0
        %1509 = vmatpush.xpose.msra.mxu0 0.0
        %1510 = vmatpush.xpose.msra.mxu0 0.0
        %1511 = vmatpush.xpose.msra.mxu0 0.0
        %1512 = vmatpush.xpose.msra.mxu0 0.0
        %1513 = vmatpush.xpose.msra.mxu0 0.0
        %1514 = vmatpush.xpose.msra.mxu0 0.0
        %1515 = vmatpush.xpose.msra.mxu0 0.0
        %1516 = vmatpush.xpose.msra.mxu0 0.0
        %1517 = vmatpush.xpose.msra.mxu0 0.0
        %1518 = vmatpush.xpose.msra.mxu0 0.0
        %1519 = vmatpush.xpose.msra.mxu0 0.0
        %1520 = vmatpush.xpose.msra.mxu0 %v1503
        %1521 = vmatmul.f32.gmra.mxu0 %v1501
        %v1522 = vpop.f32.mrf.mxu0
        %v1523 = vadd.f32 0.0, %v1522
        %1524 = vdwg.mxu0
        %v1525 = vadd.f32 %v1493, %v1523
        %1527 = vrot.lane.b32.xlu0 %v1434, 120
        %v1528 = vpop.permute.xlu0 %1527
        %1530 = vrot.lane.b32.xlu0 %v1430, 88
        %v1531 = vpop.permute.xlu0 %1530
        %v1532 = vsel %vm1189, %v1528, 0
        %v1534 = vsel %vm1189, %v1531, 0
        %1536 = vmatpush.xpose.msra.mxu0 0.0
        %1537 = vmatpush.xpose.msra.mxu0 0.0
        %1538 = vmatpush.xpose.msra.mxu0 0.0
        %1539 = vmatpush.xpose.msra.mxu0 0.0
        %1540 = vmatpush.xpose.msra.mxu0 0.0
        %1541 = vmatpush.xpose.msra.mxu0 0.0
        %1542 = vmatpush.xpose.msra.mxu0 0.0
        %1543 = vmatpush.xpose.msra.mxu0 0.0
        %1544 = vmatpush.xpose.msra.mxu0 0.0
        %1545 = vmatpush.xpose.msra.mxu0 0.0
        %1546 = vmatpush.xpose.msra.mxu0 0.0
        %1547 = vmatpush.xpose.msra.mxu0 0.0
        %1548 = vmatpush.xpose.msra.mxu0 0.0
        %1549 = vmatpush.xpose.msra.mxu0 0.0
        %1550 = vmatpush.xpose.msra.mxu0 0.0
        %1551 = vmatpush.xpose.msra.mxu0 %v1534
        %1552 = vmatmul.f32.gmra.mxu0 %v1532
        %v1553 = vpop.f32.mrf.mxu0
        %v1554 = vadd.f32 0.0, %v1553
        %1555 = vdwg.mxu0
        %v1556 = vadd.f32 %v1525, %v1554
        %v1557 = vsel %vm1189, %v1556, -inf
        %1558 = vmax.xlane.f32.xlu0 %v1557
        %v1559 = vpop.xlane.xlu0 %1558
        %v1560 = vsub.f32 %v1556, %v1559
        %v1561 = vmul.f32 %v1560, 1.442695
        %v1562 = vpow.pop %v1561
        %v1563 = vsel %vm1189, %v1562, 0.0
        %1564 = vadd.xlane.f32.xlu0 %v1563
        %v1565 = vpop.xlane.xlu0 %1564
        %v1566 = vrcp.pop %v1565
        %v1567 = vmul.f32 %v1565, %v1566
        %v1568 = vsub.f32 1.0, %v1567
        %v1569 = vmul.f32 %v1566, %v1568
        %v1570 = vadd.f32 %v1566, %v1569
        %vm1571 = vweird.f32 %v1565
        %vm1572 = vweird.f32 %v1566
        %vm1573 = vmor %vm1571, %vm1572
        %v1574 = vsel %vm1573, %v1566, %v1570
        %v1575 = vand.u32 2147483647, %v1565
        %vm1576 = vcmp.eq.f32.partialorder %v1575, 8.507059e+37
        %v1577 = vand.u32 %v1565, 2147483648
        %v1578 = vor.u32 1.1754944e-38, %v1577
        %v1579 = vsel %vm1576, %v1578, %v1574
        %v1580 = vmul.f32 %v1562, %v1579
        %1581 = vrot.lane.b32.xlu0 %v1427, 56
        %v1582 = vpop.permute.xlu0 %1581
        %v1585 = vsel %vm1189, %v1580, 0
        %1587 = vmatpush.msra.mxu0 0.0
        %1588 = vmatpush.msra.mxu0 0.0
        %1589 = vmatpush.msra.mxu0 0.0
        %1590 = vmatpush.msra.mxu0 0.0
        %1591 = vmatpush.msra.mxu0 0.0
        %1592 = vmatpush.msra.mxu0 0.0
        %1593 = vmatpush.msra.mxu0 0.0
        %1594 = vmatpush.msra.mxu0 0.0
        %1595 = vmatpush.msra.mxu0 0.0
        %1596 = vmatpush.msra.mxu0 0.0
        %1597 = vmatpush.msra.mxu0 0.0
        %1598 = vmatpush.msra.mxu0 0.0
        %1599 = vmatpush.msra.mxu0 0.0
        %1600 = vmatpush.msra.mxu0 0.0
        %1601 = vmatpush.msra.mxu0 0.0
        %1602 = vmatpush.msra.mxu0 %v1582
        %1603 = vmatmul.f32.gmra.mxu0 %v1585
        %v1604 = vpop.f32.mrf.mxu0
        %v1605 = vadd.f32 0.0, %v1604
        %1606 = vdwg.mxu0
        %1608 = vrot.lane.b32.xlu0 %v1605, 8
        %v1609 = vpop.permute.xlu0 %1608
        %vm1611 = vcmask 130112
        %1612 = vst.msk [vmem:[#allocation2] sm:$0xff] %vm1611, %v1609
        %1613 = vrot.lane.b32.xlu0 %v1428, 56
        %v1614 = vpop.permute.xlu0 %1613
        %1616 = vmatpush.msra.mxu0 0.0
        %1617 = vmatpush.msra.mxu0 0.0
        %1618 = vmatpush.msra.mxu0 0.0
        %1619 = vmatpush.msra.mxu0 0.0
        %1620 = vmatpush.msra.mxu0 0.0
        %1621 = vmatpush.msra.mxu0 0.0
        %1622 = vmatpush.msra.mxu0 0.0
        %1623 = vmatpush.msra.mxu0 0.0
        %1624 = vmatpush.msra.mxu0 0.0
        %1625 = vmatpush.msra.mxu0 0.0
        %1626 = vmatpush.msra.mxu0 0.0
        %1627 = vmatpush.msra.mxu0 0.0
        %1628 = vmatpush.msra.mxu0 0.0
        %1629 = vmatpush.msra.mxu0 0.0
        %1630 = vmatpush.msra.mxu0 0.0
        %1631 = vmatpush.msra.mxu0 %v1614
        %1632 = vmatmul.f32.gmra.mxu0 %v1585
        %v1633 = vpop.f32.mrf.mxu0
        %v1634 = vadd.f32 0.0, %v1633
        %1635 = vdwg.mxu0
        %1637 = vrot.lane.b32.xlu0 %v1634, 8
        %v1638 = vpop.permute.xlu0 %1637
        %1640 = vst.msk [vmem:[%s1375] sm:$0xff] %vm1611, %v1638
        %1641 = vrot.lane.b32.xlu0 %v1429, 56
        %v1642 = vpop.permute.xlu0 %1641
        %1644 = vmatpush.msra.mxu0 0.0
        %1645 = vmatpush.msra.mxu0 0.0
        %1646 = vmatpush.msra.mxu0 0.0
        %1647 = vmatpush.msra.mxu0 0.0
        %1648 = vmatpush.msra.mxu0 0.0
        %1649 = vmatpush.msra.mxu0 0.0
        %1650 = vmatpush.msra.mxu0 0.0
        %1651 = vmatpush.msra.mxu0 0.0
        %1652 = vmatpush.msra.mxu0 0.0
        %1653 = vmatpush.msra.mxu0 0.0
        %1654 = vmatpush.msra.mxu0 0.0
        %1655 = vmatpush.msra.mxu0 0.0
        %1656 = vmatpush.msra.mxu0 0.0
        %1657 = vmatpush.msra.mxu0 0.0
        %1658 = vmatpush.msra.mxu0 0.0
        %1659 = vmatpush.msra.mxu0 %v1642
        %1660 = vmatmul.f32.gmra.mxu0 %v1585
        %v1661 = vpop.f32.mrf.mxu0
        %v1662 = vadd.f32 0.0, %v1661
        %1663 = vdwg.mxu0
        %1665 = vrot.lane.b32.xlu0 %v1662, 8
        %v1666 = vpop.permute.xlu0 %1665
        %1668 = vst.msk [vmem:[%s1400] sm:$0xff] %vm1611, %v1666
        %1669 = vrot.lane.b32.xlu0 %v1430, 56
        %v1670 = vpop.permute.xlu0 %1669
        %1672 = vmatpush.msra.mxu0 0.0
        %1673 = vmatpush.msra.mxu0 0.0
        %1674 = vmatpush.msra.mxu0 0.0
        %1675 = vmatpush.msra.mxu0 0.0
        %1676 = vmatpush.msra.mxu0 0.0
        %1677 = vmatpush.msra.mxu0 0.0
        %1678 = vmatpush.msra.mxu0 0.0
        %1679 = vmatpush.msra.mxu0 0.0
        %1680 = vmatpush.msra.mxu0 0.0
        %1681 = vmatpush.msra.mxu0 0.0
        %1682 = vmatpush.msra.mxu0 0.0
        %1683 = vmatpush.msra.mxu0 0.0
        %1684 = vmatpush.msra.mxu0 0.0
        %1685 = vmatpush.msra.mxu0 0.0
        %1686 = vmatpush.msra.mxu0 0.0
        %1687 = vmatpush.msra.mxu0 %v1670
        %1688 = vmatmul.f32.gmra.mxu0 %v1585
        %v1689 = vpop.f32.mrf.mxu0
        %v1690 = vadd.f32 0.0, %v1689
        %1691 = vdwg.mxu0
        %1693 = vrot.lane.b32.xlu0 %v1690, 8
        %v1694 = vpop.permute.xlu0 %1693
        %1696 = vst.msk [vmem:[%s1425] sm:$0xff] %vm1611, %v1694
        %v1697 = vld [vmem:[#allocation3] sm:$0xff]
        %v1698 = vld [vmem:[#allocation3 + $0x8] sm:$0xff]
        %v1699 = vld [vmem:[#allocation3 + $0x10] sm:$0xff]
        %v1700 = vld [vmem:[#allocation3 + $0x18] sm:$0xff]
        %v1701 = vmul.f32 %v1697, 0.17677669
        %v1702 = vmul.f32 %v1698, 0.17677669
        %v1703 = vmul.f32 %v1699, 0.17677669
        %v1704 = vmul.f32 %v1700, 0.17677669
        %1706 = vrot.lane.b32.xlu0 %v1702, 112
        %v1707 = vpop.permute.xlu0 %1706
        %1709 = vrot.lane.b32.xlu0 %v1698, 80
        %v1710 = vpop.permute.xlu0 %1709
        %v1711 = vsel %vm1189, %v1707, 0
        %v1713 = vsel %vm1189, %v1710, 0
        %1715 = vmatpush.xpose.msra.mxu0 0.0
        %1716 = vmatpush.xpose.msra.mxu0 0.0
        %1717 = vmatpush.xpose.msra.mxu0 0.0
        %1718 = vmatpush.xpose.msra.mxu0 0.0
        %1719 = vmatpush.xpose.msra.mxu0 0.0
        %1720 = vmatpush.xpose.msra.mxu0 0.0
        %1721 = vmatpush.xpose.msra.mxu0 0.0
        %1722 = vmatpush.xpose.msra.mxu0 0.0
        %1723 = vmatpush.xpose.msra.mxu0 0.0
        %1724 = vmatpush.xpose.msra.mxu0 0.0
        %1725 = vmatpush.xpose.msra.mxu0 0.0
        %1726 = vmatpush.xpose.msra.mxu0 0.0
        %1727 = vmatpush.xpose.msra.mxu0 0.0
        %1728 = vmatpush.xpose.msra.mxu0 0.0
        %1729 = vmatpush.xpose.msra.mxu0 0.0
        %1730 = vmatpush.xpose.msra.mxu0 %v1713
        %1731 = vmatmul.f32.gmra.mxu0 %v1711
        %v1732 = vpop.f32.mrf.mxu0
        %v1733 = vadd.f32 0.0, %v1732
        %1734 = vdwg.mxu0
        %1736 = vrot.lane.b32.xlu0 %v1701, 112
        %v1737 = vpop.permute.xlu0 %1736
        %1739 = vrot.lane.b32.xlu0 %v1697, 80
        %v1740 = vpop.permute.xlu0 %1739
        %v1741 = vsel %vm1189, %v1737, 0
        %v1743 = vsel %vm1189, %v1740, 0
        %1745 = vmatpush.xpose.msra.mxu0 0.0
        %1746 = vmatpush.xpose.msra.mxu0 0.0
        %1747 = vmatpush.xpose.msra.mxu0 0.0
        %1748 = vmatpush.xpose.msra.mxu0 0.0
        %1749 = vmatpush.xpose.msra.mxu0 0.0
        %1750 = vmatpush.xpose.msra.mxu0 0.0
        %1751 = vmatpush.xpose.msra.mxu0 0.0
        %1752 = vmatpush.xpose.msra.mxu0 0.0
        %1753 = vmatpush.xpose.msra.mxu0 0.0
        %1754 = vmatpush.xpose.msra.mxu0 0.0
        %1755 = vmatpush.xpose.msra.mxu0 0.0
        %1756 = vmatpush.xpose.msra.mxu0 0.0
        %1757 = vmatpush.xpose.msra.mxu0 0.0
        %1758 = vmatpush.xpose.msra.mxu0 0.0
        %1759 = vmatpush.xpose.msra.mxu0 0.0
        %1760 = vmatpush.xpose.msra.mxu0 %v1743
        %1761 = vmatmul.f32.gmra.mxu0 %v1741
        %v1762 = vpop.f32.mrf.mxu0
        %v1763 = vadd.f32 %v1733, %v1762
        %1764 = vdwg.mxu0
        %1766 = vrot.lane.b32.xlu0 %v1703, 112
        %v1767 = vpop.permute.xlu0 %1766
        %1769 = vrot.lane.b32.xlu0 %v1699, 80
        %v1770 = vpop.permute.xlu0 %1769
        %v1771 = vsel %vm1189, %v1767, 0
        %v1773 = vsel %vm1189, %v1770, 0
        %1775 = vmatpush.xpose.msra.mxu0 0.0
        %1776 = vmatpush.xpose.msra.mxu0 0.0
        %1777 = vmatpush.xpose.msra.mxu0 0.0
        %1778 = vmatpush.xpose.msra.mxu0 0.0
        %1779 = vmatpush.xpose.msra.mxu0 0.0
        %1780 = vmatpush.xpose.msra.mxu0 0.0
        %1781 = vmatpush.xpose.msra.mxu0 0.0
        %1782 = vmatpush.xpose.msra.mxu0 0.0
        %1783 = vmatpush.xpose.msra.mxu0 0.0
        %1784 = vmatpush.xpose.msra.mxu0 0.0
        %1785 = vmatpush.xpose.msra.mxu0 0.0
        %1786 = vmatpush.xpose.msra.mxu0 0.0
        %1787 = vmatpush.xpose.msra.mxu0 0.0
        %1788 = vmatpush.xpose.msra.mxu0 0.0
        %1789 = vmatpush.xpose.msra.mxu0 0.0
        %1790 = vmatpush.xpose.msra.mxu0 %v1773
        %1791 = vmatmul.f32.gmra.mxu0 %v1771
        %v1792 = vpop.f32.mrf.mxu0
        %v1793 = vadd.f32 0.0, %v1792
        %1794 = vdwg.mxu0
        %v1795 = vadd.f32 %v1763, %v1793
        %1797 = vrot.lane.b32.xlu0 %v1704, 112
        %v1798 = vpop.permute.xlu0 %1797
        %1800 = vrot.lane.b32.xlu0 %v1700, 80
        %v1801 = vpop.permute.xlu0 %1800
        %v1802 = vsel %vm1189, %v1798, 0
        %v1804 = vsel %vm1189, %v1801, 0
        %1806 = vmatpush.xpose.msra.mxu0 0.0
        %1807 = vmatpush.xpose.msra.mxu0 0.0
        %1808 = vmatpush.xpose.msra.mxu0 0.0
        %1809 = vmatpush.xpose.msra.mxu0 0.0
        %1810 = vmatpush.xpose.msra.mxu0 0.0
        %1811 = vmatpush.xpose.msra.mxu0 0.0
        %1812 = vmatpush.xpose.msra.mxu0 0.0
        %1813 = vmatpush.xpose.msra.mxu0 0.0
        %1814 = vmatpush.xpose.msra.mxu0 0.0
        %1815 = vmatpush.xpose.msra.mxu0 0.0
        %1816 = vmatpush.xpose.msra.mxu0 0.0
        %1817 = vmatpush.xpose.msra.mxu0 0.0
        %1818 = vmatpush.xpose.msra.mxu0 0.0
        %1819 = vmatpush.xpose.msra.mxu0 0.0
        %1820 = vmatpush.xpose.msra.mxu0 0.0
        %1821 = vmatpush.xpose.msra.mxu0 %v1804
        %1822 = vmatmul.f32.gmra.mxu0 %v1802
        %v1823 = vpop.f32.mrf.mxu0
        %v1824 = vadd.f32 0.0, %v1823
        %1825 = vdwg.mxu0
        %v1826 = vadd.f32 %v1795, %v1824
        %v1827 = vsel %vm1189, %v1826, -inf
        %1828 = vmax.xlane.f32.xlu0 %v1827
        %v1829 = vpop.xlane.xlu0 %1828
        %v1830 = vsub.f32 %v1826, %v1829
        %v1831 = vmul.f32 %v1830, 1.442695
        %v1832 = vpow.pop %v1831
        %v1833 = vsel %vm1189, %v1832, 0.0
        %1834 = vadd.xlane.f32.xlu0 %v1833
        %v1835 = vpop.xlane.xlu0 %1834
        %v1836 = vrcp.pop %v1835
        %v1837 = vmul.f32 %v1835, %v1836
        %v1838 = vsub.f32 1.0, %v1837
        %v1839 = vmul.f32 %v1836, %v1838
        %v1840 = vadd.f32 %v1836, %v1839
        %vm1841 = vweird.f32 %v1835
        %vm1842 = vweird.f32 %v1836
        %vm1843 = vmor %vm1841, %vm1842
        %v1844 = vsel %vm1843, %v1836, %v1840
        %v1845 = vand.u32 2147483647, %v1835
        %vm1846 = vcmp.eq.f32.partialorder %v1845, 8.507059e+37
        %v1847 = vand.u32 %v1835, 2147483648
        %v1848 = vor.u32 1.1754944e-38, %v1847
        %v1849 = vsel %vm1846, %v1848, %v1844
        %v1850 = vmul.f32 %v1832, %v1849
        %1851 = vrot.lane.b32.xlu0 %v1697, 48
        %v1852 = vpop.permute.xlu0 %1851
        %v1855 = vsel %vm1189, %v1850, 0
        %1857 = vmatpush.msra.mxu0 0.0
        %1858 = vmatpush.msra.mxu0 0.0
        %1859 = vmatpush.msra.mxu0 0.0
        %1860 = vmatpush.msra.mxu0 0.0
        %1861 = vmatpush.msra.mxu0 0.0
        %1862 = vmatpush.msra.mxu0 0.0
        %1863 = vmatpush.msra.mxu0 0.0
        %1864 = vmatpush.msra.mxu0 0.0
        %1865 = vmatpush.msra.mxu0 0.0
        %1866 = vmatpush.msra.mxu0 0.0
        %1867 = vmatpush.msra.mxu0 0.0
        %1868 = vmatpush.msra.mxu0 0.0
        %1869 = vmatpush.msra.mxu0 0.0
        %1870 = vmatpush.msra.mxu0 0.0
        %1871 = vmatpush.msra.mxu0 0.0
        %1872 = vmatpush.msra.mxu0 %v1852
        %1873 = vmatmul.f32.gmra.mxu0 %v1855
        %v1874 = vpop.f32.mrf.mxu0
        %v1875 = vadd.f32 0.0, %v1874
        %1876 = vdwg.mxu0
        %1878 = vrot.lane.b32.xlu0 %v1875, 16
        %v1879 = vpop.permute.xlu0 %1878
        %vm1881 = vcmask 195712
        %1882 = vst.msk [vmem:[#allocation2] sm:$0xff] %vm1881, %v1879
        %1883 = vrot.lane.b32.xlu0 %v1698, 48
        %v1884 = vpop.permute.xlu0 %1883
        %1886 = vmatpush.msra.mxu0 0.0
        %1887 = vmatpush.msra.mxu0 0.0
        %1888 = vmatpush.msra.mxu0 0.0
        %1889 = vmatpush.msra.mxu0 0.0
        %1890 = vmatpush.msra.mxu0 0.0
        %1891 = vmatpush.msra.mxu0 0.0
        %1892 = vmatpush.msra.mxu0 0.0
        %1893 = vmatpush.msra.mxu0 0.0
        %1894 = vmatpush.msra.mxu0 0.0
        %1895 = vmatpush.msra.mxu0 0.0
        %1896 = vmatpush.msra.mxu0 0.0
        %1897 = vmatpush.msra.mxu0 0.0
        %1898 = vmatpush.msra.mxu0 0.0
        %1899 = vmatpush.msra.mxu0 0.0
        %1900 = vmatpush.msra.mxu0 0.0
        %1901 = vmatpush.msra.mxu0 %v1884
        %1902 = vmatmul.f32.gmra.mxu0 %v1855
        %v1903 = vpop.f32.mrf.mxu0
        %v1904 = vadd.f32 0.0, %v1903
        %1905 = vdwg.mxu0
        %1907 = vrot.lane.b32.xlu0 %v1904, 16
        %v1908 = vpop.permute.xlu0 %1907
        %1910 = vst.msk [vmem:[%s1375] sm:$0xff] %vm1881, %v1908
        %1911 = vrot.lane.b32.xlu0 %v1699, 48
        %v1912 = vpop.permute.xlu0 %1911
        %1914 = vmatpush.msra.mxu0 0.0
        %1915 = vmatpush.msra.mxu0 0.0
        %1916 = vmatpush.msra.mxu0 0.0
        %1917 = vmatpush.msra.mxu0 0.0
        %1918 = vmatpush.msra.mxu0 0.0
        %1919 = vmatpush.msra.mxu0 0.0
        %1920 = vmatpush.msra.mxu0 0.0
        %1921 = vmatpush.msra.mxu0 0.0
        %1922 = vmatpush.msra.mxu0 0.0
        %1923 = vmatpush.msra.mxu0 0.0
        %1924 = vmatpush.msra.mxu0 0.0
        %1925 = vmatpush.msra.mxu0 0.0
        %1926 = vmatpush.msra.mxu0 0.0
        %1927 = vmatpush.msra.mxu0 0.0
        %1928 = vmatpush.msra.mxu0 0.0
        %1929 = vmatpush.msra.mxu0 %v1912
        %1930 = vmatmul.f32.gmra.mxu0 %v1855
        %v1931 = vpop.f32.mrf.mxu0
        %v1932 = vadd.f32 0.0, %v1931
        %1933 = vdwg.mxu0
        %1935 = vrot.lane.b32.xlu0 %v1932, 16
        %v1936 = vpop.permute.xlu0 %1935
        %1938 = vst.msk [vmem:[%s1400] sm:$0xff] %vm1881, %v1936
        %1939 = vrot.lane.b32.xlu0 %v1700, 48
        %v1940 = vpop.permute.xlu0 %1939
        %1942 = vmatpush.msra.mxu0 0.0
        %1943 = vmatpush.msra.mxu0 0.0
        %1944 = vmatpush.msra.mxu0 0.0
        %1945 = vmatpush.msra.mxu0 0.0
        %1946 = vmatpush.msra.mxu0 0.0
        %1947 = vmatpush.msra.mxu0 0.0
        %1948 = vmatpush.msra.mxu0 0.0
        %1949 = vmatpush.msra.mxu0 0.0
        %1950 = vmatpush.msra.mxu0 0.0
        %1951 = vmatpush.msra.mxu0 0.0
        %1952 = vmatpush.msra.mxu0 0.0
        %1953 = vmatpush.msra.mxu0 0.0
        %1954 = vmatpush.msra.mxu0 0.0
        %1955 = vmatpush.msra.mxu0 0.0
        %1956 = vmatpush.msra.mxu0 0.0
        %1957 = vmatpush.msra.mxu0 %v1940
        %1958 = vmatmul.f32.gmra.mxu0 %v1855
        %v1959 = vpop.f32.mrf.mxu0
        %v1960 = vadd.f32 0.0, %v1959
        %1961 = vdwg.mxu0
        %1963 = vrot.lane.b32.xlu0 %v1960, 16
        %v1964 = vpop.permute.xlu0 %1963
        %1966 = vst.msk [vmem:[%s1425] sm:$0xff] %vm1881, %v1964
        %v1967 = vld [vmem:[#allocation3] sm:$0xff]
        %v1968 = vld [vmem:[#allocation3 + $0x8] sm:$0xff]
        %v1969 = vld [vmem:[#allocation3 + $0x10] sm:$0xff]
        %v1970 = vld [vmem:[#allocation3 + $0x18] sm:$0xff]
        %v1971 = vmul.f32 %v1967, 0.17677669
        %v1972 = vmul.f32 %v1968, 0.17677669
        %v1973 = vmul.f32 %v1969, 0.17677669
        %v1974 = vmul.f32 %v1970, 0.17677669
        %1976 = vrot.lane.b32.xlu0 %v1972, 104
        %v1977 = vpop.permute.xlu0 %1976
        %1979 = vrot.lane.b32.xlu0 %v1968, 72
        %v1980 = vpop.permute.xlu0 %1979
        %v1981 = vsel %vm1189, %v1977, 0
        %v1983 = vsel %vm1189, %v1980, 0
        %1985 = vmatpush.xpose.msra.mxu0 0.0
        %1986 = vmatpush.xpose.msra.mxu0 0.0
        %1987 = vmatpush.xpose.msra.mxu0 0.0
        %1988 = vmatpush.xpose.msra.mxu0 0.0
        %1989 = vmatpush.xpose.msra.mxu0 0.0
        %1990 = vmatpush.xpose.msra.mxu0 0.0
        %1991 = vmatpush.xpose.msra.mxu0 0.0
        %1992 = vmatpush.xpose.msra.mxu0 0.0
        %1993 = vmatpush.xpose.msra.mxu0 0.0
        %1994 = vmatpush.xpose.msra.mxu0 0.0
        %1995 = vmatpush.xpose.msra.mxu0 0.0
        %1996 = vmatpush.xpose.msra.mxu0 0.0
        %1997 = vmatpush.xpose.msra.mxu0 0.0
        %1998 = vmatpush.xpose.msra.mxu0 0.0
        %1999 = vmatpush.xpose.msra.mxu0 0.0
        %2000 = vmatpush.xpose.msra.mxu0 %v1983
        %2001 = vmatmul.f32.gmra.mxu0 %v1981
        %v2002 = vpop.f32.mrf.mxu0
        %v2003 = vadd.f32 0.0, %v2002
        %2004 = vdwg.mxu0
        %2006 = vrot.lane.b32.xlu0 %v1971, 104
        %v2007 = vpop.permute.xlu0 %2006
        %2009 = vrot.lane.b32.xlu0 %v1967, 72
        %v2010 = vpop.permute.xlu0 %2009
        %v2011 = vsel %vm1189, %v2007, 0
        %v2013 = vsel %vm1189, %v2010, 0
        %2015 = vmatpush.xpose.msra.mxu0 0.0
        %2016 = vmatpush.xpose.msra.mxu0 0.0
        %2017 = vmatpush.xpose.msra.mxu0 0.0
        %2018 = vmatpush.xpose.msra.mxu0 0.0
        %2019 = vmatpush.xpose.msra.mxu0 0.0
        %2020 = vmatpush.xpose.msra.mxu0 0.0
        %2021 = vmatpush.xpose.msra.mxu0 0.0
        %2022 = vmatpush.xpose.msra.mxu0 0.0
        %2023 = vmatpush.xpose.msra.mxu0 0.0
        %2024 = vmatpush.xpose.msra.mxu0 0.0
        %2025 = vmatpush.xpose.msra.mxu0 0.0
        %2026 = vmatpush.xpose.msra.mxu0 0.0
        %2027 = vmatpush.xpose.msra.mxu0 0.0
        %2028 = vmatpush.xpose.msra.mxu0 0.0
        %2029 = vmatpush.xpose.msra.mxu0 0.0
        %2030 = vmatpush.xpose.msra.mxu0 %v2013
        %2031 = vmatmul.f32.gmra.mxu0 %v2011
        %v2032 = vpop.f32.mrf.mxu0
        %v2033 = vadd.f32 %v2003, %v2032
        %2034 = vdwg.mxu0
        %2036 = vrot.lane.b32.xlu0 %v1973, 104
        %v2037 = vpop.permute.xlu0 %2036
        %2039 = vrot.lane.b32.xlu0 %v1969, 72
        %v2040 = vpop.permute.xlu0 %2039
        %v2041 = vsel %vm1189, %v2037, 0
        %v2043 = vsel %vm1189, %v2040, 0
        %2045 = vmatpush.xpose.msra.mxu0 0.0
        %2046 = vmatpush.xpose.msra.mxu0 0.0
        %2047 = vmatpush.xpose.msra.mxu0 0.0
        %2048 = vmatpush.xpose.msra.mxu0 0.0
        %2049 = vmatpush.xpose.msra.mxu0 0.0
        %2050 = vmatpush.xpose.msra.mxu0 0.0
        %2051 = vmatpush.xpose.msra.mxu0 0.0
        %2052 = vmatpush.xpose.msra.mxu0 0.0
        %2053 = vmatpush.xpose.msra.mxu0 0.0
        %2054 = vmatpush.xpose.msra.mxu0 0.0
        %2055 = vmatpush.xpose.msra.mxu0 0.0
        %2056 = vmatpush.xpose.msra.mxu0 0.0
        %2057 = vmatpush.xpose.msra.mxu0 0.0
        %2058 = vmatpush.xpose.msra.mxu0 0.0
        %2059 = vmatpush.xpose.msra.mxu0 0.0
        %2060 = vmatpush.xpose.msra.mxu0 %v2043
        %2061 = vmatmul.f32.gmra.mxu0 %v2041
        %v2062 = vpop.f32.mrf.mxu0
        %v2063 = vadd.f32 0.0, %v2062
        %2064 = vdwg.mxu0
        %v2065 = vadd.f32 %v2033, %v2063
        %2067 = vrot.lane.b32.xlu0 %v1974, 104
        %v2068 = vpop.permute.xlu0 %2067
        %2070 = vrot.lane.b32.xlu0 %v1970, 72
        %v2071 = vpop.permute.xlu0 %2070
        %v2072 = vsel %vm1189, %v2068, 0
        %v2074 = vsel %vm1189, %v2071, 0
        %2076 = vmatpush.xpose.msra.mxu0 0.0
        %2077 = vmatpush.xpose.msra.mxu0 0.0
        %2078 = vmatpush.xpose.msra.mxu0 0.0
        %2079 = vmatpush.xpose.msra.mxu0 0.0
        %2080 = vmatpush.xpose.msra.mxu0 0.0
        %2081 = vmatpush.xpose.msra.mxu0 0.0
        %2082 = vmatpush.xpose.msra.mxu0 0.0
        %2083 = vmatpush.xpose.msra.mxu0 0.0
        %2084 = vmatpush.xpose.msra.mxu0 0.0
        %2085 = vmatpush.xpose.msra.mxu0 0.0
        %2086 = vmatpush.xpose.msra.mxu0 0.0
        %2087 = vmatpush.xpose.msra.mxu0 0.0
        %2088 = vmatpush.xpose.msra.mxu0 0.0
        %2089 = vmatpush.xpose.msra.mxu0 0.0
        %2090 = vmatpush.xpose.msra.mxu0 0.0
        %2091 = vmatpush.xpose.msra.mxu0 %v2074
        %2092 = vmatmul.f32.gmra.mxu0 %v2072
        %v2093 = vpop.f32.mrf.mxu0
        %v2094 = vadd.f32 0.0, %v2093
        %2095 = vdwg.mxu0
        %v2096 = vadd.f32 %v2065, %v2094
        %v2097 = vsel %vm1189, %v2096, -inf
        %2098 = vmax.xlane.f32.xlu0 %v2097
        %v2099 = vpop.xlane.xlu0 %2098
        %v2100 = vsub.f32 %v2096, %v2099
        %v2101 = vmul.f32 %v2100, 1.442695
        %v2102 = vpow.pop %v2101
        %v2103 = vsel %vm1189, %v2102, 0.0
        %2104 = vadd.xlane.f32.xlu0 %v2103
        %v2105 = vpop.xlane.xlu0 %2104
        %v2106 = vrcp.pop %v2105
        %v2107 = vmul.f32 %v2105, %v2106
        %v2108 = vsub.f32 1.0, %v2107
        %v2109 = vmul.f32 %v2106, %v2108
        %v2110 = vadd.f32 %v2106, %v2109
        %vm2111 = vweird.f32 %v2105
        %vm2112 = vweird.f32 %v2106
        %vm2113 = vmor %vm2111, %vm2112
        %v2114 = vsel %vm2113, %v2106, %v2110
        %v2115 = vand.u32 2147483647, %v2105
        %vm2116 = vcmp.eq.f32.partialorder %v2115, 8.507059e+37
        %v2117 = vand.u32 %v2105, 2147483648
        %v2118 = vor.u32 1.1754944e-38, %v2117
        %v2119 = vsel %vm2116, %v2118, %v2114
        %v2120 = vmul.f32 %v2102, %v2119
        %2121 = vrot.lane.b32.xlu0 %v1967, 40
        %v2122 = vpop.permute.xlu0 %2121
        %v2125 = vsel %vm1189, %v2120, 0
        %2127 = vmatpush.msra.mxu0 0.0
        %2128 = vmatpush.msra.mxu0 0.0
        %2129 = vmatpush.msra.mxu0 0.0
        %2130 = vmatpush.msra.mxu0 0.0
        %2131 = vmatpush.msra.mxu0 0.0
        %2132 = vmatpush.msra.mxu0 0.0
        %2133 = vmatpush.msra.mxu0 0.0
        %2134 = vmatpush.msra.mxu0 0.0
        %2135 = vmatpush.msra.mxu0 0.0
        %2136 = vmatpush.msra.mxu0 0.0
        %2137 = vmatpush.msra.mxu0 0.0
        %2138 = vmatpush.msra.mxu0 0.0
        %2139 = vmatpush.msra.mxu0 0.0
        %2140 = vmatpush.msra.mxu0 0.0
        %2141 = vmatpush.msra.mxu0 0.0
        %2142 = vmatpush.msra.mxu0 %v2122
        %2143 = vmatmul.f32.gmra.mxu0 %v2125
        %v2144 = vpop.f32.mrf.mxu0
        %v2145 = vadd.f32 0.0, %v2144
        %2146 = vdwg.mxu0
        %2148 = vrot.lane.b32.xlu0 %v2145, 24
        %v2149 = vpop.permute.xlu0 %2148
        %vm2151 = vcmask 261312
        %2152 = vst.msk [vmem:[#allocation2] sm:$0xff] %vm2151, %v2149
        %2153 = vrot.lane.b32.xlu0 %v1968, 40
        %v2154 = vpop.permute.xlu0 %2153
        %2156 = vmatpush.msra.mxu0 0.0
        %2157 = vmatpush.msra.mxu0 0.0
        %2158 = vmatpush.msra.mxu0 0.0
        %2159 = vmatpush.msra.mxu0 0.0
        %2160 = vmatpush.msra.mxu0 0.0
        %2161 = vmatpush.msra.mxu0 0.0
        %2162 = vmatpush.msra.mxu0 0.0
        %2163 = vmatpush.msra.mxu0 0.0
        %2164 = vmatpush.msra.mxu0 0.0
        %2165 = vmatpush.msra.mxu0 0.0
        %2166 = vmatpush.msra.mxu0 0.0
        %2167 = vmatpush.msra.mxu0 0.0
        %2168 = vmatpush.msra.mxu0 0.0
        %2169 = vmatpush.msra.mxu0 0.0
        %2170 = vmatpush.msra.mxu0 0.0
        %2171 = vmatpush.msra.mxu0 %v2154
        %2172 = vmatmul.f32.gmra.mxu0 %v2125
        %v2173 = vpop.f32.mrf.mxu0
        %v2174 = vadd.f32 0.0, %v2173
        %2175 = vdwg.mxu0
        %2177 = vrot.lane.b32.xlu0 %v2174, 24
        %v2178 = vpop.permute.xlu0 %2177
        %2180 = vst.msk [vmem:[%s1375] sm:$0xff] %vm2151, %v2178
        %2181 = vrot.lane.b32.xlu0 %v1969, 40
        %v2182 = vpop.permute.xlu0 %2181
        %2184 = vmatpush.msra.mxu0 0.0
        %2185 = vmatpush.msra.mxu0 0.0
        %2186 = vmatpush.msra.mxu0 0.0
        %2187 = vmatpush.msra.mxu0 0.0
        %2188 = vmatpush.msra.mxu0 0.0
        %2189 = vmatpush.msra.mxu0 0.0
        %2190 = vmatpush.msra.mxu0 0.0
        %2191 = vmatpush.msra.mxu0 0.0
        %2192 = vmatpush.msra.mxu0 0.0
        %2193 = vmatpush.msra.mxu0 0.0
        %2194 = vmatpush.msra.mxu0 0.0
        %2195 = vmatpush.msra.mxu0 0.0
        %2196 = vmatpush.msra.mxu0 0.0
        %2197 = vmatpush.msra.mxu0 0.0
        %2198 = vmatpush.msra.mxu0 0.0
        %2199 = vmatpush.msra.mxu0 %v2182
        %2200 = vmatmul.f32.gmra.mxu0 %v2125
        %v2201 = vpop.f32.mrf.mxu0
        %v2202 = vadd.f32 0.0, %v2201
        %2203 = vdwg.mxu0
        %2205 = vrot.lane.b32.xlu0 %v2202, 24
        %v2206 = vpop.permute.xlu0 %2205
        %2208 = vst.msk [vmem:[%s1400] sm:$0xff] %vm2151, %v2206
        %2209 = vrot.lane.b32.xlu0 %v1970, 40
        %v2210 = vpop.permute.xlu0 %2209
        %2212 = vmatpush.msra.mxu0 0.0
        %2213 = vmatpush.msra.mxu0 0.0
        %2214 = vmatpush.msra.mxu0 0.0
        %2215 = vmatpush.msra.mxu0 0.0
        %2216 = vmatpush.msra.mxu0 0.0
        %2217 = vmatpush.msra.mxu0 0.0
        %2218 = vmatpush.msra.mxu0 0.0
        %2219 = vmatpush.msra.mxu0 0.0
        %2220 = vmatpush.msra.mxu0 0.0
        %2221 = vmatpush.msra.mxu0 0.0
        %2222 = vmatpush.msra.mxu0 0.0
        %2223 = vmatpush.msra.mxu0 0.0
        %2224 = vmatpush.msra.mxu0 0.0
        %2225 = vmatpush.msra.mxu0 0.0
        %2226 = vmatpush.msra.mxu0 0.0
        %2227 = vmatpush.msra.mxu0 %v2210
        %2228 = vmatmul.f32.gmra.mxu0 %v2125
        %v2229 = vpop.f32.mrf.mxu0
        %v2230 = vadd.f32 0.0, %v2229
        %2231 = vdwg.mxu0
        %2233 = vrot.lane.b32.xlu0 %v2230, 24
        %v2234 = vpop.permute.xlu0 %2233
        %2236 = vst.msk [vmem:[%s1425] sm:$0xff] %vm2151, %v2234
        %v2237 = vld [vmem:[#allocation2] sm:$0xff]
        %v2238 = vld [vmem:[#allocation2 + $0x8] sm:$0xff]
        %v2239 = vld [vmem:[#allocation2 + $0x10] sm:$0xff]
        %v2240 = vld [vmem:[#allocation2 + $0x18] sm:$0xff]
        %v2241 = vld [vmem:[%s11] sm:$0xff]
        %v2242 = vld [vmem:[%s11 + $0x8] sm:$0xff]
        %v2243 = vld [vmem:[%s11 + $0x10] sm:$0xff]
        %v2244 = vld [vmem:[%s11 + $0x18] sm:$0xff]
        %v2245 = vld [vmem:[%s13] sm:$0x1]
        %v2247 = vperm.slane %v2245, 0
        %v2250 = vsel %vm910, %v2237, 0
        %v2253 = vsel %vm910, %v2238, 0
        %v2256 = vsel %vm910, %v2239, 0
        %v2259 = vsel %vm910, %v2240, 0
        %2261 = vmatpush.msra.mxu0 0.0
        %2262 = vmatpush.msra.mxu0 0.0
        %2263 = vmatpush.msra.mxu0 0.0
        %2264 = vmatpush.msra.mxu0 0.0
        %2265 = vmatpush.msra.mxu0 0.0
        %2266 = vmatpush.msra.mxu0 0.0
        %2267 = vmatpush.msra.mxu0 0.0
        %2268 = vmatpush.msra.mxu0 0.0
        %2269 = vmatpush.msra.mxu0 0.0
        %2270 = vmatpush.msra.mxu0 0.0
        %2271 = vmatpush.msra.mxu0 0.0
        %2272 = vmatpush.msra.mxu0 0.0
        %2273 = vmatpush.msra.mxu0 %v2244
        %2274 = vmatpush.msra.mxu0 %v2243
        %2275 = vmatpush.msra.mxu0 %v2242
        %2276 = vmatpush.msra.mxu0 %v2241
        %2277 = vmatmul.f32.gmra.mxu0 %v2250
        %v2278 = vpop.f32.mrf.mxu0
        %v2279 = vadd.f32 %v2247, %v2278
        %2280 = vmatmul.f32.gmra.mxu0 %v2253
        %v2281 = vpop.f32.mrf.mxu0
        %v2282 = vadd.f32 %v2247, %v2281
        %2283 = vmatmul.f32.gmra.mxu0 %v2256
        %v2284 = vpop.f32.mrf.mxu0
        %v2285 = vadd.f32 %v2247, %v2284
        %2286 = vmatmul.f32.gmra.mxu0 %v2259
        %v2287 = vpop.f32.mrf.mxu0
        %v2288 = vadd.f32 %v2247, %v2287
        %2289 = vdwg.mxu0
        %v2290 = vadd.f32 %v1016, %v2279
        %v2291 = vadd.f32 %v1017, %v2282
        %v2292 = vadd.f32 %v1018, %v2285
        %v2293 = vadd.f32 %v1019, %v2288
        %v2294 = vld [vmem:[%s15] sm:$0x1]
        %v2295 = vld [vmem:[%s17] sm:$0x1]
        %v2296 = vsel %vm910, %v2290, 0.0
        %2297 = vadd.xlane.f32.xlu0 %v2296
        %v2298 = vpop.xlane.xlu0 %2297
        %v2299 = vsel %vm910, %v2291, 0.0
        %2300 = vadd.xlane.f32.xlu0 %v2299
        %v2301 = vpop.xlane.xlu0 %2300
        %v2302 = vsel %vm910, %v2292, 0.0
        %2303 = vadd.xlane.f32.xlu0 %v2302
        %v2304 = vpop.xlane.xlu0 %2303
        %v2305 = vsel %vm910, %v2293, 0.0
        %2306 = vadd.xlane.f32.xlu0 %v2305
        %v2307 = vpop.xlane.xlu0 %2306
        %v2308 = vmul.f32 %v2298, %v929
        %v2309 = vmul.f32 %v2301, %v929
        %v2310 = vmul.f32 %v2304, %v929
        %v2311 = vmul.f32 %v2307, %v929
        %v2312 = vsub.f32 %v2290, %v2308
        %v2313 = vsub.f32 %v2291, %v2309
        %v2314 = vsub.f32 %v2292, %v2310
        %v2315 = vsub.f32 %v2293, %v2311
        %v2316 = vmul.f32 %v2312, %v2312
        %v2317 = vmul.f32 %v2313, %v2313
        %v2318 = vmul.f32 %v2314, %v2314
        %v2319 = vmul.f32 %v2315, %v2315
        %v2320 = vsel %vm910, %v2316, 0.0
        %2321 = vadd.xlane.f32.xlu0 %v2320
        %v2322 = vpop.xlane.xlu0 %2321
        %v2323 = vsel %vm910, %v2317, 0.0
        %2324 = vadd.xlane.f32.xlu0 %v2323
        %v2325 = vpop.xlane.xlu0 %2324
        %v2326 = vsel %vm910, %v2318, 0.0
        %2327 = vadd.xlane.f32.xlu0 %v2326
        %v2328 = vpop.xlane.xlu0 %2327
        %v2329 = vsel %vm910, %v2319, 0.0
        %2330 = vadd.xlane.f32.xlu0 %v2329
        %v2331 = vpop.xlane.xlu0 %2330
        %v2332 = vmul.f32 %v2322, %v929
        %v2333 = vmul.f32 %v2325, %v929
        %v2334 = vmul.f32 %v2328, %v929
        %v2335 = vmul.f32 %v2331, %v929
        %v2336 = vadd.f32 %v2332, 1e-05
        %v2337 = vadd.f32 %v2333, 1e-05
        %v2338 = vadd.f32 %v2334, 1e-05
        %v2339 = vadd.f32 %v2335, 1e-05
        %v2340 = vrsqrt.pop %v2336
        %v2341 = vmul.f32 %v2340, %v2336
        %v2342 = vmul.f32 %v2341, %v2340
        %v2343 = vmul.f32 0.5, %v2342
        %v2344 = vsub.f32 1.5, %v2343
        %v2345 = vmul.f32 %v2340, %v2344
        %vm2346 = vweird.f32 %v2336
        %vm2347 = vweird.f32 %v2340
        %vm2348 = vmor %vm2346, %vm2347
        %v2349 = vsel %vm2348, %v2340, %v2345
        %v2350 = vrsqrt.pop %v2337
        %v2351 = vmul.f32 %v2350, %v2337
        %v2352 = vmul.f32 %v2351, %v2350
        %v2353 = vmul.f32 0.5, %v2352
        %v2354 = vsub.f32 1.5, %v2353
        %v2355 = vmul.f32 %v2350, %v2354
        %vm2356 = vweird.f32 %v2337
        %vm2357 = vweird.f32 %v2350
        %vm2358 = vmor %vm2356, %vm2357
        %v2359 = vsel %vm2358, %v2350, %v2355
        %v2360 = vrsqrt.pop %v2338
        %v2361 = vmul.f32 %v2360, %v2338
        %v2362 = vmul.f32 %v2361, %v2360
        %v2363 = vmul.f32 0.5, %v2362
        %v2364 = vsub.f32 1.5, %v2363
        %v2365 = vmul.f32 %v2360, %v2364
        %vm2366 = vweird.f32 %v2338
        %vm2367 = vweird.f32 %v2360
        %vm2368 = vmor %vm2366, %vm2367
        %v2369 = vsel %vm2368, %v2360, %v2365
        %v2370 = vrsqrt.pop %v2339
        %v2371 = vmul.f32 %v2370, %v2339
        %v2372 = vmul.f32 %v2371, %v2370
        %v2373 = vmul.f32 0.5, %v2372
        %v2374 = vsub.f32 1.5, %v2373
        %v2375 = vmul.f32 %v2370, %v2374
        %vm2376 = vweird.f32 %v2339
        %vm2377 = vweird.f32 %v2370
        %vm2378 = vmor %vm2376, %vm2377
        %v2379 = vsel %vm2378, %v2370, %v2375
        %v2380 = vmul.f32 %v2312, %v2349
        %v2381 = vmul.f32 %v2313, %v2359
        %v2382 = vmul.f32 %v2314, %v2369
        %v2383 = vmul.f32 %v2315, %v2379
        %v2385 = vperm.slane %v2294, 0
        %v2387 = vmul.f32 %v2380, %v2385
        %v2388 = vmul.f32 %v2381, %v2385
        %v2389 = vmul.f32 %v2382, %v2385
        %v2390 = vmul.f32 %v2383, %v2385
        %v2392 = vperm.slane %v2295, 0
        %v2394 = vadd.f32 %v2387, %v2392
        %v2395 = vadd.f32 %v2388, %v2392
        %v2396 = vadd.f32 %v2389, %v2392
        %v2397 = vadd.f32 %v2390, %v2392
        %v2398 = vld [vmem:[%s19] sm:$0xff]
        %v2399 = vld [vmem:[%s19 + $0x8] sm:$0xff]
        %v2400 = vld [vmem:[%s19 + $0x10] sm:$0xff]
        %v2401 = vld [vmem:[%s19 + $0x18] sm:$0xff]
        %v2402 = vld [vmem:[%s21] sm:$0x1]
        %v2404 = vperm.slane %v2402, 0
        %v2407 = vsel %vm910, %v2394, 0
        %v2410 = vsel %vm910, %v2395, 0
        %v2413 = vsel %vm910, %v2396, 0
        %v2416 = vsel %vm910, %v2397, 0
        %2418 = vmatpush.msra.mxu0 0.0
        %2419 = vmatpush.msra.mxu0 0.0
        %2420 = vmatpush.msra.mxu0 0.0
        %2421 = vmatpush.msra.mxu0 0.0
        %2422 = vmatpush.msra.mxu0 0.0
        %2423 = vmatpush.msra.mxu0 0.0
        %2424 = vmatpush.msra.mxu0 0.0
        %2425 = vmatpush.msra.mxu0 0.0
        %2426 = vmatpush.msra.mxu0 0.0
        %2427 = vmatpush.msra.mxu0 0.0
        %2428 = vmatpush.msra.mxu0 0.0
        %2429 = vmatpush.msra.mxu0 0.0
        %2430 = vmatpush.msra.mxu0 %v2401
        %2431 = vmatpush.msra.mxu0 %v2400
        %2432 = vmatpush.msra.mxu0 %v2399
        %2433 = vmatpush.msra.mxu0 %v2398
        %2434 = vmatmul.f32.gmra.mxu0 %v2407
        %v2435 = vpop.f32.mrf.mxu0
        %v2436 = vadd.f32 %v2404, %v2435
        %2437 = vmatmul.f32.gmra.mxu0 %v2410
        %v2438 = vpop.f32.mrf.mxu0
        %v2439 = vadd.f32 %v2404, %v2438
        %2440 = vmatmul.f32.gmra.mxu0 %v2413
        %v2441 = vpop.f32.mrf.mxu0
        %v2442 = vadd.f32 %v2404, %v2441
        %2443 = vmatmul.f32.gmra.mxu0 %v2416
        %v2444 = vpop.f32.mrf.mxu0
        %v2445 = vadd.f32 %v2404, %v2444
        %2446 = vdwg.mxu0
        %2447 = vst.msk [vmem:[#allocation3] sm:$0xff] %vm1173, %v2436
        %2448 = vst.msk [vmem:[#allocation3 + $0x8] sm:$0xff] %vm1173, %v2439
        %2449 = vst.msk [vmem:[#allocation3 + $0x10] sm:$0xff] %vm1173, %v2442
        %2450 = vst.msk [vmem:[#allocation3 + $0x18] sm:$0xff] %vm1173, %v2445
        %v2451 = vld [vmem:[#allocation3] sm:$0xff]
        %v2452 = vld [vmem:[#allocation3 + $0x8] sm:$0xff]
        %v2453 = vld [vmem:[#allocation3 + $0x10] sm:$0xff]
        %v2454 = vld [vmem:[#allocation3 + $0x18] sm:$0xff]
        %v2455 = vmul.f32 %v2451, 0.35355338
        %v2456 = vmul.f32 %v2452, 0.35355338
        %v2457 = vmul.f32 %v2453, 0.35355338
        %v2458 = vmul.f32 %v2454, 0.35355338
        %2463 = vrot.lane.b32.xlu0 %v2451, 96
        %v2464 = vpop.permute.xlu0 %2463
        %2465 = vrot.lane.b32.xlu0 %v2452, 96
        %v2466 = vpop.permute.xlu0 %2465
        %2467 = vrot.lane.b32.xlu0 %v2453, 96
        %v2468 = vpop.permute.xlu0 %2467
        %2469 = vrot.lane.b32.xlu0 %v2454, 96
        %v2470 = vpop.permute.xlu0 %2469
        %v2475 = vmul.f32 %v2455, %v2464
        %v2476 = vmul.f32 %v2455, %v2466
        %v2477 = vmul.f32 %v2455, %v2468
        %v2478 = vmul.f32 %v2455, %v2470
        %v2479 = vmul.f32 %v2456, %v2464
        %v2480 = vmul.f32 %v2456, %v2466
        %v2481 = vmul.f32 %v2456, %v2468
        %v2482 = vmul.f32 %v2456, %v2470
        %v2483 = vmul.f32 %v2457, %v2464
        %v2484 = vmul.f32 %v2457, %v2466
        %v2485 = vmul.f32 %v2457, %v2468
        %v2486 = vmul.f32 %v2457, %v2470
        %v2487 = vmul.f32 %v2458, %v2464
        %v2488 = vmul.f32 %v2458, %v2466
        %v2489 = vmul.f32 %v2458, %v2468
        %v2490 = vmul.f32 %v2458, %v2470
        %v2491 = vsel %vm1189, %v2475, 0.0
        %2492 = vadd.xlane.f32.xlu0 %v2491
        %v2493 = vpop.xlane.xlu0 %2492
        %v2494 = vsel %vm1189, %v2476, 0.0
        %2495 = vadd.xlane.f32.xlu0 %v2494
        %v2496 = vpop.xlane.xlu0 %2495
        %v2497 = vsel %vm1189, %v2477, 0.0
        %2498 = vadd.xlane.f32.xlu0 %v2497
        %v2499 = vpop.xlane.xlu0 %2498
        %v2500 = vsel %vm1189, %v2478, 0.0
        %2501 = vadd.xlane.f32.xlu0 %v2500
        %v2502 = vpop.xlane.xlu0 %2501
        %v2503 = vsel %vm1189, %v2479, 0.0
        %2504 = vadd.xlane.f32.xlu0 %v2503
        %v2505 = vpop.xlane.xlu0 %2504
        %v2506 = vsel %vm1189, %v2480, 0.0
        %2507 = vadd.xlane.f32.xlu0 %v2506
        %v2508 = vpop.xlane.xlu0 %2507
        %v2509 = vsel %vm1189, %v2481, 0.0
        %2510 = vadd.xlane.f32.xlu0 %v2509
        %v2511 = vpop.xlane.xlu0 %2510
        %v2512 = vsel %vm1189, %v2482, 0.0
        %2513 = vadd.xlane.f32.xlu0 %v2512
        %v2514 = vpop.xlane.xlu0 %2513
        %v2515 = vsel %vm1189, %v2483, 0.0
        %2516 = vadd.xlane.f32.xlu0 %v2515
        %v2517 = vpop.xlane.xlu0 %2516
        %v2518 = vsel %vm1189, %v2484, 0.0
        %2519 = vadd.xlane.f32.xlu0 %v2518
        %v2520 = vpop.xlane.xlu0 %2519
        %v2521 = vsel %vm1189, %v2485, 0.0
        %2522 = vadd.xlane.f32.xlu0 %v2521
        %v2523 = vpop.xlane.xlu0 %2522
        %v2524 = vsel %vm1189, %v2486, 0.0
        %2525 = vadd.xlane.f32.xlu0 %v2524
        %v2526 = vpop.xlane.xlu0 %2525
        %v2527 = vsel %vm1189, %v2487, 0.0
        %2528 = vadd.xlane.f32.xlu0 %v2527
        %v2529 = vpop.xlane.xlu0 %2528
        %v2530 = vsel %vm1189, %v2488, 0.0
        %2531 = vadd.xlane.f32.xlu0 %v2530
        %v2532 = vpop.xlane.xlu0 %2531
        %v2533 = vsel %vm1189, %v2489, 0.0
        %2534 = vadd.xlane.f32.xlu0 %v2533
        %v2535 = vpop.xlane.xlu0 %2534
        %v2536 = vsel %vm1189, %v2490, 0.0
        %2537 = vadd.xlane.f32.xlu0 %v2536
        %v2538 = vpop.xlane.xlu0 %2537
        %v2539 = vmax.f32 %v2493, %v2496
        %v2540 = vmax.f32 %v2539, %v2499
        %v2541 = vmax.f32 %v2540, %v2502
        %v2542 = vmax.f32 %v2505, %v2508
        %v2543 = vmax.f32 %v2542, %v2511
        %v2544 = vmax.f32 %v2543, %v2514
        %v2545 = vmax.f32 %v2517, %v2520
        %v2546 = vmax.f32 %v2545, %v2523
        %v2547 = vmax.f32 %v2546, %v2526
        %v2548 = vmax.f32 %v2529, %v2532
        %v2549 = vmax.f32 %v2548, %v2535
        %v2550 = vmax.f32 %v2549, %v2538
        %v2551 = vsub.f32 %v2493, %v2541
        %v2552 = vsub.f32 %v2496, %v2541
        %v2553 = vsub.f32 %v2499, %v2541
        %v2554 = vsub.f32 %v2502, %v2541
        %v2555 = vsub.f32 %v2505, %v2544
        %v2556 = vsub.f32 %v2508, %v2544
        %v2557 = vsub.f32 %v2511, %v2544
        %v2558 = vsub.f32 %v2514, %v2544
        %v2559 = vsub.f32 %v2517, %v2547
        %v2560 = vsub.f32 %v2520, %v2547
        %v2561 = vsub.f32 %v2523, %v2547
        %v2562 = vsub.f32 %v2526, %v2547
        %v2563 = vsub.f32 %v2529, %v2550
        %v2564 = vsub.f32 %v2532, %v2550
        %v2565 = vsub.f32 %v2535, %v2550
        %v2566 = vsub.f32 %v2538, %v2550
        %v2567 = vmul.f32 %v2551, 1.442695
        %v2568 = vpow.pop %v2567
        %v2569 = vmul.f32 %v2552, 1.442695
        %v2570 = vpow.pop %v2569
        %v2571 = vmul.f32 %v2553, 1.442695
        %v2572 = vpow.pop %v2571
        %v2573 = vmul.f32 %v2554, 1.442695
        %v2574 = vpow.pop %v2573
        %v2575 = vmul.f32 %v2555, 1.442695
        %v2576 = vpow.pop %v2575
        %v2577 = vmul.f32 %v2556, 1.442695
        %v2578 = vpow.pop %v2577
        %v2579 = vmul.f32 %v2557, 1.442695
        %v2580 = vpow.pop %v2579
        %v2581 = vmul.f32 %v2558, 1.442695
        %v2582 = vpow.pop %v2581
        %v2583 = vmul.f32 %v2559, 1.442695
        %v2584 = vpow.pop %v2583
        %v2585 = vmul.f32 %v2560, 1.442695
        %v2586 = vpow.pop %v2585
        %v2587 = vmul.f32 %v2561, 1.442695
        %v2588 = vpow.pop %v2587
        %v2589 = vmul.f32 %v2562, 1.442695
        %v2590 = vpow.pop %v2589
        %v2591 = vmul.f32 %v2563, 1.442695
        %v2592 = vpow.pop %v2591
        %v2593 = vmul.f32 %v2564, 1.442695
        %v2594 = vpow.pop %v2593
        %v2595 = vmul.f32 %v2565, 1.442695
        %v2596 = vpow.pop %v2595
        %v2597 = vmul.f32 %v2566, 1.442695
        %v2598 = vpow.pop %v2597
        %v2599 = vadd.f32 %v2568, %v2570
        %v2600 = vadd.f32 %v2599, %v2572
        %v2601 = vadd.f32 %v2600, %v2574
        %v2602 = vadd.f32 %v2576, %v2578
        %v2603 = vadd.f32 %v2602, %v2580
        %v2604 = vadd.f32 %v2603, %v2582
        %v2605 = vadd.f32 %v2584, %v2586
        %v2606 = vadd.f32 %v2605, %v2588
        %v2607 = vadd.f32 %v2606, %v2590
        %v2608 = vadd.f32 %v2592, %v2594
        %v2609 = vadd.f32 %v2608, %v2596
        %v2610 = vadd.f32 %v2609, %v2598
        %v2611 = vrcp.pop %v2601
        %v2612 = vmul.f32 %v2601, %v2611
        %v2613 = vsub.f32 1.0, %v2612
        %v2614 = vmul.f32 %v2611, %v2613
        %v2615 = vadd.f32 %v2611, %v2614
        %vm2616 = vweird.f32 %v2601
        %vm2617 = vweird.f32 %v2611
        %vm2618 = vmor %vm2616, %vm2617
        %v2619 = vsel %vm2618, %v2611, %v2615
        %v2620 = vand.u32 2147483647, %v2601
        %vm2621 = vcmp.eq.f32.partialorder %v2620, 8.507059e+37
        %v2622 = vand.u32 %v2601, 2147483648
        %v2623 = vor.u32 1.1754944e-38, %v2622
        %v2624 = vsel %vm2621, %v2623, %v2619
        %v2625 = vmul.f32 %v2568, %v2624
        %v2626 = vmul.f32 %v2570, %v2624
        %v2627 = vmul.f32 %v2572, %v2624
        %v2628 = vmul.f32 %v2574, %v2624
        %v2629 = vrcp.pop %v2604
        %v2630 = vmul.f32 %v2604, %v2629
        %v2631 = vsub.f32 1.0, %v2630
        %v2632 = vmul.f32 %v2629, %v2631
        %v2633 = vadd.f32 %v2629, %v2632
        %vm2634 = vweird.f32 %v2604
        %vm2635 = vweird.f32 %v2629
        %vm2636 = vmor %vm2634, %vm2635
        %v2637 = vsel %vm2636, %v2629, %v2633
        %v2638 = vand.u32 2147483647, %v2604
        %vm2639 = vcmp.eq.f32.partialorder %v2638, 8.507059e+37
        %v2640 = vand.u32 %v2604, 2147483648
        %v2641 = vor.u32 1.1754944e-38, %v2640
        %v2642 = vsel %vm2639, %v2641, %v2637
        %v2643 = vmul.f32 %v2576, %v2642
        %v2644 = vmul.f32 %v2578, %v2642
        %v2645 = vmul.f32 %v2580, %v2642
        %v2646 = vmul.f32 %v2582, %v2642
        %v2647 = vrcp.pop %v2607
        %v2648 = vmul.f32 %v2607, %v2647
        %v2649 = vsub.f32 1.0, %v2648
        %v2650 = vmul.f32 %v2647, %v2649
        %v2651 = vadd.f32 %v2647, %v2650
        %vm2652 = vweird.f32 %v2607
        %vm2653 = vweird.f32 %v2647
        %vm2654 = vmor %vm2652, %vm2653
        %v2655 = vsel %vm2654, %v2647, %v2651
        %v2656 = vand.u32 2147483647, %v2607
        %vm2657 = vcmp.eq.f32.partialorder %v2656, 8.507059e+37
        %v2658 = vand.u32 %v2607, 2147483648
        %v2659 = vor.u32 1.1754944e-38, %v2658
        %v2660 = vsel %vm2657, %v2659, %v2655
        %v2661 = vmul.f32 %v2584, %v2660
        %v2662 = vmul.f32 %v2586, %v2660
        %v2663 = vmul.f32 %v2588, %v2660
        %v2664 = vmul.f32 %v2590, %v2660
        %v2665 = vrcp.pop %v2610
        %v2666 = vmul.f32 %v2610, %v2665
        %v2667 = vsub.f32 1.0, %v2666
        %v2668 = vmul.f32 %v2665, %v2667
        %v2669 = vadd.f32 %v2665, %v2668
        %vm2670 = vweird.f32 %v2610
        %vm2671 = vweird.f32 %v2665
        %vm2672 = vmor %vm2670, %vm2671
        %v2673 = vsel %vm2672, %v2665, %v2669
        %v2674 = vand.u32 2147483647, %v2610
        %vm2675 = vcmp.eq.f32.partialorder %v2674, 8.507059e+37
        %v2676 = vand.u32 %v2610, 2147483648
        %v2677 = vor.u32 1.1754944e-38, %v2676
        %v2678 = vsel %vm2675, %v2677, %v2673
        %v2679 = vmul.f32 %v2592, %v2678
        %v2680 = vmul.f32 %v2594, %v2678
        %v2681 = vmul.f32 %v2596, %v2678
        %v2682 = vmul.f32 %v2598, %v2678
        %v2683 = vmul.f32 %v2625, %v2451
        %v2684 = vmul.f32 %v2626, %v2452
        %v2685 = vmul.f32 %v2627, %v2453
        %v2686 = vmul.f32 %v2628, %v2454
        %v2687 = vmul.f32 %v2643, %v2451
        %v2688 = vmul.f32 %v2644, %v2452
        %v2689 = vmul.f32 %v2645, %v2453
        %v2690 = vmul.f32 %v2646, %v2454
        %v2691 = vmul.f32 %v2661, %v2451
        %v2692 = vmul.f32 %v2662, %v2452
        %v2693 = vmul.f32 %v2663, %v2453
        %v2694 = vmul.f32 %v2664, %v2454
        %v2695 = vmul.f32 %v2679, %v2451
        %v2696 = vmul.f32 %v2680, %v2452
        %v2697 = vmul.f32 %v2681, %v2453
        %v2698 = vmul.f32 %v2682, %v2454
        %vm2699 = vcmask 589312
        %v2700 = vsel %vm2699, %v2683, 0.0
        %v2701 = vsel %vm2699, %v2684, 0.0
        %v2702 = vadd.f32 %v2700, %v2701
        %v2703 = vsel %vm2699, %v2685, 0.0
        %v2704 = vadd.f32 %v2702, %v2703
        %v2705 = vsel %vm2699, %v2686, 0.0
        %v2706 = vadd.f32 %v2704, %v2705
        %v2707 = vsel %vm2699, %v2687, 0.0
        %v2708 = vsel %vm2699, %v2688, 0.0
        %v2709 = vadd.f32 %v2707, %v2708
        %v2710 = vsel %vm2699, %v2689, 0.0
        %v2711 = vadd.f32 %v2709, %v2710
        %v2712 = vsel %vm2699, %v2690, 0.0
        %v2713 = vadd.f32 %v2711, %v2712
        %v2714 = vsel %vm2699, %v2691, 0.0
        %v2715 = vsel %vm2699, %v2692, 0.0
        %v2716 = vadd.f32 %v2714, %v2715
        %v2717 = vsel %vm2699, %v2693, 0.0
        %v2718 = vadd.f32 %v2716, %v2717
        %v2719 = vsel %vm2699, %v2694, 0.0
        %v2720 = vadd.f32 %v2718, %v2719
        %v2721 = vsel %vm2699, %v2695, 0.0
        %v2722 = vsel %vm2699, %v2696, 0.0
        %v2723 = vadd.f32 %v2721, %v2722
        %v2724 = vsel %vm2699, %v2697, 0.0
        %v2725 = vadd.f32 %v2723, %v2724
        %v2726 = vsel %vm2699, %v2698, 0.0
        %v2727 = vadd.f32 %v2725, %v2726
        %2732 = vrot.lane.b32.xlu0 %v2706, 64
        %v2733 = vpop.permute.xlu0 %2732
        %2734 = vrot.lane.b32.xlu0 %v2713, 64
        %v2735 = vpop.permute.xlu0 %2734
        %2736 = vrot.lane.b32.xlu0 %v2720, 64
        %v2737 = vpop.permute.xlu0 %2736
        %2738 = vrot.lane.b32.xlu0 %v2727, 64
        %v2739 = vpop.permute.xlu0 %2738
        %2744 = vst.msk [vmem:[#allocation2] sm:$0xff] %vm1189, %v2733
        %2745 = vst.msk [vmem:[#allocation2 + $0x8] sm:$0xff] %vm1189, %v2735
        %2746 = vst.msk [vmem:[#allocation2 + $0x10] sm:$0xff] %vm1189, %v2737
        %2747 = vst.msk [vmem:[#allocation2 + $0x18] sm:$0xff] %vm1189, %v2739
        %v2748 = vld [vmem:[#allocation3] sm:$0xff]
        %v2749 = vld [vmem:[#allocation3 + $0x8] sm:$0xff]
        %v2750 = vld [vmem:[#allocation3 + $0x10] sm:$0xff]
        %v2751 = vld [vmem:[#allocation3 + $0x18] sm:$0xff]
        %v2752 = vmul.f32 %v2748, 0.35355338
        %v2753 = vmul.f32 %v2749, 0.35355338
        %v2754 = vmul.f32 %v2750, 0.35355338
        %v2755 = vmul.f32 %v2751, 0.35355338
        %2760 = vrot.lane.b32.xlu0 %v2748, 96
        %v2761 = vpop.permute.xlu0 %2760
        %2762 = vrot.lane.b32.xlu0 %v2749, 96
        %v2763 = vpop.permute.xlu0 %2762
        %2764 = vrot.lane.b32.xlu0 %v2750, 96
        %v2765 = vpop.permute.xlu0 %2764
        %2766 = vrot.lane.b32.xlu0 %v2751, 96
        %v2767 = vpop.permute.xlu0 %2766
        %v2772 = vmul.f32 %v2752, %v2761
        %v2773 = vmul.f32 %v2752, %v2763
        %v2774 = vmul.f32 %v2752, %v2765
        %v2775 = vmul.f32 %v2752, %v2767
        %v2776 = vmul.f32 %v2753, %v2761
        %v2777 = vmul.f32 %v2753, %v2763
        %v2778 = vmul.f32 %v2753, %v2765
        %v2779 = vmul.f32 %v2753, %v2767
        %v2780 = vmul.f32 %v2754, %v2761
        %v2781 = vmul.f32 %v2754, %v2763
        %v2782 = vmul.f32 %v2754, %v2765
        %v2783 = vmul.f32 %v2754, %v2767
        %v2784 = vmul.f32 %v2755, %v2761
        %v2785 = vmul.f32 %v2755, %v2763
        %v2786 = vmul.f32 %v2755, %v2765
        %v2787 = vmul.f32 %v2755, %v2767
        %2804 = vrot.lane.b32.xlu0 %v2772, 120
        %v2805 = vpop.permute.xlu0 %2804
        %2806 = vrot.lane.b32.xlu0 %v2773, 120
        %v2807 = vpop.permute.xlu0 %2806
        %2808 = vrot.lane.b32.xlu0 %v2774, 120
        %v2809 = vpop.permute.xlu0 %2808
        %2810 = vrot.lane.b32.xlu0 %v2775, 120
        %v2811 = vpop.permute.xlu0 %2810
        %2812 = vrot.lane.b32.xlu0 %v2776, 120
        %v2813 = vpop.permute.xlu0 %2812
        %2814 = vrot.lane.b32.xlu0 %v2777, 120
        %v2815 = vpop.permute.xlu0 %2814
        %2816 = vrot.lane.b32.xlu0 %v2778, 120
        %v2817 = vpop.permute.xlu0 %2816
        %2818 = vrot.lane.b32.xlu0 %v2779, 120
        %v2819 = vpop.permute.xlu0 %2818
        %2820 = vrot.lane.b32.xlu0 %v2780, 120
        %v2821 = vpop.permute.xlu0 %2820
        %2822 = vrot.lane.b32.xlu0 %v2781, 120
        %v2823 = vpop.permute.xlu0 %2822
        %2824 = vrot.lane.b32.xlu0 %v2782, 120
        %v2825 = vpop.permute.xlu0 %2824
        %2826 = vrot.lane.b32.xlu0 %v2783, 120
        %v2827 = vpop.permute.xlu0 %2826
        %2828 = vrot.lane.b32.xlu0 %v2784, 120
        %v2829 = vpop.permute.xlu0 %2828
        %2830 = vrot.lane.b32.xlu0 %v2785, 120
        %v2831 = vpop.permute.xlu0 %2830
        %2832 = vrot.lane.b32.xlu0 %v2786, 120
        %v2833 = vpop.permute.xlu0 %2832
        %2834 = vrot.lane.b32.xlu0 %v2787, 120
        %v2835 = vpop.permute.xlu0 %2834
        %v2852 = vsel %vm1189, %v2805, 0.0
        %2853 = vadd.xlane.f32.xlu0 %v2852
        %v2854 = vpop.xlane.xlu0 %2853
        %v2855 = vsel %vm1189, %v2807, 0.0
        %2856 = vadd.xlane.f32.xlu0 %v2855
        %v2857 = vpop.xlane.xlu0 %2856
        %v2858 = vsel %vm1189, %v2809, 0.0
        %2859 = vadd.xlane.f32.xlu0 %v2858
        %v2860 = vpop.xlane.xlu0 %2859
        %v2861 = vsel %vm1189, %v2811, 0.0
        %2862 = vadd.xlane.f32.xlu0 %v2861
        %v2863 = vpop.xlane.xlu0 %2862
        %v2864 = vsel %vm1189, %v2813, 0.0
        %2865 = vadd.xlane.f32.xlu0 %v2864
        %v2866 = vpop.xlane.xlu0 %2865
        %v2867 = vsel %vm1189, %v2815, 0.0
        %2868 = vadd.xlane.f32.xlu0 %v2867
        %v2869 = vpop.xlane.xlu0 %2868
        %v2870 = vsel %vm1189, %v2817, 0.0
        %2871 = vadd.xlane.f32.xlu0 %v2870
        %v2872 = vpop.xlane.xlu0 %2871
        %v2873 = vsel %vm1189, %v2819, 0.0
        %2874 = vadd.xlane.f32.xlu0 %v2873
        %v2875 = vpop.xlane.xlu0 %2874
        %v2876 = vsel %vm1189, %v2821, 0.0
        %2877 = vadd.xlane.f32.xlu0 %v2876
        %v2878 = vpop.xlane.xlu0 %2877
        %v2879 = vsel %vm1189, %v2823, 0.0
        %2880 = vadd.xlane.f32.xlu0 %v2879
        %v2881 = vpop.xlane.xlu0 %2880
        %v2882 = vsel %vm1189, %v2825, 0.0
        %2883 = vadd.xlane.f32.xlu0 %v2882
        %v2884 = vpop.xlane.xlu0 %2883
        %v2885 = vsel %vm1189, %v2827, 0.0
        %2886 = vadd.xlane.f32.xlu0 %v2885
        %v2887 = vpop.xlane.xlu0 %2886
        %v2888 = vsel %vm1189, %v2829, 0.0
        %2889 = vadd.xlane.f32.xlu0 %v2888
        %v2890 = vpop.xlane.xlu0 %2889
        %v2891 = vsel %vm1189, %v2831, 0.0
        %2892 = vadd.xlane.f32.xlu0 %v2891
        %v2893 = vpop.xlane.xlu0 %2892
        %v2894 = vsel %vm1189, %v2833, 0.0
        %2895 = vadd.xlane.f32.xlu0 %v2894
        %v2896 = vpop.xlane.xlu0 %2895
        %v2897 = vsel %vm1189, %v2835, 0.0
        %2898 = vadd.xlane.f32.xlu0 %v2897
        %v2899 = vpop.xlane.xlu0 %2898
        %v2900 = vmax.f32 %v2854, %v2857
        %v2901 = vmax.f32 %v2900, %v2860
        %v2902 = vmax.f32 %v2901, %v2863
        %v2903 = vmax.f32 %v2866, %v2869
        %v2904 = vmax.f32 %v2903, %v2872
        %v2905 = vmax.f32 %v2904, %v2875
        %v2906 = vmax.f32 %v2878, %v2881
        %v2907 = vmax.f32 %v2906, %v2884
        %v2908 = vmax.f32 %v2907, %v2887
        %v2909 = vmax.f32 %v2890, %v2893
        %v2910 = vmax.f32 %v2909, %v2896
        %v2911 = vmax.f32 %v2910, %v2899
        %v2912 = vsub.f32 %v2854, %v2902
        %v2913 = vsub.f32 %v2857, %v2902
        %v2914 = vsub.f32 %v2860, %v2902
        %v2915 = vsub.f32 %v2863, %v2902
        %v2916 = vsub.f32 %v2866, %v2905
        %v2917 = vsub.f32 %v2869, %v2905
        %v2918 = vsub.f32 %v2872, %v2905
        %v2919 = vsub.f32 %v2875, %v2905
        %v2920 = vsub.f32 %v2878, %v2908
        %v2921 = vsub.f32 %v2881, %v2908
        %v2922 = vsub.f32 %v2884, %v2908
        %v2923 = vsub.f32 %v2887, %v2908
        %v2924 = vsub.f32 %v2890, %v2911
        %v2925 = vsub.f32 %v2893, %v2911
        %v2926 = vsub.f32 %v2896, %v2911
        %v2927 = vsub.f32 %v2899, %v2911
        %v2928 = vmul.f32 %v2912, 1.442695
        %v2929 = vpow.pop %v2928
        %v2930 = vmul.f32 %v2913, 1.442695
        %v2931 = vpow.pop %v2930
        %v2932 = vmul.f32 %v2914, 1.442695
        %v2933 = vpow.pop %v2932
        %v2934 = vmul.f32 %v2915, 1.442695
        %v2935 = vpow.pop %v2934
        %v2936 = vmul.f32 %v2916, 1.442695
        %v2937 = vpow.pop %v2936
        %v2938 = vmul.f32 %v2917, 1.442695
        %v2939 = vpow.pop %v2938
        %v2940 = vmul.f32 %v2918, 1.442695
        %v2941 = vpow.pop %v2940
        %v2942 = vmul.f32 %v2919, 1.442695
        %v2943 = vpow.pop %v2942
        %v2944 = vmul.f32 %v2920, 1.442695
        %v2945 = vpow.pop %v2944
        %v2946 = vmul.f32 %v2921, 1.442695
        %v2947 = vpow.pop %v2946
        %v2948 = vmul.f32 %v2922, 1.442695
        %v2949 = vpow.pop %v2948
        %v2950 = vmul.f32 %v2923, 1.442695
        %v2951 = vpow.pop %v2950
        %v2952 = vmul.f32 %v2924, 1.442695
        %v2953 = vpow.pop %v2952
        %v2954 = vmul.f32 %v2925, 1.442695
        %v2955 = vpow.pop %v2954
        %v2956 = vmul.f32 %v2926, 1.442695
        %v2957 = vpow.pop %v2956
        %v2958 = vmul.f32 %v2927, 1.442695
        %v2959 = vpow.pop %v2958
        %v2960 = vadd.f32 %v2929, %v2931
        %v2961 = vadd.f32 %v2960, %v2933
        %v2962 = vadd.f32 %v2961, %v2935
        %v2963 = vadd.f32 %v2937, %v2939
        %v2964 = vadd.f32 %v2963, %v2941
        %v2965 = vadd.f32 %v2964, %v2943
        %v2966 = vadd.f32 %v2945, %v2947
        %v2967 = vadd.f32 %v2966, %v2949
        %v2968 = vadd.f32 %v2967, %v2951
        %v2969 = vadd.f32 %v2953, %v2955
        %v2970 = vadd.f32 %v2969, %v2957
        %v2971 = vadd.f32 %v2970, %v2959
        %v2972 = vrcp.pop %v2962
        %v2973 = vmul.f32 %v2962, %v2972
        %v2974 = vsub.f32 1.0, %v2973
        %v2975 = vmul.f32 %v2972, %v2974
        %v2976 = vadd.f32 %v2972, %v2975
        %vm2977 = vweird.f32 %v2962
        %vm2978 = vweird.f32 %v2972
        %vm2979 = vmor %vm2977, %vm2978
        %v2980 = vsel %vm2979, %v2972, %v2976
        %v2981 = vand.u32 2147483647, %v2962
        %vm2982 = vcmp.eq.f32.partialorder %v2981, 8.507059e+37
        %v2983 = vand.u32 %v2962, 2147483648
        %v2984 = vor.u32 1.1754944e-38, %v2983
        %v2985 = vsel %vm2982, %v2984, %v2980
        %v2986 = vmul.f32 %v2929, %v2985
        %v2987 = vmul.f32 %v2931, %v2985
        %v2988 = vmul.f32 %v2933, %v2985
        %v2989 = vmul.f32 %v2935, %v2985
        %v2990 = vrcp.pop %v2965
        %v2991 = vmul.f32 %v2965, %v2990
        %v2992 = vsub.f32 1.0, %v2991
        %v2993 = vmul.f32 %v2990, %v2992
        %v2994 = vadd.f32 %v2990, %v2993
        %vm2995 = vweird.f32 %v2965
        %vm2996 = vweird.f32 %v2990
        %vm2997 = vmor %vm2995, %vm2996
        %v2998 = vsel %vm2997, %v2990, %v2994
        %v2999 = vand.u32 2147483647, %v2965
        %vm3000 = vcmp.eq.f32.partialorder %v2999, 8.507059e+37
        %v3001 = vand.u32 %v2965, 2147483648
        %v3002 = vor.u32 1.1754944e-38, %v3001
        %v3003 = vsel %vm3000, %v3002, %v2998
        %v3004 = vmul.f32 %v2937, %v3003
        %v3005 = vmul.f32 %v2939, %v3003
        %v3006 = vmul.f32 %v2941, %v3003
        %v3007 = vmul.f32 %v2943, %v3003
        %v3008 = vrcp.pop %v2968
        %v3009 = vmul.f32 %v2968, %v3008
        %v3010 = vsub.f32 1.0, %v3009
        %v3011 = vmul.f32 %v3008, %v3010
        %v3012 = vadd.f32 %v3008, %v3011
        %vm3013 = vweird.f32 %v2968
        %vm3014 = vweird.f32 %v3008
        %vm3015 = vmor %vm3013, %vm3014
        %v3016 = vsel %vm3015, %v3008, %v3012
        %v3017 = vand.u32 2147483647, %v2968
        %vm3018 = vcmp.eq.f32.partialorder %v3017, 8.507059e+37
        %v3019 = vand.u32 %v2968, 2147483648
        %v3020 = vor.u32 1.1754944e-38, %v3019
        %v3021 = vsel %vm3018, %v3020, %v3016
        %v3022 = vmul.f32 %v2945, %v3021
        %v3023 = vmul.f32 %v2947, %v3021
        %v3024 = vmul.f32 %v2949, %v3021
        %v3025 = vmul.f32 %v2951, %v3021
        %v3026 = vrcp.pop %v2971
        %v3027 = vmul.f32 %v2971, %v3026
        %v3028 = vsub.f32 1.0, %v3027
        %v3029 = vmul.f32 %v3026, %v3028
        %v3030 = vadd.f32 %v3026, %v3029
        %vm3031 = vweird.f32 %v2971
        %vm3032 = vweird.f32 %v3026
        %vm3033 = vmor %vm3031, %vm3032
        %v3034 = vsel %vm3033, %v3026, %v3030
        %v3035 = vand.u32 2147483647, %v2971
        %vm3036 = vcmp.eq.f32.partialorder %v3035, 8.507059e+37
        %v3037 = vand.u32 %v2971, 2147483648
        %v3038 = vor.u32 1.1754944e-38, %v3037
        %v3039 = vsel %vm3036, %v3038, %v3034
        %v3040 = vmul.f32 %v2953, %v3039
        %v3041 = vmul.f32 %v2955, %v3039
        %v3042 = vmul.f32 %v2957, %v3039
        %v3043 = vmul.f32 %v2959, %v3039
        %v3044 = vmul.f32 %v2986, %v2748
        %v3045 = vmul.f32 %v2987, %v2749
        %v3046 = vmul.f32 %v2988, %v2750
        %v3047 = vmul.f32 %v2989, %v2751
        %v3048 = vmul.f32 %v3004, %v2748
        %v3049 = vmul.f32 %v3005, %v2749
        %v3050 = vmul.f32 %v3006, %v2750
        %v3051 = vmul.f32 %v3007, %v2751
        %v3052 = vmul.f32 %v3022, %v2748
        %v3053 = vmul.f32 %v3023, %v2749
        %v3054 = vmul.f32 %v3024, %v2750
        %v3055 = vmul.f32 %v3025, %v2751
        %v3056 = vmul.f32 %v3040, %v2748
        %v3057 = vmul.f32 %v3041, %v2749
        %v3058 = vmul.f32 %v3042, %v2750
        %v3059 = vmul.f32 %v3043, %v2751
        %vm3060 = vcmask 654912
        %v3061 = vsel %vm3060, %v3044, 0.0
        %v3062 = vsel %vm3060, %v3045, 0.0
        %v3063 = vadd.f32 %v3061, %v3062
        %v3064 = vsel %vm3060, %v3046, 0.0
        %v3065 = vadd.f32 %v3063, %v3064
        %v3066 = vsel %vm3060, %v3047, 0.0
        %v3067 = vadd.f32 %v3065, %v3066
        %v3068 = vsel %vm3060, %v3048, 0.0
        %v3069 = vsel %vm3060, %v3049, 0.0
        %v3070 = vadd.f32 %v3068, %v3069
        %v3071 = vsel %vm3060, %v3050, 0.0
        %v3072 = vadd.f32 %v3070, %v3071
        %v3073 = vsel %vm3060, %v3051, 0.0
        %v3074 = vadd.f32 %v3072, %v3073
        %v3075 = vsel %vm3060, %v3052, 0.0
        %v3076 = vsel %vm3060, %v3053, 0.0
        %v3077 = vadd.f32 %v3075, %v3076
        %v3078 = vsel %vm3060, %v3054, 0.0
        %v3079 = vadd.f32 %v3077, %v3078
        %v3080 = vsel %vm3060, %v3055, 0.0
        %v3081 = vadd.f32 %v3079, %v3080
        %v3082 = vsel %vm3060, %v3056, 0.0
        %v3083 = vsel %vm3060, %v3057, 0.0
        %v3084 = vadd.f32 %v3082, %v3083
        %v3085 = vsel %vm3060, %v3058, 0.0
        %v3086 = vadd.f32 %v3084, %v3085
        %v3087 = vsel %vm3060, %v3059, 0.0
        %v3088 = vadd.f32 %v3086, %v3087
        %3093 = vrot.lane.b32.xlu0 %v3067, 64
        %v3094 = vpop.permute.xlu0 %3093
        %3095 = vrot.lane.b32.xlu0 %v3074, 64
        %v3096 = vpop.permute.xlu0 %3095
        %3097 = vrot.lane.b32.xlu0 %v3081, 64
        %v3098 = vpop.permute.xlu0 %3097
        %3099 = vrot.lane.b32.xlu0 %v3088, 64
        %v3100 = vpop.permute.xlu0 %3099
        %3105 = vst.msk [vmem:[#allocation2] sm:$0xff] %vm1611, %v3094
        %3106 = vst.msk [vmem:[#allocation2 + $0x8] sm:$0xff] %vm1611, %v3096
        %3107 = vst.msk [vmem:[#allocation2 + $0x10] sm:$0xff] %vm1611, %v3098
        %3108 = vst.msk [vmem:[#allocation2 + $0x18] sm:$0xff] %vm1611, %v3100
        %v3109 = vld [vmem:[#allocation3] sm:$0xff]
        %v3110 = vld [vmem:[#allocation3 + $0x8] sm:$0xff]
        %v3111 = vld [vmem:[#allocation3 + $0x10] sm:$0xff]
        %v3112 = vld [vmem:[#allocation3 + $0x18] sm:$0xff]
        %v3113 = vmul.f32 %v3109, 0.35355338
        %v3114 = vmul.f32 %v3110, 0.35355338
        %v3115 = vmul.f32 %v3111, 0.35355338
        %v3116 = vmul.f32 %v3112, 0.35355338
        %3121 = vrot.lane.b32.xlu0 %v3109, 96
        %v3122 = vpop.permute.xlu0 %3121
        %3123 = vrot.lane.b32.xlu0 %v3110, 96
        %v3124 = vpop.permute.xlu0 %3123
        %3125 = vrot.lane.b32.xlu0 %v3111, 96
        %v3126 = vpop.permute.xlu0 %3125
        %3127 = vrot.lane.b32.xlu0 %v3112, 96
        %v3128 = vpop.permute.xlu0 %3127
        %v3133 = vmul.f32 %v3113, %v3122
        %v3134 = vmul.f32 %v3113, %v3124
        %v3135 = vmul.f32 %v3113, %v3126
        %v3136 = vmul.f32 %v3113, %v3128
        %v3137 = vmul.f32 %v3114, %v3122
        %v3138 = vmul.f32 %v3114, %v3124
        %v3139 = vmul.f32 %v3114, %v3126
        %v3140 = vmul.f32 %v3114, %v3128
        %v3141 = vmul.f32 %v3115, %v3122
        %v3142 = vmul.f32 %v3115, %v3124
        %v3143 = vmul.f32 %v3115, %v3126
        %v3144 = vmul.f32 %v3115, %v3128
        %v3145 = vmul.f32 %v3116, %v3122
        %v3146 = vmul.f32 %v3116, %v3124
        %v3147 = vmul.f32 %v3116, %v3126
        %v3148 = vmul.f32 %v3116, %v3128
        %3165 = vrot.lane.b32.xlu0 %v3133, 112
        %v3166 = vpop.permute.xlu0 %3165
        %3167 = vrot.lane.b32.xlu0 %v3134, 112
        %v3168 = vpop.permute.xlu0 %3167
        %3169 = vrot.lane.b32.xlu0 %v3135, 112
        %v3170 = vpop.permute.xlu0 %3169
        %3171 = vrot.lane.b32.xlu0 %v3136, 112
        %v3172 = vpop.permute.xlu0 %3171
        %3173 = vrot.lane.b32.xlu0 %v3137, 112
        %v3174 = vpop.permute.xlu0 %3173
        %3175 = vrot.lane.b32.xlu0 %v3138, 112
        %v3176 = vpop.permute.xlu0 %3175
        %3177 = vrot.lane.b32.xlu0 %v3139, 112
        %v3178 = vpop.permute.xlu0 %3177
        %3179 = vrot.lane.b32.xlu0 %v3140, 112
        %v3180 = vpop.permute.xlu0 %3179
        %3181 = vrot.lane.b32.xlu0 %v3141, 112
        %v3182 = vpop.permute.xlu0 %3181
        %3183 = vrot.lane.b32.xlu0 %v3142, 112
        %v3184 = vpop.permute.xlu0 %3183
        %3185 = vrot.lane.b32.xlu0 %v3143, 112
        %v3186 = vpop.permute.xlu0 %3185
        %3187 = vrot.lane.b32.xlu0 %v3144, 112
        %v3188 = vpop.permute.xlu0 %3187
        %3189 = vrot.lane.b32.xlu0 %v3145, 112
        %v3190 = vpop.permute.xlu0 %3189
        %3191 = vrot.lane.b32.xlu0 %v3146, 112
        %v3192 = vpop.permute.xlu0 %3191
        %3193 = vrot.lane.b32.xlu0 %v3147, 112
        %v3194 = vpop.permute.xlu0 %3193
        %3195 = vrot.lane.b32.xlu0 %v3148, 112
        %v3196 = vpop.permute.xlu0 %3195
        %v3213 = vsel %vm1189, %v3166, 0.0
        %3214 = vadd.xlane.f32.xlu0 %v3213
        %v3215 = vpop.xlane.xlu0 %3214
        %v3216 = vsel %vm1189, %v3168, 0.0
        %3217 = vadd.xlane.f32.xlu0 %v3216
        %v3218 = vpop.xlane.xlu0 %3217
        %v3219 = vsel %vm1189, %v3170, 0.0
        %3220 = vadd.xlane.f32.xlu0 %v3219
        %v3221 = vpop.xlane.xlu0 %3220
        %v3222 = vsel %vm1189, %v3172, 0.0
        %3223 = vadd.xlane.f32.xlu0 %v3222
        %v3224 = vpop.xlane.xlu0 %3223
        %v3225 = vsel %vm1189, %v3174, 0.0
        %3226 = vadd.xlane.f32.xlu0 %v3225
        %v3227 = vpop.xlane.xlu0 %3226
        %v3228 = vsel %vm1189, %v3176, 0.0
        %3229 = vadd.xlane.f32.xlu0 %v3228
        %v3230 = vpop.xlane.xlu0 %3229
        %v3231 = vsel %vm1189, %v3178, 0.0
        %3232 = vadd.xlane.f32.xlu0 %v3231
        %v3233 = vpop.xlane.xlu0 %3232
        %v3234 = vsel %vm1189, %v3180, 0.0
        %3235 = vadd.xlane.f32.xlu0 %v3234
        %v3236 = vpop.xlane.xlu0 %3235
        %v3237 = vsel %vm1189, %v3182, 0.0
        %3238 = vadd.xlane.f32.xlu0 %v3237
        %v3239 = vpop.xlane.xlu0 %3238
        %v3240 = vsel %vm1189, %v3184, 0.0
        %3241 = vadd.xlane.f32.xlu0 %v3240
        %v3242 = vpop.xlane.xlu0 %3241
        %v3243 = vsel %vm1189, %v3186, 0.0
        %3244 = vadd.xlane.f32.xlu0 %v3243
        %v3245 = vpop.xlane.xlu0 %3244
        %v3246 = vsel %vm1189, %v3188, 0.0
        %3247 = vadd.xlane.f32.xlu0 %v3246
        %v3248 = vpop.xlane.xlu0 %3247
        %v3249 = vsel %vm1189, %v3190, 0.0
        %3250 = vadd.xlane.f32.xlu0 %v3249
        %v3251 = vpop.xlane.xlu0 %3250
        %v3252 = vsel %vm1189, %v3192, 0.0
        %3253 = vadd.xlane.f32.xlu0 %v3252
        %v3254 = vpop.xlane.xlu0 %3253
        %v3255 = vsel %vm1189, %v3194, 0.0
        %3256 = vadd.xlane.f32.xlu0 %v3255
        %v3257 = vpop.xlane.xlu0 %3256
        %v3258 = vsel %vm1189, %v3196, 0.0
        %3259 = vadd.xlane.f32.xlu0 %v3258
        %v3260 = vpop.xlane.xlu0 %3259
        %v3261 = vmax.f32 %v3215, %v3218
        %v3262 = vmax.f32 %v3261, %v3221
        %v3263 = vmax.f32 %v3262, %v3224
        %v3264 = vmax.f32 %v3227, %v3230
        %v3265 = vmax.f32 %v3264, %v3233
        %v3266 = vmax.f32 %v3265, %v3236
        %v3267 = vmax.f32 %v3239, %v3242
        %v3268 = vmax.f32 %v3267, %v3245
        %v3269 = vmax.f32 %v3268, %v3248
        %v3270 = vmax.f32 %v3251, %v3254
        %v3271 = vmax.f32 %v3270, %v3257
        %v3272 = vmax.f32 %v3271, %v3260
        %v3273 = vsub.f32 %v3215, %v3263
        %v3274 = vsub.f32 %v3218, %v3263
        %v3275 = vsub.f32 %v3221, %v3263
        %v3276 = vsub.f32 %v3224, %v3263
        %v3277 = vsub.f32 %v3227, %v3266
        %v3278 = vsub.f32 %v3230, %v3266
        %v3279 = vsub.f32 %v3233, %v3266
        %v3280 = vsub.f32 %v3236, %v3266
        %v3281 = vsub.f32 %v3239, %v3269
        %v3282 = vsub.f32 %v3242, %v3269
        %v3283 = vsub.f32 %v3245, %v3269
        %v3284 = vsub.f32 %v3248, %v3269
        %v3285 = vsub.f32 %v3251, %v3272
        %v3286 = vsub.f32 %v3254, %v3272
        %v3287 = vsub.f32 %v3257, %v3272
        %v3288 = vsub.f32 %v3260, %v3272
        %v3289 = vmul.f32 %v3273, 1.442695
        %v3290 = vpow.pop %v3289
        %v3291 = vmul.f32 %v3274, 1.442695
        %v3292 = vpow.pop %v3291
        %v3293 = vmul.f32 %v3275, 1.442695
        %v3294 = vpow.pop %v3293
        %v3295 = vmul.f32 %v3276, 1.442695
        %v3296 = vpow.pop %v3295
        %v3297 = vmul.f32 %v3277, 1.442695
        %v3298 = vpow.pop %v3297
        %v3299 = vmul.f32 %v3278, 1.442695
        %v3300 = vpow.pop %v3299
        %v3301 = vmul.f32 %v3279, 1.442695
        %v3302 = vpow.pop %v3301
        %v3303 = vmul.f32 %v3280, 1.442695
        %v3304 = vpow.pop %v3303
        %v3305 = vmul.f32 %v3281, 1.442695
        %v3306 = vpow.pop %v3305
        %v3307 = vmul.f32 %v3282, 1.442695
        %v3308 = vpow.pop %v3307
        %v3309 = vmul.f32 %v3283, 1.442695
        %v3310 = vpow.pop %v3309
        %v3311 = vmul.f32 %v3284, 1.442695
        %v3312 = vpow.pop %v3311
        %v3313 = vmul.f32 %v3285, 1.442695
        %v3314 = vpow.pop %v3313
        %v3315 = vmul.f32 %v3286, 1.442695
        %v3316 = vpow.pop %v3315
        %v3317 = vmul.f32 %v3287, 1.442695
        %v3318 = vpow.pop %v3317
        %v3319 = vmul.f32 %v3288, 1.442695
        %v3320 = vpow.pop %v3319
        %v3321 = vadd.f32 %v3290, %v3292
        %v3322 = vadd.f32 %v3321, %v3294
        %v3323 = vadd.f32 %v3322, %v3296
        %v3324 = vadd.f32 %v3298, %v3300
        %v3325 = vadd.f32 %v3324, %v3302
        %v3326 = vadd.f32 %v3325, %v3304
        %v3327 = vadd.f32 %v3306, %v3308
        %v3328 = vadd.f32 %v3327, %v3310
        %v3329 = vadd.f32 %v3328, %v3312
        %v3330 = vadd.f32 %v3314, %v3316
        %v3331 = vadd.f32 %v3330, %v3318
        %v3332 = vadd.f32 %v3331, %v3320
        %v3333 = vrcp.pop %v3323
        %v3334 = vmul.f32 %v3323, %v3333
        %v3335 = vsub.f32 1.0, %v3334
        %v3336 = vmul.f32 %v3333, %v3335
        %v3337 = vadd.f32 %v3333, %v3336
        %vm3338 = vweird.f32 %v3323
        %vm3339 = vweird.f32 %v3333
        %vm3340 = vmor %vm3338, %vm3339
        %v3341 = vsel %vm3340, %v3333, %v3337
        %v3342 = vand.u32 2147483647, %v3323
        %vm3343 = vcmp.eq.f32.partialorder %v3342, 8.507059e+37
        %v3344 = vand.u32 %v3323, 2147483648
        %v3345 = vor.u32 1.1754944e-38, %v3344
        %v3346 = vsel %vm3343, %v3345, %v3341
        %v3347 = vmul.f32 %v3290, %v3346
        %v3348 = vmul.f32 %v3292, %v3346
        %v3349 = vmul.f32 %v3294, %v3346
        %v3350 = vmul.f32 %v3296, %v3346
        %v3351 = vrcp.pop %v3326
        %v3352 = vmul.f32 %v3326, %v3351
        %v3353 = vsub.f32 1.0, %v3352
        %v3354 = vmul.f32 %v3351, %v3353
        %v3355 = vadd.f32 %v3351, %v3354
        %vm3356 = vweird.f32 %v3326
        %vm3357 = vweird.f32 %v3351
        %vm3358 = vmor %vm3356, %vm3357
        %v3359 = vsel %vm3358, %v3351, %v3355
        %v3360 = vand.u32 2147483647, %v3326
        %vm3361 = vcmp.eq.f32.partialorder %v3360, 8.507059e+37
        %v3362 = vand.u32 %v3326, 2147483648
        %v3363 = vor.u32 1.1754944e-38, %v3362
        %v3364 = vsel %vm3361, %v3363, %v3359
        %v3365 = vmul.f32 %v3298, %v3364
        %v3366 = vmul.f32 %v3300, %v3364
        %v3367 = vmul.f32 %v3302, %v3364
        %v3368 = vmul.f32 %v3304, %v3364
        %v3369 = vrcp.pop %v3329
        %v3370 = vmul.f32 %v3329, %v3369
        %v3371 = vsub.f32 1.0, %v3370
        %v3372 = vmul.f32 %v3369, %v3371
        %v3373 = vadd.f32 %v3369, %v3372
        %vm3374 = vweird.f32 %v3329
        %vm3375 = vweird.f32 %v3369
        %vm3376 = vmor %vm3374, %vm3375
        %v3377 = vsel %vm3376, %v3369, %v3373
        %v3378 = vand.u32 2147483647, %v3329
        %vm3379 = vcmp.eq.f32.partialorder %v3378, 8.507059e+37
        %v3380 = vand.u32 %v3329, 2147483648
        %v3381 = vor.u32 1.1754944e-38, %v3380
        %v3382 = vsel %vm3379, %v3381, %v3377
        %v3383 = vmul.f32 %v3306, %v3382
        %v3384 = vmul.f32 %v3308, %v3382
        %v3385 = vmul.f32 %v3310, %v3382
        %v3386 = vmul.f32 %v3312, %v3382
        %v3387 = vrcp.pop %v3332
        %v3388 = vmul.f32 %v3332, %v3387
        %v3389 = vsub.f32 1.0, %v3388
        %v3390 = vmul.f32 %v3387, %v3389
        %v3391 = vadd.f32 %v3387, %v3390
        %vm3392 = vweird.f32 %v3332
        %vm3393 = vweird.f32 %v3387
        %vm3394 = vmor %vm3392, %vm3393
        %v3395 = vsel %vm3394, %v3387, %v3391
        %v3396 = vand.u32 2147483647, %v3332
        %vm3397 = vcmp.eq.f32.partialorder %v3396, 8.507059e+37
        %v3398 = vand.u32 %v3332, 2147483648
        %v3399 = vor.u32 1.1754944e-38, %v3398
        %v3400 = vsel %vm3397, %v3399, %v3395
        %v3401 = vmul.f32 %v3314, %v3400
        %v3402 = vmul.f32 %v3316, %v3400
        %v3403 = vmul.f32 %v3318, %v3400
        %v3404 = vmul.f32 %v3320, %v3400
        %v3405 = vmul.f32 %v3347, %v3109
        %v3406 = vmul.f32 %v3348, %v3110
        %v3407 = vmul.f32 %v3349, %v3111
        %v3408 = vmul.f32 %v3350, %v3112
        %v3409 = vmul.f32 %v3365, %v3109
        %v3410 = vmul.f32 %v3366, %v3110
        %v3411 = vmul.f32 %v3367, %v3111
        %v3412 = vmul.f32 %v3368, %v3112
        %v3413 = vmul.f32 %v3383, %v3109
        %v3414 = vmul.f32 %v3384, %v3110
        %v3415 = vmul.f32 %v3385, %v3111
        %v3416 = vmul.f32 %v3386, %v3112
        %v3417 = vmul.f32 %v3401, %v3109
        %v3418 = vmul.f32 %v3402, %v3110
        %v3419 = vmul.f32 %v3403, %v3111
        %v3420 = vmul.f32 %v3404, %v3112
        %vm3421 = vcmask 720512
        %v3422 = vsel %vm3421, %v3405, 0.0
        %v3423 = vsel %vm3421, %v3406, 0.0
        %v3424 = vadd.f32 %v3422, %v3423
        %v3425 = vsel %vm3421, %v3407, 0.0
        %v3426 = vadd.f32 %v3424, %v3425
        %v3427 = vsel %vm3421, %v3408, 0.0
        %v3428 = vadd.f32 %v3426, %v3427
        %v3429 = vsel %vm3421, %v3409, 0.0
        %v3430 = vsel %vm3421, %v3410, 0.0
        %v3431 = vadd.f32 %v3429, %v3430
        %v3432 = vsel %vm3421, %v3411, 0.0
        %v3433 = vadd.f32 %v3431, %v3432
        %v3434 = vsel %vm3421, %v3412, 0.0
        %v3435 = vadd.f32 %v3433, %v3434
        %v3436 = vsel %vm3421, %v3413, 0.0
        %v3437 = vsel %vm3421, %v3414, 0.0
        %v3438 = vadd.f32 %v3436, %v3437
        %v3439 = vsel %vm3421, %v3415, 0.0
        %v3440 = vadd.f32 %v3438, %v3439
        %v3441 = vsel %vm3421, %v3416, 0.0
        %v3442 = vadd.f32 %v3440, %v3441
        %v3443 = vsel %vm3421, %v3417, 0.0
        %v3444 = vsel %vm3421, %v3418, 0.0
        %v3445 = vadd.f32 %v3443, %v3444
        %v3446 = vsel %vm3421, %v3419, 0.0
        %v3447 = vadd.f32 %v3445, %v3446
        %v3448 = vsel %vm3421, %v3420, 0.0
        %v3449 = vadd.f32 %v3447, %v3448
        %3454 = vrot.lane.b32.xlu0 %v3428, 64
        %v3455 = vpop.permute.xlu0 %3454
        %3456 = vrot.lane.b32.xlu0 %v3435, 64
        %v3457 = vpop.permute.xlu0 %3456
        %3458 = vrot.lane.b32.xlu0 %v3442, 64
        %v3459 = vpop.permute.xlu0 %3458
        %3460 = vrot.lane.b32.xlu0 %v3449, 64
        %v3461 = vpop.permute.xlu0 %3460
        %3466 = vst.msk [vmem:[#allocation2] sm:$0xff] %vm1881, %v3455
        %3467 = vst.msk [vmem:[#allocation2 + $0x8] sm:$0xff] %vm1881, %v3457
        %3468 = vst.msk [vmem:[#allocation2 + $0x10] sm:$0xff] %vm1881, %v3459
        %3469 = vst.msk [vmem:[#allocation2 + $0x18] sm:$0xff] %vm1881, %v3461
        %v3470 = vld [vmem:[#allocation3] sm:$0xff]
        %v3471 = vld [vmem:[#allocation3 + $0x8] sm:$0xff]
        %v3472 = vld [vmem:[#allocation3 + $0x10] sm:$0xff]
        %v3473 = vld [vmem:[#allocation3 + $0x18] sm:$0xff]
        %v3474 = vmul.f32 %v3470, 0.35355338
        %v3475 = vmul.f32 %v3471, 0.35355338
        %v3476 = vmul.f32 %v3472, 0.35355338
        %v3477 = vmul.f32 %v3473, 0.35355338
        %3482 = vrot.lane.b32.xlu0 %v3470, 96
        %v3483 = vpop.permute.xlu0 %3482
        %3484 = vrot.lane.b32.xlu0 %v3471, 96
        %v3485 = vpop.permute.xlu0 %3484
        %3486 = vrot.lane.b32.xlu0 %v3472, 96
        %v3487 = vpop.permute.xlu0 %3486
        %3488 = vrot.lane.b32.xlu0 %v3473, 96
        %v3489 = vpop.permute.xlu0 %3488
        %v3494 = vmul.f32 %v3474, %v3483
        %v3495 = vmul.f32 %v3474, %v3485
        %v3496 = vmul.f32 %v3474, %v3487
        %v3497 = vmul.f32 %v3474, %v3489
        %v3498 = vmul.f32 %v3475, %v3483
        %v3499 = vmul.f32 %v3475, %v3485
        %v3500 = vmul.f32 %v3475, %v3487
        %v3501 = vmul.f32 %v3475, %v3489
        %v3502 = vmul.f32 %v3476, %v3483
        %v3503 = vmul.f32 %v3476, %v3485
        %v3504 = vmul.f32 %v3476, %v3487
        %v3505 = vmul.f32 %v3476, %v3489
        %v3506 = vmul.f32 %v3477, %v3483
        %v3507 = vmul.f32 %v3477, %v3485
        %v3508 = vmul.f32 %v3477, %v3487
        %v3509 = vmul.f32 %v3477, %v3489
        %3526 = vrot.lane.b32.xlu0 %v3494, 104
        %v3527 = vpop.permute.xlu0 %3526
        %3528 = vrot.lane.b32.xlu0 %v3495, 104
        %v3529 = vpop.permute.xlu0 %3528
        %3530 = vrot.lane.b32.xlu0 %v3496, 104
        %v3531 = vpop.permute.xlu0 %3530
        %3532 = vrot.lane.b32.xlu0 %v3497, 104
        %v3533 = vpop.permute.xlu0 %3532
        %3534 = vrot.lane.b32.xlu0 %v3498, 104
        %v3535 = vpop.permute.xlu0 %3534
        %3536 = vrot.lane.b32.xlu0 %v3499, 104
        %v3537 = vpop.permute.xlu0 %3536
        %3538 = vrot.lane.b32.xlu0 %v3500, 104
        %v3539 = vpop.permute.xlu0 %3538
        %3540 = vrot.lane.b32.xlu0 %v3501, 104
        %v3541 = vpop.permute.xlu0 %3540
        %3542 = vrot.lane.b32.xlu0 %v3502, 104
        %v3543 = vpop.permute.xlu0 %3542
        %3544 = vrot.lane.b32.xlu0 %v3503, 104
        %v3545 = vpop.permute.xlu0 %3544
        %3546 = vrot.lane.b32.xlu0 %v3504, 104
        %v3547 = vpop.permute.xlu0 %3546
        %3548 = vrot.lane.b32.xlu0 %v3505, 104
        %v3549 = vpop.permute.xlu0 %3548
        %3550 = vrot.lane.b32.xlu0 %v3506, 104
        %v3551 = vpop.permute.xlu0 %3550
        %3552 = vrot.lane.b32.xlu0 %v3507, 104
        %v3553 = vpop.permute.xlu0 %3552
        %3554 = vrot.lane.b32.xlu0 %v3508, 104
        %v3555 = vpop.permute.xlu0 %3554
        %3556 = vrot.lane.b32.xlu0 %v3509, 104
        %v3557 = vpop.permute.xlu0 %3556
        %v3574 = vsel %vm1189, %v3527, 0.0
        %3575 = vadd.xlane.f32.xlu0 %v3574
        %v3576 = vpop.xlane.xlu0 %3575
        %v3577 = vsel %vm1189, %v3529, 0.0
        %3578 = vadd.xlane.f32.xlu0 %v3577
        %v3579 = vpop.xlane.xlu0 %3578
        %v3580 = vsel %vm1189, %v3531, 0.0
        %3581 = vadd.xlane.f32.xlu0 %v3580
        %v3582 = vpop.xlane.xlu0 %3581
        %v3583 = vsel %vm1189, %v3533, 0.0
        %3584 = vadd.xlane.f32.xlu0 %v3583
        %v3585 = vpop.xlane.xlu0 %3584
        %v3586 = vsel %vm1189, %v3535, 0.0
        %3587 = vadd.xlane.f32.xlu0 %v3586
        %v3588 = vpop.xlane.xlu0 %3587
        %v3589 = vsel %vm1189, %v3537, 0.0
        %3590 = vadd.xlane.f32.xlu0 %v3589
        %v3591 = vpop.xlane.xlu0 %3590
        %v3592 = vsel %vm1189, %v3539, 0.0
        %3593 = vadd.xlane.f32.xlu0 %v3592
        %v3594 = vpop.xlane.xlu0 %3593
        %v3595 = vsel %vm1189, %v3541, 0.0
        %3596 = vadd.xlane.f32.xlu0 %v3595
        %v3597 = vpop.xlane.xlu0 %3596
        %v3598 = vsel %vm1189, %v3543, 0.0
        %3599 = vadd.xlane.f32.xlu0 %v3598
        %v3600 = vpop.xlane.xlu0 %3599
        %v3601 = vsel %vm1189, %v3545, 0.0
        %3602 = vadd.xlane.f32.xlu0 %v3601
        %v3603 = vpop.xlane.xlu0 %3602
        %v3604 = vsel %vm1189, %v3547, 0.0
        %3605 = vadd.xlane.f32.xlu0 %v3604
        %v3606 = vpop.xlane.xlu0 %3605
        %v3607 = vsel %vm1189, %v3549, 0.0
        %3608 = vadd.xlane.f32.xlu0 %v3607
        %v3609 = vpop.xlane.xlu0 %3608
        %v3610 = vsel %vm1189, %v3551, 0.0
        %3611 = vadd.xlane.f32.xlu0 %v3610
        %v3612 = vpop.xlane.xlu0 %3611
        %v3613 = vsel %vm1189, %v3553, 0.0
        %3614 = vadd.xlane.f32.xlu0 %v3613
        %v3615 = vpop.xlane.xlu0 %3614
        %v3616 = vsel %vm1189, %v3555, 0.0
        %3617 = vadd.xlane.f32.xlu0 %v3616
        %v3618 = vpop.xlane.xlu0 %3617
        %v3619 = vsel %vm1189, %v3557, 0.0
        %3620 = vadd.xlane.f32.xlu0 %v3619
        %v3621 = vpop.xlane.xlu0 %3620
        %v3622 = vmax.f32 %v3576, %v3579
        %v3623 = vmax.f32 %v3622, %v3582
        %v3624 = vmax.f32 %v3623, %v3585
        %v3625 = vmax.f32 %v3588, %v3591
        %v3626 = vmax.f32 %v3625, %v3594
        %v3627 = vmax.f32 %v3626, %v3597
        %v3628 = vmax.f32 %v3600, %v3603
        %v3629 = vmax.f32 %v3628, %v3606
        %v3630 = vmax.f32 %v3629, %v3609
        %v3631 = vmax.f32 %v3612, %v3615
        %v3632 = vmax.f32 %v3631, %v3618
        %v3633 = vmax.f32 %v3632, %v3621
        %v3634 = vsub.f32 %v3576, %v3624
        %v3635 = vsub.f32 %v3579, %v3624
        %v3636 = vsub.f32 %v3582, %v3624
        %v3637 = vsub.f32 %v3585, %v3624
        %v3638 = vsub.f32 %v3588, %v3627
        %v3639 = vsub.f32 %v3591, %v3627
        %v3640 = vsub.f32 %v3594, %v3627
        %v3641 = vsub.f32 %v3597, %v3627
        %v3642 = vsub.f32 %v3600, %v3630
        %v3643 = vsub.f32 %v3603, %v3630
        %v3644 = vsub.f32 %v3606, %v3630
        %v3645 = vsub.f32 %v3609, %v3630
        %v3646 = vsub.f32 %v3612, %v3633
        %v3647 = vsub.f32 %v3615, %v3633
        %v3648 = vsub.f32 %v3618, %v3633
        %v3649 = vsub.f32 %v3621, %v3633
        %v3650 = vmul.f32 %v3634, 1.442695
        %v3651 = vpow.pop %v3650
        %v3652 = vmul.f32 %v3635, 1.442695
        %v3653 = vpow.pop %v3652
        %v3654 = vmul.f32 %v3636, 1.442695
        %v3655 = vpow.pop %v3654
        %v3656 = vmul.f32 %v3637, 1.442695
        %v3657 = vpow.pop %v3656
        %v3658 = vmul.f32 %v3638, 1.442695
        %v3659 = vpow.pop %v3658
        %v3660 = vmul.f32 %v3639, 1.442695
        %v3661 = vpow.pop %v3660
        %v3662 = vmul.f32 %v3640, 1.442695
        %v3663 = vpow.pop %v3662
        %v3664 = vmul.f32 %v3641, 1.442695
        %v3665 = vpow.pop %v3664
        %v3666 = vmul.f32 %v3642, 1.442695
        %v3667 = vpow.pop %v3666
        %v3668 = vmul.f32 %v3643, 1.442695
        %v3669 = vpow.pop %v3668
        %v3670 = vmul.f32 %v3644, 1.442695
        %v3671 = vpow.pop %v3670
        %v3672 = vmul.f32 %v3645, 1.442695
        %v3673 = vpow.pop %v3672
        %v3674 = vmul.f32 %v3646, 1.442695
        %v3675 = vpow.pop %v3674
        %v3676 = vmul.f32 %v3647, 1.442695
        %v3677 = vpow.pop %v3676
        %v3678 = vmul.f32 %v3648, 1.442695
        %v3679 = vpow.pop %v3678
        %v3680 = vmul.f32 %v3649, 1.442695
        %v3681 = vpow.pop %v3680
        %v3682 = vadd.f32 %v3651, %v3653
        %v3683 = vadd.f32 %v3682, %v3655
        %v3684 = vadd.f32 %v3683, %v3657
        %v3685 = vadd.f32 %v3659, %v3661
        %v3686 = vadd.f32 %v3685, %v3663
        %v3687 = vadd.f32 %v3686, %v3665
        %v3688 = vadd.f32 %v3667, %v3669
        %v3689 = vadd.f32 %v3688, %v3671
        %v3690 = vadd.f32 %v3689, %v3673
        %v3691 = vadd.f32 %v3675, %v3677
        %v3692 = vadd.f32 %v3691, %v3679
        %v3693 = vadd.f32 %v3692, %v3681
        %v3694 = vrcp.pop %v3684
        %v3695 = vmul.f32 %v3684, %v3694
        %v3696 = vsub.f32 1.0, %v3695
        %v3697 = vmul.f32 %v3694, %v3696
        %v3698 = vadd.f32 %v3694, %v3697
        %vm3699 = vweird.f32 %v3684
        %vm3700 = vweird.f32 %v3694
        %vm3701 = vmor %vm3699, %vm3700
        %v3702 = vsel %vm3701, %v3694, %v3698
        %v3703 = vand.u32 2147483647, %v3684
        %vm3704 = vcmp.eq.f32.partialorder %v3703, 8.507059e+37
        %v3705 = vand.u32 %v3684, 2147483648
        %v3706 = vor.u32 1.1754944e-38, %v3705
        %v3707 = vsel %vm3704, %v3706, %v3702
        %v3708 = vmul.f32 %v3651, %v3707
        %v3709 = vmul.f32 %v3653, %v3707
        %v3710 = vmul.f32 %v3655, %v3707
        %v3711 = vmul.f32 %v3657, %v3707
        %v3712 = vrcp.pop %v3687
        %v3713 = vmul.f32 %v3687, %v3712
        %v3714 = vsub.f32 1.0, %v3713
        %v3715 = vmul.f32 %v3712, %v3714
        %v3716 = vadd.f32 %v3712, %v3715
        %vm3717 = vweird.f32 %v3687
        %vm3718 = vweird.f32 %v3712
        %vm3719 = vmor %vm3717, %vm3718
        %v3720 = vsel %vm3719, %v3712, %v3716
        %v3721 = vand.u32 2147483647, %v3687
        %vm3722 = vcmp.eq.f32.partialorder %v3721, 8.507059e+37
        %v3723 = vand.u32 %v3687, 2147483648
        %v3724 = vor.u32 1.1754944e-38, %v3723
        %v3725 = vsel %vm3722, %v3724, %v3720
        %v3726 = vmul.f32 %v3659, %v3725
        %v3727 = vmul.f32 %v3661, %v3725
        %v3728 = vmul.f32 %v3663, %v3725
        %v3729 = vmul.f32 %v3665, %v3725
        %v3730 = vrcp.pop %v3690
        %v3731 = vmul.f32 %v3690, %v3730
        %v3732 = vsub.f32 1.0, %v3731
        %v3733 = vmul.f32 %v3730, %v3732
        %v3734 = vadd.f32 %v3730, %v3733
        %vm3735 = vweird.f32 %v3690
        %vm3736 = vweird.f32 %v3730
        %vm3737 = vmor %vm3735, %vm3736
        %v3738 = vsel %vm3737, %v3730, %v3734
        %v3739 = vand.u32 2147483647, %v3690
        %vm3740 = vcmp.eq.f32.partialorder %v3739, 8.507059e+37
        %v3741 = vand.u32 %v3690, 2147483648
        %v3742 = vor.u32 1.1754944e-38, %v3741
        %v3743 = vsel %vm3740, %v3742, %v3738
        %v3744 = vmul.f32 %v3667, %v3743
        %v3745 = vmul.f32 %v3669, %v3743
        %v3746 = vmul.f32 %v3671, %v3743
        %v3747 = vmul.f32 %v3673, %v3743
        %v3748 = vrcp.pop %v3693
        %v3749 = vmul.f32 %v3693, %v3748
        %v3750 = vsub.f32 1.0, %v3749
        %v3751 = vmul.f32 %v3748, %v3750
        %v3752 = vadd.f32 %v3748, %v3751
        %vm3753 = vweird.f32 %v3693
        %vm3754 = vweird.f32 %v3748
        %vm3755 = vmor %vm3753, %vm3754
        %v3756 = vsel %vm3755, %v3748, %v3752
        %v3757 = vand.u32 2147483647, %v3693
        %vm3758 = vcmp.eq.f32.partialorder %v3757, 8.507059e+37
        %v3759 = vand.u32 %v3693, 2147483648
        %v3760 = vor.u32 1.1754944e-38, %v3759
        %v3761 = vsel %vm3758, %v3760, %v3756
        %v3762 = vmul.f32 %v3675, %v3761
        %v3763 = vmul.f32 %v3677, %v3761
        %v3764 = vmul.f32 %v3679, %v3761
        %v3765 = vmul.f32 %v3681, %v3761
        %v3766 = vmul.f32 %v3708, %v3470
        %v3767 = vmul.f32 %v3709, %v3471
        %v3768 = vmul.f32 %v3710, %v3472
        %v3769 = vmul.f32 %v3711, %v3473
        %v3770 = vmul.f32 %v3726, %v3470
        %v3771 = vmul.f32 %v3727, %v3471
        %v3772 = vmul.f32 %v3728, %v3472
        %v3773 = vmul.f32 %v3729, %v3473
        %v3774 = vmul.f32 %v3744, %v3470
        %v3775 = vmul.f32 %v3745, %v3471
        %v3776 = vmul.f32 %v3746, %v3472
        %v3777 = vmul.f32 %v3747, %v3473
        %v3778 = vmul.f32 %v3762, %v3470
        %v3779 = vmul.f32 %v3763, %v3471
        %v3780 = vmul.f32 %v3764, %v3472
        %v3781 = vmul.f32 %v3765, %v3473
        %vm3782 = vcmask 786112
        %v3783 = vsel %vm3782, %v3766, 0.0
        %v3784 = vsel %vm3782, %v3767, 0.0
        %v3785 = vadd.f32 %v3783, %v3784
        %v3786 = vsel %vm3782, %v3768, 0.0
        %v3787 = vadd.f32 %v3785, %v3786
        %v3788 = vsel %vm3782, %v3769, 0.0
        %v3789 = vadd.f32 %v3787, %v3788
        %v3790 = vsel %vm3782, %v3770, 0.0
        %v3791 = vsel %vm3782, %v3771, 0.0
        %v3792 = vadd.f32 %v3790, %v3791
        %v3793 = vsel %vm3782, %v3772, 0.0
        %v3794 = vadd.f32 %v3792, %v3793
        %v3795 = vsel %vm3782, %v3773, 0.0
        %v3796 = vadd.f32 %v3794, %v3795
        %v3797 = vsel %vm3782, %v3774, 0.0
        %v3798 = vsel %vm3782, %v3775, 0.0
        %v3799 = vadd.f32 %v3797, %v3798
        %v3800 = vsel %vm3782, %v3776, 0.0
        %v3801 = vadd.f32 %v3799, %v3800
        %v3802 = vsel %vm3782, %v3777, 0.0
        %v3803 = vadd.f32 %v3801, %v3802
        %v3804 = vsel %vm3782, %v3778, 0.0
        %v3805 = vsel %vm3782, %v3779, 0.0
        %v3806 = vadd.f32 %v3804, %v3805
        %v3807 = vsel %vm3782, %v3780, 0.0
        %v3808 = vadd.f32 %v3806, %v3807
        %v3809 = vsel %vm3782, %v3781, 0.0
        %v3810 = vadd.f32 %v3808, %v3809
        %3815 = vrot.lane.b32.xlu0 %v3789, 64
        %v3816 = vpop.permute.xlu0 %3815
        %3817 = vrot.lane.b32.xlu0 %v3796, 64
        %v3818 = vpop.permute.xlu0 %3817
        %3819 = vrot.lane.b32.xlu0 %v3803, 64
        %v3820 = vpop.permute.xlu0 %3819
        %3821 = vrot.lane.b32.xlu0 %v3810, 64
        %v3822 = vpop.permute.xlu0 %3821
        %3827 = vst.msk [vmem:[#allocation2] sm:$0xff] %vm2151, %v3816
        %3828 = vst.msk [vmem:[#allocation2 + $0x8] sm:$0xff] %vm2151, %v3818
        %3829 = vst.msk [vmem:[#allocation2 + $0x10] sm:$0xff] %vm2151, %v3820
        %3830 = vst.msk [vmem:[#allocation2 + $0x18] sm:$0xff] %vm2151, %v3822
        %v3831 = vld [vmem:[#allocation2] sm:$0xff]
        %v3832 = vld [vmem:[#allocation2 + $0x8] sm:$0xff]
        %v3833 = vld [vmem:[#allocation2 + $0x10] sm:$0xff]
        %v3834 = vld [vmem:[#allocation2 + $0x18] sm:$0xff]
        %v3835 = vld [vmem:[%s23] sm:$0xff]
        %v3836 = vld [vmem:[%s23 + $0x8] sm:$0xff]
        %v3837 = vld [vmem:[%s23 + $0x10] sm:$0xff]
        %v3838 = vld [vmem:[%s23 + $0x18] sm:$0xff]
        %v3839 = vld [vmem:[%s25] sm:$0x1]
        %v3841 = vperm.slane %v3839, 0
        %v3844 = vsel %vm910, %v3831, 0
        %v3847 = vsel %vm910, %v3832, 0
        %v3850 = vsel %vm910, %v3833, 0
        %v3853 = vsel %vm910, %v3834, 0
        %3855 = vmatpush.msra.mxu0 0.0
        %3856 = vmatpush.msra.mxu0 0.0
        %3857 = vmatpush.msra.mxu0 0.0
        %3858 = vmatpush.msra.mxu0 0.0
        %3859 = vmatpush.msra.mxu0 0.0
        %3860 = vmatpush.msra.mxu0 0.0
        %3861 = vmatpush.msra.mxu0 0.0
        %3862 = vmatpush.msra.mxu0 0.0
        %3863 = vmatpush.msra.mxu0 0.0
        %3864 = vmatpush.msra.mxu0 0.0
        %3865 = vmatpush.msra.mxu0 0.0
        %3866 = vmatpush.msra.mxu0 0.0
        %3867 = vmatpush.msra.mxu0 %v3838
        %3868 = vmatpush.msra.mxu0 %v3837
        %3869 = vmatpush.msra.mxu0 %v3836
        %3870 = vmatpush.msra.mxu0 %v3835
        %3871 = vmatmul.f32.gmra.mxu0 %v3844
        %v3872 = vpop.f32.mrf.mxu0
        %v3873 = vadd.f32 %v3841, %v3872
        %3874 = vmatmul.f32.gmra.mxu0 %v3847
        %v3875 = vpop.f32.mrf.mxu0
        %v3876 = vadd.f32 %v3841, %v3875
        %3877 = vmatmul.f32.gmra.mxu0 %v3850
        %v3878 = vpop.f32.mrf.mxu0
        %v3879 = vadd.f32 %v3841, %v3878
        %3880 = vmatmul.f32.gmra.mxu0 %v3853
        %v3881 = vpop.f32.mrf.mxu0
        %v3882 = vadd.f32 %v3841, %v3881
        %3883 = vdwg.mxu0
        %v3884 = vadd.f32 %v2290, %v3873
        %v3885 = vadd.f32 %v2291, %v3876
        %v3886 = vadd.f32 %v2292, %v3879
        %v3887 = vadd.f32 %v2293, %v3882
        %v3888 = vld [vmem:[%s27] sm:$0x1]
        %v3889 = vld [vmem:[%s29] sm:$0x1]
        %v3890 = vsel %vm910, %v3884, 0.0
        %3891 = vadd.xlane.f32.xlu0 %v3890
        %v3892 = vpop.xlane.xlu0 %3891
        %v3893 = vsel %vm910, %v3885, 0.0
        %3894 = vadd.xlane.f32.xlu0 %v3893
        %v3895 = vpop.xlane.xlu0 %3894
        %v3896 = vsel %vm910, %v3886, 0.0
        %3897 = vadd.xlane.f32.xlu0 %v3896
        %v3898 = vpop.xlane.xlu0 %3897
        %v3899 = vsel %vm910, %v3887, 0.0
        %3900 = vadd.xlane.f32.xlu0 %v3899
        %v3901 = vpop.xlane.xlu0 %3900
        %v3902 = vmul.f32 %v3892, %v929
        %v3903 = vmul.f32 %v3895, %v929
        %v3904 = vmul.f32 %v3898, %v929
        %v3905 = vmul.f32 %v3901, %v929
        %v3906 = vsub.f32 %v3884, %v3902
        %v3907 = vsub.f32 %v3885, %v3903
        %v3908 = vsub.f32 %v3886, %v3904
        %v3909 = vsub.f32 %v3887, %v3905
        %v3910 = vmul.f32 %v3906, %v3906
        %v3911 = vmul.f32 %v3907, %v3907
        %v3912 = vmul.f32 %v3908, %v3908
        %v3913 = vmul.f32 %v3909, %v3909
        %v3914 = vsel %vm910, %v3910, 0.0
        %3915 = vadd.xlane.f32.xlu0 %v3914
        %v3916 = vpop.xlane.xlu0 %3915
        %v3917 = vsel %vm910, %v3911, 0.0
        %3918 = vadd.xlane.f32.xlu0 %v3917
        %v3919 = vpop.xlane.xlu0 %3918
        %v3920 = vsel %vm910, %v3912, 0.0
        %3921 = vadd.xlane.f32.xlu0 %v3920
        %v3922 = vpop.xlane.xlu0 %3921
        %v3923 = vsel %vm910, %v3913, 0.0
        %3924 = vadd.xlane.f32.xlu0 %v3923
        %v3925 = vpop.xlane.xlu0 %3924
        %v3926 = vmul.f32 %v3916, %v929
        %v3927 = vmul.f32 %v3919, %v929
        %v3928 = vmul.f32 %v3922, %v929
        %v3929 = vmul.f32 %v3925, %v929
        %v3930 = vadd.f32 %v3926, 1e-05
        %v3931 = vadd.f32 %v3927, 1e-05
        %v3932 = vadd.f32 %v3928, 1e-05
        %v3933 = vadd.f32 %v3929, 1e-05
        %v3934 = vrsqrt.pop %v3930
        %v3935 = vmul.f32 %v3934, %v3930
        %v3936 = vmul.f32 %v3935, %v3934
        %v3937 = vmul.f32 0.5, %v3936
        %v3938 = vsub.f32 1.5, %v3937
        %v3939 = vmul.f32 %v3934, %v3938
        %vm3940 = vweird.f32 %v3930
        %vm3941 = vweird.f32 %v3934
        %vm3942 = vmor %vm3940, %vm3941
        %v3943 = vsel %vm3942, %v3934, %v3939
        %v3944 = vrsqrt.pop %v3931
        %v3945 = vmul.f32 %v3944, %v3931
        %v3946 = vmul.f32 %v3945, %v3944
        %v3947 = vmul.f32 0.5, %v3946
        %v3948 = vsub.f32 1.5, %v3947
        %v3949 = vmul.f32 %v3944, %v3948
        %vm3950 = vweird.f32 %v3931
        %vm3951 = vweird.f32 %v3944
        %vm3952 = vmor %vm3950, %vm3951
        %v3953 = vsel %vm3952, %v3944, %v3949
        %v3954 = vrsqrt.pop %v3932
        %v3955 = vmul.f32 %v3954, %v3932
        %v3956 = vmul.f32 %v3955, %v3954
        %v3957 = vmul.f32 0.5, %v3956
        %v3958 = vsub.f32 1.5, %v3957
        %v3959 = vmul.f32 %v3954, %v3958
        %vm3960 = vweird.f32 %v3932
        %vm3961 = vweird.f32 %v3954
        %vm3962 = vmor %vm3960, %vm3961
        %v3963 = vsel %vm3962, %v3954, %v3959
        %v3964 = vrsqrt.pop %v3933
        %v3965 = vmul.f32 %v3964, %v3933
        %v3966 = vmul.f32 %v3965, %v3964
        %v3967 = vmul.f32 0.5, %v3966
        %v3968 = vsub.f32 1.5, %v3967
        %v3969 = vmul.f32 %v3964, %v3968
        %vm3970 = vweird.f32 %v3933
        %vm3971 = vweird.f32 %v3964
        %vm3972 = vmor %vm3970, %vm3971
        %v3973 = vsel %vm3972, %v3964, %v3969
        %v3974 = vmul.f32 %v3906, %v3943
        %v3975 = vmul.f32 %v3907, %v3953
        %v3976 = vmul.f32 %v3908, %v3963
        %v3977 = vmul.f32 %v3909, %v3973
        %v3979 = vperm.slane %v3888, 0
        %v3981 = vmul.f32 %v3974, %v3979
        %v3982 = vmul.f32 %v3975, %v3979
        %v3983 = vmul.f32 %v3976, %v3979
        %v3984 = vmul.f32 %v3977, %v3979
        %v3986 = vperm.slane %v3889, 0
        %v3988 = vadd.f32 %v3981, %v3986
        %v3989 = vadd.f32 %v3982, %v3986
        %v3990 = vadd.f32 %v3983, %v3986
        %v3991 = vadd.f32 %v3984, %v3986
        %v3992 = vld [vmem:[%s31] sm:$0xff]
        %v3993 = vld [vmem:[%s31 + $0x8] sm:$0xff]
        %v3994 = vld [vmem:[%s31 + $0x10] sm:$0xff]
        %v3995 = vld [vmem:[%s31 + $0x18] sm:$0xff]
        %v3996 = vld [vmem:[%s33] sm:$0x1]
        %v3998 = vperm.slane %v3996, 0
        %v4001 = vsel %vm910, %v3988, 0
        %v4004 = vsel %vm910, %v3989, 0
        %v4007 = vsel %vm910, %v3990, 0
        %v4010 = vsel %vm910, %v3991, 0
        %4012 = vmatpush.msra.mxu0 0.0
        %4013 = vmatpush.msra.mxu0 0.0
        %4014 = vmatpush.msra.mxu0 0.0
        %4015 = vmatpush.msra.mxu0 0.0
        %4016 = vmatpush.msra.mxu0 0.0
        %4017 = vmatpush.msra.mxu0 0.0
        %4018 = vmatpush.msra.mxu0 0.0
        %4019 = vmatpush.msra.mxu0 0.0
        %4020 = vmatpush.msra.mxu0 0.0
        %4021 = vmatpush.msra.mxu0 0.0
        %4022 = vmatpush.msra.mxu0 0.0
        %4023 = vmatpush.msra.mxu0 0.0
        %4024 = vmatpush.msra.mxu0 %v3995
        %4025 = vmatpush.msra.mxu0 %v3994
        %4026 = vmatpush.msra.mxu0 %v3993
        %4027 = vmatpush.msra.mxu0 %v3992
        %4028 = vmatmul.f32.gmra.mxu0 %v4001
        %v4029 = vpop.f32.mrf.mxu0
        %v4030 = vadd.f32 %v3998, %v4029
        %4031 = vmatmul.f32.gmra.mxu0 %v4004
        %v4032 = vpop.f32.mrf.mxu0
        %v4033 = vadd.f32 %v3998, %v4032
        %4034 = vmatmul.f32.gmra.mxu0 %v4007
        %v4035 = vpop.f32.mrf.mxu0
        %v4036 = vadd.f32 %v3998, %v4035
        %4037 = vmatmul.f32.gmra.mxu0 %v4010
        %v4038 = vpop.f32.mrf.mxu0
        %v4039 = vadd.f32 %v3998, %v4038
        %4040 = vdwg.mxu0
        %v4041 = vmul.f32 %v4030, 0.5
        %v4042 = vmul.f32 %v4033, 0.5
        %v4043 = vmul.f32 %v4036, 0.5
        %v4044 = vmul.f32 %v4039, 0.5
        %v4045 = vmul.f32 %v4030, 0.70710677
        %v4046 = vmul.f32 %v4033, 0.70710677
        %v4047 = vmul.f32 %v4036, 0.70710677
        %v4048 = vmul.f32 %v4039, 0.70710677
        %v4049 = vand.u32 2147483647, %v4045
        %v4050 = vand.u32 2147483647, %v4046
        %v4051 = vand.u32 2147483647, %v4047
        %v4052 = vand.u32 2147483647, %v4048
        %v4053 = vmul.f32 %v4049, 0.3275911
        %v4054 = vmul.f32 %v4050, 0.3275911
        %v4055 = vmul.f32 %v4051, 0.3275911
        %v4056 = vmul.f32 %v4052, 0.3275911
        %v4057 = vadd.f32 %v4053, 1.0
        %v4058 = vadd.f32 %v4054, 1.0
        %v4059 = vadd.f32 %v4055, 1.0
        %v4060 = vadd.f32 %v4056, 1.0
        %v4061 = vrcp.pop %v4057
        %v4062 = vmul.f32 %v4057, %v4061
        %v4063 = vsub.f32 1.0, %v4062
        %v4064 = vmul.f32 %v4061, %v4063
        %v4065 = vadd.f32 %v4061, %v4064
        %vm4066 = vweird.f32 %v4057
        %vm4067 = vweird.f32 %v4061
        %vm4068 = vmor %vm4066, %vm4067
        %v4069 = vsel %vm4068, %v4061, %v4065
        %v4070 = vand.u32 2147483647, %v4057
        %vm4071 = vcmp.eq.f32.partialorder %v4070, 8.507059e+37
        %v4072 = vand.u32 %v4057, 2147483648
        %v4073 = vor.u32 1.1754944e-38, %v4072
        %v4074 = vsel %vm4071, %v4073, %v4069
        %v4075 = vmul.f32 1.0, %v4074
        %v4076 = vrcp.pop %v4058
        %v4077 = vmul.f32 %v4058, %v4076
        %v4078 = vsub.f32 1.0, %v4077
        %v4079 = vmul.f32 %v4076, %v4078
        %v4080 = vadd.f32 %v4076, %v4079
        %vm4081 = vweird.f32 %v4058
        %vm4082 = vweird.f32 %v4076
        %vm4083 = vmor %vm4081, %vm4082
        %v4084 = vsel %vm4083, %v4076, %v4080
        %v4085 = vand.u32 2147483647, %v4058
        %vm4086 = vcmp.eq.f32.partialorder %v4085, 8.507059e+37
        %v4087 = vand.u32 %v4058, 2147483648
        %v4088 = vor.u32 1.1754944e-38, %v4087
        %v4089 = vsel %vm4086, %v4088, %v4084
        %v4090 = vmul.f32 1.0, %v4089
        %v4091 = vrcp.pop %v4059
        %v4092 = vmul.f32 %v4059, %v4091
        %v4093 = vsub.f32 1.0, %v4092
        %v4094 = vmul.f32 %v4091, %v4093
        %v4095 = vadd.f32 %v4091, %v4094
        %vm4096 = vweird.f32 %v4059
        %vm4097 = vweird.f32 %v4091
        %vm4098 = vmor %vm4096, %vm4097
        %v4099 = vsel %vm4098, %v4091, %v4095
        %v4100 = vand.u32 2147483647, %v4059
        %vm4101 = vcmp.eq.f32.partialorder %v4100, 8.507059e+37
        %v4102 = vand.u32 %v4059, 2147483648
        %v4103 = vor.u32 1.1754944e-38, %v4102
        %v4104 = vsel %vm4101, %v4103, %v4099
        %v4105 = vmul.f32 1.0, %v4104
        %v4106 = vrcp.pop %v4060
        %v4107 = vmul.f32 %v4060, %v4106
        %v4108 = vsub.f32 1.0, %v4107
        %v4109 = vmul.f32 %v4106, %v4108
        %v4110 = vadd.f32 %v4106, %v4109
        %vm4111 = vweird.f32 %v4060
        %vm4112 = vweird.f32 %v4106
        %vm4113 = vmor %vm4111, %vm4112
        %v4114 = vsel %vm4113, %v4106, %v4110
        %v4115 = vand.u32 2147483647, %v4060
        %vm4116 = vcmp.eq.f32.partialorder %v4115, 8.507059e+37
        %v4117 = vand.u32 %v4060, 2147483648
        %v4118 = vor.u32 1.1754944e-38, %v4117
        %v4119 = vsel %vm4116, %v4118, %v4114
        %v4120 = vmul.f32 1.0, %v4119
        %v4121 = vmul.f32 %v4075, 1.0614054
        %v4122 = vmul.f32 %v4090, 1.0614054
        %v4123 = vmul.f32 %v4105, 1.0614054
        %v4124 = vmul.f32 %v4120, 1.0614054
        %v4125 = vadd.f32 %v4121, -1.4531521
        %v4126 = vadd.f32 %v4122, -1.4531521
        %v4127 = vadd.f32 %v4123, -1.4531521
        %v4128 = vadd.f32 %v4124, -1.4531521
        %v4129 = vmul.f32 %v4125, %v4075
        %v4130 = vmul.f32 %v4126, %v4090
        %v4131 = vmul.f32 %v4127, %v4105
        %v4132 = vmul.f32 %v4128, %v4120
        %v4133 = vadd.f32 %v4129, 1.4214138
        %v4134 = vadd.f32 %v4130, 1.4214138
        %v4135 = vadd.f32 %v4131, 1.4214138
        %v4136 = vadd.f32 %v4132, 1.4214138
        %v4137 = vmul.f32 %v4133, %v4075
        %v4138 = vmul.f32 %v4134, %v4090
        %v4139 = vmul.f32 %v4135, %v4105
        %v4140 = vmul.f32 %v4136, %v4120
        %v4141 = vadd.f32 %v4137, -0.28449672
        %v4142 = vadd.f32 %v4138, -0.28449672
        %v4143 = vadd.f32 %v4139, -0.28449672
        %v4144 = vadd.f32 %v4140, -0.28449672
        %v4145 = vmul.f32 %v4141, %v4075
        %v4146 = vmul.f32 %v4142, %v4090
        %v4147 = vmul.f32 %v4143, %v4105
        %v4148 = vmul.f32 %v4144, %v4120
        %v4149 = vadd.f32 %v4145, 0.2548296
        %v4150 = vadd.f32 %v4146, 0.2548296
        %v4151 = vadd.f32 %v4147, 0.2548296
        %v4152 = vadd.f32 %v4148, 0.2548296
        %v4153 = vmul.f32 %v4149, %v4075
        %v4154 = vmul.f32 %v4150, %v4090
        %v4155 = vmul.f32 %v4151, %v4105
        %v4156 = vmul.f32 %v4152, %v4120
        %v4157 = vmul.f32 %v4049, %v4049
        %v4158 = vmul.f32 %v4050, %v4050
        %v4159 = vmul.f32 %v4051, %v4051
        %v4160 = vmul.f32 %v4052, %v4052
        %v4161 = vsub.f32 0.0, %v4157
        %v4162 = vsub.f32 0.0, %v4158
        %v4163 = vsub.f32 0.0, %v4159
        %v4164 = vsub.f32 0.0, %v4160
        %v4165 = vmul.f32 %v4161, 1.442695
        %v4166 = vpow.pop %v4165
        %v4167 = vmul.f32 %v4162, 1.442695
        %v4168 = vpow.pop %v4167
        %v4169 = vmul.f32 %v4163, 1.442695
        %v4170 = vpow.pop %v4169
        %v4171 = vmul.f32 %v4164, 1.442695
        %v4172 = vpow.pop %v4171
        %v4173 = vmul.f32 %v4153, %v4166
        %v4174 = vmul.f32 %v4154, %v4168
        %v4175 = vmul.f32 %v4155, %v4170
        %v4176 = vmul.f32 %v4156, %v4172
        %v4177 = vsub.f32 1.0, %v4173
        %v4178 = vsub.f32 1.0, %v4174
        %v4179 = vsub.f32 1.0, %v4175
        %v4180 = vsub.f32 1.0, %v4176
        %vm4181 = vcmp.ge.f32.partialorder %v4045, 0.0
        %vm4182 = vcmp.ge.f32.partialorder %v4046, 0.0
        %vm4183 = vcmp.ge.f32.partialorder %v4047, 0.0
        %vm4184 = vcmp.ge.f32.partialorder %v4048, 0.0
        %v4185 = vsub.f32 0.0, %v4177
        %v4186 = vsub.f32 0.0, %v4178
        %v4187 = vsub.f32 0.0, %v4179
        %v4188 = vsub.f32 0.0, %v4180
        %v4189 = vsel %vm4181, %v4177, %v4185
        %v4190 = vsel %vm4182, %v4178, %v4186
        %v4191 = vsel %vm4183, %v4179, %v4187
        %v4192 = vsel %vm4184, %v4180, %v4188
        %v4193 = vadd.f32 %v4189, 1.0
        %v4194 = vadd.f32 %v4190, 1.0
        %v4195 = vadd.f32 %v4191, 1.0
        %v4196 = vadd.f32 %v4192, 1.0
        %v4197 = vmul.f32 %v4041, %v4193
        %v4198 = vmul.f32 %v4042, %v4194
        %v4199 = vmul.f32 %v4043, %v4195
        %v4200 = vmul.f32 %v4044, %v4196
        %v4201 = vld [vmem:[%s35] sm:$0xff]
        %v4202 = vld [vmem:[%s35 + $0x8] sm:$0xff]
        %v4203 = vld [vmem:[%s35 + $0x10] sm:$0xff]
        %v4204 = vld [vmem:[%s35 + $0x18] sm:$0xff]
        %v4205 = vld [vmem:[%s37] sm:$0x1]
        %v4207 = vperm.slane %v4205, 0
        %v4210 = vsel %vm910, %v4197, 0
        %v4213 = vsel %vm910, %v4198, 0
        %v4216 = vsel %vm910, %v4199, 0
        %v4219 = vsel %vm910, %v4200, 0
        %4221 = vmatpush.msra.mxu0 0.0
        %4222 = vmatpush.msra.mxu0 0.0
        %4223 = vmatpush.msra.mxu0 0.0
        %4224 = vmatpush.msra.mxu0 0.0
        %4225 = vmatpush.msra.mxu0 0.0
        %4226 = vmatpush.msra.mxu0 0.0
        %4227 = vmatpush.msra.mxu0 0.0
        %4228 = vmatpush.msra.mxu0 0.0
        %4229 = vmatpush.msra.mxu0 0.0
        %4230 = vmatpush.msra.mxu0 0.0
        %4231 = vmatpush.msra.mxu0 0.0
        %4232 = vmatpush.msra.mxu0 0.0
        %4233 = vmatpush.msra.mxu0 %v4204
        %4234 = vmatpush.msra.mxu0 %v4203
        %4235 = vmatpush.msra.mxu0 %v4202
        %4236 = vmatpush.msra.mxu0 %v4201
        %4237 = vmatmul.f32.gmra.mxu0 %v4210
        %v4238 = vpop.f32.mrf.mxu0
        %v4239 = vadd.f32 %v4207, %v4238
        %4240 = vmatmul.f32.gmra.mxu0 %v4213
        %v4241 = vpop.f32.mrf.mxu0
        %v4242 = vadd.f32 %v4207, %v4241
        %4243 = vmatmul.f32.gmra.mxu0 %v4216
        %v4244 = vpop.f32.mrf.mxu0
        %v4245 = vadd.f32 %v4207, %v4244
        %4246 = vmatmul.f32.gmra.mxu0 %v4219
        %v4247 = vpop.f32.mrf.mxu0
        %v4248 = vadd.f32 %v4207, %v4247
        %4249 = vdwg.mxu0
        %v4250 = vadd.f32 %v3884, %v4239
        %v4251 = vadd.f32 %v3885, %v4242
        %v4252 = vadd.f32 %v3886, %v4245
        %v4253 = vadd.f32 %v3887, %v4248
        %s4254 = scalar_lea.vmem %s3, 1
        %v4255 = vld [vmem:[%s4254] sm:$0x1]
        %s4256 = scalar_lea.vmem %s5, 1
        %v4257 = vld [vmem:[%s4256] sm:$0x1]
        %v4258 = vsel %vm910, %v4250, 0.0
        %4259 = vadd.xlane.f32.xlu0 %v4258
        %v4260 = vpop.xlane.xlu0 %4259
        %v4261 = vsel %vm910, %v4251, 0.0
        %4262 = vadd.xlane.f32.xlu0 %v4261
        %v4263 = vpop.xlane.xlu0 %4262
        %v4264 = vsel %vm910, %v4252, 0.0
        %4265 = vadd.xlane.f32.xlu0 %v4264
        %v4266 = vpop.xlane.xlu0 %4265
        %v4267 = vsel %vm910, %v4253, 0.0
        %4268 = vadd.xlane.f32.xlu0 %v4267
        %v4269 = vpop.xlane.xlu0 %4268
        %v4270 = vmul.f32 %v4260, %v929
        %v4271 = vmul.f32 %v4263, %v929
        %v4272 = vmul.f32 %v4266, %v929
        %v4273 = vmul.f32 %v4269, %v929
        %v4274 = vsub.f32 %v4250, %v4270
        %v4275 = vsub.f32 %v4251, %v4271
        %v4276 = vsub.f32 %v4252, %v4272
        %v4277 = vsub.f32 %v4253, %v4273
        %v4278 = vmul.f32 %v4274, %v4274
        %v4279 = vmul.f32 %v4275, %v4275
        %v4280 = vmul.f32 %v4276, %v4276
        %v4281 = vmul.f32 %v4277, %v4277
        %v4282 = vsel %vm910, %v4278, 0.0
        %4283 = vadd.xlane.f32.xlu0 %v4282
        %v4284 = vpop.xlane.xlu0 %4283
        %v4285 = vsel %vm910, %v4279, 0.0
        %4286 = vadd.xlane.f32.xlu0 %v4285
        %v4287 = vpop.xlane.xlu0 %4286
        %v4288 = vsel %vm910, %v4280, 0.0
        %4289 = vadd.xlane.f32.xlu0 %v4288
        %v4290 = vpop.xlane.xlu0 %4289
        %v4291 = vsel %vm910, %v4281, 0.0
        %4292 = vadd.xlane.f32.xlu0 %v4291
        %v4293 = vpop.xlane.xlu0 %4292
        %v4294 = vmul.f32 %v4284, %v929
        %v4295 = vmul.f32 %v4287, %v929
        %v4296 = vmul.f32 %v4290, %v929
        %v4297 = vmul.f32 %v4293, %v929
        %v4298 = vadd.f32 %v4294, 1e-05
        %v4299 = vadd.f32 %v4295, 1e-05
        %v4300 = vadd.f32 %v4296, 1e-05
        %v4301 = vadd.f32 %v4297, 1e-05
        %v4302 = vrsqrt.pop %v4298
        %v4303 = vmul.f32 %v4302, %v4298
        %v4304 = vmul.f32 %v4303, %v4302
        %v4305 = vmul.f32 0.5, %v4304
        %v4306 = vsub.f32 1.5, %v4305
        %v4307 = vmul.f32 %v4302, %v4306
        %vm4308 = vweird.f32 %v4298
        %vm4309 = vweird.f32 %v4302
        %vm4310 = vmor %vm4308, %vm4309
        %v4311 = vsel %vm4310, %v4302, %v4307
        %v4312 = vrsqrt.pop %v4299
        %v4313 = vmul.f32 %v4312, %v4299
        %v4314 = vmul.f32 %v4313, %v4312
        %v4315 = vmul.f32 0.5, %v4314
        %v4316 = vsub.f32 1.5, %v4315
        %v4317 = vmul.f32 %v4312, %v4316
        %vm4318 = vweird.f32 %v4299
        %vm4319 = vweird.f32 %v4312
        %vm4320 = vmor %vm4318, %vm4319
        %v4321 = vsel %vm4320, %v4312, %v4317
        %v4322 = vrsqrt.pop %v4300
        %v4323 = vmul.f32 %v4322, %v4300
        %v4324 = vmul.f32 %v4323, %v4322
        %v4325 = vmul.f32 0.5, %v4324
        %v4326 = vsub.f32 1.5, %v4325
        %v4327 = vmul.f32 %v4322, %v4326
        %vm4328 = vweird.f32 %v4300
        %vm4329 = vweird.f32 %v4322
        %vm4330 = vmor %vm4328, %vm4329
        %v4331 = vsel %vm4330, %v4322, %v4327
        %v4332 = vrsqrt.pop %v4301
        %v4333 = vmul.f32 %v4332, %v4301
        %v4334 = vmul.f32 %v4333, %v4332
        %v4335 = vmul.f32 0.5, %v4334
        %v4336 = vsub.f32 1.5, %v4335
        %v4337 = vmul.f32 %v4332, %v4336
        %vm4338 = vweird.f32 %v4301
        %vm4339 = vweird.f32 %v4332
        %vm4340 = vmor %vm4338, %vm4339
        %v4341 = vsel %vm4340, %v4332, %v4337
        %v4342 = vmul.f32 %v4274, %v4311
        %v4343 = vmul.f32 %v4275, %v4321
        %v4344 = vmul.f32 %v4276, %v4331
        %v4345 = vmul.f32 %v4277, %v4341
        %v4347 = vperm.slane %v4255, 0
        %v4349 = vmul.f32 %v4342, %v4347
        %v4350 = vmul.f32 %v4343, %v4347
        %v4351 = vmul.f32 %v4344, %v4347
        %v4352 = vmul.f32 %v4345, %v4347
        %v4354 = vperm.slane %v4257, 0
        %v4356 = vadd.f32 %v4349, %v4354
        %v4357 = vadd.f32 %v4350, %v4354
        %v4358 = vadd.f32 %v4351, %v4354
        %v4359 = vadd.f32 %v4352, %v4354
        %s4360 = scalar_lea.vmem %s7, 32
        %v4361 = vld [vmem:[%s4360] sm:$0xff]
        %v4362 = vld [vmem:[%s4360 + $0x8] sm:$0xff]
        %v4363 = vld [vmem:[%s4360 + $0x10] sm:$0xff]
        %v4364 = vld [vmem:[%s4360 + $0x18] sm:$0xff]
        %s4365 = scalar_lea.vmem %s9, 1
        %v4366 = vld [vmem:[%s4365] sm:$0x1]
        %v4368 = vperm.slane %v4366, 0
        %v4371 = vsel %vm910, %v4356, 0
        %v4374 = vsel %vm910, %v4357, 0
        %v4377 = vsel %vm910, %v4358, 0
        %v4380 = vsel %vm910, %v4359, 0
        %4382 = vmatpush.msra.mxu0 0.0
        %4383 = vmatpush.msra.mxu0 0.0
        %4384 = vmatpush.msra.mxu0 0.0
        %4385 = vmatpush.msra.mxu0 0.0
        %4386 = vmatpush.msra.mxu0 0.0
        %4387 = vmatpush.msra.mxu0 0.0
        %4388 = vmatpush.msra.mxu0 0.0
        %4389 = vmatpush.msra.mxu0 0.0
        %4390 = vmatpush.msra.mxu0 0.0
        %4391 = vmatpush.msra.mxu0 0.0
        %4392 = vmatpush.msra.mxu0 0.0
        %4393 = vmatpush.msra.mxu0 0.0
        %4394 = vmatpush.msra.mxu0 %v4364
        %4395 = vmatpush.msra.mxu0 %v4363
        %4396 = vmatpush.msra.mxu0 %v4362
        %4397 = vmatpush.msra.mxu0 %v4361
        %4398 = vmatmul.f32.gmra.mxu0 %v4371
        %v4399 = vpop.f32.mrf.mxu0
        %v4400 = vadd.f32 %v4368, %v4399
        %4401 = vmatmul.f32.gmra.mxu0 %v4374
        %v4402 = vpop.f32.mrf.mxu0
        %v4403 = vadd.f32 %v4368, %v4402
        %4404 = vmatmul.f32.gmra.mxu0 %v4377
        %v4405 = vpop.f32.mrf.mxu0
        %v4406 = vadd.f32 %v4368, %v4405
        %4407 = vmatmul.f32.gmra.mxu0 %v4380
        %v4408 = vpop.f32.mrf.mxu0
        %v4409 = vadd.f32 %v4368, %v4408
        %4410 = vdwg.mxu0
        %4411 = vst.msk [vmem:[#allocation3] sm:$0xff] %vm1173, %v4400
        %4412 = vst.msk [vmem:[#allocation3 + $0x8] sm:$0xff] %vm1173, %v4403
        %4413 = vst.msk [vmem:[#allocation3 + $0x10] sm:$0xff] %vm1173, %v4406
        %4414 = vst.msk [vmem:[#allocation3 + $0x18] sm:$0xff] %vm1173, %v4409
        %v4415 = vld [vmem:[#allocation3] sm:$0xff]
        %v4416 = vld [vmem:[#allocation3 + $0x8] sm:$0xff]
        %v4417 = vld [vmem:[#allocation3 + $0x10] sm:$0xff]
        %v4418 = vld [vmem:[#allocation3 + $0x18] sm:$0xff]
        %v4419 = vmul.f32 %v4415, 0.17677669
        %v4420 = vmul.f32 %v4416, 0.17677669
        %v4421 = vmul.f32 %v4417, 0.17677669
        %v4422 = vmul.f32 %v4418, 0.17677669
        %4424 = vrot.lane.b32.xlu0 %v4416, 96
        %v4425 = vpop.permute.xlu0 %4424
        %v4427 = vsel %vm1189, %v4420, 0
        %v4429 = vsel %vm1189, %v4425, 0
        %4431 = vmatpush.xpose.msra.mxu0 0.0
        %4432 = vmatpush.xpose.msra.mxu0 0.0
        %4433 = vmatpush.xpose.msra.mxu0 0.0
        %4434 = vmatpush.xpose.msra.mxu0 0.0
        %4435 = vmatpush.xpose.msra.mxu0 0.0
        %4436 = vmatpush.xpose.msra.mxu0 0.0
        %4437 = vmatpush.xpose.msra.mxu0 0.0
        %4438 = vmatpush.xpose.msra.mxu0 0.0
        %4439 = vmatpush.xpose.msra.mxu0 0.0
        %4440 = vmatpush.xpose.msra.mxu0 0.0
        %4441 = vmatpush.xpose.msra.mxu0 0.0
        %4442 = vmatpush.xpose.msra.mxu0 0.0
        %4443 = vmatpush.xpose.msra.mxu0 0.0
        %4444 = vmatpush.xpose.msra.mxu0 0.0
        %4445 = vmatpush.xpose.msra.mxu0 0.0
        %4446 = vmatpush.xpose.msra.mxu0 %v4429
        %4447 = vmatmul.f32.gmra.mxu0 %v4427
        %v4448 = vpop.f32.mrf.mxu0
        %v4449 = vadd.f32 0.0, %v4448
        %4450 = vdwg.mxu0
        %4452 = vrot.lane.b32.xlu0 %v4415, 96
        %v4453 = vpop.permute.xlu0 %4452
        %v4455 = vsel %vm1189, %v4419, 0
        %v4457 = vsel %vm1189, %v4453, 0
        %4459 = vmatpush.xpose.msra.mxu0 0.0
        %4460 = vmatpush.xpose.msra.mxu0 0.0
        %4461 = vmatpush.xpose.msra.mxu0 0.0
        %4462 = vmatpush.xpose.msra.mxu0 0.0
        %4463 = vmatpush.xpose.msra.mxu0 0.0
        %4464 = vmatpush.xpose.msra.mxu0 0.0
        %4465 = vmatpush.xpose.msra.mxu0 0.0
        %4466 = vmatpush.xpose.msra.mxu0 0.0
        %4467 = vmatpush.xpose.msra.mxu0 0.0
        %4468 = vmatpush.xpose.msra.mxu0 0.0
        %4469 = vmatpush.xpose.msra.mxu0 0.0
        %4470 = vmatpush.xpose.msra.mxu0 0.0
        %4471 = vmatpush.xpose.msra.mxu0 0.0
        %4472 = vmatpush.xpose.msra.mxu0 0.0
        %4473 = vmatpush.xpose.msra.mxu0 0.0
        %4474 = vmatpush.xpose.msra.mxu0 %v4457
        %4475 = vmatmul.f32.gmra.mxu0 %v4455
        %v4476 = vpop.f32.mrf.mxu0
        %v4477 = vadd.f32 %v4449, %v4476
        %4478 = vdwg.mxu0
        %4480 = vrot.lane.b32.xlu0 %v4417, 96
        %v4481 = vpop.permute.xlu0 %4480
        %v4483 = vsel %vm1189, %v4421, 0
        %v4485 = vsel %vm1189, %v4481, 0
        %4487 = vmatpush.xpose.msra.mxu0 0.0
        %4488 = vmatpush.xpose.msra.mxu0 0.0
        %4489 = vmatpush.xpose.msra.mxu0 0.0
        %4490 = vmatpush.xpose.msra.mxu0 0.0
        %4491 = vmatpush.xpose.msra.mxu0 0.0
        %4492 = vmatpush.xpose.msra.mxu0 0.0
        %4493 = vmatpush.xpose.msra.mxu0 0.0
        %4494 = vmatpush.xpose.msra.mxu0 0.0
        %4495 = vmatpush.xpose.msra.mxu0 0.0
        %4496 = vmatpush.xpose.msra.mxu0 0.0
        %4497 = vmatpush.xpose.msra.mxu0 0.0
        %4498 = vmatpush.xpose.msra.mxu0 0.0
        %4499 = vmatpush.xpose.msra.mxu0 0.0
        %4500 = vmatpush.xpose.msra.mxu0 0.0
        %4501 = vmatpush.xpose.msra.mxu0 0.0
        %4502 = vmatpush.xpose.msra.mxu0 %v4485
        %4503 = vmatmul.f32.gmra.mxu0 %v4483
        %v4504 = vpop.f32.mrf.mxu0
        %v4505 = vadd.f32 0.0, %v4504
        %4506 = vdwg.mxu0
        %v4507 = vadd.f32 %v4477, %v4505
        %4509 = vrot.lane.b32.xlu0 %v4418, 96
        %v4510 = vpop.permute.xlu0 %4509
        %v4512 = vsel %vm1189, %v4422, 0
        %v4514 = vsel %vm1189, %v4510, 0
        %4516 = vmatpush.xpose.msra.mxu0 0.0
        %4517 = vmatpush.xpose.msra.mxu0 0.0
        %4518 = vmatpush.xpose.msra.mxu0 0.0
        %4519 = vmatpush.xpose.msra.mxu0 0.0
        %4520 = vmatpush.xpose.msra.mxu0 0.0
        %4521 = vmatpush.xpose.msra.mxu0 0.0
        %4522 = vmatpush.xpose.msra.mxu0 0.0
        %4523 = vmatpush.xpose.msra.mxu0 0.0
        %4524 = vmatpush.xpose.msra.mxu0 0.0
        %4525 = vmatpush.xpose.msra.mxu0 0.0
        %4526 = vmatpush.xpose.msra.mxu0 0.0
        %4527 = vmatpush.xpose.msra.mxu0 0.0
        %4528 = vmatpush.xpose.msra.mxu0 0.0
        %4529 = vmatpush.xpose.msra.mxu0 0.0
        %4530 = vmatpush.xpose.msra.mxu0 0.0
        %4531 = vmatpush.xpose.msra.mxu0 %v4514
        %4532 = vmatmul.f32.gmra.mxu0 %v4512
        %v4533 = vpop.f32.mrf.mxu0
        %v4534 = vadd.f32 0.0, %v4533
        %4535 = vdwg.mxu0
        %v4536 = vadd.f32 %v4507, %v4534
        %v4537 = vsel %vm1189, %v4536, -inf
        %4538 = vmax.xlane.f32.xlu0 %v4537
        %v4539 = vpop.xlane.xlu0 %4538
        %v4540 = vsub.f32 %v4536, %v4539
        %v4541 = vmul.f32 %v4540, 1.442695
        %v4542 = vpow.pop %v4541
        %v4543 = vsel %vm1189, %v4542, 0.0
        %4544 = vadd.xlane.f32.xlu0 %v4543
        %v4545 = vpop.xlane.xlu0 %4544
        %v4546 = vrcp.pop %v4545
        %v4547 = vmul.f32 %v4545, %v4546
        %v4548 = vsub.f32 1.0, %v4547
        %v4549 = vmul.f32 %v4546, %v4548
        %v4550 = vadd.f32 %v4546, %v4549
        %vm4551 = vweird.f32 %v4545
        %vm4552 = vweird.f32 %v4546
        %vm4553 = vmor %vm4551, %vm4552
        %v4554 = vsel %vm4553, %v4546, %v4550
        %v4555 = vand.u32 2147483647, %v4545
        %vm4556 = vcmp.eq.f32.partialorder %v4555, 8.507059e+37
        %v4557 = vand.u32 %v4545, 2147483648
        %v4558 = vor.u32 1.1754944e-38, %v4557
        %v4559 = vsel %vm4556, %v4558, %v4554
        %v4560 = vmul.f32 %v4542, %v4559
        %4561 = vrot.lane.b32.xlu0 %v4415, 64
        %v4562 = vpop.permute.xlu0 %4561
        %v4565 = vsel %vm1189, %v4560, 0
        %4567 = vmatpush.msra.mxu0 0.0
        %4568 = vmatpush.msra.mxu0 0.0
        %4569 = vmatpush.msra.mxu0 0.0
        %4570 = vmatpush.msra.mxu0 0.0
        %4571 = vmatpush.msra.mxu0 0.0
        %4572 = vmatpush.msra.mxu0 0.0
        %4573 = vmatpush.msra.mxu0 0.0
        %4574 = vmatpush.msra.mxu0 0.0
        %4575 = vmatpush.msra.mxu0 0.0
        %4576 = vmatpush.msra.mxu0 0.0
        %4577 = vmatpush.msra.mxu0 0.0
        %4578 = vmatpush.msra.mxu0 0.0
        %4579 = vmatpush.msra.mxu0 0.0
        %4580 = vmatpush.msra.mxu0 0.0
        %4581 = vmatpush.msra.mxu0 0.0
        %4582 = vmatpush.msra.mxu0 %v4562
        %4583 = vmatmul.f32.gmra.mxu0 %v4565
        %v4584 = vpop.f32.mrf.mxu0
        %v4585 = vadd.f32 0.0, %v4584
        %4586 = vdwg.mxu0
        %4587 = vst.msk [vmem:[#allocation2] sm:$0xff] %vm1189, %v4585
        %4588 = vrot.lane.b32.xlu0 %v4416, 64
        %v4589 = vpop.permute.xlu0 %4588
        %4591 = vmatpush.msra.mxu0 0.0
        %4592 = vmatpush.msra.mxu0 0.0
        %4593 = vmatpush.msra.mxu0 0.0
        %4594 = vmatpush.msra.mxu0 0.0
        %4595 = vmatpush.msra.mxu0 0.0
        %4596 = vmatpush.msra.mxu0 0.0
        %4597 = vmatpush.msra.mxu0 0.0
        %4598 = vmatpush.msra.mxu0 0.0
        %4599 = vmatpush.msra.mxu0 0.0
        %4600 = vmatpush.msra.mxu0 0.0
        %4601 = vmatpush.msra.mxu0 0.0
        %4602 = vmatpush.msra.mxu0 0.0
        %4603 = vmatpush.msra.mxu0 0.0
        %4604 = vmatpush.msra.mxu0 0.0
        %4605 = vmatpush.msra.mxu0 0.0
        %4606 = vmatpush.msra.mxu0 %v4589
        %4607 = vmatmul.f32.gmra.mxu0 %v4565
        %v4608 = vpop.f32.mrf.mxu0
        %v4609 = vadd.f32 0.0, %v4608
        %4610 = vdwg.mxu0
        %4611 = vst.msk [vmem:[%s1375] sm:$0xff] %vm1189, %v4609
        %4612 = vrot.lane.b32.xlu0 %v4417, 64
        %v4613 = vpop.permute.xlu0 %4612
        %4615 = vmatpush.msra.mxu0 0.0
        %4616 = vmatpush.msra.mxu0 0.0
        %4617 = vmatpush.msra.mxu0 0.0
        %4618 = vmatpush.msra.mxu0 0.0
        %4619 = vmatpush.msra.mxu0 0.0
        %4620 = vmatpush.msra.mxu0 0.0
        %4621 = vmatpush.msra.mxu0 0.0
        %4622 = vmatpush.msra.mxu0 0.0
        %4623 = vmatpush.msra.mxu0 0.0
        %4624 = vmatpush.msra.mxu0 0.0
        %4625 = vmatpush.msra.mxu0 0.0
        %4626 = vmatpush.msra.mxu0 0.0
        %4627 = vmatpush.msra.mxu0 0.0
        %4628 = vmatpush.msra.mxu0 0.0
        %4629 = vmatpush.msra.mxu0 0.0
        %4630 = vmatpush.msra.mxu0 %v4613
        %4631 = vmatmul.f32.gmra.mxu0 %v4565
        %v4632 = vpop.f32.mrf.mxu0
        %v4633 = vadd.f32 0.0, %v4632
        %4634 = vdwg.mxu0
        %4635 = vst.msk [vmem:[%s1400] sm:$0xff] %vm1189, %v4633
        %4636 = vrot.lane.b32.xlu0 %v4418, 64
        %v4637 = vpop.permute.xlu0 %4636
        %4639 = vmatpush.msra.mxu0 0.0
        %4640 = vmatpush.msra.mxu0 0.0
        %4641 = vmatpush.msra.mxu0 0.0
        %4642 = vmatpush.msra.mxu0 0.0
        %4643 = vmatpush.msra.mxu0 0.0
        %4644 = vmatpush.msra.mxu0 0.0
        %4645 = vmatpush.msra.mxu0 0.0
        %4646 = vmatpush.msra.mxu0 0.0
        %4647 = vmatpush.msra.mxu0 0.0
        %4648 = vmatpush.msra.mxu0 0.0
        %4649 = vmatpush.msra.mxu0 0.0
        %4650 = vmatpush.msra.mxu0 0.0
        %4651 = vmatpush.msra.mxu0 0.0
        %4652 = vmatpush.msra.mxu0 0.0
        %4653 = vmatpush.msra.mxu0 0.0
        %4654 = vmatpush.msra.mxu0 %v4637
        %4655 = vmatmul.f32.gmra.mxu0 %v4565
        %v4656 = vpop.f32.mrf.mxu0
        %v4657 = vadd.f32 0.0, %v4656
        %4658 = vdwg.mxu0
        %4659 = vst.msk [vmem:[%s1425] sm:$0xff] %vm1189, %v4657
        %v4660 = vld [vmem:[#allocation3] sm:$0xff]
        %v4661 = vld [vmem:[#allocation3 + $0x8] sm:$0xff]
        %v4662 = vld [vmem:[#allocation3 + $0x10] sm:$0xff]
        %v4663 = vld [vmem:[#allocation3 + $0x18] sm:$0xff]
        %v4664 = vmul.f32 %v4660, 0.17677669
        %v4665 = vmul.f32 %v4661, 0.17677669
        %v4666 = vmul.f32 %v4662, 0.17677669
        %v4667 = vmul.f32 %v4663, 0.17677669
        %4669 = vrot.lane.b32.xlu0 %v4665, 120
        %v4670 = vpop.permute.xlu0 %4669
        %4672 = vrot.lane.b32.xlu0 %v4661, 88
        %v4673 = vpop.permute.xlu0 %4672
        %v4674 = vsel %vm1189, %v4670, 0
        %v4676 = vsel %vm1189, %v4673, 0
        %4678 = vmatpush.xpose.msra.mxu0 0.0
        %4679 = vmatpush.xpose.msra.mxu0 0.0
        %4680 = vmatpush.xpose.msra.mxu0 0.0
        %4681 = vmatpush.xpose.msra.mxu0 0.0
        %4682 = vmatpush.xpose.msra.mxu0 0.0
        %4683 = vmatpush.xpose.msra.mxu0 0.0
        %4684 = vmatpush.xpose.msra.mxu0 0.0
        %4685 = vmatpush.xpose.msra.mxu0 0.0
        %4686 = vmatpush.xpose.msra.mxu0 0.0
        %4687 = vmatpush.xpose.msra.mxu0 0.0
        %4688 = vmatpush.xpose.msra.mxu0 0.0
        %4689 = vmatpush.xpose.msra.mxu0 0.0
        %4690 = vmatpush.xpose.msra.mxu0 0.0
        %4691 = vmatpush.xpose.msra.mxu0 0.0
        %4692 = vmatpush.xpose.msra.mxu0 0.0
        %4693 = vmatpush.xpose.msra.mxu0 %v4676
        %4694 = vmatmul.f32.gmra.mxu0 %v4674
        %v4695 = vpop.f32.mrf.mxu0
        %v4696 = vadd.f32 0.0, %v4695
        %4697 = vdwg.mxu0
        %4699 = vrot.lane.b32.xlu0 %v4664, 120
        %v4700 = vpop.permute.xlu0 %4699
        %4702 = vrot.lane.b32.xlu0 %v4660, 88
        %v4703 = vpop.permute.xlu0 %4702
        %v4704 = vsel %vm1189, %v4700, 0
        %v4706 = vsel %vm1189, %v4703, 0
        %4708 = vmatpush.xpose.msra.mxu0 0.0
        %4709 = vmatpush.xpose.msra.mxu0 0.0
        %4710 = vmatpush.xpose.msra.mxu0 0.0
        %4711 = vmatpush.xpose.msra.mxu0 0.0
        %4712 = vmatpush.xpose.msra.mxu0 0.0
        %4713 = vmatpush.xpose.msra.mxu0 0.0
        %4714 = vmatpush.xpose.msra.mxu0 0.0
        %4715 = vmatpush.xpose.msra.mxu0 0.0
        %4716 = vmatpush.xpose.msra.mxu0 0.0
        %4717 = vmatpush.xpose.msra.mxu0 0.0
        %4718 = vmatpush.xpose.msra.mxu0 0.0
        %4719 = vmatpush.xpose.msra.mxu0 0.0
        %4720 = vmatpush.xpose.msra.mxu0 0.0
        %4721 = vmatpush.xpose.msra.mxu0 0.0
        %4722 = vmatpush.xpose.msra.mxu0 0.0
        %4723 = vmatpush.xpose.msra.mxu0 %v4706
        %4724 = vmatmul.f32.gmra.mxu0 %v4704
        %v4725 = vpop.f32.mrf.mxu0
        %v4726 = vadd.f32 %v4696, %v4725
        %4727 = vdwg.mxu0
        %4729 = vrot.lane.b32.xlu0 %v4666, 120
        %v4730 = vpop.permute.xlu0 %4729
        %4732 = vrot.lane.b32.xlu0 %v4662, 88
        %v4733 = vpop.permute.xlu0 %4732
        %v4734 = vsel %vm1189, %v4730, 0
        %v4736 = vsel %vm1189, %v4733, 0
        %4738 = vmatpush.xpose.msra.mxu0 0.0
        %4739 = vmatpush.xpose.msra.mxu0 0.0
        %4740 = vmatpush.xpose.msra.mxu0 0.0
        %4741 = vmatpush.xpose.msra.mxu0 0.0
        %4742 = vmatpush.xpose.msra.mxu0 0.0
        %4743 = vmatpush.xpose.msra.mxu0 0.0
        %4744 = vmatpush.xpose.msra.mxu0 0.0
        %4745 = vmatpush.xpose.msra.mxu0 0.0
        %4746 = vmatpush.xpose.msra.mxu0 0.0
        %4747 = vmatpush.xpose.msra.mxu0 0.0
        %4748 = vmatpush.xpose.msra.mxu0 0.0
        %4749 = vmatpush.xpose.msra.mxu0 0.0
        %4750 = vmatpush.xpose.msra.mxu0 0.0
        %4751 = vmatpush.xpose.msra.mxu0 0.0
        %4752 = vmatpush.xpose.msra.mxu0 0.0
        %4753 = vmatpush.xpose.msra.mxu0 %v4736
        %4754 = vmatmul.f32.gmra.mxu0 %v4734
        %v4755 = vpop.f32.mrf.mxu0
        %v4756 = vadd.f32 0.0, %v4755
        %4757 = vdwg.mxu0
        %v4758 = vadd.f32 %v4726, %v4756
        %4760 = vrot.lane.b32.xlu0 %v4667, 120
        %v4761 = vpop.permute.xlu0 %4760
        %4763 = vrot.lane.b32.xlu0 %v4663, 88
        %v4764 = vpop.permute.xlu0 %4763
        %v4765 = vsel %vm1189, %v4761, 0
        %v4767 = vsel %vm1189, %v4764, 0
        %4769 = vmatpush.xpose.msra.mxu0 0.0
        %4770 = vmatpush.xpose.msra.mxu0 0.0
        %4771 = vmatpush.xpose.msra.mxu0 0.0
        %4772 = vmatpush.xpose.msra.mxu0 0.0
        %4773 = vmatpush.xpose.msra.mxu0 0.0
        %4774 = vmatpush.xpose.msra.mxu0 0.0
        %4775 = vmatpush.xpose.msra.mxu0 0.0
        %4776 = vmatpush.xpose.msra.mxu0 0.0
        %4777 = vmatpush.xpose.msra.mxu0 0.0
        %4778 = vmatpush.xpose.msra.mxu0 0.0
        %4779 = vmatpush.xpose.msra.mxu0 0.0
        %4780 = vmatpush.xpose.msra.mxu0 0.0
        %4781 = vmatpush.xpose.msra.mxu0 0.0
        %4782 = vmatpush.xpose.msra.mxu0 0.0
        %4783 = vmatpush.xpose.msra.mxu0 0.0
        %4784 = vmatpush.xpose.msra.mxu0 %v4767
        %4785 = vmatmul.f32.gmra.mxu0 %v4765
        %v4786 = vpop.f32.mrf.mxu0
        %v4787 = vadd.f32 0.0, %v4786
        %4788 = vdwg.mxu0
        %v4789 = vadd.f32 %v4758, %v4787
        %v4790 = vsel %vm1189, %v4789, -inf
        %4791 = vmax.xlane.f32.xlu0 %v4790
        %v4792 = vpop.xlane.xlu0 %4791
        %v4793 = vsub.f32 %v4789, %v4792
        %v4794 = vmul.f32 %v4793, 1.442695
        %v4795 = vpow.pop %v4794
        %v4796 = vsel %vm1189, %v4795, 0.0
        %4797 = vadd.xlane.f32.xlu0 %v4796
        %v4798 = vpop.xlane.xlu0 %4797
        %v4799 = vrcp.pop %v4798
        %v4800 = vmul.f32 %v4798, %v4799
        %v4801 = vsub.f32 1.0, %v4800
        %v4802 = vmul.f32 %v4799, %v4801
        %v4803 = vadd.f32 %v4799, %v4802
        %vm4804 = vweird.f32 %v4798
        %vm4805 = vweird.f32 %v4799
        %vm4806 = vmor %vm4804, %vm4805
        %v4807 = vsel %vm4806, %v4799, %v4803
        %v4808 = vand.u32 2147483647, %v4798
        %vm4809 = vcmp.eq.f32.partialorder %v4808, 8.507059e+37
        %v4810 = vand.u32 %v4798, 2147483648
        %v4811 = vor.u32 1.1754944e-38, %v4810
        %v4812 = vsel %vm4809, %v4811, %v4807
        %v4813 = vmul.f32 %v4795, %v4812
        %4814 = vrot.lane.b32.xlu0 %v4660, 56
        %v4815 = vpop.permute.xlu0 %4814
        %v4818 = vsel %vm1189, %v4813, 0
        %4820 = vmatpush.msra.mxu0 0.0
        %4821 = vmatpush.msra.mxu0 0.0
        %4822 = vmatpush.msra.mxu0 0.0
        %4823 = vmatpush.msra.mxu0 0.0
        %4824 = vmatpush.msra.mxu0 0.0
        %4825 = vmatpush.msra.mxu0 0.0
        %4826 = vmatpush.msra.mxu0 0.0
        %4827 = vmatpush.msra.mxu0 0.0
        %4828 = vmatpush.msra.mxu0 0.0
        %4829 = vmatpush.msra.mxu0 0.0
        %4830 = vmatpush.msra.mxu0 0.0
        %4831 = vmatpush.msra.mxu0 0.0
        %4832 = vmatpush.msra.mxu0 0.0
        %4833 = vmatpush.msra.mxu0 0.0
        %4834 = vmatpush.msra.mxu0 0.0
        %4835 = vmatpush.msra.mxu0 %v4815
        %4836 = vmatmul.f32.gmra.mxu0 %v4818
        %v4837 = vpop.f32.mrf.mxu0
        %v4838 = vadd.f32 0.0, %v4837
        %4839 = vdwg.mxu0
        %4841 = vrot.lane.b32.xlu0 %v4838, 8
        %v4842 = vpop.permute.xlu0 %4841
        %4844 = vst.msk [vmem:[#allocation2] sm:$0xff] %vm1611, %v4842
        %4845 = vrot.lane.b32.xlu0 %v4661, 56
        %v4846 = vpop.permute.xlu0 %4845
        %4848 = vmatpush.msra.mxu0 0.0
        %4849 = vmatpush.msra.mxu0 0.0
        %4850 = vmatpush.msra.mxu0 0.0
        %4851 = vmatpush.msra.mxu0 0.0
        %4852 = vmatpush.msra.mxu0 0.0
        %4853 = vmatpush.msra.mxu0 0.0
        %4854 = vmatpush.msra.mxu0 0.0
        %4855 = vmatpush.msra.mxu0 0.0
        %4856 = vmatpush.msra.mxu0 0.0
        %4857 = vmatpush.msra.mxu0 0.0
        %4858 = vmatpush.msra.mxu0 0.0
        %4859 = vmatpush.msra.mxu0 0.0
        %4860 = vmatpush.msra.mxu0 0.0
        %4861 = vmatpush.msra.mxu0 0.0
        %4862 = vmatpush.msra.mxu0 0.0
        %4863 = vmatpush.msra.mxu0 %v4846
        %4864 = vmatmul.f32.gmra.mxu0 %v4818
        %v4865 = vpop.f32.mrf.mxu0
        %v4866 = vadd.f32 0.0, %v4865
        %4867 = vdwg.mxu0
        %4869 = vrot.lane.b32.xlu0 %v4866, 8
        %v4870 = vpop.permute.xlu0 %4869
        %4872 = vst.msk [vmem:[%s1375] sm:$0xff] %vm1611, %v4870
        %4873 = vrot.lane.b32.xlu0 %v4662, 56
        %v4874 = vpop.permute.xlu0 %4873
        %4876 = vmatpush.msra.mxu0 0.0
        %4877 = vmatpush.msra.mxu0 0.0
        %4878 = vmatpush.msra.mxu0 0.0
        %4879 = vmatpush.msra.mxu0 0.0
        %4880 = vmatpush.msra.mxu0 0.0
        %4881 = vmatpush.msra.mxu0 0.0
        %4882 = vmatpush.msra.mxu0 0.0
        %4883 = vmatpush.msra.mxu0 0.0
        %4884 = vmatpush.msra.mxu0 0.0
        %4885 = vmatpush.msra.mxu0 0.0
        %4886 = vmatpush.msra.mxu0 0.0
        %4887 = vmatpush.msra.mxu0 0.0
        %4888 = vmatpush.msra.mxu0 0.0
        %4889 = vmatpush.msra.mxu0 0.0
        %4890 = vmatpush.msra.mxu0 0.0
        %4891 = vmatpush.msra.mxu0 %v4874
        %4892 = vmatmul.f32.gmra.mxu0 %v4818
        %v4893 = vpop.f32.mrf.mxu0
        %v4894 = vadd.f32 0.0, %v4893
        %4895 = vdwg.mxu0
        %4897 = vrot.lane.b32.xlu0 %v4894, 8
        %v4898 = vpop.permute.xlu0 %4897
        %4900 = vst.msk [vmem:[%s1400] sm:$0xff] %vm1611, %v4898
        %4901 = vrot.lane.b32.xlu0 %v4663, 56
        %v4902 = vpop.permute.xlu0 %4901
        %4904 = vmatpush.msra.mxu0 0.0
        %4905 = vmatpush.msra.mxu0 0.0
        %4906 = vmatpush.msra.mxu0 0.0
        %4907 = vmatpush.msra.mxu0 0.0
        %4908 = vmatpush.msra.mxu0 0.0
        %4909 = vmatpush.msra.mxu0 0.0
        %4910 = vmatpush.msra.mxu0 0.0
        %4911 = vmatpush.msra.mxu0 0.0
        %4912 = vmatpush.msra.mxu0 0.0
        %4913 = vmatpush.msra.mxu0 0.0
        %4914 = vmatpush.msra.mxu0 0.0
        %4915 = vmatpush.msra.mxu0 0.0
        %4916 = vmatpush.msra.mxu0 0.0
        %4917 = vmatpush.msra.mxu0 0.0
        %4918 = vmatpush.msra.mxu0 0.0
        %4919 = vmatpush.msra.mxu0 %v4902
        %4920 = vmatmul.f32.gmra.mxu0 %v4818
        %v4921 = vpop.f32.mrf.mxu0
        %v4922 = vadd.f32 0.0, %v4921
        %4923 = vdwg.mxu0
        %4925 = vrot.lane.b32.xlu0 %v4922, 8
        %v4926 = vpop.permute.xlu0 %4925
        %4928 = vst.msk [vmem:[%s1425] sm:$0xff] %vm1611, %v4926
        %v4929 = vld [vmem:[#allocation3] sm:$0xff]
        %v4930 = vld [vmem:[#allocation3 + $0x8] sm:$0xff]
        %v4931 = vld [vmem:[#allocation3 + $0x10] sm:$0xff]
        %v4932 = vld [vmem:[#allocation3 + $0x18] sm:$0xff]
        %v4933 = vmul.f32 %v4929, 0.17677669
        %v4934 = vmul.f32 %v4930, 0.17677669
        %v4935 = vmul.f32 %v4931, 0.17677669
        %v4936 = vmul.f32 %v4932, 0.17677669
        %4938 = vrot.lane.b32.xlu0 %v4934, 112
        %v4939 = vpop.permute.xlu0 %4938
        %4941 = vrot.lane.b32.xlu0 %v4930, 80
        %v4942 = vpop.permute.xlu0 %4941
        %v4943 = vsel %vm1189, %v4939, 0
        %v4945 = vsel %vm1189, %v4942, 0
        %4947 = vmatpush.xpose.msra.mxu0 0.0
        %4948 = vmatpush.xpose.msra.mxu0 0.0
        %4949 = vmatpush.xpose.msra.mxu0 0.0
        %4950 = vmatpush.xpose.msra.mxu0 0.0
        %4951 = vmatpush.xpose.msra.mxu0 0.0
        %4952 = vmatpush.xpose.msra.mxu0 0.0
        %4953 = vmatpush.xpose.msra.mxu0 0.0
        %4954 = vmatpush.xpose.msra.mxu0 0.0
        %4955 = vmatpush.xpose.msra.mxu0 0.0
        %4956 = vmatpush.xpose.msra.mxu0 0.0
        %4957 = vmatpush.xpose.msra.mxu0 0.0
        %4958 = vmatpush.xpose.msra.mxu0 0.0
        %4959 = vmatpush.xpose.msra.mxu0 0.0
        %4960 = vmatpush.xpose.msra.mxu0 0.0
        %4961 = vmatpush.xpose.msra.mxu0 0.0
        %4962 = vmatpush.xpose.msra.mxu0 %v4945
        %4963 = vmatmul.f32.gmra.mxu0 %v4943
        %v4964 = vpop.f32.mrf.mxu0
        %v4965 = vadd.f32 0.0, %v4964
        %4966 = vdwg.mxu0
        %4968 = vrot.lane.b32.xlu0 %v4933, 112
        %v4969 = vpop.permute.xlu0 %4968
        %4971 = vrot.lane.b32.xlu0 %v4929, 80
        %v4972 = vpop.permute.xlu0 %4971
        %v4973 = vsel %vm1189, %v4969, 0
        %v4975 = vsel %vm1189, %v4972, 0
        %4977 = vmatpush.xpose.msra.mxu0 0.0
        %4978 = vmatpush.xpose.msra.mxu0 0.0
        %4979 = vmatpush.xpose.msra.mxu0 0.0
        %4980 = vmatpush.xpose.msra.mxu0 0.0
        %4981 = vmatpush.xpose.msra.mxu0 0.0
        %4982 = vmatpush.xpose.msra.mxu0 0.0
        %4983 = vmatpush.xpose.msra.mxu0 0.0
        %4984 = vmatpush.xpose.msra.mxu0 0.0
        %4985 = vmatpush.xpose.msra.mxu0 0.0
        %4986 = vmatpush.xpose.msra.mxu0 0.0
        %4987 = vmatpush.xpose.msra.mxu0 0.0
        %4988 = vmatpush.xpose.msra.mxu0 0.0
        %4989 = vmatpush.xpose.msra.mxu0 0.0
        %4990 = vmatpush.xpose.msra.mxu0 0.0
        %4991 = vmatpush.xpose.msra.mxu0 0.0
        %4992 = vmatpush.xpose.msra.mxu0 %v4975
        %4993 = vmatmul.f32.gmra.mxu0 %v4973
        %v4994 = vpop.f32.mrf.mxu0
        %v4995 = vadd.f32 %v4965, %v4994
        %4996 = vdwg.mxu0
        %4998 = vrot.lane.b32.xlu0 %v4935, 112
        %v4999 = vpop.permute.xlu0 %4998
        %5001 = vrot.lane.b32.xlu0 %v4931, 80
        %v5002 = vpop.permute.xlu0 %5001
        %v5003 = vsel %vm1189, %v4999, 0
        %v5005 = vsel %vm1189, %v5002, 0
        %5007 = vmatpush.xpose.msra.mxu0 0.0
        %5008 = vmatpush.xpose.msra.mxu0 0.0
        %5009 = vmatpush.xpose.msra.mxu0 0.0
        %5010 = vmatpush.xpose.msra.mxu0 0.0
        %5011 = vmatpush.xpose.msra.mxu0 0.0
        %5012 = vmatpush.xpose.msra.mxu0 0.0
        %5013 = vmatpush.xpose.msra.mxu0 0.0
        %5014 = vmatpush.xpose.msra.mxu0 0.0
        %5015 = vmatpush.xpose.msra.mxu0 0.0
        %5016 = vmatpush.xpose.msra.mxu0 0.0
        %5017 = vmatpush.xpose.msra.mxu0 0.0
        %5018 = vmatpush.xpose.msra.mxu0 0.0
        %5019 = vmatpush.xpose.msra.mxu0 0.0
        %5020 = vmatpush.xpose.msra.mxu0 0.0
        %5021 = vmatpush.xpose.msra.mxu0 0.0
        %5022 = vmatpush.xpose.msra.mxu0 %v5005
        %5023 = vmatmul.f32.gmra.mxu0 %v5003
        %v5024 = vpop.f32.mrf.mxu0
        %v5025 = vadd.f32 0.0, %v5024
        %5026 = vdwg.mxu0
        %v5027 = vadd.f32 %v4995, %v5025
        %5029 = vrot.lane.b32.xlu0 %v4936, 112
        %v5030 = vpop.permute.xlu0 %5029
        %5032 = vrot.lane.b32.xlu0 %v4932, 80
        %v5033 = vpop.permute.xlu0 %5032
        %v5034 = vsel %vm1189, %v5030, 0
        %v5036 = vsel %vm1189, %v5033, 0
        %5038 = vmatpush.xpose.msra.mxu0 0.0
        %5039 = vmatpush.xpose.msra.mxu0 0.0
        %5040 = vmatpush.xpose.msra.mxu0 0.0
        %5041 = vmatpush.xpose.msra.mxu0 0.0
        %5042 = vmatpush.xpose.msra.mxu0 0.0
        %5043 = vmatpush.xpose.msra.mxu0 0.0
        %5044 = vmatpush.xpose.msra.mxu0 0.0
        %5045 = vmatpush.xpose.msra.mxu0 0.0
        %5046 = vmatpush.xpose.msra.mxu0 0.0
        %5047 = vmatpush.xpose.msra.mxu0 0.0
        %5048 = vmatpush.xpose.msra.mxu0 0.0
        %5049 = vmatpush.xpose.msra.mxu0 0.0
        %5050 = vmatpush.xpose.msra.mxu0 0.0
        %5051 = vmatpush.xpose.msra.mxu0 0.0
        %5052 = vmatpush.xpose.msra.mxu0 0.0
        %5053 = vmatpush.xpose.msra.mxu0 %v5036
        %5054 = vmatmul.f32.gmra.mxu0 %v5034
        %v5055 = vpop.f32.mrf.mxu0
        %v5056 = vadd.f32 0.0, %v5055
        %5057 = vdwg.mxu0
        %v5058 = vadd.f32 %v5027, %v5056
        %v5059 = vsel %vm1189, %v5058, -inf
        %5060 = vmax.xlane.f32.xlu0 %v5059
        %v5061 = vpop.xlane.xlu0 %5060
        %v5062 = vsub.f32 %v5058, %v5061
        %v5063 = vmul.f32 %v5062, 1.442695
        %v5064 = vpow.pop %v5063
        %v5065 = vsel %vm1189, %v5064, 0.0
        %5066 = vadd.xlane.f32.xlu0 %v5065
        %v5067 = vpop.xlane.xlu0 %5066
        %v5068 = vrcp.pop %v5067
        %v5069 = vmul.f32 %v5067, %v5068
        %v5070 = vsub.f32 1.0, %v5069
        %v5071 = vmul.f32 %v5068, %v5070
        %v5072 = vadd.f32 %v5068, %v5071
        %vm5073 = vweird.f32 %v5067
        %vm5074 = vweird.f32 %v5068
        %vm5075 = vmor %vm5073, %vm5074
        %v5076 = vsel %vm5075, %v5068, %v5072
        %v5077 = vand.u32 2147483647, %v5067
        %vm5078 = vcmp.eq.f32.partialorder %v5077, 8.507059e+37
        %v5079 = vand.u32 %v5067, 2147483648
        %v5080 = vor.u32 1.1754944e-38, %v5079
        %v5081 = vsel %vm5078, %v5080, %v5076
        %v5082 = vmul.f32 %v5064, %v5081
        %5083 = vrot.lane.b32.xlu0 %v4929, 48
        %v5084 = vpop.permute.xlu0 %5083
        %v5087 = vsel %vm1189, %v5082, 0
        %5089 = vmatpush.msra.mxu0 0.0
        %5090 = vmatpush.msra.mxu0 0.0
        %5091 = vmatpush.msra.mxu0 0.0
        %5092 = vmatpush.msra.mxu0 0.0
        %5093 = vmatpush.msra.mxu0 0.0
        %5094 = vmatpush.msra.mxu0 0.0
        %5095 = vmatpush.msra.mxu0 0.0
        %5096 = vmatpush.msra.mxu0 0.0
        %5097 = vmatpush.msra.mxu0 0.0
        %5098 = vmatpush.msra.mxu0 0.0
        %5099 = vmatpush.msra.mxu0 0.0
        %5100 = vmatpush.msra.mxu0 0.0
        %5101 = vmatpush.msra.mxu0 0.0
        %5102 = vmatpush.msra.mxu0 0.0
        %5103 = vmatpush.msra.mxu0 0.0
        %5104 = vmatpush.msra.mxu0 %v5084
        %5105 = vmatmul.f32.gmra.mxu0 %v5087
        %v5106 = vpop.f32.mrf.mxu0
        %v5107 = vadd.f32 0.0, %v5106
        %5108 = vdwg.mxu0
        %5110 = vrot.lane.b32.xlu0 %v5107, 16
        %v5111 = vpop.permute.xlu0 %5110
        %5113 = vst.msk [vmem:[#allocation2] sm:$0xff] %vm1881, %v5111
        %5114 = vrot.lane.b32.xlu0 %v4930, 48
        %v5115 = vpop.permute.xlu0 %5114
        %5117 = vmatpush.msra.mxu0 0.0
        %5118 = vmatpush.msra.mxu0 0.0
        %5119 = vmatpush.msra.mxu0 0.0
        %5120 = vmatpush.msra.mxu0 0.0
        %5121 = vmatpush.msra.mxu0 0.0
        %5122 = vmatpush.msra.mxu0 0.0
        %5123 = vmatpush.msra.mxu0 0.0
        %5124 = vmatpush.msra.mxu0 0.0
        %5125 = vmatpush.msra.mxu0 0.0
        %5126 = vmatpush.msra.mxu0 0.0
        %5127 = vmatpush.msra.mxu0 0.0
        %5128 = vmatpush.msra.mxu0 0.0
        %5129 = vmatpush.msra.mxu0 0.0
        %5130 = vmatpush.msra.mxu0 0.0
        %5131 = vmatpush.msra.mxu0 0.0
        %5132 = vmatpush.msra.mxu0 %v5115
        %5133 = vmatmul.f32.gmra.mxu0 %v5087
        %v5134 = vpop.f32.mrf.mxu0
        %v5135 = vadd.f32 0.0, %v5134
        %5136 = vdwg.mxu0
        %5138 = vrot.lane.b32.xlu0 %v5135, 16
        %v5139 = vpop.permute.xlu0 %5138
        %5141 = vst.msk [vmem:[%s1375] sm:$0xff] %vm1881, %v5139
        %5142 = vrot.lane.b32.xlu0 %v4931, 48
        %v5143 = vpop.permute.xlu0 %5142
        %5145 = vmatpush.msra.mxu0 0.0
        %5146 = vmatpush.msra.mxu0 0.0
        %5147 = vmatpush.msra.mxu0 0.0
        %5148 = vmatpush.msra.mxu0 0.0
        %5149 = vmatpush.msra.mxu0 0.0
        %5150 = vmatpush.msra.mxu0 0.0
        %5151 = vmatpush.msra.mxu0 0.0
        %5152 = vmatpush.msra.mxu0 0.0
        %5153 = vmatpush.msra.mxu0 0.0
        %5154 = vmatpush.msra.mxu0 0.0
        %5155 = vmatpush.msra.mxu0 0.0
        %5156 = vmatpush.msra.mxu0 0.0
        %5157 = vmatpush.msra.mxu0 0.0
        %5158 = vmatpush.msra.mxu0 0.0
        %5159 = vmatpush.msra.mxu0 0.0
        %5160 = vmatpush.msra.mxu0 %v5143
        %5161 = vmatmul.f32.gmra.mxu0 %v5087
        %v5162 = vpop.f32.mrf.mxu0
        %v5163 = vadd.f32 0.0, %v5162
        %5164 = vdwg.mxu0
        %5166 = vrot.lane.b32.xlu0 %v5163, 16
        %v5167 = vpop.permute.xlu0 %5166
        %5169 = vst.msk [vmem:[%s1400] sm:$0xff] %vm1881, %v5167
        %5170 = vrot.lane.b32.xlu0 %v4932, 48
        %v5171 = vpop.permute.xlu0 %5170
        %5173 = vmatpush.msra.mxu0 0.0
        %5174 = vmatpush.msra.mxu0 0.0
        %5175 = vmatpush.msra.mxu0 0.0
        %5176 = vmatpush.msra.mxu0 0.0
        %5177 = vmatpush.msra.mxu0 0.0
        %5178 = vmatpush.msra.mxu0 0.0
        %5179 = vmatpush.msra.mxu0 0.0
        %5180 = vmatpush.msra.mxu0 0.0
        %5181 = vmatpush.msra.mxu0 0.0
        %5182 = vmatpush.msra.mxu0 0.0
        %5183 = vmatpush.msra.mxu0 0.0
        %5184 = vmatpush.msra.mxu0 0.0
        %5185 = vmatpush.msra.mxu0 0.0
        %5186 = vmatpush.msra.mxu0 0.0
        %5187 = vmatpush.msra.mxu0 0.0
        %5188 = vmatpush.msra.mxu0 %v5171
        %5189 = vmatmul.f32.gmra.mxu0 %v5087
        %v5190 = vpop.f32.mrf.mxu0
        %v5191 = vadd.f32 0.0, %v5190
        %5192 = vdwg.mxu0
        %5194 = vrot.lane.b32.xlu0 %v5191, 16
        %v5195 = vpop.permute.xlu0 %5194
        %5197 = vst.msk [vmem:[%s1425] sm:$0xff] %vm1881, %v5195
        %v5198 = vld [vmem:[#allocation3] sm:$0xff]
        %v5199 = vld [vmem:[#allocation3 + $0x8] sm:$0xff]
        %v5200 = vld [vmem:[#allocation3 + $0x10] sm:$0xff]
        %v5201 = vld [vmem:[#allocation3 + $0x18] sm:$0xff]
        %v5202 = vmul.f32 %v5198, 0.17677669
        %v5203 = vmul.f32 %v5199, 0.17677669
        %v5204 = vmul.f32 %v5200, 0.17677669
        %v5205 = vmul.f32 %v5201, 0.17677669
        %5207 = vrot.lane.b32.xlu0 %v5203, 104
        %v5208 = vpop.permute.xlu0 %5207
        %5210 = vrot.lane.b32.xlu0 %v5199, 72
        %v5211 = vpop.permute.xlu0 %5210
        %v5212 = vsel %vm1189, %v5208, 0
        %v5214 = vsel %vm1189, %v5211, 0
        %5216 = vmatpush.xpose.msra.mxu0 0.0
        %5217 = vmatpush.xpose.msra.mxu0 0.0
        %5218 = vmatpush.xpose.msra.mxu0 0.0
        %5219 = vmatpush.xpose.msra.mxu0 0.0
        %5220 = vmatpush.xpose.msra.mxu0 0.0
        %5221 = vmatpush.xpose.msra.mxu0 0.0
        %5222 = vmatpush.xpose.msra.mxu0 0.0
        %5223 = vmatpush.xpose.msra.mxu0 0.0
        %5224 = vmatpush.xpose.msra.mxu0 0.0
        %5225 = vmatpush.xpose.msra.mxu0 0.0
        %5226 = vmatpush.xpose.msra.mxu0 0.0
        %5227 = vmatpush.xpose.msra.mxu0 0.0
        %5228 = vmatpush.xpose.msra.mxu0 0.0
        %5229 = vmatpush.xpose.msra.mxu0 0.0
        %5230 = vmatpush.xpose.msra.mxu0 0.0
        %5231 = vmatpush.xpose.msra.mxu0 %v5214
        %5232 = vmatmul.f32.gmra.mxu0 %v5212
        %v5233 = vpop.f32.mrf.mxu0
        %v5234 = vadd.f32 0.0, %v5233
        %5235 = vdwg.mxu0
        %5237 = vrot.lane.b32.xlu0 %v5202, 104
        %v5238 = vpop.permute.xlu0 %5237
        %5240 = vrot.lane.b32.xlu0 %v5198, 72
        %v5241 = vpop.permute.xlu0 %5240
        %v5242 = vsel %vm1189, %v5238, 0
        %v5244 = vsel %vm1189, %v5241, 0
        %5246 = vmatpush.xpose.msra.mxu0 0.0
        %5247 = vmatpush.xpose.msra.mxu0 0.0
        %5248 = vmatpush.xpose.msra.mxu0 0.0
        %5249 = vmatpush.xpose.msra.mxu0 0.0
        %5250 = vmatpush.xpose.msra.mxu0 0.0
        %5251 = vmatpush.xpose.msra.mxu0 0.0
        %5252 = vmatpush.xpose.msra.mxu0 0.0
        %5253 = vmatpush.xpose.msra.mxu0 0.0
        %5254 = vmatpush.xpose.msra.mxu0 0.0
        %5255 = vmatpush.xpose.msra.mxu0 0.0
        %5256 = vmatpush.xpose.msra.mxu0 0.0
        %5257 = vmatpush.xpose.msra.mxu0 0.0
        %5258 = vmatpush.xpose.msra.mxu0 0.0
        %5259 = vmatpush.xpose.msra.mxu0 0.0
        %5260 = vmatpush.xpose.msra.mxu0 0.0
        %5261 = vmatpush.xpose.msra.mxu0 %v5244
        %5262 = vmatmul.f32.gmra.mxu0 %v5242
        %v5263 = vpop.f32.mrf.mxu0
        %v5264 = vadd.f32 %v5234, %v5263
        %5265 = vdwg.mxu0
        %5267 = vrot.lane.b32.xlu0 %v5204, 104
        %v5268 = vpop.permute.xlu0 %5267
        %5270 = vrot.lane.b32.xlu0 %v5200, 72
        %v5271 = vpop.permute.xlu0 %5270
        %v5272 = vsel %vm1189, %v5268, 0
        %v5274 = vsel %vm1189, %v5271, 0
        %5276 = vmatpush.xpose.msra.mxu0 0.0
        %5277 = vmatpush.xpose.msra.mxu0 0.0
        %5278 = vmatpush.xpose.msra.mxu0 0.0
        %5279 = vmatpush.xpose.msra.mxu0 0.0
        %5280 = vmatpush.xpose.msra.mxu0 0.0
        %5281 = vmatpush.xpose.msra.mxu0 0.0
        %5282 = vmatpush.xpose.msra.mxu0 0.0
        %5283 = vmatpush.xpose.msra.mxu0 0.0
        %5284 = vmatpush.xpose.msra.mxu0 0.0
        %5285 = vmatpush.xpose.msra.mxu0 0.0
        %5286 = vmatpush.xpose.msra.mxu0 0.0
        %5287 = vmatpush.xpose.msra.mxu0 0.0
        %5288 = vmatpush.xpose.msra.mxu0 0.0
        %5289 = vmatpush.xpose.msra.mxu0 0.0
        %5290 = vmatpush.xpose.msra.mxu0 0.0
        %5291 = vmatpush.xpose.msra.mxu0 %v5274
        %5292 = vmatmul.f32.gmra.mxu0 %v5272
        %v5293 = vpop.f32.mrf.mxu0
        %v5294 = vadd.f32 0.0, %v5293
        %5295 = vdwg.mxu0
        %v5296 = vadd.f32 %v5264, %v5294
        %5298 = vrot.lane.b32.xlu0 %v5205, 104
        %v5299 = vpop.permute.xlu0 %5298
        %5301 = vrot.lane.b32.xlu0 %v5201, 72
        %v5302 = vpop.permute.xlu0 %5301
        %v5303 = vsel %vm1189, %v5299, 0
        %v5305 = vsel %vm1189, %v5302, 0
        %5307 = vmatpush.xpose.msra.mxu0 0.0
        %5308 = vmatpush.xpose.msra.mxu0 0.0
        %5309 = vmatpush.xpose.msra.mxu0 0.0
        %5310 = vmatpush.xpose.msra.mxu0 0.0
        %5311 = vmatpush.xpose.msra.mxu0 0.0
        %5312 = vmatpush.xpose.msra.mxu0 0.0
        %5313 = vmatpush.xpose.msra.mxu0 0.0
        %5314 = vmatpush.xpose.msra.mxu0 0.0
        %5315 = vmatpush.xpose.msra.mxu0 0.0
        %5316 = vmatpush.xpose.msra.mxu0 0.0
        %5317 = vmatpush.xpose.msra.mxu0 0.0
        %5318 = vmatpush.xpose.msra.mxu0 0.0
        %5319 = vmatpush.xpose.msra.mxu0 0.0
        %5320 = vmatpush.xpose.msra.mxu0 0.0
        %5321 = vmatpush.xpose.msra.mxu0 0.0
        %5322 = vmatpush.xpose.msra.mxu0 %v5305
        %5323 = vmatmul.f32.gmra.mxu0 %v5303
        %v5324 = vpop.f32.mrf.mxu0
        %v5325 = vadd.f32 0.0, %v5324
        %5326 = vdwg.mxu0
        %v5327 = vadd.f32 %v5296, %v5325
        %v5328 = vsel %vm1189, %v5327, -inf
        %5329 = vmax.xlane.f32.xlu0 %v5328
        %v5330 = vpop.xlane.xlu0 %5329
        %v5331 = vsub.f32 %v5327, %v5330
        %v5332 = vmul.f32 %v5331, 1.442695
        %v5333 = vpow.pop %v5332
        %v5334 = vsel %vm1189, %v5333, 0.0
        %5335 = vadd.xlane.f32.xlu0 %v5334
        %v5336 = vpop.xlane.xlu0 %5335
        %v5337 = vrcp.pop %v5336
        %v5338 = vmul.f32 %v5336, %v5337
        %v5339 = vsub.f32 1.0, %v5338
        %v5340 = vmul.f32 %v5337, %v5339
        %v5341 = vadd.f32 %v5337, %v5340
        %vm5342 = vweird.f32 %v5336
        %vm5343 = vweird.f32 %v5337
        %vm5344 = vmor %vm5342, %vm5343
        %v5345 = vsel %vm5344, %v5337, %v5341
        %v5346 = vand.u32 2147483647, %v5336
        %vm5347 = vcmp.eq.f32.partialorder %v5346, 8.507059e+37
        %v5348 = vand.u32 %v5336, 2147483648
        %v5349 = vor.u32 1.1754944e-38, %v5348
        %v5350 = vsel %vm5347, %v5349, %v5345
        %v5351 = vmul.f32 %v5333, %v5350
        %5352 = vrot.lane.b32.xlu0 %v5198, 40
        %v5353 = vpop.permute.xlu0 %5352
        %v5356 = vsel %vm1189, %v5351, 0
        %5358 = vmatpush.msra.mxu0 0.0
        %5359 = vmatpush.msra.mxu0 0.0
        %5360 = vmatpush.msra.mxu0 0.0
        %5361 = vmatpush.msra.mxu0 0.0
        %5362 = vmatpush.msra.mxu0 0.0
        %5363 = vmatpush.msra.mxu0 0.0
        %5364 = vmatpush.msra.mxu0 0.0
        %5365 = vmatpush.msra.mxu0 0.0
        %5366 = vmatpush.msra.mxu0 0.0
        %5367 = vmatpush.msra.mxu0 0.0
        %5368 = vmatpush.msra.mxu0 0.0
        %5369 = vmatpush.msra.mxu0 0.0
        %5370 = vmatpush.msra.mxu0 0.0
        %5371 = vmatpush.msra.mxu0 0.0
        %5372 = vmatpush.msra.mxu0 0.0
        %5373 = vmatpush.msra.mxu0 %v5353
        %5374 = vmatmul.f32.gmra.mxu0 %v5356
        %v5375 = vpop.f32.mrf.mxu0
        %v5376 = vadd.f32 0.0, %v5375
        %5377 = vdwg.mxu0
        %5379 = vrot.lane.b32.xlu0 %v5376, 24
        %v5380 = vpop.permute.xlu0 %5379
        %5382 = vst.msk [vmem:[#allocation2] sm:$0xff] %vm2151, %v5380
        %5383 = vrot.lane.b32.xlu0 %v5199, 40
        %v5384 = vpop.permute.xlu0 %5383
        %5386 = vmatpush.msra.mxu0 0.0
        %5387 = vmatpush.msra.mxu0 0.0
        %5388 = vmatpush.msra.mxu0 0.0
        %5389 = vmatpush.msra.mxu0 0.0
        %5390 = vmatpush.msra.mxu0 0.0
        %5391 = vmatpush.msra.mxu0 0.0
        %5392 = vmatpush.msra.mxu0 0.0
        %5393 = vmatpush.msra.mxu0 0.0
        %5394 = vmatpush.msra.mxu0 0.0
        %5395 = vmatpush.msra.mxu0 0.0
        %5396 = vmatpush.msra.mxu0 0.0
        %5397 = vmatpush.msra.mxu0 0.0
        %5398 = vmatpush.msra.mxu0 0.0
        %5399 = vmatpush.msra.mxu0 0.0
        %5400 = vmatpush.msra.mxu0 0.0
        %5401 = vmatpush.msra.mxu0 %v5384
        %5402 = vmatmul.f32.gmra.mxu0 %v5356
        %v5403 = vpop.f32.mrf.mxu0
        %v5404 = vadd.f32 0.0, %v5403
        %5405 = vdwg.mxu0
        %5407 = vrot.lane.b32.xlu0 %v5404, 24
        %v5408 = vpop.permute.xlu0 %5407
        %5410 = vst.msk [vmem:[%s1375] sm:$0xff] %vm2151, %v5408
        %5411 = vrot.lane.b32.xlu0 %v5200, 40
        %v5412 = vpop.permute.xlu0 %5411
        %5414 = vmatpush.msra.mxu0 0.0
        %5415 = vmatpush.msra.mxu0 0.0
        %5416 = vmatpush.msra.mxu0 0.0
        %5417 = vmatpush.msra.mxu0 0.0
        %5418 = vmatpush.msra.mxu0 0.0
        %5419 = vmatpush.msra.mxu0 0.0
        %5420 = vmatpush.msra.mxu0 0.0
        %5421 = vmatpush.msra.mxu0 0.0
        %5422 = vmatpush.msra.mxu0 0.0
        %5423 = vmatpush.msra.mxu0 0.0
        %5424 = vmatpush.msra.mxu0 0.0
        %5425 = vmatpush.msra.mxu0 0.0
        %5426 = vmatpush.msra.mxu0 0.0
        %5427 = vmatpush.msra.mxu0 0.0
        %5428 = vmatpush.msra.mxu0 0.0
        %5429 = vmatpush.msra.mxu0 %v5412
        %5430 = vmatmul.f32.gmra.mxu0 %v5356
        %v5431 = vpop.f32.mrf.mxu0
        %v5432 = vadd.f32 0.0, %v5431
        %5433 = vdwg.mxu0
        %5435 = vrot.lane.b32.xlu0 %v5432, 24
        %v5436 = vpop.permute.xlu0 %5435
        %5438 = vst.msk [vmem:[%s1400] sm:$0xff] %vm2151, %v5436
        %5439 = vrot.lane.b32.xlu0 %v5201, 40
        %v5440 = vpop.permute.xlu0 %5439
        %5442 = vmatpush.msra.mxu0 0.0
        %5443 = vmatpush.msra.mxu0 0.0
        %5444 = vmatpush.msra.mxu0 0.0
        %5445 = vmatpush.msra.mxu0 0.0
        %5446 = vmatpush.msra.mxu0 0.0
        %5447 = vmatpush.msra.mxu0 0.0
        %5448 = vmatpush.msra.mxu0 0.0
        %5449 = vmatpush.msra.mxu0 0.0
        %5450 = vmatpush.msra.mxu0 0.0
        %5451 = vmatpush.msra.mxu0 0.0
        %5452 = vmatpush.msra.mxu0 0.0
        %5453 = vmatpush.msra.mxu0 0.0
        %5454 = vmatpush.msra.mxu0 0.0
        %5455 = vmatpush.msra.mxu0 0.0
        %5456 = vmatpush.msra.mxu0 0.0
        %5457 = vmatpush.msra.mxu0 %v5440
        %5458 = vmatmul.f32.gmra.mxu0 %v5356
        %v5459 = vpop.f32.mrf.mxu0
        %v5460 = vadd.f32 0.0, %v5459
        %5461 = vdwg.mxu0
        %5463 = vrot.lane.b32.xlu0 %v5460, 24
        %v5464 = vpop.permute.xlu0 %5463
        %5466 = vst.msk [vmem:[%s1425] sm:$0xff] %vm2151, %v5464
        %v5467 = vld [vmem:[#allocation2] sm:$0xff]
        %v5468 = vld [vmem:[#allocation2 + $0x8] sm:$0xff]
        %v5469 = vld [vmem:[#allocation2 + $0x10] sm:$0xff]
        %v5470 = vld [vmem:[#allocation2 + $0x18] sm:$0xff]
        %s5471 = scalar_lea.vmem %s11, 32
        %v5472 = vld [vmem:[%s5471] sm:$0xff]
        %v5473 = vld [vmem:[%s5471 + $0x8] sm:$0xff]
        %v5474 = vld [vmem:[%s5471 + $0x10] sm:$0xff]
        %v5475 = vld [vmem:[%s5471 + $0x18] sm:$0xff]
        %s5476 = scalar_lea.vmem %s13, 1
        %v5477 = vld [vmem:[%s5476] sm:$0x1]
        %v5479 = vperm.slane %v5477, 0
        %v5482 = vsel %vm910, %v5467, 0
        %v5485 = vsel %vm910, %v5468, 0
        %v5488 = vsel %vm910, %v5469, 0
        %v5491 = vsel %vm910, %v5470, 0
        %5493 = vmatpush.msra.mxu0 0.0
        %5494 = vmatpush.msra.mxu0 0.0
        %5495 = vmatpush.msra.mxu0 0.0
        %5496 = vmatpush.msra.mxu0 0.0
        %5497 = vmatpush.msra.mxu0 0.0
        %5498 = vmatpush.msra.mxu0 0.0
        %5499 = vmatpush.msra.mxu0 0.0
        %5500 = vmatpush.msra.mxu0 0.0
        %5501 = vmatpush.msra.mxu0 0.0
        %5502 = vmatpush.msra.mxu0 0.0
        %5503 = vmatpush.msra.mxu0 0.0
        %5504 = vmatpush.msra.mxu0 0.0
        %5505 = vmatpush.msra.mxu0 %v5475
        %5506 = vmatpush.msra.mxu0 %v5474
        %5507 = vmatpush.msra.mxu0 %v5473
        %5508 = vmatpush.msra.mxu0 %v5472
        %5509 = vmatmul.f32.gmra.mxu0 %v5482
        %v5510 = vpop.f32.mrf.mxu0
        %v5511 = vadd.f32 %v5479, %v5510
        %5512 = vmatmul.f32.gmra.mxu0 %v5485
        %v5513 = vpop.f32.mrf.mxu0
        %v5514 = vadd.f32 %v5479, %v5513
        %5515 = vmatmul.f32.gmra.mxu0 %v5488
        %v5516 = vpop.f32.mrf.mxu0
        %v5517 = vadd.f32 %v5479, %v5516
        %5518 = vmatmul.f32.gmra.mxu0 %v5491
        %v5519 = vpop.f32.mrf.mxu0
        %v5520 = vadd.f32 %v5479, %v5519
        %5521 = vdwg.mxu0
        %v5522 = vadd.f32 %v4250, %v5511
        %v5523 = vadd.f32 %v4251, %v5514
        %v5524 = vadd.f32 %v4252, %v5517
        %v5525 = vadd.f32 %v4253, %v5520
        %s5526 = scalar_lea.vmem %s15, 1
        %v5527 = vld [vmem:[%s5526] sm:$0x1]
        %s5528 = scalar_lea.vmem %s17, 1
        %v5529 = vld [vmem:[%s5528] sm:$0x1]
        %v5530 = vsel %vm910, %v5522, 0.0
        %5531 = vadd.xlane.f32.xlu0 %v5530
        %v5532 = vpop.xlane.xlu0 %5531
        %v5533 = vsel %vm910, %v5523, 0.0
        %5534 = vadd.xlane.f32.xlu0 %v5533
        %v5535 = vpop.xlane.xlu0 %5534
        %v5536 = vsel %vm910, %v5524, 0.0
        %5537 = vadd.xlane.f32.xlu0 %v5536
        %v5538 = vpop.xlane.xlu0 %5537
        %v5539 = vsel %vm910, %v5525, 0.0
        %5540 = vadd.xlane.f32.xlu0 %v5539
        %v5541 = vpop.xlane.xlu0 %5540
        %v5542 = vmul.f32 %v5532, %v929
        %v5543 = vmul.f32 %v5535, %v929
        %v5544 = vmul.f32 %v5538, %v929
        %v5545 = vmul.f32 %v5541, %v929
        %v5546 = vsub.f32 %v5522, %v5542
        %v5547 = vsub.f32 %v5523, %v5543
        %v5548 = vsub.f32 %v5524, %v5544
        %v5549 = vsub.f32 %v5525, %v5545
        %v5550 = vmul.f32 %v5546, %v5546
        %v5551 = vmul.f32 %v5547, %v5547
        %v5552 = vmul.f32 %v5548, %v5548
        %v5553 = vmul.f32 %v5549, %v5549
        %v5554 = vsel %vm910, %v5550, 0.0
        %5555 = vadd.xlane.f32.xlu0 %v5554
        %v5556 = vpop.xlane.xlu0 %5555
        %v5557 = vsel %vm910, %v5551, 0.0
        %5558 = vadd.xlane.f32.xlu0 %v5557
        %v5559 = vpop.xlane.xlu0 %5558
        %v5560 = vsel %vm910, %v5552, 0.0
        %5561 = vadd.xlane.f32.xlu0 %v5560
        %v5562 = vpop.xlane.xlu0 %5561
        %v5563 = vsel %vm910, %v5553, 0.0
        %5564 = vadd.xlane.f32.xlu0 %v5563
        %v5565 = vpop.xlane.xlu0 %5564
        %v5566 = vmul.f32 %v5556, %v929
        %v5567 = vmul.f32 %v5559, %v929
        %v5568 = vmul.f32 %v5562, %v929
        %v5569 = vmul.f32 %v5565, %v929
        %v5570 = vadd.f32 %v5566, 1e-05
        %v5571 = vadd.f32 %v5567, 1e-05
        %v5572 = vadd.f32 %v5568, 1e-05
        %v5573 = vadd.f32 %v5569, 1e-05
        %v5574 = vrsqrt.pop %v5570
        %v5575 = vmul.f32 %v5574, %v5570
        %v5576 = vmul.f32 %v5575, %v5574
        %v5577 = vmul.f32 0.5, %v5576
        %v5578 = vsub.f32 1.5, %v5577
        %v5579 = vmul.f32 %v5574, %v5578
        %vm5580 = vweird.f32 %v5570
        %vm5581 = vweird.f32 %v5574
        %vm5582 = vmor %vm5580, %vm5581
        %v5583 = vsel %vm5582, %v5574, %v5579
        %v5584 = vrsqrt.pop %v5571
        %v5585 = vmul.f32 %v5584, %v5571
        %v5586 = vmul.f32 %v5585, %v5584
        %v5587 = vmul.f32 0.5, %v5586
        %v5588 = vsub.f32 1.5, %v5587
        %v5589 = vmul.f32 %v5584, %v5588
        %vm5590 = vweird.f32 %v5571
        %vm5591 = vweird.f32 %v5584
        %vm5592 = vmor %vm5590, %vm5591
        %v5593 = vsel %vm5592, %v5584, %v5589
        %v5594 = vrsqrt.pop %v5572
        %v5595 = vmul.f32 %v5594, %v5572
        %v5596 = vmul.f32 %v5595, %v5594
        %v5597 = vmul.f32 0.5, %v5596
        %v5598 = vsub.f32 1.5, %v5597
        %v5599 = vmul.f32 %v5594, %v5598
        %vm5600 = vweird.f32 %v5572
        %vm5601 = vweird.f32 %v5594
        %vm5602 = vmor %vm5600, %vm5601
        %v5603 = vsel %vm5602, %v5594, %v5599
        %v5604 = vrsqrt.pop %v5573
        %v5605 = vmul.f32 %v5604, %v5573
        %v5606 = vmul.f32 %v5605, %v5604
        %v5607 = vmul.f32 0.5, %v5606
        %v5608 = vsub.f32 1.5, %v5607
        %v5609 = vmul.f32 %v5604, %v5608
        %vm5610 = vweird.f32 %v5573
        %vm5611 = vweird.f32 %v5604
        %vm5612 = vmor %vm5610, %vm5611
        %v5613 = vsel %vm5612, %v5604, %v5609
        %v5614 = vmul.f32 %v5546, %v5583
        %v5615 = vmul.f32 %v5547, %v5593
        %v5616 = vmul.f32 %v5548, %v5603
        %v5617 = vmul.f32 %v5549, %v5613
        %v5619 = vperm.slane %v5527, 0
        %v5621 = vmul.f32 %v5614, %v5619
        %v5622 = vmul.f32 %v5615, %v5619
        %v5623 = vmul.f32 %v5616, %v5619
        %v5624 = vmul.f32 %v5617, %v5619
        %v5626 = vperm.slane %v5529, 0
        %v5628 = vadd.f32 %v5621, %v5626
        %v5629 = vadd.f32 %v5622, %v5626
        %v5630 = vadd.f32 %v5623, %v5626
        %v5631 = vadd.f32 %v5624, %v5626
        %s5632 = scalar_lea.vmem %s19, 32
        %v5633 = vld [vmem:[%s5632] sm:$0xff]
        %v5634 = vld [vmem:[%s5632 + $0x8] sm:$0xff]
        %v5635 = vld [vmem:[%s5632 + $0x10] sm:$0xff]
        %v5636 = vld [vmem:[%s5632 + $0x18] sm:$0xff]
        %s5637 = scalar_lea.vmem %s21, 1
        %v5638 = vld [vmem:[%s5637] sm:$0x1]
        %v5640 = vperm.slane %v5638, 0
        %v5643 = vsel %vm910, %v5628, 0
        %v5646 = vsel %vm910, %v5629, 0
        %v5649 = vsel %vm910, %v5630, 0
        %v5652 = vsel %vm910, %v5631, 0
        %5654 = vmatpush.msra.mxu0 0.0
        %5655 = vmatpush.msra.mxu0 0.0
        %5656 = vmatpush.msra.mxu0 0.0
        %5657 = vmatpush.msra.mxu0 0.0
        %5658 = vmatpush.msra.mxu0 0.0
        %5659 = vmatpush.msra.mxu0 0.0
        %5660 = vmatpush.msra.mxu0 0.0
        %5661 = vmatpush.msra.mxu0 0.0
        %5662 = vmatpush.msra.mxu0 0.0
        %5663 = vmatpush.msra.mxu0 0.0
        %5664 = vmatpush.msra.mxu0 0.0
        %5665 = vmatpush.msra.mxu0 0.0
        %5666 = vmatpush.msra.mxu0 %v5636
        %5667 = vmatpush.msra.mxu0 %v5635
        %5668 = vmatpush.msra.mxu0 %v5634
        %5669 = vmatpush.msra.mxu0 %v5633
        %5670 = vmatmul.f32.gmra.mxu0 %v5643
        %v5671 = vpop.f32.mrf.mxu0
        %v5672 = vadd.f32 %v5640, %v5671
        %5673 = vmatmul.f32.gmra.mxu0 %v5646
        %v5674 = vpop.f32.mrf.mxu0
        %v5675 = vadd.f32 %v5640, %v5674
        %5676 = vmatmul.f32.gmra.mxu0 %v5649
        %v5677 = vpop.f32.mrf.mxu0
        %v5678 = vadd.f32 %v5640, %v5677
        %5679 = vmatmul.f32.gmra.mxu0 %v5652
        %v5680 = vpop.f32.mrf.mxu0
        %v5681 = vadd.f32 %v5640, %v5680
        %5682 = vdwg.mxu0
        %5683 = vst.msk [vmem:[#allocation3] sm:$0xff] %vm1173, %v5672
        %5684 = vst.msk [vmem:[#allocation3 + $0x8] sm:$0xff] %vm1173, %v5675
        %5685 = vst.msk [vmem:[#allocation3 + $0x10] sm:$0xff] %vm1173, %v5678
        %5686 = vst.msk [vmem:[#allocation3 + $0x18] sm:$0xff] %vm1173, %v5681
        %v5687 = vld [vmem:[#allocation3] sm:$0xff]
        %v5688 = vld [vmem:[#allocation3 + $0x8] sm:$0xff]
        %v5689 = vld [vmem:[#allocation3 + $0x10] sm:$0xff]
        %v5690 = vld [vmem:[#allocation3 + $0x18] sm:$0xff]
        %v5691 = vmul.f32 %v5687, 0.35355338
        %v5692 = vmul.f32 %v5688, 0.35355338
        %v5693 = vmul.f32 %v5689, 0.35355338
        %v5694 = vmul.f32 %v5690, 0.35355338
        %5699 = vrot.lane.b32.xlu0 %v5687, 96
        %v5700 = vpop.permute.xlu0 %5699
        %5701 = vrot.lane.b32.xlu0 %v5688, 96
        %v5702 = vpop.permute.xlu0 %5701
        %5703 = vrot.lane.b32.xlu0 %v5689, 96
        %v5704 = vpop.permute.xlu0 %5703
        %5705 = vrot.lane.b32.xlu0 %v5690, 96
        %v5706 = vpop.permute.xlu0 %5705
        %v5711 = vmul.f32 %v5691, %v5700
        %v5712 = vmul.f32 %v5691, %v5702
        %v5713 = vmul.f32 %v5691, %v5704
        %v5714 = vmul.f32 %v5691, %v5706
        %v5715 = vmul.f32 %v5692, %v5700
        %v5716 = vmul.f32 %v5692, %v5702
        %v5717 = vmul.f32 %v5692, %v5704
        %v5718 = vmul.f32 %v5692, %v5706
        %v5719 = vmul.f32 %v5693, %v5700
        %v5720 = vmul.f32 %v5693, %v5702
        %v5721 = vmul.f32 %v5693, %v5704
        %v5722 = vmul.f32 %v5693, %v5706
        %v5723 = vmul.f32 %v5694, %v5700
        %v5724 = vmul.f32 %v5694, %v5702
        %v5725 = vmul.f32 %v5694, %v5704
        %v5726 = vmul.f32 %v5694, %v5706
        %v5727 = vsel %vm1189, %v5711, 0.0
        %5728 = vadd.xlane.f32.xlu0 %v5727
        %v5729 = vpop.xlane.xlu0 %5728
        %v5730 = vsel %vm1189, %v5712, 0.0
        %5731 = vadd.xlane.f32.xlu0 %v5730
        %v5732 = vpop.xlane.xlu0 %5731
        %v5733 = vsel %vm1189, %v5713, 0.0
        %5734 = vadd.xlane.f32.xlu0 %v5733
        %v5735 = vpop.xlane.xlu0 %5734
        %v5736 = vsel %vm1189, %v5714, 0.0
        %5737 = vadd.xlane.f32.xlu0 %v5736
        %v5738 = vpop.xlane.xlu0 %5737
        %v5739 = vsel %vm1189, %v5715, 0.0
        %5740 = vadd.xlane.f32.xlu0 %v5739
        %v5741 = vpop.xlane.xlu0 %5740
        %v5742 = vsel %vm1189, %v5716, 0.0
        %5743 = vadd.xlane.f32.xlu0 %v5742
        %v5744 = vpop.xlane.xlu0 %5743
        %v5745 = vsel %vm1189, %v5717, 0.0
        %5746 = vadd.xlane.f32.xlu0 %v5745
        %v5747 = vpop.xlane.xlu0 %5746
        %v5748 = vsel %vm1189, %v5718, 0.0
        %5749 = vadd.xlane.f32.xlu0 %v5748
        %v5750 = vpop.xlane.xlu0 %5749
        %v5751 = vsel %vm1189, %v5719, 0.0
        %5752 = vadd.xlane.f32.xlu0 %v5751
        %v5753 = vpop.xlane.xlu0 %5752
        %v5754 = vsel %vm1189, %v5720, 0.0
        %5755 = vadd.xlane.f32.xlu0 %v5754
        %v5756 = vpop.xlane.xlu0 %5755
        %v5757 = vsel %vm1189, %v5721, 0.0
        %5758 = vadd.xlane.f32.xlu0 %v5757
        %v5759 = vpop.xlane.xlu0 %5758
        %v5760 = vsel %vm1189, %v5722, 0.0
        %5761 = vadd.xlane.f32.xlu0 %v5760
        %v5762 = vpop.xlane.xlu0 %5761
        %v5763 = vsel %vm1189, %v5723, 0.0
        %5764 = vadd.xlane.f32.xlu0 %v5763
        %v5765 = vpop.xlane.xlu0 %5764
        %v5766 = vsel %vm1189, %v5724, 0.0
        %5767 = vadd.xlane.f32.xlu0 %v5766
        %v5768 = vpop.xlane.xlu0 %5767
        %v5769 = vsel %vm1189, %v5725, 0.0
        %5770 = vadd.xlane.f32.xlu0 %v5769
        %v5771 = vpop.xlane.xlu0 %5770
        %v5772 = vsel %vm1189, %v5726, 0.0
        %5773 = vadd.xlane.f32.xlu0 %v5772
        %v5774 = vpop.xlane.xlu0 %5773
        %v5775 = vmax.f32 %v5729, %v5732
        %v5776 = vmax.f32 %v5775, %v5735
        %v5777 = vmax.f32 %v5776, %v5738
        %v5778 = vmax.f32 %v5741, %v5744
        %v5779 = vmax.f32 %v5778, %v5747
        %v5780 = vmax.f32 %v5779, %v5750
        %v5781 = vmax.f32 %v5753, %v5756
        %v5782 = vmax.f32 %v5781, %v5759
        %v5783 = vmax.f32 %v5782, %v5762
        %v5784 = vmax.f32 %v5765, %v5768
        %v5785 = vmax.f32 %v5784, %v5771
        %v5786 = vmax.f32 %v5785, %v5774
        %v5787 = vsub.f32 %v5729, %v5777
        %v5788 = vsub.f32 %v5732, %v5777
        %v5789 = vsub.f32 %v5735, %v5777
        %v5790 = vsub.f32 %v5738, %v5777
        %v5791 = vsub.f32 %v5741, %v5780
        %v5792 = vsub.f32 %v5744, %v5780
        %v5793 = vsub.f32 %v5747, %v5780
        %v5794 = vsub.f32 %v5750, %v5780
        %v5795 = vsub.f32 %v5753, %v5783
        %v5796 = vsub.f32 %v5756, %v5783
        %v5797 = vsub.f32 %v5759, %v5783
        %v5798 = vsub.f32 %v5762, %v5783
        %v5799 = vsub.f32 %v5765, %v5786
        %v5800 = vsub.f32 %v5768, %v5786
        %v5801 = vsub.f32 %v5771, %v5786
        %v5802 = vsub.f32 %v5774, %v5786
        %v5803 = vmul.f32 %v5787, 1.442695
        %v5804 = vpow.pop %v5803
        %v5805 = vmul.f32 %v5788, 1.442695
        %v5806 = vpow.pop %v5805
        %v5807 = vmul.f32 %v5789, 1.442695
        %v5808 = vpow.pop %v5807
        %v5809 = vmul.f32 %v5790, 1.442695
        %v5810 = vpow.pop %v5809
        %v5811 = vmul.f32 %v5791, 1.442695
        %v5812 = vpow.pop %v5811
        %v5813 = vmul.f32 %v5792, 1.442695
        %v5814 = vpow.pop %v5813
        %v5815 = vmul.f32 %v5793, 1.442695
        %v5816 = vpow.pop %v5815
        %v5817 = vmul.f32 %v5794, 1.442695
        %v5818 = vpow.pop %v5817
        %v5819 = vmul.f32 %v5795, 1.442695
        %v5820 = vpow.pop %v5819
        %v5821 = vmul.f32 %v5796, 1.442695
        %v5822 = vpow.pop %v5821
        %v5823 = vmul.f32 %v5797, 1.442695
        %v5824 = vpow.pop %v5823
        %v5825 = vmul.f32 %v5798, 1.442695
        %v5826 = vpow.pop %v5825
        %v5827 = vmul.f32 %v5799, 1.442695
        %v5828 = vpow.pop %v5827
        %v5829 = vmul.f32 %v5800, 1.442695
        %v5830 = vpow.pop %v5829
        %v5831 = vmul.f32 %v5801, 1.442695
        %v5832 = vpow.pop %v5831
        %v5833 = vmul.f32 %v5802, 1.442695
        %v5834 = vpow.pop %v5833
        %v5835 = vadd.f32 %v5804, %v5806
        %v5836 = vadd.f32 %v5835, %v5808
        %v5837 = vadd.f32 %v5836, %v5810
        %v5838 = vadd.f32 %v5812, %v5814
        %v5839 = vadd.f32 %v5838, %v5816
        %v5840 = vadd.f32 %v5839, %v5818
        %v5841 = vadd.f32 %v5820, %v5822
        %v5842 = vadd.f32 %v5841, %v5824
        %v5843 = vadd.f32 %v5842, %v5826
        %v5844 = vadd.f32 %v5828, %v5830
        %v5845 = vadd.f32 %v5844, %v5832
        %v5846 = vadd.f32 %v5845, %v5834
        %v5847 = vrcp.pop %v5837
        %v5848 = vmul.f32 %v5837, %v5847
        %v5849 = vsub.f32 1.0, %v5848
        %v5850 = vmul.f32 %v5847, %v5849
        %v5851 = vadd.f32 %v5847, %v5850
        %vm5852 = vweird.f32 %v5837
        %vm5853 = vweird.f32 %v5847
        %vm5854 = vmor %vm5852, %vm5853
        %v5855 = vsel %vm5854, %v5847, %v5851
        %v5856 = vand.u32 2147483647, %v5837
        %vm5857 = vcmp.eq.f32.partialorder %v5856, 8.507059e+37
        %v5858 = vand.u32 %v5837, 2147483648
        %v5859 = vor.u32 1.1754944e-38, %v5858
        %v5860 = vsel %vm5857, %v5859, %v5855
        %v5861 = vmul.f32 %v5804, %v5860
        %v5862 = vmul.f32 %v5806, %v5860
        %v5863 = vmul.f32 %v5808, %v5860
        %v5864 = vmul.f32 %v5810, %v5860
        %v5865 = vrcp.pop %v5840
        %v5866 = vmul.f32 %v5840, %v5865
        %v5867 = vsub.f32 1.0, %v5866
        %v5868 = vmul.f32 %v5865, %v5867
        %v5869 = vadd.f32 %v5865, %v5868
        %vm5870 = vweird.f32 %v5840
        %vm5871 = vweird.f32 %v5865
        %vm5872 = vmor %vm5870, %vm5871
        %v5873 = vsel %vm5872, %v5865, %v5869
        %v5874 = vand.u32 2147483647, %v5840
        %vm5875 = vcmp.eq.f32.partialorder %v5874, 8.507059e+37
        %v5876 = vand.u32 %v5840, 2147483648
        %v5877 = vor.u32 1.1754944e-38, %v5876
        %v5878 = vsel %vm5875, %v5877, %v5873
        %v5879 = vmul.f32 %v5812, %v5878
        %v5880 = vmul.f32 %v5814, %v5878
        %v5881 = vmul.f32 %v5816, %v5878
        %v5882 = vmul.f32 %v5818, %v5878
        %v5883 = vrcp.pop %v5843
        %v5884 = vmul.f32 %v5843, %v5883
        %v5885 = vsub.f32 1.0, %v5884
        %v5886 = vmul.f32 %v5883, %v5885
        %v5887 = vadd.f32 %v5883, %v5886
        %vm5888 = vweird.f32 %v5843
        %vm5889 = vweird.f32 %v5883
        %vm5890 = vmor %vm5888, %vm5889
        %v5891 = vsel %vm5890, %v5883, %v5887
        %v5892 = vand.u32 2147483647, %v5843
        %vm5893 = vcmp.eq.f32.partialorder %v5892, 8.507059e+37
        %v5894 = vand.u32 %v5843, 2147483648
        %v5895 = vor.u32 1.1754944e-38, %v5894
        %v5896 = vsel %vm5893, %v5895, %v5891
        %v5897 = vmul.f32 %v5820, %v5896
        %v5898 = vmul.f32 %v5822, %v5896
        %v5899 = vmul.f32 %v5824, %v5896
        %v5900 = vmul.f32 %v5826, %v5896
        %v5901 = vrcp.pop %v5846
        %v5902 = vmul.f32 %v5846, %v5901
        %v5903 = vsub.f32 1.0, %v5902
        %v5904 = vmul.f32 %v5901, %v5903
        %v5905 = vadd.f32 %v5901, %v5904
        %vm5906 = vweird.f32 %v5846
        %vm5907 = vweird.f32 %v5901
        %vm5908 = vmor %vm5906, %vm5907
        %v5909 = vsel %vm5908, %v5901, %v5905
        %v5910 = vand.u32 2147483647, %v5846
        %vm5911 = vcmp.eq.f32.partialorder %v5910, 8.507059e+37
        %v5912 = vand.u32 %v5846, 2147483648
        %v5913 = vor.u32 1.1754944e-38, %v5912
        %v5914 = vsel %vm5911, %v5913, %v5909
        %v5915 = vmul.f32 %v5828, %v5914
        %v5916 = vmul.f32 %v5830, %v5914
        %v5917 = vmul.f32 %v5832, %v5914
        %v5918 = vmul.f32 %v5834, %v5914
        %v5919 = vmul.f32 %v5861, %v5687
        %v5920 = vmul.f32 %v5862, %v5688
        %v5921 = vmul.f32 %v5863, %v5689
        %v5922 = vmul.f32 %v5864, %v5690
        %v5923 = vmul.f32 %v5879, %v5687
        %v5924 = vmul.f32 %v5880, %v5688
        %v5925 = vmul.f32 %v5881, %v5689
        %v5926 = vmul.f32 %v5882, %v5690
        %v5927 = vmul.f32 %v5897, %v5687
        %v5928 = vmul.f32 %v5898, %v5688
        %v5929 = vmul.f32 %v5899, %v5689
        %v5930 = vmul.f32 %v5900, %v5690
        %v5931 = vmul.f32 %v5915, %v5687
        %v5932 = vmul.f32 %v5916, %v5688
        %v5933 = vmul.f32 %v5917, %v5689
        %v5934 = vmul.f32 %v5918, %v5690
        %v5935 = vsel %vm2699, %v5919, 0.0
        %v5936 = vsel %vm2699, %v5920, 0.0
        %v5937 = vadd.f32 %v5935, %v5936
        %v5938 = vsel %vm2699, %v5921, 0.0
        %v5939 = vadd.f32 %v5937, %v5938
        %v5940 = vsel %vm2699, %v5922, 0.0
        %v5941 = vadd.f32 %v5939, %v5940
        %v5942 = vsel %vm2699, %v5923, 0.0
        %v5943 = vsel %vm2699, %v5924, 0.0
        %v5944 = vadd.f32 %v5942, %v5943
        %v5945 = vsel %vm2699, %v5925, 0.0
        %v5946 = vadd.f32 %v5944, %v5945
        %v5947 = vsel %vm2699, %v5926, 0.0
        %v5948 = vadd.f32 %v5946, %v5947
        %v5949 = vsel %vm2699, %v5927, 0.0
        %v5950 = vsel %vm2699, %v5928, 0.0
        %v5951 = vadd.f32 %v5949, %v5950
        %v5952 = vsel %vm2699, %v5929, 0.0
        %v5953 = vadd.f32 %v5951, %v5952
        %v5954 = vsel %vm2699, %v5930, 0.0
        %v5955 = vadd.f32 %v5953, %v5954
        %v5956 = vsel %vm2699, %v5931, 0.0
        %v5957 = vsel %vm2699, %v5932, 0.0
        %v5958 = vadd.f32 %v5956, %v5957
        %v5959 = vsel %vm2699, %v5933, 0.0
        %v5960 = vadd.f32 %v5958, %v5959
        %v5961 = vsel %vm2699, %v5934, 0.0
        %v5962 = vadd.f32 %v5960, %v5961
        %5967 = vrot.lane.b32.xlu0 %v5941, 64
        %v5968 = vpop.permute.xlu0 %5967
        %5969 = vrot.lane.b32.xlu0 %v5948, 64
        %v5970 = vpop.permute.xlu0 %5969
        %5971 = vrot.lane.b32.xlu0 %v5955, 64
        %v5972 = vpop.permute.xlu0 %5971
        %5973 = vrot.lane.b32.xlu0 %v5962, 64
        %v5974 = vpop.permute.xlu0 %5973
        %5979 = vst.msk [vmem:[#allocation2] sm:$0xff] %vm1189, %v5968
        %5980 = vst.msk [vmem:[#allocation2 + $0x8] sm:$0xff] %vm1189, %v5970
        %5981 = vst.msk [vmem:[#allocation2 + $0x10] sm:$0xff] %vm1189, %v5972
        %5982 = vst.msk [vmem:[#allocation2 + $0x18] sm:$0xff] %vm1189, %v5974
        %v5983 = vld [vmem:[#allocation3] sm:$0xff]
        %v5984 = vld [vmem:[#allocation3 + $0x8] sm:$0xff]
        %v5985 = vld [vmem:[#allocation3 + $0x10] sm:$0xff]
        %v5986 = vld [vmem:[#allocation3 + $0x18] sm:$0xff]
        %v5987 = vmul.f32 %v5983, 0.35355338
        %v5988 = vmul.f32 %v5984, 0.35355338
        %v5989 = vmul.f32 %v5985, 0.35355338
        %v5990 = vmul.f32 %v5986, 0.35355338
        %5995 = vrot.lane.b32.xlu0 %v5983, 96
        %v5996 = vpop.permute.xlu0 %5995
        %5997 = vrot.lane.b32.xlu0 %v5984, 96
        %v5998 = vpop.permute.xlu0 %5997
        %5999 = vrot.lane.b32.xlu0 %v5985, 96
        %v6000 = vpop.permute.xlu0 %5999
        %6001 = vrot.lane.b32.xlu0 %v5986, 96
        %v6002 = vpop.permute.xlu0 %6001
        %v6007 = vmul.f32 %v5987, %v5996
        %v6008 = vmul.f32 %v5987, %v5998
        %v6009 = vmul.f32 %v5987, %v6000
        %v6010 = vmul.f32 %v5987, %v6002
        %v6011 = vmul.f32 %v5988, %v5996
        %v6012 = vmul.f32 %v5988, %v5998
        %v6013 = vmul.f32 %v5988, %v6000
        %v6014 = vmul.f32 %v5988, %v6002
        %v6015 = vmul.f32 %v5989, %v5996
        %v6016 = vmul.f32 %v5989, %v5998
        %v6017 = vmul.f32 %v5989, %v6000
        %v6018 = vmul.f32 %v5989, %v6002
        %v6019 = vmul.f32 %v5990, %v5996
        %v6020 = vmul.f32 %v5990, %v5998
        %v6021 = vmul.f32 %v5990, %v6000
        %v6022 = vmul.f32 %v5990, %v6002
        %6039 = vrot.lane.b32.xlu0 %v6007, 120
        %v6040 = vpop.permute.xlu0 %6039
        %6041 = vrot.lane.b32.xlu0 %v6008, 120
        %v6042 = vpop.permute.xlu0 %6041
        %6043 = vrot.lane.b32.xlu0 %v6009, 120
        %v6044 = vpop.permute.xlu0 %6043
        %6045 = vrot.lane.b32.xlu0 %v6010, 120
        %v6046 = vpop.permute.xlu0 %6045
        %6047 = vrot.lane.b32.xlu0 %v6011, 120
        %v6048 = vpop.permute.xlu0 %6047
        %6049 = vrot.lane.b32.xlu0 %v6012, 120
        %v6050 = vpop.permute.xlu0 %6049
        %6051 = vrot.lane.b32.xlu0 %v6013, 120
        %v6052 = vpop.permute.xlu0 %6051
        %6053 = vrot.lane.b32.xlu0 %v6014, 120
        %v6054 = vpop.permute.xlu0 %6053
        %6055 = vrot.lane.b32.xlu0 %v6015, 120
        %v6056 = vpop.permute.xlu0 %6055
        %6057 = vrot.lane.b32.xlu0 %v6016, 120
        %v6058 = vpop.permute.xlu0 %6057
        %6059 = vrot.lane.b32.xlu0 %v6017, 120
        %v6060 = vpop.permute.xlu0 %6059
        %6061 = vrot.lane.b32.xlu0 %v6018, 120
        %v6062 = vpop.permute.xlu0 %6061
        %6063 = vrot.lane.b32.xlu0 %v6019, 120
        %v6064 = vpop.permute.xlu0 %6063
        %6065 = vrot.lane.b32.xlu0 %v6020, 120
        %v6066 = vpop.permute.xlu0 %6065
        %6067 = vrot.lane.b32.xlu0 %v6021, 120
        %v6068 = vpop.permute.xlu0 %6067
        %6069 = vrot.lane.b32.xlu0 %v6022, 120
        %v6070 = vpop.permute.xlu0 %6069
        %v6087 = vsel %vm1189, %v6040, 0.0
        %6088 = vadd.xlane.f32.xlu0 %v6087
        %v6089 = vpop.xlane.xlu0 %6088
        %v6090 = vsel %vm1189, %v6042, 0.0
        %6091 = vadd.xlane.f32.xlu0 %v6090
        %v6092 = vpop.xlane.xlu0 %6091
        %v6093 = vsel %vm1189, %v6044, 0.0
        %6094 = vadd.xlane.f32.xlu0 %v6093
        %v6095 = vpop.xlane.xlu0 %6094
        %v6096 = vsel %vm1189, %v6046, 0.0
        %6097 = vadd.xlane.f32.xlu0 %v6096
        %v6098 = vpop.xlane.xlu0 %6097
        %v6099 = vsel %vm1189, %v6048, 0.0
        %6100 = vadd.xlane.f32.xlu0 %v6099
        %v6101 = vpop.xlane.xlu0 %6100
        %v6102 = vsel %vm1189, %v6050, 0.0
        %6103 = vadd.xlane.f32.xlu0 %v6102
        %v6104 = vpop.xlane.xlu0 %6103
        %v6105 = vsel %vm1189, %v6052, 0.0
        %6106 = vadd.xlane.f32.xlu0 %v6105
        %v6107 = vpop.xlane.xlu0 %6106
        %v6108 = vsel %vm1189, %v6054, 0.0
        %6109 = vadd.xlane.f32.xlu0 %v6108
        %v6110 = vpop.xlane.xlu0 %6109
        %v6111 = vsel %vm1189, %v6056, 0.0
        %6112 = vadd.xlane.f32.xlu0 %v6111
        %v6113 = vpop.xlane.xlu0 %6112
        %v6114 = vsel %vm1189, %v6058, 0.0
        %6115 = vadd.xlane.f32.xlu0 %v6114
        %v6116 = vpop.xlane.xlu0 %6115
        %v6117 = vsel %vm1189, %v6060, 0.0
        %6118 = vadd.xlane.f32.xlu0 %v6117
        %v6119 = vpop.xlane.xlu0 %6118
        %v6120 = vsel %vm1189, %v6062, 0.0
        %6121 = vadd.xlane.f32.xlu0 %v6120
        %v6122 = vpop.xlane.xlu0 %6121
        %v6123 = vsel %vm1189, %v6064, 0.0
        %6124 = vadd.xlane.f32.xlu0 %v6123
        %v6125 = vpop.xlane.xlu0 %6124
        %v6126 = vsel %vm1189, %v6066, 0.0
        %6127 = vadd.xlane.f32.xlu0 %v6126
        %v6128 = vpop.xlane.xlu0 %6127
        %v6129 = vsel %vm1189, %v6068, 0.0
        %6130 = vadd.xlane.f32.xlu0 %v6129
        %v6131 = vpop.xlane.xlu0 %6130
        %v6132 = vsel %vm1189, %v6070, 0.0
        %6133 = vadd.xlane.f32.xlu0 %v6132
        %v6134 = vpop.xlane.xlu0 %6133
        %v6135 = vmax.f32 %v6089, %v6092
        %v6136 = vmax.f32 %v6135, %v6095
        %v6137 = vmax.f32 %v6136, %v6098
        %v6138 = vmax.f32 %v6101, %v6104
        %v6139 = vmax.f32 %v6138, %v6107
        %v6140 = vmax.f32 %v6139, %v6110
        %v6141 = vmax.f32 %v6113, %v6116
        %v6142 = vmax.f32 %v6141, %v6119
        %v6143 = vmax.f32 %v6142, %v6122
        %v6144 = vmax.f32 %v6125, %v6128
        %v6145 = vmax.f32 %v6144, %v6131
        %v6146 = vmax.f32 %v6145, %v6134
        %v6147 = vsub.f32 %v6089, %v6137
        %v6148 = vsub.f32 %v6092, %v6137
        %v6149 = vsub.f32 %v6095, %v6137
        %v6150 = vsub.f32 %v6098, %v6137
        %v6151 = vsub.f32 %v6101, %v6140
        %v6152 = vsub.f32 %v6104, %v6140
        %v6153 = vsub.f32 %v6107, %v6140
        %v6154 = vsub.f32 %v6110, %v6140
        %v6155 = vsub.f32 %v6113, %v6143
        %v6156 = vsub.f32 %v6116, %v6143
        %v6157 = vsub.f32 %v6119, %v6143
        %v6158 = vsub.f32 %v6122, %v6143
        %v6159 = vsub.f32 %v6125, %v6146
        %v6160 = vsub.f32 %v6128, %v6146
        %v6161 = vsub.f32 %v6131, %v6146
        %v6162 = vsub.f32 %v6134, %v6146
        %v6163 = vmul.f32 %v6147, 1.442695
        %v6164 = vpow.pop %v6163
        %v6165 = vmul.f32 %v6148, 1.442695
        %v6166 = vpow.pop %v6165
        %v6167 = vmul.f32 %v6149, 1.442695
        %v6168 = vpow.pop %v6167
        %v6169 = vmul.f32 %v6150, 1.442695
        %v6170 = vpow.pop %v6169
        %v6171 = vmul.f32 %v6151, 1.442695
        %v6172 = vpow.pop %v6171
        %v6173 = vmul.f32 %v6152, 1.442695
        %v6174 = vpow.pop %v6173
        %v6175 = vmul.f32 %v6153, 1.442695
        %v6176 = vpow.pop %v6175
        %v6177 = vmul.f32 %v6154, 1.442695
        %v6178 = vpow.pop %v6177
        %v6179 = vmul.f32 %v6155, 1.442695
        %v6180 = vpow.pop %v6179
        %v6181 = vmul.f32 %v6156, 1.442695
        %v6182 = vpow.pop %v6181
        %v6183 = vmul.f32 %v6157, 1.442695
        %v6184 = vpow.pop %v6183
        %v6185 = vmul.f32 %v6158, 1.442695
        %v6186 = vpow.pop %v6185
        %v6187 = vmul.f32 %v6159, 1.442695
        %v6188 = vpow.pop %v6187
        %v6189 = vmul.f32 %v6160, 1.442695
        %v6190 = vpow.pop %v6189
        %v6191 = vmul.f32 %v6161, 1.442695
        %v6192 = vpow.pop %v6191
        %v6193 = vmul.f32 %v6162, 1.442695
        %v6194 = vpow.pop %v6193
        %v6195 = vadd.f32 %v6164, %v6166
        %v6196 = vadd.f32 %v6195, %v6168
        %v6197 = vadd.f32 %v6196, %v6170
        %v6198 = vadd.f32 %v6172, %v6174
        %v6199 = vadd.f32 %v6198, %v6176
        %v6200 = vadd.f32 %v6199, %v6178
        %v6201 = vadd.f32 %v6180, %v6182
        %v6202 = vadd.f32 %v6201, %v6184
        %v6203 = vadd.f32 %v6202, %v6186
        %v6204 = vadd.f32 %v6188, %v6190
        %v6205 = vadd.f32 %v6204, %v6192
        %v6206 = vadd.f32 %v6205, %v6194
        %v6207 = vrcp.pop %v6197
        %v6208 = vmul.f32 %v6197, %v6207
        %v6209 = vsub.f32 1.0, %v6208
        %v6210 = vmul.f32 %v6207, %v6209
        %v6211 = vadd.f32 %v6207, %v6210
        %vm6212 = vweird.f32 %v6197
        %vm6213 = vweird.f32 %v6207
        %vm6214 = vmor %vm6212, %vm6213
        %v6215 = vsel %vm6214, %v6207, %v6211
        %v6216 = vand.u32 2147483647, %v6197
        %vm6217 = vcmp.eq.f32.partialorder %v6216, 8.507059e+37
        %v6218 = vand.u32 %v6197, 2147483648
        %v6219 = vor.u32 1.1754944e-38, %v6218
        %v6220 = vsel %vm6217, %v6219, %v6215
        %v6221 = vmul.f32 %v6164, %v6220
        %v6222 = vmul.f32 %v6166, %v6220
        %v6223 = vmul.f32 %v6168, %v6220
        %v6224 = vmul.f32 %v6170, %v6220
        %v6225 = vrcp.pop %v6200
        %v6226 = vmul.f32 %v6200, %v6225
        %v6227 = vsub.f32 1.0, %v6226
        %v6228 = vmul.f32 %v6225, %v6227
        %v6229 = vadd.f32 %v6225, %v6228
        %vm6230 = vweird.f32 %v6200
        %vm6231 = vweird.f32 %v6225
        %vm6232 = vmor %vm6230, %vm6231
        %v6233 = vsel %vm6232, %v6225, %v6229
        %v6234 = vand.u32 2147483647, %v6200
        %vm6235 = vcmp.eq.f32.partialorder %v6234, 8.507059e+37
        %v6236 = vand.u32 %v6200, 2147483648
        %v6237 = vor.u32 1.1754944e-38, %v6236
        %v6238 = vsel %vm6235, %v6237, %v6233
        %v6239 = vmul.f32 %v6172, %v6238
        %v6240 = vmul.f32 %v6174, %v6238
        %v6241 = vmul.f32 %v6176, %v6238
        %v6242 = vmul.f32 %v6178, %v6238
        %v6243 = vrcp.pop %v6203
        %v6244 = vmul.f32 %v6203, %v6243
        %v6245 = vsub.f32 1.0, %v6244
        %v6246 = vmul.f32 %v6243, %v6245
        %v6247 = vadd.f32 %v6243, %v6246
        %vm6248 = vweird.f32 %v6203
        %vm6249 = vweird.f32 %v6243
        %vm6250 = vmor %vm6248, %vm6249
        %v6251 = vsel %vm6250, %v6243, %v6247
        %v6252 = vand.u32 2147483647, %v6203
        %vm6253 = vcmp.eq.f32.partialorder %v6252, 8.507059e+37
        %v6254 = vand.u32 %v6203, 2147483648
        %v6255 = vor.u32 1.1754944e-38, %v6254
        %v6256 = vsel %vm6253, %v6255, %v6251
        %v6257 = vmul.f32 %v6180, %v6256
        %v6258 = vmul.f32 %v6182, %v6256
        %v6259 = vmul.f32 %v6184, %v6256
        %v6260 = vmul.f32 %v6186, %v6256
        %v6261 = vrcp.pop %v6206
        %v6262 = vmul.f32 %v6206, %v6261
        %v6263 = vsub.f32 1.0, %v6262
        %v6264 = vmul.f32 %v6261, %v6263
        %v6265 = vadd.f32 %v6261, %v6264
        %vm6266 = vweird.f32 %v6206
        %vm6267 = vweird.f32 %v6261
        %vm6268 = vmor %vm6266, %vm6267
        %v6269 = vsel %vm6268, %v6261, %v6265
        %v6270 = vand.u32 2147483647, %v6206
        %vm6271 = vcmp.eq.f32.partialorder %v6270, 8.507059e+37
        %v6272 = vand.u32 %v6206, 2147483648
        %v6273 = vor.u32 1.1754944e-38, %v6272
        %v6274 = vsel %vm6271, %v6273, %v6269
        %v6275 = vmul.f32 %v6188, %v6274
        %v6276 = vmul.f32 %v6190, %v6274
        %v6277 = vmul.f32 %v6192, %v6274
        %v6278 = vmul.f32 %v6194, %v6274
        %v6279 = vmul.f32 %v6221, %v5983
        %v6280 = vmul.f32 %v6222, %v5984
        %v6281 = vmul.f32 %v6223, %v5985
        %v6282 = vmul.f32 %v6224, %v5986
        %v6283 = vmul.f32 %v6239, %v5983
        %v6284 = vmul.f32 %v6240, %v5984
        %v6285 = vmul.f32 %v6241, %v5985
        %v6286 = vmul.f32 %v6242, %v5986
        %v6287 = vmul.f32 %v6257, %v5983
        %v6288 = vmul.f32 %v6258, %v5984
        %v6289 = vmul.f32 %v6259, %v5985
        %v6290 = vmul.f32 %v6260, %v5986
        %v6291 = vmul.f32 %v6275, %v5983
        %v6292 = vmul.f32 %v6276, %v5984
        %v6293 = vmul.f32 %v6277, %v5985
        %v6294 = vmul.f32 %v6278, %v5986
        %v6295 = vsel %vm3060, %v6279, 0.0
        %v6296 = vsel %vm3060, %v6280, 0.0
        %v6297 = vadd.f32 %v6295, %v6296
        %v6298 = vsel %vm3060, %v6281, 0.0
        %v6299 = vadd.f32 %v6297, %v6298
        %v6300 = vsel %vm3060, %v6282, 0.0
        %v6301 = vadd.f32 %v6299, %v6300
        %v6302 = vsel %vm3060, %v6283, 0.0
        %v6303 = vsel %vm3060, %v6284, 0.0
        %v6304 = vadd.f32 %v6302, %v6303
        %v6305 = vsel %vm3060, %v6285, 0.0
        %v6306 = vadd.f32 %v6304, %v6305
        %v6307 = vsel %vm3060, %v6286, 0.0
        %v6308 = vadd.f32 %v6306, %v6307
        %v6309 = vsel %vm3060, %v6287, 0.0
        %v6310 = vsel %vm3060, %v6288, 0.0
        %v6311 = vadd.f32 %v6309, %v6310
        %v6312 = vsel %vm3060, %v6289, 0.0
        %v6313 = vadd.f32 %v6311, %v6312
        %v6314 = vsel %vm3060, %v6290, 0.0
        %v6315 = vadd.f32 %v6313, %v6314
        %v6316 = vsel %vm3060, %v6291, 0.0
        %v6317 = vsel %vm3060, %v6292, 0.0
        %v6318 = vadd.f32 %v6316, %v6317
        %v6319 = vsel %vm3060, %v6293, 0.0
        %v6320 = vadd.f32 %v6318, %v6319
        %v6321 = vsel %vm3060, %v6294, 0.0
        %v6322 = vadd.f32 %v6320, %v6321
        %6327 = vrot.lane.b32.xlu0 %v6301, 64
        %v6328 = vpop.permute.xlu0 %6327
        %6329 = vrot.lane.b32.xlu0 %v6308, 64
        %v6330 = vpop.permute.xlu0 %6329
        %6331 = vrot.lane.b32.xlu0 %v6315, 64
        %v6332 = vpop.permute.xlu0 %6331
        %6333 = vrot.lane.b32.xlu0 %v6322, 64
        %v6334 = vpop.permute.xlu0 %6333
        %6339 = vst.msk [vmem:[#allocation2] sm:$0xff] %vm1611, %v6328
        %6340 = vst.msk [vmem:[#allocation2 + $0x8] sm:$0xff] %vm1611, %v6330
        %6341 = vst.msk [vmem:[#allocation2 + $0x10] sm:$0xff] %vm1611, %v6332
        %6342 = vst.msk [vmem:[#allocation2 + $0x18] sm:$0xff] %vm1611, %v6334
        %v6343 = vld [vmem:[#allocation3] sm:$0xff]
        %v6344 = vld [vmem:[#allocation3 + $0x8] sm:$0xff]
        %v6345 = vld [vmem:[#allocation3 + $0x10] sm:$0xff]
        %v6346 = vld [vmem:[#allocation3 + $0x18] sm:$0xff]
        %v6347 = vmul.f32 %v6343, 0.35355338
        %v6348 = vmul.f32 %v6344, 0.35355338
        %v6349 = vmul.f32 %v6345, 0.35355338
        %v6350 = vmul.f32 %v6346, 0.35355338
        %6355 = vrot.lane.b32.xlu0 %v6343, 96
        %v6356 = vpop.permute.xlu0 %6355
        %6357 = vrot.lane.b32.xlu0 %v6344, 96
        %v6358 = vpop.permute.xlu0 %6357
        %6359 = vrot.lane.b32.xlu0 %v6345, 96
        %v6360 = vpop.permute.xlu0 %6359
        %6361 = vrot.lane.b32.xlu0 %v6346, 96
        %v6362 = vpop.permute.xlu0 %6361
        %v6367 = vmul.f32 %v6347, %v6356
        %v6368 = vmul.f32 %v6347, %v6358
        %v6369 = vmul.f32 %v6347, %v6360
        %v6370 = vmul.f32 %v6347, %v6362
        %v6371 = vmul.f32 %v6348, %v6356
        %v6372 = vmul.f32 %v6348, %v6358
        %v6373 = vmul.f32 %v6348, %v6360
        %v6374 = vmul.f32 %v6348, %v6362
        %v6375 = vmul.f32 %v6349, %v6356
        %v6376 = vmul.f32 %v6349, %v6358
        %v6377 = vmul.f32 %v6349, %v6360
        %v6378 = vmul.f32 %v6349, %v6362
        %v6379 = vmul.f32 %v6350, %v6356
        %v6380 = vmul.f32 %v6350, %v6358
        %v6381 = vmul.f32 %v6350, %v6360
        %v6382 = vmul.f32 %v6350, %v6362
        %6399 = vrot.lane.b32.xlu0 %v6367, 112
        %v6400 = vpop.permute.xlu0 %6399
        %6401 = vrot.lane.b32.xlu0 %v6368, 112
        %v6402 = vpop.permute.xlu0 %6401
        %6403 = vrot.lane.b32.xlu0 %v6369, 112
        %v6404 = vpop.permute.xlu0 %6403
        %6405 = vrot.lane.b32.xlu0 %v6370, 112
        %v6406 = vpop.permute.xlu0 %6405
        %6407 = vrot.lane.b32.xlu0 %v6371, 112
        %v6408 = vpop.permute.xlu0 %6407
        %6409 = vrot.lane.b32.xlu0 %v6372, 112
        %v6410 = vpop.permute.xlu0 %6409
        %6411 = vrot.lane.b32.xlu0 %v6373, 112
        %v6412 = vpop.permute.xlu0 %6411
        %6413 = vrot.lane.b32.xlu0 %v6374, 112
        %v6414 = vpop.permute.xlu0 %6413
        %6415 = vrot.lane.b32.xlu0 %v6375, 112
        %v6416 = vpop.permute.xlu0 %6415
        %6417 = vrot.lane.b32.xlu0 %v6376, 112
        %v6418 = vpop.permute.xlu0 %6417
        %6419 = vrot.lane.b32.xlu0 %v6377, 112
        %v6420 = vpop.permute.xlu0 %6419
        %6421 = vrot.lane.b32.xlu0 %v6378, 112
        %v6422 = vpop.permute.xlu0 %6421
        %6423 = vrot.lane.b32.xlu0 %v6379, 112
        %v6424 = vpop.permute.xlu0 %6423
        %6425 = vrot.lane.b32.xlu0 %v6380, 112
        %v6426 = vpop.permute.xlu0 %6425
        %6427 = vrot.lane.b32.xlu0 %v6381, 112
        %v6428 = vpop.permute.xlu0 %6427
        %6429 = vrot.lane.b32.xlu0 %v6382, 112
        %v6430 = vpop.permute.xlu0 %6429
        %v6447 = vsel %vm1189, %v6400, 0.0
        %6448 = vadd.xlane.f32.xlu0 %v6447
        %v6449 = vpop.xlane.xlu0 %6448
        %v6450 = vsel %vm1189, %v6402, 0.0
        %6451 = vadd.xlane.f32.xlu0 %v6450
        %v6452 = vpop.xlane.xlu0 %6451
        %v6453 = vsel %vm1189, %v6404, 0.0
        %6454 = vadd.xlane.f32.xlu0 %v6453
        %v6455 = vpop.xlane.xlu0 %6454
        %v6456 = vsel %vm1189, %v6406, 0.0
        %6457 = vadd.xlane.f32.xlu0 %v6456
        %v6458 = vpop.xlane.xlu0 %6457
        %v6459 = vsel %vm1189, %v6408, 0.0
        %6460 = vadd.xlane.f32.xlu0 %v6459
        %v6461 = vpop.xlane.xlu0 %6460
        %v6462 = vsel %vm1189, %v6410, 0.0
        %6463 = vadd.xlane.f32.xlu0 %v6462
        %v6464 = vpop.xlane.xlu0 %6463
        %v6465 = vsel %vm1189, %v6412, 0.0
        %6466 = vadd.xlane.f32.xlu0 %v6465
        %v6467 = vpop.xlane.xlu0 %6466
        %v6468 = vsel %vm1189, %v6414, 0.0
        %6469 = vadd.xlane.f32.xlu0 %v6468
        %v6470 = vpop.xlane.xlu0 %6469
        %v6471 = vsel %vm1189, %v6416, 0.0
        %6472 = vadd.xlane.f32.xlu0 %v6471
        %v6473 = vpop.xlane.xlu0 %6472
        %v6474 = vsel %vm1189, %v6418, 0.0
        %6475 = vadd.xlane.f32.xlu0 %v6474
        %v6476 = vpop.xlane.xlu0 %6475
        %v6477 = vsel %vm1189, %v6420, 0.0
        %6478 = vadd.xlane.f32.xlu0 %v6477
        %v6479 = vpop.xlane.xlu0 %6478
        %v6480 = vsel %vm1189, %v6422, 0.0
        %6481 = vadd.xlane.f32.xlu0 %v6480
        %v6482 = vpop.xlane.xlu0 %6481
        %v6483 = vsel %vm1189, %v6424, 0.0
        %6484 = vadd.xlane.f32.xlu0 %v6483
        %v6485 = vpop.xlane.xlu0 %6484
        %v6486 = vsel %vm1189, %v6426, 0.0
        %6487 = vadd.xlane.f32.xlu0 %v6486
        %v6488 = vpop.xlane.xlu0 %6487
        %v6489 = vsel %vm1189, %v6428, 0.0
        %6490 = vadd.xlane.f32.xlu0 %v6489
        %v6491 = vpop.xlane.xlu0 %6490
        %v6492 = vsel %vm1189, %v6430, 0.0
        %6493 = vadd.xlane.f32.xlu0 %v6492
        %v6494 = vpop.xlane.xlu0 %6493
        %v6495 = vmax.f32 %v6449, %v6452
        %v6496 = vmax.f32 %v6495, %v6455
        %v6497 = vmax.f32 %v6496, %v6458
        %v6498 = vmax.f32 %v6461, %v6464
        %v6499 = vmax.f32 %v6498, %v6467
        %v6500 = vmax.f32 %v6499, %v6470
        %v6501 = vmax.f32 %v6473, %v6476
        %v6502 = vmax.f32 %v6501, %v6479
        %v6503 = vmax.f32 %v6502, %v6482
        %v6504 = vmax.f32 %v6485, %v6488
        %v6505 = vmax.f32 %v6504, %v6491
        %v6506 = vmax.f32 %v6505, %v6494
        %v6507 = vsub.f32 %v6449, %v6497
        %v6508 = vsub.f32 %v6452, %v6497
        %v6509 = vsub.f32 %v6455, %v6497
        %v6510 = vsub.f32 %v6458, %v6497
        %v6511 = vsub.f32 %v6461, %v6500
        %v6512 = vsub.f32 %v6464, %v6500
        %v6513 = vsub.f32 %v6467, %v6500
        %v6514 = vsub.f32 %v6470, %v6500
        %v6515 = vsub.f32 %v6473, %v6503
        %v6516 = vsub.f32 %v6476, %v6503
        %v6517 = vsub.f32 %v6479, %v6503
        %v6518 = vsub.f32 %v6482, %v6503
        %v6519 = vsub.f32 %v6485, %v6506
        %v6520 = vsub.f32 %v6488, %v6506
        %v6521 = vsub.f32 %v6491, %v6506
        %v6522 = vsub.f32 %v6494, %v6506
        %v6523 = vmul.f32 %v6507, 1.442695
        %v6524 = vpow.pop %v6523
        %v6525 = vmul.f32 %v6508, 1.442695
        %v6526 = vpow.pop %v6525
        %v6527 = vmul.f32 %v6509, 1.442695
        %v6528 = vpow.pop %v6527
        %v6529 = vmul.f32 %v6510, 1.442695
        %v6530 = vpow.pop %v6529
        %v6531 = vmul.f32 %v6511, 1.442695
        %v6532 = vpow.pop %v6531
        %v6533 = vmul.f32 %v6512, 1.442695
        %v6534 = vpow.pop %v6533
        %v6535 = vmul.f32 %v6513, 1.442695
        %v6536 = vpow.pop %v6535
        %v6537 = vmul.f32 %v6514, 1.442695
        %v6538 = vpow.pop %v6537
        %v6539 = vmul.f32 %v6515, 1.442695
        %v6540 = vpow.pop %v6539
        %v6541 = vmul.f32 %v6516, 1.442695
        %v6542 = vpow.pop %v6541
        %v6543 = vmul.f32 %v6517, 1.442695
        %v6544 = vpow.pop %v6543
        %v6545 = vmul.f32 %v6518, 1.442695
        %v6546 = vpow.pop %v6545
        %v6547 = vmul.f32 %v6519, 1.442695
        %v6548 = vpow.pop %v6547
        %v6549 = vmul.f32 %v6520, 1.442695
        %v6550 = vpow.pop %v6549
        %v6551 = vmul.f32 %v6521, 1.442695
        %v6552 = vpow.pop %v6551
        %v6553 = vmul.f32 %v6522, 1.442695
        %v6554 = vpow.pop %v6553
        %v6555 = vadd.f32 %v6524, %v6526
        %v6556 = vadd.f32 %v6555, %v6528
        %v6557 = vadd.f32 %v6556, %v6530
        %v6558 = vadd.f32 %v6532, %v6534
        %v6559 = vadd.f32 %v6558, %v6536
        %v6560 = vadd.f32 %v6559, %v6538
        %v6561 = vadd.f32 %v6540, %v6542
        %v6562 = vadd.f32 %v6561, %v6544
        %v6563 = vadd.f32 %v6562, %v6546
        %v6564 = vadd.f32 %v6548, %v6550
        %v6565 = vadd.f32 %v6564, %v6552
        %v6566 = vadd.f32 %v6565, %v6554
        %v6567 = vrcp.pop %v6557
        %v6568 = vmul.f32 %v6557, %v6567
        %v6569 = vsub.f32 1.0, %v6568
        %v6570 = vmul.f32 %v6567, %v6569
        %v6571 = vadd.f32 %v6567, %v6570
        %vm6572 = vweird.f32 %v6557
        %vm6573 = vweird.f32 %v6567
        %vm6574 = vmor %vm6572, %vm6573
        %v6575 = vsel %vm6574, %v6567, %v6571
        %v6576 = vand.u32 2147483647, %v6557
        %vm6577 = vcmp.eq.f32.partialorder %v6576, 8.507059e+37
        %v6578 = vand.u32 %v6557, 2147483648
        %v6579 = vor.u32 1.1754944e-38, %v6578
        %v6580 = vsel %vm6577, %v6579, %v6575
        %v6581 = vmul.f32 %v6524, %v6580
        %v6582 = vmul.f32 %v6526, %v6580
        %v6583 = vmul.f32 %v6528, %v6580
        %v6584 = vmul.f32 %v6530, %v6580
        %v6585 = vrcp.pop %v6560
        %v6586 = vmul.f32 %v6560, %v6585
        %v6587 = vsub.f32 1.0, %v6586
        %v6588 = vmul.f32 %v6585, %v6587
        %v6589 = vadd.f32 %v6585, %v6588
        %vm6590 = vweird.f32 %v6560
        %vm6591 = vweird.f32 %v6585
        %vm6592 = vmor %vm6590, %vm6591
        %v6593 = vsel %vm6592, %v6585, %v6589
        %v6594 = vand.u32 2147483647, %v6560
        %vm6595 = vcmp.eq.f32.partialorder %v6594, 8.507059e+37
        %v6596 = vand.u32 %v6560, 2147483648
        %v6597 = vor.u32 1.1754944e-38, %v6596
        %v6598 = vsel %vm6595, %v6597, %v6593
        %v6599 = vmul.f32 %v6532, %v6598
        %v6600 = vmul.f32 %v6534, %v6598
        %v6601 = vmul.f32 %v6536, %v6598
        %v6602 = vmul.f32 %v6538, %v6598
        %v6603 = vrcp.pop %v6563
        %v6604 = vmul.f32 %v6563, %v6603
        %v6605 = vsub.f32 1.0, %v6604
        %v6606 = vmul.f32 %v6603, %v6605
        %v6607 = vadd.f32 %v6603, %v6606
        %vm6608 = vweird.f32 %v6563
        %vm6609 = vweird.f32 %v6603
        %vm6610 = vmor %vm6608, %vm6609
        %v6611 = vsel %vm6610, %v6603, %v6607
        %v6612 = vand.u32 2147483647, %v6563
        %vm6613 = vcmp.eq.f32.partialorder %v6612, 8.507059e+37
        %v6614 = vand.u32 %v6563, 2147483648
        %v6615 = vor.u32 1.1754944e-38, %v6614
        %v6616 = vsel %vm6613, %v6615, %v6611
        %v6617 = vmul.f32 %v6540, %v6616
        %v6618 = vmul.f32 %v6542, %v6616
        %v6619 = vmul.f32 %v6544, %v6616
        %v6620 = vmul.f32 %v6546, %v6616
        %v6621 = vrcp.pop %v6566
        %v6622 = vmul.f32 %v6566, %v6621
        %v6623 = vsub.f32 1.0, %v6622
        %v6624 = vmul.f32 %v6621, %v6623
        %v6625 = vadd.f32 %v6621, %v6624
        %vm6626 = vweird.f32 %v6566
        %vm6627 = vweird.f32 %v6621
        %vm6628 = vmor %vm6626, %vm6627
        %v6629 = vsel %vm6628, %v6621, %v6625
        %v6630 = vand.u32 2147483647, %v6566
        %vm6631 = vcmp.eq.f32.partialorder %v6630, 8.507059e+37
        %v6632 = vand.u32 %v6566, 2147483648
        %v6633 = vor.u32 1.1754944e-38, %v6632
        %v6634 = vsel %vm6631, %v6633, %v6629
        %v6635 = vmul.f32 %v6548, %v6634
        %v6636 = vmul.f32 %v6550, %v6634
        %v6637 = vmul.f32 %v6552, %v6634
        %v6638 = vmul.f32 %v6554, %v6634
        %v6639 = vmul.f32 %v6581, %v6343
        %v6640 = vmul.f32 %v6582, %v6344
        %v6641 = vmul.f32 %v6583, %v6345
        %v6642 = vmul.f32 %v6584, %v6346
        %v6643 = vmul.f32 %v6599, %v6343
        %v6644 = vmul.f32 %v6600, %v6344
        %v6645 = vmul.f32 %v6601, %v6345
        %v6646 = vmul.f32 %v6602, %v6346
        %v6647 = vmul.f32 %v6617, %v6343
        %v6648 = vmul.f32 %v6618, %v6344
        %v6649 = vmul.f32 %v6619, %v6345
        %v6650 = vmul.f32 %v6620, %v6346
        %v6651 = vmul.f32 %v6635, %v6343
        %v6652 = vmul.f32 %v6636, %v6344
        %v6653 = vmul.f32 %v6637, %v6345
        %v6654 = vmul.f32 %v6638, %v6346
        %v6655 = vsel %vm3421, %v6639, 0.0
        %v6656 = vsel %vm3421, %v6640, 0.0
        %v6657 = vadd.f32 %v6655, %v6656
        %v6658 = vsel %vm3421, %v6641, 0.0
        %v6659 = vadd.f32 %v6657, %v6658
        %v6660 = vsel %vm3421, %v6642, 0.0
        %v6661 = vadd.f32 %v6659, %v6660
        %v6662 = vsel %vm3421, %v6643, 0.0
        %v6663 = vsel %vm3421, %v6644, 0.0
        %v6664 = vadd.f32 %v6662, %v6663
        %v6665 = vsel %vm3421, %v6645, 0.0
        %v6666 = vadd.f32 %v6664, %v6665
        %v6667 = vsel %vm3421, %v6646, 0.0
        %v6668 = vadd.f32 %v6666, %v6667
        %v6669 = vsel %vm3421, %v6647, 0.0
        %v6670 = vsel %vm3421, %v6648, 0.0
        %v6671 = vadd.f32 %v6669, %v6670
        %v6672 = vsel %vm3421, %v6649, 0.0
        %v6673 = vadd.f32 %v6671, %v6672
        %v6674 = vsel %vm3421, %v6650, 0.0
        %v6675 = vadd.f32 %v6673, %v6674
        %v6676 = vsel %vm3421, %v6651, 0.0
        %v6677 = vsel %vm3421, %v6652, 0.0
        %v6678 = vadd.f32 %v6676, %v6677
        %v6679 = vsel %vm3421, %v6653, 0.0
        %v6680 = vadd.f32 %v6678, %v6679
        %v6681 = vsel %vm3421, %v6654, 0.0
        %v6682 = vadd.f32 %v6680, %v6681
        %6687 = vrot.lane.b32.xlu0 %v6661, 64
        %v6688 = vpop.permute.xlu0 %6687
        %6689 = vrot.lane.b32.xlu0 %v6668, 64
        %v6690 = vpop.permute.xlu0 %6689
        %6691 = vrot.lane.b32.xlu0 %v6675, 64
        %v6692 = vpop.permute.xlu0 %6691
        %6693 = vrot.lane.b32.xlu0 %v6682, 64
        %v6694 = vpop.permute.xlu0 %6693
        %6699 = vst.msk [vmem:[#allocation2] sm:$0xff] %vm1881, %v6688
        %6700 = vst.msk [vmem:[#allocation2 + $0x8] sm:$0xff] %vm1881, %v6690
        %6701 = vst.msk [vmem:[#allocation2 + $0x10] sm:$0xff] %vm1881, %v6692
        %6702 = vst.msk [vmem:[#allocation2 + $0x18] sm:$0xff] %vm1881, %v6694
        %v6703 = vld [vmem:[#allocation3] sm:$0xff]
        %v6704 = vld [vmem:[#allocation3 + $0x8] sm:$0xff]
        %v6705 = vld [vmem:[#allocation3 + $0x10] sm:$0xff]
        %v6706 = vld [vmem:[#allocation3 + $0x18] sm:$0xff]
        %v6707 = vmul.f32 %v6703, 0.35355338
        %v6708 = vmul.f32 %v6704, 0.35355338
        %v6709 = vmul.f32 %v6705, 0.35355338
        %v6710 = vmul.f32 %v6706, 0.35355338
        %6715 = vrot.lane.b32.xlu0 %v6703, 96
        %v6716 = vpop.permute.xlu0 %6715
        %6717 = vrot.lane.b32.xlu0 %v6704, 96
        %v6718 = vpop.permute.xlu0 %6717
        %6719 = vrot.lane.b32.xlu0 %v6705, 96
        %v6720 = vpop.permute.xlu0 %6719
        %6721 = vrot.lane.b32.xlu0 %v6706, 96
        %v6722 = vpop.permute.xlu0 %6721
        %v6727 = vmul.f32 %v6707, %v6716
        %v6728 = vmul.f32 %v6707, %v6718
        %v6729 = vmul.f32 %v6707, %v6720
        %v6730 = vmul.f32 %v6707, %v6722
        %v6731 = vmul.f32 %v6708, %v6716
        %v6732 = vmul.f32 %v6708, %v6718
        %v6733 = vmul.f32 %v6708, %v6720
        %v6734 = vmul.f32 %v6708, %v6722
        %v6735 = vmul.f32 %v6709, %v6716
        %v6736 = vmul.f32 %v6709, %v6718
        %v6737 = vmul.f32 %v6709, %v6720
        %v6738 = vmul.f32 %v6709, %v6722
        %v6739 = vmul.f32 %v6710, %v6716
        %v6740 = vmul.f32 %v6710, %v6718
        %v6741 = vmul.f32 %v6710, %v6720
        %v6742 = vmul.f32 %v6710, %v6722
        %6759 = vrot.lane.b32.xlu0 %v6727, 104
        %v6760 = vpop.permute.xlu0 %6759
        %6761 = vrot.lane.b32.xlu0 %v6728, 104
        %v6762 = vpop.permute.xlu0 %6761
        %6763 = vrot.lane.b32.xlu0 %v6729, 104
        %v6764 = vpop.permute.xlu0 %6763
        %6765 = vrot.lane.b32.xlu0 %v6730, 104
        %v6766 = vpop.permute.xlu0 %6765
        %6767 = vrot.lane.b32.xlu0 %v6731, 104
        %v6768 = vpop.permute.xlu0 %6767
        %6769 = vrot.lane.b32.xlu0 %v6732, 104
        %v6770 = vpop.permute.xlu0 %6769
        %6771 = vrot.lane.b32.xlu0 %v6733, 104
        %v6772 = vpop.permute.xlu0 %6771
        %6773 = vrot.lane.b32.xlu0 %v6734, 104
        %v6774 = vpop.permute.xlu0 %6773
        %6775 = vrot.lane.b32.xlu0 %v6735, 104
        %v6776 = vpop.permute.xlu0 %6775
        %6777 = vrot.lane.b32.xlu0 %v6736, 104
        %v6778 = vpop.permute.xlu0 %6777
        %6779 = vrot.lane.b32.xlu0 %v6737, 104
        %v6780 = vpop.permute.xlu0 %6779
        %6781 = vrot.lane.b32.xlu0 %v6738, 104
        %v6782 = vpop.permute.xlu0 %6781
        %6783 = vrot.lane.b32.xlu0 %v6739, 104
        %v6784 = vpop.permute.xlu0 %6783
        %6785 = vrot.lane.b32.xlu0 %v6740, 104
        %v6786 = vpop.permute.xlu0 %6785
        %6787 = vrot.lane.b32.xlu0 %v6741, 104
        %v6788 = vpop.permute.xlu0 %6787
        %6789 = vrot.lane.b32.xlu0 %v6742, 104
        %v6790 = vpop.permute.xlu0 %6789
        %v6807 = vsel %vm1189, %v6760, 0.0
        %6808 = vadd.xlane.f32.xlu0 %v6807
        %v6809 = vpop.xlane.xlu0 %6808
        %v6810 = vsel %vm1189, %v6762, 0.0
        %6811 = vadd.xlane.f32.xlu0 %v6810
        %v6812 = vpop.xlane.xlu0 %6811
        %v6813 = vsel %vm1189, %v6764, 0.0
        %6814 = vadd.xlane.f32.xlu0 %v6813
        %v6815 = vpop.xlane.xlu0 %6814
        %v6816 = vsel %vm1189, %v6766, 0.0
        %6817 = vadd.xlane.f32.xlu0 %v6816
        %v6818 = vpop.xlane.xlu0 %6817
        %v6819 = vsel %vm1189, %v6768, 0.0
        %6820 = vadd.xlane.f32.xlu0 %v6819
        %v6821 = vpop.xlane.xlu0 %6820
        %v6822 = vsel %vm1189, %v6770, 0.0
        %6823 = vadd.xlane.f32.xlu0 %v6822
        %v6824 = vpop.xlane.xlu0 %6823
        %v6825 = vsel %vm1189, %v6772, 0.0
        %6826 = vadd.xlane.f32.xlu0 %v6825
        %v6827 = vpop.xlane.xlu0 %6826
        %v6828 = vsel %vm1189, %v6774, 0.0
        %6829 = vadd.xlane.f32.xlu0 %v6828
        %v6830 = vpop.xlane.xlu0 %6829
        %v6831 = vsel %vm1189, %v6776, 0.0
        %6832 = vadd.xlane.f32.xlu0 %v6831
        %v6833 = vpop.xlane.xlu0 %6832
        %v6834 = vsel %vm1189, %v6778, 0.0
        %6835 = vadd.xlane.f32.xlu0 %v6834
        %v6836 = vpop.xlane.xlu0 %6835
        %v6837 = vsel %vm1189, %v6780, 0.0
        %6838 = vadd.xlane.f32.xlu0 %v6837
        %v6839 = vpop.xlane.xlu0 %6838
        %v6840 = vsel %vm1189, %v6782, 0.0
        %6841 = vadd.xlane.f32.xlu0 %v6840
        %v6842 = vpop.xlane.xlu0 %6841
        %v6843 = vsel %vm1189, %v6784, 0.0
        %6844 = vadd.xlane.f32.xlu0 %v6843
        %v6845 = vpop.xlane.xlu0 %6844
        %v6846 = vsel %vm1189, %v6786, 0.0
        %6847 = vadd.xlane.f32.xlu0 %v6846
        %v6848 = vpop.xlane.xlu0 %6847
        %v6849 = vsel %vm1189, %v6788, 0.0
        %6850 = vadd.xlane.f32.xlu0 %v6849
        %v6851 = vpop.xlane.xlu0 %6850
        %v6852 = vsel %vm1189, %v6790, 0.0
        %6853 = vadd.xlane.f32.xlu0 %v6852
        %v6854 = vpop.xlane.xlu0 %6853
        %v6855 = vmax.f32 %v6809, %v6812
        %v6856 = vmax.f32 %v6855, %v6815
        %v6857 = vmax.f32 %v6856, %v6818
        %v6858 = vmax.f32 %v6821, %v6824
        %v6859 = vmax.f32 %v6858, %v6827
        %v6860 = vmax.f32 %v6859, %v6830
        %v6861 = vmax.f32 %v6833, %v6836
        %v6862 = vmax.f32 %v6861, %v6839
        %v6863 = vmax.f32 %v6862, %v6842
        %v6864 = vmax.f32 %v6845, %v6848
        %v6865 = vmax.f32 %v6864, %v6851
        %v6866 = vmax.f32 %v6865, %v6854
        %v6867 = vsub.f32 %v6809, %v6857
        %v6868 = vsub.f32 %v6812, %v6857
        %v6869 = vsub.f32 %v6815, %v6857
        %v6870 = vsub.f32 %v6818, %v6857
        %v6871 = vsub.f32 %v6821, %v6860
        %v6872 = vsub.f32 %v6824, %v6860
        %v6873 = vsub.f32 %v6827, %v6860
        %v6874 = vsub.f32 %v6830, %v6860
        %v6875 = vsub.f32 %v6833, %v6863
        %v6876 = vsub.f32 %v6836, %v6863
        %v6877 = vsub.f32 %v6839, %v6863
        %v6878 = vsub.f32 %v6842, %v6863
        %v6879 = vsub.f32 %v6845, %v6866
        %v6880 = vsub.f32 %v6848, %v6866
        %v6881 = vsub.f32 %v6851, %v6866
        %v6882 = vsub.f32 %v6854, %v6866
        %v6883 = vmul.f32 %v6867, 1.442695
        %v6884 = vpow.pop %v6883
        %v6885 = vmul.f32 %v6868, 1.442695
        %v6886 = vpow.pop %v6885
        %v6887 = vmul.f32 %v6869, 1.442695
        %v6888 = vpow.pop %v6887
        %v6889 = vmul.f32 %v6870, 1.442695
        %v6890 = vpow.pop %v6889
        %v6891 = vmul.f32 %v6871, 1.442695
        %v6892 = vpow.pop %v6891
        %v6893 = vmul.f32 %v6872, 1.442695
        %v6894 = vpow.pop %v6893
        %v6895 = vmul.f32 %v6873, 1.442695
        %v6896 = vpow.pop %v6895
        %v6897 = vmul.f32 %v6874, 1.442695
        %v6898 = vpow.pop %v6897
        %v6899 = vmul.f32 %v6875, 1.442695
        %v6900 = vpow.pop %v6899
        %v6901 = vmul.f32 %v6876, 1.442695
        %v6902 = vpow.pop %v6901
        %v6903 = vmul.f32 %v6877, 1.442695
        %v6904 = vpow.pop %v6903
        %v6905 = vmul.f32 %v6878, 1.442695
        %v6906 = vpow.pop %v6905
        %v6907 = vmul.f32 %v6879, 1.442695
        %v6908 = vpow.pop %v6907
        %v6909 = vmul.f32 %v6880, 1.442695
        %v6910 = vpow.pop %v6909
        %v6911 = vmul.f32 %v6881, 1.442695
        %v6912 = vpow.pop %v6911
        %v6913 = vmul.f32 %v6882, 1.442695
        %v6914 = vpow.pop %v6913
        %v6915 = vadd.f32 %v6884, %v6886
        %v6916 = vadd.f32 %v6915, %v6888
        %v6917 = vadd.f32 %v6916, %v6890
        %v6918 = vadd.f32 %v6892, %v6894
        %v6919 = vadd.f32 %v6918, %v6896
        %v6920 = vadd.f32 %v6919, %v6898
        %v6921 = vadd.f32 %v6900, %v6902
        %v6922 = vadd.f32 %v6921, %v6904
        %v6923 = vadd.f32 %v6922, %v6906
        %v6924 = vadd.f32 %v6908, %v6910
        %v6925 = vadd.f32 %v6924, %v6912
        %v6926 = vadd.f32 %v6925, %v6914
        %v6927 = vrcp.pop %v6917
        %v6928 = vmul.f32 %v6917, %v6927
        %v6929 = vsub.f32 1.0, %v6928
        %v6930 = vmul.f32 %v6927, %v6929
        %v6931 = vadd.f32 %v6927, %v6930
        %vm6932 = vweird.f32 %v6917
        %vm6933 = vweird.f32 %v6927
        %vm6934 = vmor %vm6932, %vm6933
        %v6935 = vsel %vm6934, %v6927, %v6931
        %v6936 = vand.u32 2147483647, %v6917
        %vm6937 = vcmp.eq.f32.partialorder %v6936, 8.507059e+37
        %v6938 = vand.u32 %v6917, 2147483648
        %v6939 = vor.u32 1.1754944e-38, %v6938
        %v6940 = vsel %vm6937, %v6939, %v6935
        %v6941 = vmul.f32 %v6884, %v6940
        %v6942 = vmul.f32 %v6886, %v6940
        %v6943 = vmul.f32 %v6888, %v6940
        %v6944 = vmul.f32 %v6890, %v6940
        %v6945 = vrcp.pop %v6920
        %v6946 = vmul.f32 %v6920, %v6945
        %v6947 = vsub.f32 1.0, %v6946
        %v6948 = vmul.f32 %v6945, %v6947
        %v6949 = vadd.f32 %v6945, %v6948
        %vm6950 = vweird.f32 %v6920
        %vm6951 = vweird.f32 %v6945
        %vm6952 = vmor %vm6950, %vm6951
        %v6953 = vsel %vm6952, %v6945, %v6949
        %v6954 = vand.u32 2147483647, %v6920
        %vm6955 = vcmp.eq.f32.partialorder %v6954, 8.507059e+37
        %v6956 = vand.u32 %v6920, 2147483648
        %v6957 = vor.u32 1.1754944e-38, %v6956
        %v6958 = vsel %vm6955, %v6957, %v6953
        %v6959 = vmul.f32 %v6892, %v6958
        %v6960 = vmul.f32 %v6894, %v6958
        %v6961 = vmul.f32 %v6896, %v6958
        %v6962 = vmul.f32 %v6898, %v6958
        %v6963 = vrcp.pop %v6923
        %v6964 = vmul.f32 %v6923, %v6963
        %v6965 = vsub.f32 1.0, %v6964
        %v6966 = vmul.f32 %v6963, %v6965
        %v6967 = vadd.f32 %v6963, %v6966
        %vm6968 = vweird.f32 %v6923
        %vm6969 = vweird.f32 %v6963
        %vm6970 = vmor %vm6968, %vm6969
        %v6971 = vsel %vm6970, %v6963, %v6967
        %v6972 = vand.u32 2147483647, %v6923
        %vm6973 = vcmp.eq.f32.partialorder %v6972, 8.507059e+37
        %v6974 = vand.u32 %v6923, 2147483648
        %v6975 = vor.u32 1.1754944e-38, %v6974
        %v6976 = vsel %vm6973, %v6975, %v6971
        %v6977 = vmul.f32 %v6900, %v6976
        %v6978 = vmul.f32 %v6902, %v6976
        %v6979 = vmul.f32 %v6904, %v6976
        %v6980 = vmul.f32 %v6906, %v6976
        %v6981 = vrcp.pop %v6926
        %v6982 = vmul.f32 %v6926, %v6981
        %v6983 = vsub.f32 1.0, %v6982
        %v6984 = vmul.f32 %v6981, %v6983
        %v6985 = vadd.f32 %v6981, %v6984
        %vm6986 = vweird.f32 %v6926
        %vm6987 = vweird.f32 %v6981
        %vm6988 = vmor %vm6986, %vm6987
        %v6989 = vsel %vm6988, %v6981, %v6985
        %v6990 = vand.u32 2147483647, %v6926
        %vm6991 = vcmp.eq.f32.partialorder %v6990, 8.507059e+37
        %v6992 = vand.u32 %v6926, 2147483648
        %v6993 = vor.u32 1.1754944e-38, %v6992
        %v6994 = vsel %vm6991, %v6993, %v6989
        %v6995 = vmul.f32 %v6908, %v6994
        %v6996 = vmul.f32 %v6910, %v6994
        %v6997 = vmul.f32 %v6912, %v6994
        %v6998 = vmul.f32 %v6914, %v6994
        %v6999 = vmul.f32 %v6941, %v6703
        %v7000 = vmul.f32 %v6942, %v6704
        %v7001 = vmul.f32 %v6943, %v6705
        %v7002 = vmul.f32 %v6944, %v6706
        %v7003 = vmul.f32 %v6959, %v6703
        %v7004 = vmul.f32 %v6960, %v6704
        %v7005 = vmul.f32 %v6961, %v6705
        %v7006 = vmul.f32 %v6962, %v6706
        %v7007 = vmul.f32 %v6977, %v6703
        %v7008 = vmul.f32 %v6978, %v6704
        %v7009 = vmul.f32 %v6979, %v6705
        %v7010 = vmul.f32 %v6980, %v6706
        %v7011 = vmul.f32 %v6995, %v6703
        %v7012 = vmul.f32 %v6996, %v6704
        %v7013 = vmul.f32 %v6997, %v6705
        %v7014 = vmul.f32 %v6998, %v6706
        %v7015 = vsel %vm3782, %v6999, 0.0
        %v7016 = vsel %vm3782, %v7000, 0.0
        %v7017 = vadd.f32 %v7015, %v7016
        %v7018 = vsel %vm3782, %v7001, 0.0
        %v7019 = vadd.f32 %v7017, %v7018
        %v7020 = vsel %vm3782, %v7002, 0.0
        %v7021 = vadd.f32 %v7019, %v7020
        %v7022 = vsel %vm3782, %v7003, 0.0
        %v7023 = vsel %vm3782, %v7004, 0.0
        %v7024 = vadd.f32 %v7022, %v7023
        %v7025 = vsel %vm3782, %v7005, 0.0
        %v7026 = vadd.f32 %v7024, %v7025
        %v7027 = vsel %vm3782, %v7006, 0.0
        %v7028 = vadd.f32 %v7026, %v7027
        %v7029 = vsel %vm3782, %v7007, 0.0
        %v7030 = vsel %vm3782, %v7008, 0.0
        %v7031 = vadd.f32 %v7029, %v7030
        %v7032 = vsel %vm3782, %v7009, 0.0
        %v7033 = vadd.f32 %v7031, %v7032
        %v7034 = vsel %vm3782, %v7010, 0.0
        %v7035 = vadd.f32 %v7033, %v7034
        %v7036 = vsel %vm3782, %v7011, 0.0
        %v7037 = vsel %vm3782, %v7012, 0.0
        %v7038 = vadd.f32 %v7036, %v7037
        %v7039 = vsel %vm3782, %v7013, 0.0
        %v7040 = vadd.f32 %v7038, %v7039
        %v7041 = vsel %vm3782, %v7014, 0.0
        %v7042 = vadd.f32 %v7040, %v7041
        %7047 = vrot.lane.b32.xlu0 %v7021, 64
        %v7048 = vpop.permute.xlu0 %7047
        %7049 = vrot.lane.b32.xlu0 %v7028, 64
        %v7050 = vpop.permute.xlu0 %7049
        %7051 = vrot.lane.b32.xlu0 %v7035, 64
        %v7052 = vpop.permute.xlu0 %7051
        %7053 = vrot.lane.b32.xlu0 %v7042, 64
        %v7054 = vpop.permute.xlu0 %7053
        %7059 = vst.msk [vmem:[#allocation2] sm:$0xff] %vm2151, %v7048
        %7060 = vst.msk [vmem:[#allocation2 + $0x8] sm:$0xff] %vm2151, %v7050
        %7061 = vst.msk [vmem:[#allocation2 + $0x10] sm:$0xff] %vm2151, %v7052
        %7062 = vst.msk [vmem:[#allocation2 + $0x18] sm:$0xff] %vm2151, %v7054
        %v7063 = vld [vmem:[#allocation2] sm:$0xff]
        %v7064 = vld [vmem:[#allocation2 + $0x8] sm:$0xff]
        %v7065 = vld [vmem:[#allocation2 + $0x10] sm:$0xff]
        %v7066 = vld [vmem:[#allocation2 + $0x18] sm:$0xff]
        %s7067 = scalar_lea.vmem %s23, 32
        %v7068 = vld [vmem:[%s7067] sm:$0xff]
        %v7069 = vld [vmem:[%s7067 + $0x8] sm:$0xff]
        %v7070 = vld [vmem:[%s7067 + $0x10] sm:$0xff]
        %v7071 = vld [vmem:[%s7067 + $0x18] sm:$0xff]
        %s7072 = scalar_lea.vmem %s25, 1
        %v7073 = vld [vmem:[%s7072] sm:$0x1]
        %v7075 = vperm.slane %v7073, 0
        %v7078 = vsel %vm910, %v7063, 0
        %v7081 = vsel %vm910, %v7064, 0
        %v7084 = vsel %vm910, %v7065, 0
        %v7087 = vsel %vm910, %v7066, 0
        %7089 = vmatpush.msra.mxu0 0.0
        %7090 = vmatpush.msra.mxu0 0.0
        %7091 = vmatpush.msra.mxu0 0.0
        %7092 = vmatpush.msra.mxu0 0.0
        %7093 = vmatpush.msra.mxu0 0.0
        %7094 = vmatpush.msra.mxu0 0.0
        %7095 = vmatpush.msra.mxu0 0.0
        %7096 = vmatpush.msra.mxu0 0.0
        %7097 = vmatpush.msra.mxu0 0.0
        %7098 = vmatpush.msra.mxu0 0.0
        %7099 = vmatpush.msra.mxu0 0.0
        %7100 = vmatpush.msra.mxu0 0.0
        %7101 = vmatpush.msra.mxu0 %v7071
        %7102 = vmatpush.msra.mxu0 %v7070
        %7103 = vmatpush.msra.mxu0 %v7069
        %7104 = vmatpush.msra.mxu0 %v7068
        %7105 = vmatmul.f32.gmra.mxu0 %v7078
        %v7106 = vpop.f32.mrf.mxu0
        %v7107 = vadd.f32 %v7075, %v7106
        %7108 = vmatmul.f32.gmra.mxu0 %v7081
        %v7109 = vpop.f32.mrf.mxu0
        %v7110 = vadd.f32 %v7075, %v7109
        %7111 = vmatmul.f32.gmra.mxu0 %v7084
        %v7112 = vpop.f32.mrf.mxu0
        %v7113 = vadd.f32 %v7075, %v7112
        %7114 = vmatmul.f32.gmra.mxu0 %v7087
        %v7115 = vpop.f32.mrf.mxu0
        %v7116 = vadd.f32 %v7075, %v7115
        %7117 = vdwg.mxu0
        %v7118 = vadd.f32 %v5522, %v7107
        %v7119 = vadd.f32 %v5523, %v7110
        %v7120 = vadd.f32 %v5524, %v7113
        %v7121 = vadd.f32 %v5525, %v7116
        %s7122 = scalar_lea.vmem %s27, 1
        %v7123 = vld [vmem:[%s7122] sm:$0x1]
        %s7124 = scalar_lea.vmem %s29, 1
        %v7125 = vld [vmem:[%s7124] sm:$0x1]
        %v7126 = vsel %vm910, %v7118, 0.0
        %7127 = vadd.xlane.f32.xlu0 %v7126
        %v7128 = vpop.xlane.xlu0 %7127
        %v7129 = vsel %vm910, %v7119, 0.0
        %7130 = vadd.xlane.f32.xlu0 %v7129
        %v7131 = vpop.xlane.xlu0 %7130
        %v7132 = vsel %vm910, %v7120, 0.0
        %7133 = vadd.xlane.f32.xlu0 %v7132
        %v7134 = vpop.xlane.xlu0 %7133
        %v7135 = vsel %vm910, %v7121, 0.0
        %7136 = vadd.xlane.f32.xlu0 %v7135
        %v7137 = vpop.xlane.xlu0 %7136
        %v7138 = vmul.f32 %v7128, %v929
        %v7139 = vmul.f32 %v7131, %v929
        %v7140 = vmul.f32 %v7134, %v929
        %v7141 = vmul.f32 %v7137, %v929
        %v7142 = vsub.f32 %v7118, %v7138
        %v7143 = vsub.f32 %v7119, %v7139
        %v7144 = vsub.f32 %v7120, %v7140
        %v7145 = vsub.f32 %v7121, %v7141
        %v7146 = vmul.f32 %v7142, %v7142
        %v7147 = vmul.f32 %v7143, %v7143
        %v7148 = vmul.f32 %v7144, %v7144
        %v7149 = vmul.f32 %v7145, %v7145
        %v7150 = vsel %vm910, %v7146, 0.0
        %7151 = vadd.xlane.f32.xlu0 %v7150
        %v7152 = vpop.xlane.xlu0 %7151
        %v7153 = vsel %vm910, %v7147, 0.0
        %7154 = vadd.xlane.f32.xlu0 %v7153
        %v7155 = vpop.xlane.xlu0 %7154
        %v7156 = vsel %vm910, %v7148, 0.0
        %7157 = vadd.xlane.f32.xlu0 %v7156
        %v7158 = vpop.xlane.xlu0 %7157
        %v7159 = vsel %vm910, %v7149, 0.0
        %7160 = vadd.xlane.f32.xlu0 %v7159
        %v7161 = vpop.xlane.xlu0 %7160
        %v7162 = vmul.f32 %v7152, %v929
        %v7163 = vmul.f32 %v7155, %v929
        %v7164 = vmul.f32 %v7158, %v929
        %v7165 = vmul.f32 %v7161, %v929
        %v7166 = vadd.f32 %v7162, 1e-05
        %v7167 = vadd.f32 %v7163, 1e-05
        %v7168 = vadd.f32 %v7164, 1e-05
        %v7169 = vadd.f32 %v7165, 1e-05
        %v7170 = vrsqrt.pop %v7166
        %v7171 = vmul.f32 %v7170, %v7166
        %v7172 = vmul.f32 %v7171, %v7170
        %v7173 = vmul.f32 0.5, %v7172
        %v7174 = vsub.f32 1.5, %v7173
        %v7175 = vmul.f32 %v7170, %v7174
        %vm7176 = vweird.f32 %v7166
        %vm7177 = vweird.f32 %v7170
        %vm7178 = vmor %vm7176, %vm7177
        %v7179 = vsel %vm7178, %v7170, %v7175
        %v7180 = vrsqrt.pop %v7167
        %v7181 = vmul.f32 %v7180, %v7167
        %v7182 = vmul.f32 %v7181, %v7180
        %v7183 = vmul.f32 0.5, %v7182
        %v7184 = vsub.f32 1.5, %v7183
        %v7185 = vmul.f32 %v7180, %v7184
        %vm7186 = vweird.f32 %v7167
        %vm7187 = vweird.f32 %v7180
        %vm7188 = vmor %vm7186, %vm7187
        %v7189 = vsel %vm7188, %v7180, %v7185
        %v7190 = vrsqrt.pop %v7168
        %v7191 = vmul.f32 %v7190, %v7168
        %v7192 = vmul.f32 %v7191, %v7190
        %v7193 = vmul.f32 0.5, %v7192
        %v7194 = vsub.f32 1.5, %v7193
        %v7195 = vmul.f32 %v7190, %v7194
        %vm7196 = vweird.f32 %v7168
        %vm7197 = vweird.f32 %v7190
        %vm7198 = vmor %vm7196, %vm7197
        %v7199 = vsel %vm7198, %v7190, %v7195
        %v7200 = vrsqrt.pop %v7169
        %v7201 = vmul.f32 %v7200, %v7169
        %v7202 = vmul.f32 %v7201, %v7200
        %v7203 = vmul.f32 0.5, %v7202
        %v7204 = vsub.f32 1.5, %v7203
        %v7205 = vmul.f32 %v7200, %v7204
        %vm7206 = vweird.f32 %v7169
        %vm7207 = vweird.f32 %v7200
        %vm7208 = vmor %vm7206, %vm7207
        %v7209 = vsel %vm7208, %v7200, %v7205
        %v7210 = vmul.f32 %v7142, %v7179
        %v7211 = vmul.f32 %v7143, %v7189
        %v7212 = vmul.f32 %v7144, %v7199
        %v7213 = vmul.f32 %v7145, %v7209
        %v7215 = vperm.slane %v7123, 0
        %v7217 = vmul.f32 %v7210, %v7215
        %v7218 = vmul.f32 %v7211, %v7215
        %v7219 = vmul.f32 %v7212, %v7215
        %v7220 = vmul.f32 %v7213, %v7215
        %v7222 = vperm.slane %v7125, 0
        %v7224 = vadd.f32 %v7217, %v7222
        %v7225 = vadd.f32 %v7218, %v7222
        %v7226 = vadd.f32 %v7219, %v7222
        %v7227 = vadd.f32 %v7220, %v7222
        %s7228 = scalar_lea.vmem %s31, 32
        %v7229 = vld [vmem:[%s7228] sm:$0xff]
        %v7230 = vld [vmem:[%s7228 + $0x8] sm:$0xff]
        %v7231 = vld [vmem:[%s7228 + $0x10] sm:$0xff]
        %v7232 = vld [vmem:[%s7228 + $0x18] sm:$0xff]
        %s7233 = scalar_lea.vmem %s33, 1
        %v7234 = vld [vmem:[%s7233] sm:$0x1]
        %v7236 = vperm.slane %v7234, 0
        %v7239 = vsel %vm910, %v7224, 0
        %v7242 = vsel %vm910, %v7225, 0
        %v7245 = vsel %vm910, %v7226, 0
        %v7248 = vsel %vm910, %v7227, 0
        %7250 = vmatpush.msra.mxu0 0.0
        %7251 = vmatpush.msra.mxu0 0.0
        %7252 = vmatpush.msra.mxu0 0.0
        %7253 = vmatpush.msra.mxu0 0.0
        %7254 = vmatpush.msra.mxu0 0.0
        %7255 = vmatpush.msra.mxu0 0.0
        %7256 = vmatpush.msra.mxu0 0.0
        %7257 = vmatpush.msra.mxu0 0.0
        %7258 = vmatpush.msra.mxu0 0.0
        %7259 = vmatpush.msra.mxu0 0.0
        %7260 = vmatpush.msra.mxu0 0.0
        %7261 = vmatpush.msra.mxu0 0.0
        %7262 = vmatpush.msra.mxu0 %v7232
        %7263 = vmatpush.msra.mxu0 %v7231
        %7264 = vmatpush.msra.mxu0 %v7230
        %7265 = vmatpush.msra.mxu0 %v7229
        %7266 = vmatmul.f32.gmra.mxu0 %v7239
        %v7267 = vpop.f32.mrf.mxu0
        %v7268 = vadd.f32 %v7236, %v7267
        %7269 = vmatmul.f32.gmra.mxu0 %v7242
        %v7270 = vpop.f32.mrf.mxu0
        %v7271 = vadd.f32 %v7236, %v7270
        %7272 = vmatmul.f32.gmra.mxu0 %v7245
        %v7273 = vpop.f32.mrf.mxu0
        %v7274 = vadd.f32 %v7236, %v7273
        %7275 = vmatmul.f32.gmra.mxu0 %v7248
        %v7276 = vpop.f32.mrf.mxu0
        %v7277 = vadd.f32 %v7236, %v7276
        %7278 = vdwg.mxu0
        %v7279 = vmul.f32 %v7268, 0.5
        %v7280 = vmul.f32 %v7271, 0.5
        %v7281 = vmul.f32 %v7274, 0.5
        %v7282 = vmul.f32 %v7277, 0.5
        %v7283 = vmul.f32 %v7268, 0.70710677
        %v7284 = vmul.f32 %v7271, 0.70710677
        %v7285 = vmul.f32 %v7274, 0.70710677
        %v7286 = vmul.f32 %v7277, 0.70710677
        %v7287 = vand.u32 2147483647, %v7283
        %v7288 = vand.u32 2147483647, %v7284
        %v7289 = vand.u32 2147483647, %v7285
        %v7290 = vand.u32 2147483647, %v7286
        %v7291 = vmul.f32 %v7287, 0.3275911
        %v7292 = vmul.f32 %v7288, 0.3275911
        %v7293 = vmul.f32 %v7289, 0.3275911
        %v7294 = vmul.f32 %v7290, 0.3275911
        %v7295 = vadd.f32 %v7291, 1.0
        %v7296 = vadd.f32 %v7292, 1.0
        %v7297 = vadd.f32 %v7293, 1.0
        %v7298 = vadd.f32 %v7294, 1.0
        %v7299 = vrcp.pop %v7295
        %v7300 = vmul.f32 %v7295, %v7299
        %v7301 = vsub.f32 1.0, %v7300
        %v7302 = vmul.f32 %v7299, %v7301
        %v7303 = vadd.f32 %v7299, %v7302
        %vm7304 = vweird.f32 %v7295
        %vm7305 = vweird.f32 %v7299
        %vm7306 = vmor %vm7304, %vm7305
        %v7307 = vsel %vm7306, %v7299, %v7303
        %v7308 = vand.u32 2147483647, %v7295
        %vm7309 = vcmp.eq.f32.partialorder %v7308, 8.507059e+37
        %v7310 = vand.u32 %v7295, 2147483648
        %v7311 = vor.u32 1.1754944e-38, %v7310
        %v7312 = vsel %vm7309, %v7311, %v7307
        %v7313 = vmul.f32 1.0, %v7312
        %v7314 = vrcp.pop %v7296
        %v7315 = vmul.f32 %v7296, %v7314
        %v7316 = vsub.f32 1.0, %v7315
        %v7317 = vmul.f32 %v7314, %v7316
        %v7318 = vadd.f32 %v7314, %v7317
        %vm7319 = vweird.f32 %v7296
        %vm7320 = vweird.f32 %v7314
        %vm7321 = vmor %vm7319, %vm7320
        %v7322 = vsel %vm7321, %v7314, %v7318
        %v7323 = vand.u32 2147483647, %v7296
        %vm7324 = vcmp.eq.f32.partialorder %v7323, 8.507059e+37
        %v7325 = vand.u32 %v7296, 2147483648
        %v7326 = vor.u32 1.1754944e-38, %v7325
        %v7327 = vsel %vm7324, %v7326, %v7322
        %v7328 = vmul.f32 1.0, %v7327
        %v7329 = vrcp.pop %v7297
        %v7330 = vmul.f32 %v7297, %v7329
        %v7331 = vsub.f32 1.0, %v7330
        %v7332 = vmul.f32 %v7329, %v7331
        %v7333 = vadd.f32 %v7329, %v7332
        %vm7334 = vweird.f32 %v7297
        %vm7335 = vweird.f32 %v7329
        %vm7336 = vmor %vm7334, %vm7335
        %v7337 = vsel %vm7336, %v7329, %v7333
        %v7338 = vand.u32 2147483647, %v7297
        %vm7339 = vcmp.eq.f32.partialorder %v7338, 8.507059e+37
        %v7340 = vand.u32 %v7297, 2147483648
        %v7341 = vor.u32 1.1754944e-38, %v7340
        %v7342 = vsel %vm7339, %v7341, %v7337
        %v7343 = vmul.f32 1.0, %v7342
        %v7344 = vrcp.pop %v7298
        %v7345 = vmul.f32 %v7298, %v7344
        %v7346 = vsub.f32 1.0, %v7345
        %v7347 = vmul.f32 %v7344, %v7346
        %v7348 = vadd.f32 %v7344, %v7347
        %vm7349 = vweird.f32 %v7298
        %vm7350 = vweird.f32 %v7344
        %vm7351 = vmor %vm7349, %vm7350
        %v7352 = vsel %vm7351, %v7344, %v7348
        %v7353 = vand.u32 2147483647, %v7298
        %vm7354 = vcmp.eq.f32.partialorder %v7353, 8.507059e+37
        %v7355 = vand.u32 %v7298, 2147483648
        %v7356 = vor.u32 1.1754944e-38, %v7355
        %v7357 = vsel %vm7354, %v7356, %v7352
        %v7358 = vmul.f32 1.0, %v7357
        %v7359 = vmul.f32 %v7313, 1.0614054
        %v7360 = vmul.f32 %v7328, 1.0614054
        %v7361 = vmul.f32 %v7343, 1.0614054
        %v7362 = vmul.f32 %v7358, 1.0614054
        %v7363 = vadd.f32 %v7359, -1.4531521
        %v7364 = vadd.f32 %v7360, -1.4531521
        %v7365 = vadd.f32 %v7361, -1.4531521
        %v7366 = vadd.f32 %v7362, -1.4531521
        %v7367 = vmul.f32 %v7363, %v7313
        %v7368 = vmul.f32 %v7364, %v7328
        %v7369 = vmul.f32 %v7365, %v7343
        %v7370 = vmul.f32 %v7366, %v7358
        %v7371 = vadd.f32 %v7367, 1.4214138
        %v7372 = vadd.f32 %v7368, 1.4214138
        %v7373 = vadd.f32 %v7369, 1.4214138
        %v7374 = vadd.f32 %v7370, 1.4214138
        %v7375 = vmul.f32 %v7371, %v7313
        %v7376 = vmul.f32 %v7372, %v7328
        %v7377 = vmul.f32 %v7373, %v7343
        %v7378 = vmul.f32 %v7374, %v7358
        %v7379 = vadd.f32 %v7375, -0.28449672
        %v7380 = vadd.f32 %v7376, -0.28449672
        %v7381 = vadd.f32 %v7377, -0.28449672
        %v7382 = vadd.f32 %v7378, -0.28449672
        %v7383 = vmul.f32 %v7379, %v7313
        %v7384 = vmul.f32 %v7380, %v7328
        %v7385 = vmul.f32 %v7381, %v7343
        %v7386 = vmul.f32 %v7382, %v7358
        %v7387 = vadd.f32 %v7383, 0.2548296
        %v7388 = vadd.f32 %v7384, 0.2548296
        %v7389 = vadd.f32 %v7385, 0.2548296
        %v7390 = vadd.f32 %v7386, 0.2548296
        %v7391 = vmul.f32 %v7387, %v7313
        %v7392 = vmul.f32 %v7388, %v7328
        %v7393 = vmul.f32 %v7389, %v7343
        %v7394 = vmul.f32 %v7390, %v7358
        %v7395 = vmul.f32 %v7287, %v7287
        %v7396 = vmul.f32 %v7288, %v7288
        %v7397 = vmul.f32 %v7289, %v7289
        %v7398 = vmul.f32 %v7290, %v7290
        %v7399 = vsub.f32 0.0, %v7395
        %v7400 = vsub.f32 0.0, %v7396
        %v7401 = vsub.f32 0.0, %v7397
        %v7402 = vsub.f32 0.0, %v7398
        %v7403 = vmul.f32 %v7399, 1.442695
        %v7404 = vpow.pop %v7403
        %v7405 = vmul.f32 %v7400, 1.442695
        %v7406 = vpow.pop %v7405
        %v7407 = vmul.f32 %v7401, 1.442695
        %v7408 = vpow.pop %v7407
        %v7409 = vmul.f32 %v7402, 1.442695
        %v7410 = vpow.pop %v7409
        %v7411 = vmul.f32 %v7391, %v7404
        %v7412 = vmul.f32 %v7392, %v7406
        %v7413 = vmul.f32 %v7393, %v7408
        %v7414 = vmul.f32 %v7394, %v7410
        %v7415 = vsub.f32 1.0, %v7411
        %v7416 = vsub.f32 1.0, %v7412
        %v7417 = vsub.f32 1.0, %v7413
        %v7418 = vsub.f32 1.0, %v7414
        %vm7419 = vcmp.ge.f32.partialorder %v7283, 0.0
        %vm7420 = vcmp.ge.f32.partialorder %v7284, 0.0
        %vm7421 = vcmp.ge.f32.partialorder %v7285, 0.0
        %vm7422 = vcmp.ge.f32.partialorder %v7286, 0.0
        %v7423 = vsub.f32 0.0, %v7415
        %v7424 = vsub.f32 0.0, %v7416
        %v7425 = vsub.f32 0.0, %v7417
        %v7426 = vsub.f32 0.0, %v7418
        %v7427 = vsel %vm7419, %v7415, %v7423
        %v7428 = vsel %vm7420, %v7416, %v7424
        %v7429 = vsel %vm7421, %v7417, %v7425
        %v7430 = vsel %vm7422, %v7418, %v7426
        %v7431 = vadd.f32 %v7427, 1.0
        %v7432 = vadd.f32 %v7428, 1.0
        %v7433 = vadd.f32 %v7429, 1.0
        %v7434 = vadd.f32 %v7430, 1.0
        %v7435 = vmul.f32 %v7279, %v7431
        %v7436 = vmul.f32 %v7280, %v7432
        %v7437 = vmul.f32 %v7281, %v7433
        %v7438 = vmul.f32 %v7282, %v7434
        %s7439 = scalar_lea.vmem %s35, 32
        %v7440 = vld [vmem:[%s7439] sm:$0xff]
        %v7441 = vld [vmem:[%s7439 + $0x8] sm:$0xff]
        %v7442 = vld [vmem:[%s7439 + $0x10] sm:$0xff]
        %v7443 = vld [vmem:[%s7439 + $0x18] sm:$0xff]
        %s7444 = scalar_lea.vmem %s37, 1
        %v7445 = vld [vmem:[%s7444] sm:$0x1]
        %v7447 = vperm.slane %v7445, 0
        %v7450 = vsel %vm910, %v7435, 0
        %v7453 = vsel %vm910, %v7436, 0
        %v7456 = vsel %vm910, %v7437, 0
        %v7459 = vsel %vm910, %v7438, 0
        %7461 = vmatpush.msra.mxu0 0.0
        %7462 = vmatpush.msra.mxu0 0.0
        %7463 = vmatpush.msra.mxu0 0.0
        %7464 = vmatpush.msra.mxu0 0.0
        %7465 = vmatpush.msra.mxu0 0.0
        %7466 = vmatpush.msra.mxu0 0.0
        %7467 = vmatpush.msra.mxu0 0.0
        %7468 = vmatpush.msra.mxu0 0.0
        %7469 = vmatpush.msra.mxu0 0.0
        %7470 = vmatpush.msra.mxu0 0.0
        %7471 = vmatpush.msra.mxu0 0.0
        %7472 = vmatpush.msra.mxu0 0.0
        %7473 = vmatpush.msra.mxu0 %v7443
        %7474 = vmatpush.msra.mxu0 %v7442
        %7475 = vmatpush.msra.mxu0 %v7441
        %7476 = vmatpush.msra.mxu0 %v7440
        %7477 = vmatmul.f32.gmra.mxu0 %v7450
        %v7478 = vpop.f32.mrf.mxu0
        %v7479 = vadd.f32 %v7447, %v7478
        %7480 = vmatmul.f32.gmra.mxu0 %v7453
        %v7481 = vpop.f32.mrf.mxu0
        %v7482 = vadd.f32 %v7447, %v7481
        %7483 = vmatmul.f32.gmra.mxu0 %v7456
        %v7484 = vpop.f32.mrf.mxu0
        %v7485 = vadd.f32 %v7447, %v7484
        %7486 = vmatmul.f32.gmra.mxu0 %v7459
        %v7487 = vpop.f32.mrf.mxu0
        %v7488 = vadd.f32 %v7447, %v7487
        %7489 = vdwg.mxu0
        %v7490 = vadd.f32 %v7118, %v7479
        %v7491 = vadd.f32 %v7119, %v7482
        %v7492 = vadd.f32 %v7120, %v7485
        %v7493 = vadd.f32 %v7121, %v7488
        %v7494 = vld [vmem:[%s43] sm:$0x1]
        %v7495 = vld [vmem:[%s45] sm:$0x1]
        %v7496 = vsel %vm910, %v7490, 0.0
        %7497 = vadd.xlane.f32.xlu0 %v7496
        %v7498 = vpop.xlane.xlu0 %7497
        %v7499 = vsel %vm910, %v7491, 0.0
        %7500 = vadd.xlane.f32.xlu0 %v7499
        %v7501 = vpop.xlane.xlu0 %7500
        %v7502 = vsel %vm910, %v7492, 0.0
        %7503 = vadd.xlane.f32.xlu0 %v7502
        %v7504 = vpop.xlane.xlu0 %7503
        %v7505 = vsel %vm910, %v7493, 0.0
        %7506 = vadd.xlane.f32.xlu0 %v7505
        %v7507 = vpop.xlane.xlu0 %7506
        %v7508 = vmul.f32 %v7498, %v929
        %v7509 = vmul.f32 %v7501, %v929
        %v7510 = vmul.f32 %v7504, %v929
        %v7511 = vmul.f32 %v7507, %v929
        %v7512 = vsub.f32 %v7490, %v7508
        %v7513 = vsub.f32 %v7491, %v7509
        %v7514 = vsub.f32 %v7492, %v7510
        %v7515 = vsub.f32 %v7493, %v7511
        %v7516 = vmul.f32 %v7512, %v7512
        %v7517 = vmul.f32 %v7513, %v7513
        %v7518 = vmul.f32 %v7514, %v7514
        %v7519 = vmul.f32 %v7515, %v7515
        %v7520 = vsel %vm910, %v7516, 0.0
        %7521 = vadd.xlane.f32.xlu0 %v7520
        %v7522 = vpop.xlane.xlu0 %7521
        %v7523 = vsel %vm910, %v7517, 0.0
        %7524 = vadd.xlane.f32.xlu0 %v7523
        %v7525 = vpop.xlane.xlu0 %7524
        %v7526 = vsel %vm910, %v7518, 0.0
        %7527 = vadd.xlane.f32.xlu0 %v7526
        %v7528 = vpop.xlane.xlu0 %7527
        %v7529 = vsel %vm910, %v7519, 0.0
        %7530 = vadd.xlane.f32.xlu0 %v7529
        %v7531 = vpop.xlane.xlu0 %7530
        %v7532 = vmul.f32 %v7522, %v929
        %v7533 = vmul.f32 %v7525, %v929
        %v7534 = vmul.f32 %v7528, %v929
        %v7535 = vmul.f32 %v7531, %v929
        %v7536 = vadd.f32 %v7532, 1e-05
        %v7537 = vadd.f32 %v7533, 1e-05
        %v7538 = vadd.f32 %v7534, 1e-05
        %v7539 = vadd.f32 %v7535, 1e-05
        %v7540 = vrsqrt.pop %v7536
        %v7541 = vmul.f32 %v7540, %v7536
        %v7542 = vmul.f32 %v7541, %v7540
        %v7543 = vmul.f32 0.5, %v7542
        %v7544 = vsub.f32 1.5, %v7543
        %v7545 = vmul.f32 %v7540, %v7544
        %vm7546 = vweird.f32 %v7536
        %vm7547 = vweird.f32 %v7540
        %vm7548 = vmor %vm7546, %vm7547
        %v7549 = vsel %vm7548, %v7540, %v7545
        %v7550 = vrsqrt.pop %v7537
        %v7551 = vmul.f32 %v7550, %v7537
        %v7552 = vmul.f32 %v7551, %v7550
        %v7553 = vmul.f32 0.5, %v7552
        %v7554 = vsub.f32 1.5, %v7553
        %v7555 = vmul.f32 %v7550, %v7554
        %vm7556 = vweird.f32 %v7537
        %vm7557 = vweird.f32 %v7550
        %vm7558 = vmor %vm7556, %vm7557
        %v7559 = vsel %vm7558, %v7550, %v7555
        %v7560 = vrsqrt.pop %v7538
        %v7561 = vmul.f32 %v7560, %v7538
        %v7562 = vmul.f32 %v7561, %v7560
        %v7563 = vmul.f32 0.5, %v7562
        %v7564 = vsub.f32 1.5, %v7563
        %v7565 = vmul.f32 %v7560, %v7564
        %vm7566 = vweird.f32 %v7538
        %vm7567 = vweird.f32 %v7560
        %vm7568 = vmor %vm7566, %vm7567
        %v7569 = vsel %vm7568, %v7560, %v7565
        %v7570 = vrsqrt.pop %v7539
        %v7571 = vmul.f32 %v7570, %v7539
        %v7572 = vmul.f32 %v7571, %v7570
        %v7573 = vmul.f32 0.5, %v7572
        %v7574 = vsub.f32 1.5, %v7573
        %v7575 = vmul.f32 %v7570, %v7574
        %vm7576 = vweird.f32 %v7539
        %vm7577 = vweird.f32 %v7570
        %vm7578 = vmor %vm7576, %vm7577
        %v7579 = vsel %vm7578, %v7570, %v7575
        %v7580 = vmul.f32 %v7512, %v7549
        %v7581 = vmul.f32 %v7513, %v7559
        %v7582 = vmul.f32 %v7514, %v7569
        %v7583 = vmul.f32 %v7515, %v7579
        %v7585 = vperm.slane %v7494, 0
        %v7587 = vmul.f32 %v7580, %v7585
        %v7588 = vmul.f32 %v7581, %v7585
        %v7589 = vmul.f32 %v7582, %v7585
        %v7590 = vmul.f32 %v7583, %v7585
        %v7592 = vperm.slane %v7495, 0
        %v7594 = vadd.f32 %v7587, %v7592
        %v7595 = vadd.f32 %v7588, %v7592
        %v7596 = vadd.f32 %v7589, %v7592
        %v7597 = vadd.f32 %v7590, %v7592
        %v7598 = vld [vmem:[%s47] sm:$0xff]
        %v7599 = vld [vmem:[%s47 + $0x8] sm:$0xff]
        %v7600 = vld [vmem:[%s47 + $0x10] sm:$0xff]
        %v7601 = vld [vmem:[%s47 + $0x18] sm:$0xff]
        %v7602 = vld [vmem:[%s49] sm:$0x1]
        %v7604 = vperm.slane %v7602, 0
        %v7607 = vsel %vm910, %v7594, 0
        %v7610 = vsel %vm910, %v7595, 0
        %v7613 = vsel %vm910, %v7596, 0
        %v7616 = vsel %vm910, %v7597, 0
        %7618 = vmatpush.msra.mxu0 0.0
        %7619 = vmatpush.msra.mxu0 0.0
        %7620 = vmatpush.msra.mxu0 0.0
        %7621 = vmatpush.msra.mxu0 0.0
        %7622 = vmatpush.msra.mxu0 0.0
        %7623 = vmatpush.msra.mxu0 0.0
        %7624 = vmatpush.msra.mxu0 0.0
        %7625 = vmatpush.msra.mxu0 0.0
        %7626 = vmatpush.msra.mxu0 0.0
        %7627 = vmatpush.msra.mxu0 0.0
        %7628 = vmatpush.msra.mxu0 0.0
        %7629 = vmatpush.msra.mxu0 0.0
        %7630 = vmatpush.msra.mxu0 %v7601
        %7631 = vmatpush.msra.mxu0 %v7600
        %7632 = vmatpush.msra.mxu0 %v7599
        %7633 = vmatpush.msra.mxu0 %v7598
        %7634 = vmatmul.f32.gmra.mxu0 %v7607
        %v7635 = vpop.f32.mrf.mxu0
        %v7636 = vadd.f32 %v7604, %v7635
        %7637 = vmatmul.f32.gmra.mxu0 %v7610
        %v7638 = vpop.f32.mrf.mxu0
        %v7639 = vadd.f32 %v7604, %v7638
        %7640 = vmatmul.f32.gmra.mxu0 %v7613
        %v7641 = vpop.f32.mrf.mxu0
        %v7642 = vadd.f32 %v7604, %v7641
        %7643 = vmatmul.f32.gmra.mxu0 %v7616
        %v7644 = vpop.f32.mrf.mxu0
        %v7645 = vadd.f32 %v7604, %v7644
        %7646 = vdwg.mxu0
        %v7647 = vmul.f32 %v7636, 0.5
        %v7648 = vmul.f32 %v7639, 0.5
        %v7649 = vmul.f32 %v7642, 0.5
        %v7650 = vmul.f32 %v7645, 0.5
        %v7651 = vmul.f32 %v7636, 0.70710677
        %v7652 = vmul.f32 %v7639, 0.70710677
        %v7653 = vmul.f32 %v7642, 0.70710677
        %v7654 = vmul.f32 %v7645, 0.70710677
        %v7655 = vand.u32 2147483647, %v7651
        %v7656 = vand.u32 2147483647, %v7652
        %v7657 = vand.u32 2147483647, %v7653
        %v7658 = vand.u32 2147483647, %v7654
        %v7659 = vmul.f32 %v7655, 0.3275911
        %v7660 = vmul.f32 %v7656, 0.3275911
        %v7661 = vmul.f32 %v7657, 0.3275911
        %v7662 = vmul.f32 %v7658, 0.3275911
        %v7663 = vadd.f32 %v7659, 1.0
        %v7664 = vadd.f32 %v7660, 1.0
        %v7665 = vadd.f32 %v7661, 1.0
        %v7666 = vadd.f32 %v7662, 1.0
        %v7667 = vrcp.pop %v7663
        %v7668 = vmul.f32 %v7663, %v7667
        %v7669 = vsub.f32 1.0, %v7668
        %v7670 = vmul.f32 %v7667, %v7669
        %v7671 = vadd.f32 %v7667, %v7670
        %vm7672 = vweird.f32 %v7663
        %vm7673 = vweird.f32 %v7667
        %vm7674 = vmor %vm7672, %vm7673
        %v7675 = vsel %vm7674, %v7667, %v7671
        %v7676 = vand.u32 2147483647, %v7663
        %vm7677 = vcmp.eq.f32.partialorder %v7676, 8.507059e+37
        %v7678 = vand.u32 %v7663, 2147483648
        %v7679 = vor.u32 1.1754944e-38, %v7678
        %v7680 = vsel %vm7677, %v7679, %v7675
        %v7681 = vmul.f32 1.0, %v7680
        %v7682 = vrcp.pop %v7664
        %v7683 = vmul.f32 %v7664, %v7682
        %v7684 = vsub.f32 1.0, %v7683
        %v7685 = vmul.f32 %v7682, %v7684
        %v7686 = vadd.f32 %v7682, %v7685
        %vm7687 = vweird.f32 %v7664
        %vm7688 = vweird.f32 %v7682
        %vm7689 = vmor %vm7687, %vm7688
        %v7690 = vsel %vm7689, %v7682, %v7686
        %v7691 = vand.u32 2147483647, %v7664
        %vm7692 = vcmp.eq.f32.partialorder %v7691, 8.507059e+37
        %v7693 = vand.u32 %v7664, 2147483648
        %v7694 = vor.u32 1.1754944e-38, %v7693
        %v7695 = vsel %vm7692, %v7694, %v7690
        %v7696 = vmul.f32 1.0, %v7695
        %v7697 = vrcp.pop %v7665
        %v7698 = vmul.f32 %v7665, %v7697
        %v7699 = vsub.f32 1.0, %v7698
        %v7700 = vmul.f32 %v7697, %v7699
        %v7701 = vadd.f32 %v7697, %v7700
        %vm7702 = vweird.f32 %v7665
        %vm7703 = vweird.f32 %v7697
        %vm7704 = vmor %vm7702, %vm7703
        %v7705 = vsel %vm7704, %v7697, %v7701
        %v7706 = vand.u32 2147483647, %v7665
        %vm7707 = vcmp.eq.f32.partialorder %v7706, 8.507059e+37
        %v7708 = vand.u32 %v7665, 2147483648
        %v7709 = vor.u32 1.1754944e-38, %v7708
        %v7710 = vsel %vm7707, %v7709, %v7705
        %v7711 = vmul.f32 1.0, %v7710
        %v7712 = vrcp.pop %v7666
        %v7713 = vmul.f32 %v7666, %v7712
        %v7714 = vsub.f32 1.0, %v7713
        %v7715 = vmul.f32 %v7712, %v7714
        %v7716 = vadd.f32 %v7712, %v7715
        %vm7717 = vweird.f32 %v7666
        %vm7718 = vweird.f32 %v7712
        %vm7719 = vmor %vm7717, %vm7718
        %v7720 = vsel %vm7719, %v7712, %v7716
        %v7721 = vand.u32 2147483647, %v7666
        %vm7722 = vcmp.eq.f32.partialorder %v7721, 8.507059e+37
        %v7723 = vand.u32 %v7666, 2147483648
        %v7724 = vor.u32 1.1754944e-38, %v7723
        %v7725 = vsel %vm7722, %v7724, %v7720
        %v7726 = vmul.f32 1.0, %v7725
        %v7727 = vmul.f32 %v7681, 1.0614054
        %v7728 = vmul.f32 %v7696, 1.0614054
        %v7729 = vmul.f32 %v7711, 1.0614054
        %v7730 = vmul.f32 %v7726, 1.0614054
        %v7731 = vadd.f32 %v7727, -1.4531521
        %v7732 = vadd.f32 %v7728, -1.4531521
        %v7733 = vadd.f32 %v7729, -1.4531521
        %v7734 = vadd.f32 %v7730, -1.4531521
        %v7735 = vmul.f32 %v7731, %v7681
        %v7736 = vmul.f32 %v7732, %v7696
        %v7737 = vmul.f32 %v7733, %v7711
        %v7738 = vmul.f32 %v7734, %v7726
        %v7739 = vadd.f32 %v7735, 1.4214138
        %v7740 = vadd.f32 %v7736, 1.4214138
        %v7741 = vadd.f32 %v7737, 1.4214138
        %v7742 = vadd.f32 %v7738, 1.4214138
        %v7743 = vmul.f32 %v7739, %v7681
        %v7744 = vmul.f32 %v7740, %v7696
        %v7745 = vmul.f32 %v7741, %v7711
        %v7746 = vmul.f32 %v7742, %v7726
        %v7747 = vadd.f32 %v7743, -0.28449672
        %v7748 = vadd.f32 %v7744, -0.28449672
        %v7749 = vadd.f32 %v7745, -0.28449672
        %v7750 = vadd.f32 %v7746, -0.28449672
        %v7751 = vmul.f32 %v7747, %v7681
        %v7752 = vmul.f32 %v7748, %v7696
        %v7753 = vmul.f32 %v7749, %v7711
        %v7754 = vmul.f32 %v7750, %v7726
        %v7755 = vadd.f32 %v7751, 0.2548296
        %v7756 = vadd.f32 %v7752, 0.2548296
        %v7757 = vadd.f32 %v7753, 0.2548296
        %v7758 = vadd.f32 %v7754, 0.2548296
        %v7759 = vmul.f32 %v7755, %v7681
        %v7760 = vmul.f32 %v7756, %v7696
        %v7761 = vmul.f32 %v7757, %v7711
        %v7762 = vmul.f32 %v7758, %v7726
        %v7763 = vmul.f32 %v7655, %v7655
        %v7764 = vmul.f32 %v7656, %v7656
        %v7765 = vmul.f32 %v7657, %v7657
        %v7766 = vmul.f32 %v7658, %v7658
        %v7767 = vsub.f32 0.0, %v7763
        %v7768 = vsub.f32 0.0, %v7764
        %v7769 = vsub.f32 0.0, %v7765
        %v7770 = vsub.f32 0.0, %v7766
        %v7771 = vmul.f32 %v7767, 1.442695
        %v7772 = vpow.pop %v7771
        %v7773 = vmul.f32 %v7768, 1.442695
        %v7774 = vpow.pop %v7773
        %v7775 = vmul.f32 %v7769, 1.442695
        %v7776 = vpow.pop %v7775
        %v7777 = vmul.f32 %v7770, 1.442695
        %v7778 = vpow.pop %v7777
        %v7779 = vmul.f32 %v7759, %v7772
        %v7780 = vmul.f32 %v7760, %v7774
        %v7781 = vmul.f32 %v7761, %v7776
        %v7782 = vmul.f32 %v7762, %v7778
        %v7783 = vsub.f32 1.0, %v7779
        %v7784 = vsub.f32 1.0, %v7780
        %v7785 = vsub.f32 1.0, %v7781
        %v7786 = vsub.f32 1.0, %v7782
        %vm7787 = vcmp.ge.f32.partialorder %v7651, 0.0
        %vm7788 = vcmp.ge.f32.partialorder %v7652, 0.0
        %vm7789 = vcmp.ge.f32.partialorder %v7653, 0.0
        %vm7790 = vcmp.ge.f32.partialorder %v7654, 0.0
        %v7791 = vsub.f32 0.0, %v7783
        %v7792 = vsub.f32 0.0, %v7784
        %v7793 = vsub.f32 0.0, %v7785
        %v7794 = vsub.f32 0.0, %v7786
        %v7795 = vsel %vm7787, %v7783, %v7791
        %v7796 = vsel %vm7788, %v7784, %v7792
        %v7797 = vsel %vm7789, %v7785, %v7793
        %v7798 = vsel %vm7790, %v7786, %v7794
        %v7799 = vadd.f32 %v7795, 1.0
        %v7800 = vadd.f32 %v7796, 1.0
        %v7801 = vadd.f32 %v7797, 1.0
        %v7802 = vadd.f32 %v7798, 1.0
        %v7803 = vmul.f32 %v7647, %v7799
        %v7804 = vmul.f32 %v7648, %v7800
        %v7805 = vmul.f32 %v7649, %v7801
        %v7806 = vmul.f32 %v7650, %v7802
        %v7807 = vld [vmem:[%s51] sm:$0x1]
        %v7808 = vld [vmem:[%s53] sm:$0x1]
        %v7809 = vsel %vm910, %v7803, 0.0
        %7810 = vadd.xlane.f32.xlu0 %v7809
        %v7811 = vpop.xlane.xlu0 %7810
        %v7812 = vsel %vm910, %v7804, 0.0
        %7813 = vadd.xlane.f32.xlu0 %v7812
        %v7814 = vpop.xlane.xlu0 %7813
        %v7815 = vsel %vm910, %v7805, 0.0
        %7816 = vadd.xlane.f32.xlu0 %v7815
        %v7817 = vpop.xlane.xlu0 %7816
        %v7818 = vsel %vm910, %v7806, 0.0
        %7819 = vadd.xlane.f32.xlu0 %v7818
        %v7820 = vpop.xlane.xlu0 %7819
        %v7821 = vmul.f32 %v7811, %v929
        %v7822 = vmul.f32 %v7814, %v929
        %v7823 = vmul.f32 %v7817, %v929
        %v7824 = vmul.f32 %v7820, %v929
        %v7825 = vsub.f32 %v7803, %v7821
        %v7826 = vsub.f32 %v7804, %v7822
        %v7827 = vsub.f32 %v7805, %v7823
        %v7828 = vsub.f32 %v7806, %v7824
        %v7829 = vmul.f32 %v7825, %v7825
        %v7830 = vmul.f32 %v7826, %v7826
        %v7831 = vmul.f32 %v7827, %v7827
        %v7832 = vmul.f32 %v7828, %v7828
        %v7833 = vsel %vm910, %v7829, 0.0
        %7834 = vadd.xlane.f32.xlu0 %v7833
        %v7835 = vpop.xlane.xlu0 %7834
        %v7836 = vsel %vm910, %v7830, 0.0
        %7837 = vadd.xlane.f32.xlu0 %v7836
        %v7838 = vpop.xlane.xlu0 %7837
        %v7839 = vsel %vm910, %v7831, 0.0
        %7840 = vadd.xlane.f32.xlu0 %v7839
        %v7841 = vpop.xlane.xlu0 %7840
        %v7842 = vsel %vm910, %v7832, 0.0
        %7843 = vadd.xlane.f32.xlu0 %v7842
        %v7844 = vpop.xlane.xlu0 %7843
        %v7845 = vmul.f32 %v7835, %v929
        %v7846 = vmul.f32 %v7838, %v929
        %v7847 = vmul.f32 %v7841, %v929
        %v7848 = vmul.f32 %v7844, %v929
        %v7849 = vadd.f32 %v7845, 1e-05
        %v7850 = vadd.f32 %v7846, 1e-05
        %v7851 = vadd.f32 %v7847, 1e-05
        %v7852 = vadd.f32 %v7848, 1e-05
        %v7853 = vrsqrt.pop %v7849
        %v7854 = vmul.f32 %v7853, %v7849
        %v7855 = vmul.f32 %v7854, %v7853
        %v7856 = vmul.f32 0.5, %v7855
        %v7857 = vsub.f32 1.5, %v7856
        %v7858 = vmul.f32 %v7853, %v7857
        %vm7859 = vweird.f32 %v7849
        %vm7860 = vweird.f32 %v7853
        %vm7861 = vmor %vm7859, %vm7860
        %v7862 = vsel %vm7861, %v7853, %v7858
        %v7863 = vrsqrt.pop %v7850
        %v7864 = vmul.f32 %v7863, %v7850
        %v7865 = vmul.f32 %v7864, %v7863
        %v7866 = vmul.f32 0.5, %v7865
        %v7867 = vsub.f32 1.5, %v7866
        %v7868 = vmul.f32 %v7863, %v7867
        %vm7869 = vweird.f32 %v7850
        %vm7870 = vweird.f32 %v7863
        %vm7871 = vmor %vm7869, %vm7870
        %v7872 = vsel %vm7871, %v7863, %v7868
        %v7873 = vrsqrt.pop %v7851
        %v7874 = vmul.f32 %v7873, %v7851
        %v7875 = vmul.f32 %v7874, %v7873
        %v7876 = vmul.f32 0.5, %v7875
        %v7877 = vsub.f32 1.5, %v7876
        %v7878 = vmul.f32 %v7873, %v7877
        %vm7879 = vweird.f32 %v7851
        %vm7880 = vweird.f32 %v7873
        %vm7881 = vmor %vm7879, %vm7880
        %v7882 = vsel %vm7881, %v7873, %v7878
        %v7883 = vrsqrt.pop %v7852
        %v7884 = vmul.f32 %v7883, %v7852
        %v7885 = vmul.f32 %v7884, %v7883
        %v7886 = vmul.f32 0.5, %v7885
        %v7887 = vsub.f32 1.5, %v7886
        %v7888 = vmul.f32 %v7883, %v7887
        %vm7889 = vweird.f32 %v7852
        %vm7890 = vweird.f32 %v7883
        %vm7891 = vmor %vm7889, %vm7890
        %v7892 = vsel %vm7891, %v7883, %v7888
        %v7893 = vmul.f32 %v7825, %v7862
        %v7894 = vmul.f32 %v7826, %v7872
        %v7895 = vmul.f32 %v7827, %v7882
        %v7896 = vmul.f32 %v7828, %v7892
        %v7898 = vperm.slane %v7807, 0
        %v7900 = vmul.f32 %v7893, %v7898
        %v7901 = vmul.f32 %v7894, %v7898
        %v7902 = vmul.f32 %v7895, %v7898
        %v7903 = vmul.f32 %v7896, %v7898
        %v7905 = vperm.slane %v7808, 0
        %v7907 = vadd.f32 %v7900, %v7905
        %v7908 = vadd.f32 %v7901, %v7905
        %v7909 = vadd.f32 %v7902, %v7905
        %v7910 = vadd.f32 %v7903, %v7905
        %v7911 = vld [vmem:[%s55] sm:$0xff]
        %v7912 = vld [vmem:[%s55 + $0x8] sm:$0xff]
        %v7913 = vld [vmem:[%s55 + $0x10] sm:$0xff]
        %v7914 = vld [vmem:[%s55 + $0x18] sm:$0xff]
        %v7915 = vld [vmem:[%s57] sm:$0x1]
        %v7917 = vperm.slane %v7915, 0
        %v7920 = vsel %vm910, %v7907, 0
        %v7923 = vsel %vm910, %v7908, 0
        %v7926 = vsel %vm910, %v7909, 0
        %v7929 = vsel %vm910, %v7910, 0
        %7931 = vmatpush.msra.mxu0 0.0
        %7932 = vmatpush.msra.mxu0 0.0
        %7933 = vmatpush.msra.mxu0 0.0
        %7934 = vmatpush.msra.mxu0 0.0
        %7935 = vmatpush.msra.mxu0 0.0
        %7936 = vmatpush.msra.mxu0 0.0
        %7937 = vmatpush.msra.mxu0 0.0
        %7938 = vmatpush.msra.mxu0 0.0
        %7939 = vmatpush.msra.mxu0 0.0
        %7940 = vmatpush.msra.mxu0 0.0
        %7941 = vmatpush.msra.mxu0 0.0
        %7942 = vmatpush.msra.mxu0 0.0
        %7943 = vmatpush.msra.mxu0 %v7914
        %7944 = vmatpush.msra.mxu0 %v7913
        %7945 = vmatpush.msra.mxu0 %v7912
        %7946 = vmatpush.msra.mxu0 %v7911
        %7947 = vmatmul.f32.gmra.mxu0 %v7920
        %v7948 = vpop.f32.mrf.mxu0
        %v7949 = vadd.f32 %v7917, %v7948
        %7950 = vmatmul.f32.gmra.mxu0 %v7923
        %v7951 = vpop.f32.mrf.mxu0
        %v7952 = vadd.f32 %v7917, %v7951
        %7953 = vmatmul.f32.gmra.mxu0 %v7926
        %v7954 = vpop.f32.mrf.mxu0
        %v7955 = vadd.f32 %v7917, %v7954
        %7956 = vmatmul.f32.gmra.mxu0 %v7929
        %v7957 = vpop.f32.mrf.mxu0
        %v7958 = vadd.f32 %v7917, %v7957
        %7959 = vdwg.mxu0
        %7960 = vst [vmem:[%s896] sm:$0xff] %v7949
        %7961 = vst [vmem:[%s896 + $0x8] sm:$0xff] %v7952
        %7962 = vst [vmem:[%s896 + $0x10] sm:$0xff] %v7955
        %7963 = vst [vmem:[%s896 + $0x18] sm:$0xff] %v7958
        %s7964 = sand.u32 %s695, 1
        %s7965 = scalar_lea.sflag [#allocation5], %s7964
        %s7966 = sand.u32 %s695, 1
        %s7967 = smul.addr %s7966, 32
        %s7968 = scalar_lea.vmem [#allocation4], %s7967
        // Predicated region
        $region137: #{msa_transf_forward.1} parent=135 // pred_check
          %p7969 = pneg %p705
        $region138: #{msa_transf_forward.1} parent=135 // pred_check_branch
          %7971 = sbr.rel (%p7969) target = $region140
        $region139: #{msa_transf_forward.1} parent=135 // pred_region
          %s7972 = smul.u32 4, %s73
          %7974 = vsyncadd %s7965, 0
          %s7975 = smul.addr %s7972, 8
          %s7976 = scalar_lea.hbm %s59, %s7975
          %s7977 = sshll.u32 %s7968, 4
          %s7978 = int_to_ptr.vmem [resolvable:$true] %s7977
          %s7979 = sshll.u32 %s7976, 4
          %s7980 = int_to_ptr.hbm [resolvable:$true] %s7979
          %7985 = dma.vmem_to_hbm [thread:$0]  %s7978, 512, %s7980, %s7965, 128, 128, 8
        $region140: #{msa_transf_forward.1} parent=135 // pred_fallthru
          _
      $region136: #{msa_transf_forward.1} parent=5 // pred_fallthru
        _
      %p7986 = scmp.le.s32.totalorder 2, %s68
      // Predicated region
      $region141: #{msa_transf_forward.1} parent=5 // pred_check
        %p7987 = pneg %p7986
      $region142: #{msa_transf_forward.1} parent=5 // pred_check_branch
        %7989 = sbr.rel (%p7987) target = $region144
      $region143: #{msa_transf_forward.1} parent=5 // pred_region
        %s7990 = ssub.s32 %s68, 2
        // Predicated region
        $region145: #{msa_transf_forward.1} parent=143 // pred_check
          %p7991 = pneg %p711
        $region146: #{msa_transf_forward.1} parent=143 // pred_check_branch
          %7993 = sbr.rel (%p7991) target = $region148
        $region147: #{msa_transf_forward.1} parent=143 // pred_region
          %s7994 = sand.u32 %s696, 1
          %s7995 = scalar_lea.sflag [#allocation5], %s7994
          %s7996 = sand.u32 %s696, 1
          %s7997 = smul.addr %s7996, 32
          %s7998 = scalar_lea.vmem [#allocation4], %s7997
          %8000 = dma.done %s7995, 512
        $region148: #{msa_transf_forward.1} parent=143 // pred_fallthru
          _
      $region144: #{msa_transf_forward.1} parent=5 // pred_fallthru
        _
    $region6: #{msa_transf_forward.1} parent=1 // loop_footer
      %s72 = sadd.s32 1, %s68
    $region7: #{msa_transf_forward.1} parent=1 // loop_footer_branch
      %67 = sbr.rel target = $region3
    $region8: #{msa_transf_forward.1} parent=1 // loop_exit
      _
    %8001 = vsyncpa [#allocation5], 1
    %s8002 = scalar_lea.sflag [#allocation5], 1
    %8003 = vsyncpa %s8002, 1

</llo_original>
